<compile_context>
chip_gen: v7x
topology: tpu7x:2x2x1
jax: 0.10.0
libtpu: 0.0.40
codegen_flags: <defaults>
</compile_context>

<pallas_src>
from functools import partial

import numpy as np

import jax
import jax.numpy as jnp
from jax import lax
from jax.experimental import pallas as pl
from jax.experimental.pallas import tpu as pltpu


# ----------------------------------------------------------------------------
# Pallas kernel: one (T_BLK, B_BLK) tile per grid iteration.
# ----------------------------------------------------------------------------
def seq_layer_kernel(
    # inputs
    x_ref,        # (T_BLK, B_BLK, D)  raw inputs for this block
    h0_ref,       # (2, B_BLK, H)      initial hidden state [re; im], f32
    lam_ref,      # (2, H)             diag_lambda [re; im], f32
    lnw_ref,      # (1, D)             LayerNorm weight
    lnb_ref,      # (1, D)             LayerNorm bias
    d_ref,        # (1, D)             D vector
    wbre_ref,     # (D, H)             (B_re * gamma)^T
    wbim_ref,     # (D, H)             (B_im * gamma)^T
    wcre_ref,     # (H, D)             C_re^T
    wcimn_ref,    # (H, D)             -C_im^T
    w1t_ref,      # (D, D)             W1^T
    w2t_ref,      # (D, D)             W2^T
    b1_ref,       # (1, D)             b1
    b2_ref,       # (1, D)             b2
    # outputs
    out_ref,      # (T_BLK, B_BLK, D)
    hout_ref,     # (2, B_BLK, H)      final hidden state [re; im], f32
    # scratch
    h_carry,      # (2, B_BLK, H) f32  hidden state carried across time blocks
    hre_seq,      # (T_BLK, B_BLK, H)  Bu_re, then h_re per step (f32 or bf16)
    him_seq,      # (T_BLK, B_BLK, H)  Bu_im, then h_im per step (f32 or bf16)
    *, approx_gelu: bool,
):
    t_idx = pl.program_id(1)

    # Initialize the carried hidden state at the first time block of each
    # batch block (the batch axis is the outer grid axis).
    @pl.when(t_idx == 0)
    def _():
        h_carry[...] = h0_ref[...].astype(jnp.float32)

    TB, BB, D = x_ref.shape
    H = h_carry.shape[-1]
    M = TB * BB
    wdt = wbre_ref.dtype  # MXU operand dtype (bf16 or f32)

    # --- LayerNorm over features, eps = 1e-5 (torch default) ----------------
    x32 = x_ref[...].astype(jnp.float32).reshape(M, D)
    mean = jnp.mean(x32, axis=-1, keepdims=True)
    var = jnp.mean((x32 - mean) ** 2, axis=-1, keepdims=True)
    u = (x32 - mean) * lax.rsqrt(var + 1e-5) * lnw_ref[...] + lnb_ref[...]  # (M, D) f32
    # x32 is dead from here on; the residual re-reads x_ref at the end.

    # --- B projection: two dots (re / im), no lane-half slices ---------------
    um = u.astype(wdt)
    bu_re = jnp.dot(um, wbre_ref[...], preferred_element_type=jnp.float32)  # (M, H)
    bu_im = jnp.dot(um, wbim_ref[...], preferred_element_type=jnp.float32)  # (M, H)
    hre_seq[...] = bu_re.reshape(TB, BB, H).astype(hre_seq.dtype)
    him_seq[...] = bu_im.reshape(TB, BB, H).astype(him_seq.dtype)

    # --- serial LRU recurrence over the time block (elementwise only) --------
    # Broadcasts hoisted out of the loop.
    lam_re = jnp.broadcast_to(lam_ref[0:1, :], (BB, H))
    lam_im = jnp.broadcast_to(lam_ref[1:2, :], (BB, H))

    def step(t, carry):
        h_re, h_im = carry                              # f32 vregs
        b_re = hre_seq[t].astype(jnp.float32)
        b_im = him_seq[t].astype(jnp.float32)
        n_re = h_re * lam_re - h_im * lam_im + b_re
        n_im = h_re * lam_im + h_im * lam_re + b_im
        hre_seq[t] = n_re.astype(hre_seq.dtype)
        him_seq[t] = n_im.astype(him_seq.dtype)
        return (n_re, n_im)

    h_re, h_im = lax.fori_loop(0, TB, step, (h_carry[0], h_carry[1]),
                               unroll=min(8, TB))
    h_carry[0] = h_re
    h_carry[1] = h_im

    # --- y = Re[C @ h] + D * u : two accumulating dots (no hcat concat) ------
    y = jnp.dot(hre_seq[...].reshape(M, H), wcre_ref[...],
                preferred_element_type=jnp.float32)
    y = y + jnp.dot(him_seq[...].reshape(M, H), wcimn_ref[...],
                    preferred_element_type=jnp.float32)
    y = y + d_ref[...] * u

    # --- GELU (exact erf form by default, matching torch nn.GELU) ------------
    if approx_gelu:
        g = jax.nn.gelu(y, approximate=True)   # tanh path -> EUP slot
    else:
        g = 0.5 * y * (1.0 + lax.erf(y * jnp.float32(0.7071067811865476)))

    # --- GLU: out1 * sigmoid(out2) as two dots (no lane-half slices) ---------
    gm = g.astype(wdt)
    o1 = jnp.dot(gm, w1t_ref[...], preferred_element_type=jnp.float32) + b1_ref[...]
    o2 = jnp.dot(gm, w2t_ref[...], preferred_element_type=jnp.float32) + b2_ref[...]
    glu = o1 * jax.nn.sigmoid(o2)

    # --- residual: re-read the (already resident) input block ----------------
    out_ref[...] = (x_ref[...].astype(jnp.float32)
                    + glu.reshape(TB, BB, D)).astype(out_ref.dtype)

    # Emit the final hidden state on the last time block.
    @pl.when(t_idx == pl.num_programs(1) - 1)
    def _():
        hout_ref[...] = h_carry[...].astype(hout_ref.dtype)


# ----------------------------------------------------------------------------
# Wrapper helpers.
# ----------------------------------------------------------------------------
def _largest_divisor_le(n, target):
    d = min(max(1, int(target)), n)
    while n % d != 0:
        d -= 1
    return d


def _vmem_capacity_bytes():
    # Conservative default: v7x per-core VMEM (smallest current generation).
    cap = 64 << 20
    try:
        cap = int(pltpu.get_tpu_info().vmem_capacity_bytes)
    except Exception:
        pass
    return cap


def _vmem_footprint_bytes(t_blk, b_blk, D, H, in_bytes, seq_bytes,
                          weight_bytes, single_buffer_weights):
    m = t_blk * b_blk
    io = 2 * 2 * m * D * in_bytes                 # x + out blocks, double-buffered
    h_io = 2 * 2 * 2 * b_blk * H * 4              # h0 in + h out blocks (f32)
    scratch = 2 * b_blk * H * 4 + 2 * m * H * seq_bytes
    interm = m * (4 * D + 2 * H) * 4              # rough peak f32 intermediates
    weights = weight_bytes * (1 if single_buffer_weights else 2)
    return io + h_io + scratch + interm + weights


# ----------------------------------------------------------------------------
# Wrapper: parameter preprocessing in plain JAX + pallas_call.
# ----------------------------------------------------------------------------
def sequence_layer_pallas(
    inputs, h0_re, h0_im, params, *,
    t_block=128, b_block=None,
    weight_dtype=jnp.bfloat16,
    approx_gelu=False,
    single_buffer_weights=True,
    vmem_limit_bytes=None,
):
    T, B, D = inputs.shape
    H = h0_re.shape[-1]

    # --- batch tiling: split the batch in two (multiple of 8) so v7x's second
    # TensorCore gets its own hidden-state slice; harmless on v5e/v6e. --------
    if b_block is None:
        b_blk = B // 2 if (B % 16 == 0) else B
    else:
        b_blk = _largest_divisor_le(B, b_block)
        if b_blk != B and b_blk % 8 != 0:          # sublane constraint on partial blocks
            b_blk = B

    in_bytes = jnp.dtype(inputs.dtype).itemsize
    w_elem = jnp.dtype(weight_dtype).itemsize

    # h-sequence scratch dtype: bf16 in the bf16-weight path, but only when the
    # batch block keeps the (packed-sublane) layout tile-clean; otherwise f32.
    if w_elem == 2 and (b_blk % 16 == 0):
        seq_dtype = weight_dtype
    else:
        seq_dtype = jnp.float32
    seq_bytes = jnp.dtype(seq_dtype).itemsize

    weight_bytes = (2 * H * 4                       # lambda
                    + 5 * D * 4                     # ln_w, ln_b, D, b1, b2
                    + (2 * D * H + 2 * H * D + 2 * D * D) * w_elem)

    # --- time tiling sized against the smallest-VMEM generation --------------
    cap = _vmem_capacity_bytes()
    budget = int(0.75 * cap)
    t_blk = _largest_divisor_le(T, t_block)
    while t_blk > 1 and _vmem_footprint_bytes(
            t_blk, b_blk, D, H, in_bytes, seq_bytes, weight_bytes,
            single_buffer_weights) > budget:
        t_blk = _largest_divisor_le(T, t_blk - 1)

    if vmem_limit_bytes is None:
        fp = _vmem_footprint_bytes(t_blk, b_blk, D, H, in_bytes, seq_bytes,
                                   weight_bytes, single_buffer_weights)
        vmem_limit_bytes = int(min(max(2 * fp, 32 << 20), cap))

    # ---- precompute effective (real-split) parameters -----------------------
    nu_log, theta_log, gamma_log = params["nu_log"], params["theta_log"], params["gamma_log"]
    lam_mag = jnp.exp(-jnp.exp(nu_log))                     # (H,)
    lam_ang = jnp.exp(theta_log)                            # (H,)
    lam = jnp.stack([lam_mag * jnp.cos(lam_ang),
                     lam_mag * jnp.sin(lam_ang)], axis=0).astype(jnp.float32)  # (2, H)

    gamma = jnp.exp(gamma_log)[:, None]                     # (H, 1)
    wb_re = (params["B_re"] * gamma).T.astype(weight_dtype)     # (D, H)
    wb_im = (params["B_im"] * gamma).T.astype(weight_dtype)     # (D, H)
    wc_re = params["C_re"].T.astype(weight_dtype)               # (H, D)
    wc_imn = (-params["C_im"].T).astype(weight_dtype)           # (H, D)
    w1t = params["W1"].T.astype(weight_dtype)                   # (D, D)
    w2t = params["W2"].T.astype(weight_dtype)                   # (D, D)
    b1 = params["b1"].reshape(1, D).astype(jnp.float32)
    b2 = params["b2"].reshape(1, D).astype(jnp.float32)
    d_vec = params["D"].reshape(1, D).astype(jnp.float32)
    ln_w = params["ln_w"].reshape(1, D).astype(jnp.float32)
    ln_b = params["ln_b"].reshape(1, D).astype(jnp.float32)
    h0 = jnp.stack([h0_re, h0_im], axis=0).astype(jnp.float32)  # (2, B, H)

    def build(single_buf):
        def const_spec(shape):
            kw = {"pipeline_mode": pl.Buffered(1)} if single_buf else {}
            return pl.BlockSpec(shape, lambda b, t: (0,) * len(shape), **kw)

        h0_kw = {"pipeline_mode": pl.Buffered(1)} if single_buf else {}

        # NOTE(correctness): grid must stay (batch, time) with time INNERMOST
        # and "arbitrary" — the h_carry scratch relies on it.
        grid_spec = pltpu.PrefetchScalarGridSpec(
            num_scalar_prefetch=0,
            grid=(B // b_blk, T // t_blk),
            in_specs=[
                pl.BlockSpec((t_blk, b_blk, D), lambda b, t: (t, b, 0)),        # x
                pl.BlockSpec((2, b_blk, H), lambda b, t: (0, b, 0), **h0_kw),   # h0
                const_spec((2, H)),                                             # lambda
                const_spec((1, D)), const_spec((1, D)),                         # LN w/b
                const_spec((1, D)),                                             # D vector
                const_spec((D, H)), const_spec((D, H)),                         # B_norm^T re/im
                const_spec((H, D)), const_spec((H, D)),                         # C_re^T / -C_im^T
                const_spec((D, D)), const_spec((D, D)),                         # W1^T / W2^T
                const_spec((1, D)), const_spec((1, D)),                         # b1 / b2
            ],
            out_specs=[
                pl.BlockSpec((t_blk, b_blk, D), lambda b, t: (t, b, 0)),        # outputs
                pl.BlockSpec((2, b_blk, H), lambda b, t: (0, b, 0)),            # final hidden
            ],
            scratch_shapes=[
                pltpu.VMEM((2, b_blk, H), jnp.float32),     # carried hidden state
                pltpu.VMEM((t_blk, b_blk, H), seq_dtype),   # Bu_re / h_re sequence
                pltpu.VMEM((t_blk, b_blk, H), seq_dtype),   # Bu_im / h_im sequence
            ],
        )
        return pl.pallas_call(
            partial(seq_layer_kernel, approx_gelu=approx_gelu),
            out_shape=(jax.ShapeDtypeStruct((T, B, D), inputs.dtype),
                       jax.ShapeDtypeStruct((2, B, H), jnp.float32)),
            grid_spec=grid_spec,
            compiler_params=pltpu.CompilerParams(
                dimension_semantics=("parallel", "arbitrary"),
                vmem_limit_bytes=int(vmem_limit_bytes)),
        )

    args = (inputs, h0, lam, ln_w, ln_b, d_vec, wb_re, wb_im,
            wc_re, wc_imn, w1t, w2t, b1, b2)
    try:
        out, h_final = build(single_buffer_weights)(*args)
    except Exception:
        if not single_buffer_weights:
            raise
        # pl.Buffered(1) single-buffering unsupported on this JAX/libtpu combo:
        # fall back to default double-buffered constant weights.
        out, h_final = build(False)(*args)

    return out, h_final[0], h_final[1]


# ----------------------------------------------------------------------------
# Pure-JAX reference (mirrors the PyTorch forward exactly) for verification.
# ----------------------------------------------------------------------------
def sequence_layer_ref(inputs, h0_re, h0_im, params):
    T, B, D = inputs.shape
    lam = jnp.exp(-jnp.exp(params["nu_log"]) + 1j * jnp.exp(params["theta_log"]))
    B_norm = (params["B_re"] + 1j * params["B_im"]) * jnp.exp(params["gamma_log"])[:, None]
    C = params["C_re"] + 1j * params["C_im"]
    h = h0_re + 1j * h0_im

    mean = jnp.mean(inputs, axis=-1, keepdims=True)
    var = jnp.mean((inputs - mean) ** 2, axis=-1, keepdims=True)
    x = (inputs - mean) / jnp.sqrt(var + 1e-5) * params["ln_w"] + params["ln_b"]

    ys = []
    for t in range(T):
        u = x[t]
        h = h * lam + u.astype(jnp.complex64) @ B_norm.T
        y = (h @ C.T).real + params["D"] * u
        ys.append(y)
    y = jnp.stack(ys, axis=0)

    g = 0.5 * y * (1.0 + lax.erf(y / jnp.sqrt(2.0)))
    o1 = g @ params["W1"].T + params["b1"]
    o2 = g @ params["W2"].T + params["b2"]
    out = inputs + o1 * jax.nn.sigmoid(o2)
    return out, h.real, h.imag


# ----------------------------------------------------------------------------
# Deterministic parameter construction (mirrors the __init__ shapes).
# ----------------------------------------------------------------------------
def make_params(key, d_hidden, d_model, r_min=0.0, r_max=1.0, max_phase=6.28):
    ks = jax.random.split(key, 10)
    u1 = jax.random.uniform(ks[0], (d_hidden,), minval=1e-4, maxval=1.0)
    u2 = jax.random.uniform(ks[1], (d_hidden,), minval=1e-4, maxval=1.0)
    theta_log = jnp.log(max_phase * u2)
    nu_log = jnp.log(-0.5 * jnp.log(u1 * (r_max**2 - r_min**2) + r_min**2))
    diag_lambda = jnp.exp(-jnp.exp(nu_log) + 1j * jnp.exp(theta_log))
    gamma_log = jnp.log(jnp.sqrt(1.0 - jnp.abs(diag_lambda) ** 2))

    params = dict(
        nu_log=nu_log,
        theta_log=theta_log,
        gamma_log=gamma_log,
        B_re=jax.random.normal(ks[2], (d_hidden, d_model)) / np.sqrt(2 * d_model),
        B_im=jax.random.normal(ks[3], (d_hidden, d_model)) / np.sqrt(2 * d_model),
        C_re=jax.random.normal(ks[4], (d_model, d_hidden)) / np.sqrt(d_hidden),
        C_im=jax.random.normal(ks[5], (d_model, d_hidden)) / np.sqrt(d_hidden),
        D=jax.random.normal(ks[6], (d_model,)),
        ln_w=jnp.ones((d_model,), jnp.float32),
        ln_b=jnp.zeros((d_model,), jnp.float32),
        W1=jax.random.normal(ks[7], (d_model, d_model)) / np.sqrt(d_model),
        b1=jnp.zeros((d_model,), jnp.float32),
        W2=jax.random.normal(ks[8], (d_model, d_model)) / np.sqrt(d_model),
        b2=jnp.zeros((d_model,), jnp.float32),
    )
    return {k: v.astype(jnp.float32) if v.dtype != jnp.float32 else v for k, v in params.items()}


if __name__ == "__main__":
    T, B, D, H = 8, 32, 16, 32  # seq len, batch, d_model, d_hidden

    key = jax.random.PRNGKey(0)
    k_in, k_h, k_p = jax.random.split(key, 3)

    inputs = jax.random.normal(k_in, (T, B, D), dtype=jnp.float32)
    h0_re = jax.random.normal(k_h, (B, H), dtype=jnp.float32) * 0.1
    h0_im = jnp.zeros((B, H), jnp.float32)
    params = make_params(k_p, H, D)

    ref_out, ref_hre, ref_him = sequence_layer_ref(inputs, h0_re, h0_im, params)

    # f32-weight path, default tiling (batch split into two blocks): tight check.
    out32, hre32, him32 = jax.block_until_ready(
        sequence_layer_pallas(inputs, h0_re, h0_im, params, weight_dtype=jnp.float32)
    )
    assert jnp.allclose(out32, ref_out, atol=2e-4, rtol=2e-4), "output mismatch (f32)"
    assert jnp.allclose(hre32, ref_hre, atol=2e-4, rtol=2e-4), "hidden(re) mismatch (f32)"
    assert jnp.allclose(him32, ref_him, atol=2e-4, rtol=2e-4), "hidden(im) mismatch (f32)"

    # f32-weight path, multiple time blocks: exercises the hidden-state carry
    # across time blocks and the per-batch-block re-initialization.
    out32b, hre32b, him32b = jax.block_until_ready(
        sequence_layer_pallas(inputs, h0_re, h0_im, params,
                              weight_dtype=jnp.float32, t_block=4)
    )
    assert jnp.allclose(out32b, ref_out, atol=2e-4, rtol=2e-4), "output mismatch (f32, carry)"
    assert jnp.allclose(hre32b, ref_hre, atol=2e-4, rtol=2e-4), "hidden(re) mismatch (f32, carry)"
    assert jnp.allclose(him32b, ref_him, atol=2e-4, rtol=2e-4), "hidden(im) mismatch (f32, carry)"

    # bf16-weight fast path (bf16 MXU operands + bf16 h-sequence scratch): loose check.
    outbf, hrebf, himbf = jax.block_until_ready(
        sequence_layer_pallas(inputs, h0_re, h0_im, params)
    )
    assert jnp.allclose(outbf, ref_out, atol=2e-1, rtol=2e-1), "output mismatch (bf16)"
    assert jnp.allclose(hrebf, ref_hre, atol=2e-1, rtol=2e-1), "hidden(re) mismatch (bf16)"
    assert jnp.allclose(himbf, ref_him, atol=2e-1, rtol=2e-1), "hidden(im) mismatch (bf16)"

    print("KERNEL_OK")
</pallas_src>

<mosaic_0001>
module attributes {stable_mosaic.version = 11 : i64} {
  func.func @seq_layer_kernel(%arg0: i32, %arg1: i32, %arg2: memref<8x16x16xf32, #tpu.memory_space<vmem>>, %arg3: memref<2x16x32xf32, #tpu.memory_space<vmem>>, %arg4: memref<2x32xf32, #tpu.memory_space<vmem>>, %arg5: memref<1x16xf32, #tpu.memory_space<vmem>>, %arg6: memref<1x16xf32, #tpu.memory_space<vmem>>, %arg7: memref<1x16xf32, #tpu.memory_space<vmem>>, %arg8: memref<16x32xf32, #tpu.memory_space<vmem>>, %arg9: memref<16x32xf32, #tpu.memory_space<vmem>>, %arg10: memref<32x16xf32, #tpu.memory_space<vmem>>, %arg11: memref<32x16xf32, #tpu.memory_space<vmem>>, %arg12: memref<16x16xf32, #tpu.memory_space<vmem>>, %arg13: memref<16x16xf32, #tpu.memory_space<vmem>>, %arg14: memref<1x16xf32, #tpu.memory_space<vmem>>, %arg15: memref<1x16xf32, #tpu.memory_space<vmem>>, %arg16: memref<8x16x16xf32, #tpu.memory_space<vmem>>, %arg17: memref<2x16x32xf32, #tpu.memory_space<vmem>>, %arg18: memref<2x16x32xf32, #tpu.memory_space<vmem>>, %arg19: memref<8x16x32xf32, #tpu.memory_space<vmem>>, %arg20: memref<8x16x32xf32, #tpu.memory_space<vmem>>) attributes {dimension_semantics = [#tpu.dimension_semantics<parallel>, #tpu.dimension_semantics<arbitrary>], iteration_bounds = array<i64: 2, 1>, scalar_prefetch = 0 : i64, scratch_operands = 3 : i64, tpu.core_type = #tpu.core_type<tc>, window_params = [{transform_indices = @transform_0, window_bounds = array<i64: 8, 16, 16>}, {pipeline_mode = #tpu.pipeline_mode<synchronous>, transform_indices = @transform_1, window_bounds = array<i64: 2, 16, 32>}, {pipeline_mode = #tpu.pipeline_mode<synchronous>, transform_indices = @transform_2, window_bounds = array<i64: 2, 32>}, {pipeline_mode = #tpu.pipeline_mode<synchronous>, transform_indices = @transform_3, window_bounds = array<i64: 1, 16>}, {pipeline_mode = #tpu.pipeline_mode<synchronous>, transform_indices = @transform_4, window_bounds = array<i64: 1, 16>}, {pipeline_mode = #tpu.pipeline_mode<synchronous>, transform_indices = @transform_5, window_bounds = array<i64: 1, 16>}, {pipeline_mode = #tpu.pipeline_mode<synchronous>, transform_indices = @transform_6, window_bounds = array<i64: 16, 32>}, {pipeline_mode = #tpu.pipeline_mode<synchronous>, transform_indices = @transform_7, window_bounds = array<i64: 16, 32>}, {pipeline_mode = #tpu.pipeline_mode<synchronous>, transform_indices = @transform_8, window_bounds = array<i64: 32, 16>}, {pipeline_mode = #tpu.pipeline_mode<synchronous>, transform_indices = @transform_9, window_bounds = array<i64: 32, 16>}, {pipeline_mode = #tpu.pipeline_mode<synchronous>, transform_indices = @transform_10, window_bounds = array<i64: 16, 16>}, {pipeline_mode = #tpu.pipeline_mode<synchronous>, transform_indices = @transform_11, window_bounds = array<i64: 16, 16>}, {pipeline_mode = #tpu.pipeline_mode<synchronous>, transform_indices = @transform_12, window_bounds = array<i64: 1, 16>}, {pipeline_mode = #tpu.pipeline_mode<synchronous>, transform_indices = @transform_13, window_bounds = array<i64: 1, 16>}, {transform_indices = @transform_14, window_bounds = array<i64: 8, 16, 16>}, {transform_indices = @transform_15, window_bounds = array<i64: 2, 16, 32>}]} {
    %c0_i32 = arith.constant 0 : i32
    %0 = arith.cmpi eq, %arg1, %c0_i32 : i32
    %1 = arith.extui %0 : i1 to i32
    %c0_i32_0 = arith.constant 0 : i32
    %2 = arith.cmpi ne, %1, %c0_i32_0 : i32
    scf.if %2 {
      %c0_139 = arith.constant 0 : index
      %c0_140 = arith.constant 0 : index
      %c0_141 = arith.constant 0 : index
      %273 = vector.load %arg3[%c0_139, %c0_140, %c0_141] : memref<2x16x32xf32, #tpu.memory_space<vmem>>, vector<2x16x32xf32>
      %c0_142 = arith.constant 0 : index
      %c0_143 = arith.constant 0 : index
      %c0_144 = arith.constant 0 : index
      %274 = vector.load %arg18[%c0_142, %c0_143, %c0_144] : memref<2x16x32xf32, #tpu.memory_space<vmem>>, vector<2x16x32xf32>
      tpu.vector_store %arg18[%c0_142, %c0_143, %c0_144], %273 {strides = array<i32>} : memref<2x16x32xf32, #tpu.memory_space<vmem>>, vector<2x16x32xf32>,
    } else {
    }
    %c0 = arith.constant 0 : index
    %c0_1 = arith.constant 0 : index
    %c0_2 = arith.constant 0 : index
    %3 = vector.load %arg2[%c0, %c0_1, %c0_2] : memref<8x16x16xf32, #tpu.memory_space<vmem>>, vector<8x16x16xf32>
    %4 = vector.shape_cast %3 : vector<8x16x16xf32> to vector<128x16xf32>
    %cst = arith.constant dense<0.000000e+00> : vector<128xf32>
    %5 = vector.multi_reduction <add>, %4, %cst [1] : vector<128x16xf32> to vector<128xf32>
    %6 = vector.shape_cast %5 : vector<128xf32> to vector<128x1xf32>
    %cst_3 = arith.constant 1.600000e+01 : f32
    %7 = vector.broadcast %cst_3 : f32 to vector<128x1xf32>
    %8 = arith.divf %6, %7 : vector<128x1xf32>
    %9 = vector.broadcast %8 : vector<128x1xf32> to vector<128x16xf32>
    %10 = arith.subf %4, %9 : vector<128x16xf32>
    %11 = arith.mulf %10, %10 : vector<128x16xf32>
    %cst_4 = arith.constant dense<0.000000e+00> : vector<128xf32>
    %12 = vector.multi_reduction <add>, %11, %cst_4 [1] : vector<128x16xf32> to vector<128xf32>
    %13 = vector.shape_cast %12 : vector<128xf32> to vector<128x1xf32>
    %cst_5 = arith.constant 1.600000e+01 : f32
    %14 = vector.broadcast %cst_5 : f32 to vector<128x1xf32>
    %15 = arith.divf %13, %14 : vector<128x1xf32>
    %16 = vector.broadcast %8 : vector<128x1xf32> to vector<128x16xf32>
    %17 = arith.subf %4, %16 : vector<128x16xf32>
    %cst_6 = arith.constant 9.99999974E-6 : f32
    %18 = vector.broadcast %cst_6 : f32 to vector<128x1xf32>
    %19 = arith.addf %15, %18 : vector<128x1xf32>
    %20 = math.rsqrt %19 : vector<128x1xf32>
    %21 = vector.broadcast %20 : vector<128x1xf32> to vector<128x16xf32>
    %22 = arith.mulf %17, %21 : vector<128x16xf32>
    %c0_7 = arith.constant 0 : index
    %c0_8 = arith.constant 0 : index
    %23 = vector.load %arg5[%c0_7, %c0_8] : memref<1x16xf32, #tpu.memory_space<vmem>>, vector<1x16xf32>
    %24 = vector.broadcast %23 : vector<1x16xf32> to vector<128x16xf32>
    %25 = arith.mulf %22, %24 : vector<128x16xf32>
    %c0_9 = arith.constant 0 : index
    %c0_10 = arith.constant 0 : index
    %26 = vector.load %arg6[%c0_9, %c0_10] : memref<1x16xf32, #tpu.memory_space<vmem>>, vector<1x16xf32>
    %27 = vector.broadcast %26 : vector<1x16xf32> to vector<128x16xf32>
    %28 = arith.addf %25, %27 : vector<128x16xf32>
    %c0_11 = arith.constant 0 : index
    %c0_12 = arith.constant 0 : index
    %29 = vector.load %arg8[%c0_11, %c0_12] : memref<16x32xf32, #tpu.memory_space<vmem>>, vector<16x32xf32>
    %cst_13 = arith.constant dense<0.000000e+00> : vector<128x32xf32>
    %30 = tpu.matmul %28, %29, %cst_13 {dimension_numbers = #tpu.dot_dimension_numbers<[1], [0], [0], [1], [0, 0, 1, 1], [], []>} : vector<128x16xf32>, vector<16x32xf32>, vector<128x32xf32> -> vector<128x32xf32>
    %c0_14 = arith.constant 0 : index
    %c0_15 = arith.constant 0 : index
    %31 = vector.load %arg9[%c0_14, %c0_15] : memref<16x32xf32, #tpu.memory_space<vmem>>, vector<16x32xf32>
    %cst_16 = arith.constant dense<0.000000e+00> : vector<128x32xf32>
    %32 = tpu.matmul %28, %31, %cst_16 {dimension_numbers = #tpu.dot_dimension_numbers<[1], [0], [0], [1], [0, 0, 1, 1], [], []>} : vector<128x16xf32>, vector<16x32xf32>, vector<128x32xf32> -> vector<128x32xf32>
    %33 = vector.shape_cast %30 : vector<128x32xf32> to vector<8x16x32xf32>
    %c0_17 = arith.constant 0 : index
    %c0_18 = arith.constant 0 : index
    %c0_19 = arith.constant 0 : index
    %34 = vector.load %arg19[%c0_17, %c0_18, %c0_19] : memref<8x16x32xf32, #tpu.memory_space<vmem>>, vector<8x16x32xf32>
    tpu.vector_store %arg19[%c0_17, %c0_18, %c0_19], %33 {strides = array<i32>} : memref<8x16x32xf32, #tpu.memory_space<vmem>>, vector<8x16x32xf32>,
    %35 = vector.shape_cast %32 : vector<128x32xf32> to vector<8x16x32xf32>
    %c0_20 = arith.constant 0 : index
    %c0_21 = arith.constant 0 : index
    %c0_22 = arith.constant 0 : index
    %36 = vector.load %arg20[%c0_20, %c0_21, %c0_22] : memref<8x16x32xf32, #tpu.memory_space<vmem>>, vector<8x16x32xf32>
    tpu.vector_store %arg20[%c0_20, %c0_21, %c0_22], %35 {strides = array<i32>} : memref<8x16x32xf32, #tpu.memory_space<vmem>>, vector<8x16x32xf32>,
    %c0_23 = arith.constant 0 : index
    %c0_24 = arith.constant 0 : index
    %37 = vector.load %arg4[%c0_23, %c0_24] : memref<2x32xf32, #tpu.memory_space<vmem>>, vector<1x32xf32>
    %38 = vector.shape_cast %37 : vector<1x32xf32> to vector<1x32xf32>
    %39 = vector.broadcast %38 : vector<1x32xf32> to vector<16x32xf32>
    %c1 = arith.constant 1 : index
    %c0_25 = arith.constant 0 : index
    %40 = vector.load %arg4[%c1, %c0_25] : memref<2x32xf32, #tpu.memory_space<vmem>>, vector<1x32xf32>
    %41 = vector.shape_cast %40 : vector<1x32xf32> to vector<1x32xf32>
    %42 = vector.broadcast %41 : vector<1x32xf32> to vector<16x32xf32>
    %c0_26 = arith.constant 0 : index
    %c0_27 = arith.constant 0 : index
    %c0_28 = arith.constant 0 : index
    %43 = vector.load %arg18[%c0_26, %c0_27, %c0_28] : memref<2x16x32xf32, #tpu.memory_space<vmem>>, vector<1x16x32xf32>
    %44 = vector.shape_cast %43 : vector<1x16x32xf32> to vector<16x32xf32>
    %c1_29 = arith.constant 1 : index
    %c0_30 = arith.constant 0 : index
    %c0_31 = arith.constant 0 : index
    %45 = vector.load %arg18[%c1_29, %c0_30, %c0_31] : memref<2x16x32xf32, #tpu.memory_space<vmem>>, vector<1x16x32xf32>
    %46 = vector.shape_cast %45 : vector<1x16x32xf32> to vector<16x32xf32>
    %c0_i32_32 = arith.constant 0 : i32
    %47 = arith.index_cast %c0_i32_32 : i32 to index
    %c0_33 = arith.constant 0 : index
    %c0_34 = arith.constant 0 : index
    %48 = vector.load %arg19[%47, %c0_33, %c0_34] : memref<8x16x32xf32, #tpu.memory_space<vmem>>, vector<1x16x32xf32>
    %49 = vector.shape_cast %48 : vector<1x16x32xf32> to vector<16x32xf32>
    %50 = arith.index_cast %c0_i32_32 : i32 to index
    %c0_35 = arith.constant 0 : index
    %c0_36 = arith.constant 0 : index
    %51 = vector.load %arg20[%50, %c0_35, %c0_36] : memref<8x16x32xf32, #tpu.memory_space<vmem>>, vector<1x16x32xf32>
    %52 = vector.shape_cast %51 : vector<1x16x32xf32> to vector<16x32xf32>
    %53 = arith.mulf %44, %39 : vector<16x32xf32>
    %54 = arith.mulf %46, %42 : vector<16x32xf32>
    %55 = arith.subf %53, %54 : vector<16x32xf32>
    %56 = arith.addf %55, %49 : vector<16x32xf32>
    %57 = arith.mulf %44, %42 : vector<16x32xf32>
    %58 = arith.mulf %46, %39 : vector<16x32xf32>
    %59 = arith.addf %57, %58 : vector<16x32xf32>
    %60 = arith.addf %59, %52 : vector<16x32xf32>
    %61 = arith.index_cast %c0_i32_32 : i32 to index
    %c0_37 = arith.constant 0 : index
    %c0_38 = arith.constant 0 : index
    %62 = vector.load %arg19[%61, %c0_37, %c0_38] : memref<8x16x32xf32, #tpu.memory_space<vmem>>, vector<1x16x32xf32>
    %63 = vector.shape_cast %62 : vector<1x16x32xf32> to vector<16x32xf32>
    %64 = vector.shape_cast %56 : vector<16x32xf32> to vector<1x16x32xf32>
    tpu.vector_store %arg19[%61, %c0_37, %c0_38], %64 {strides = array<i32>} : memref<8x16x32xf32, #tpu.memory_space<vmem>>, vector<1x16x32xf32>,
    %65 = arith.index_cast %c0_i32_32 : i32 to index
    %c0_39 = arith.constant 0 : index
    %c0_40 = arith.constant 0 : index
    %66 = vector.load %arg20[%65, %c0_39, %c0_40] : memref<8x16x32xf32, #tpu.memory_space<vmem>>, vector<1x16x32xf32>
    %67 = vector.shape_cast %66 : vector<1x16x32xf32> to vector<16x32xf32>
    %68 = vector.shape_cast %60 : vector<16x32xf32> to vector<1x16x32xf32>
    tpu.vector_store %arg20[%65, %c0_39, %c0_40], %68 {strides = array<i32>} : memref<8x16x32xf32, #tpu.memory_space<vmem>>, vector<1x16x32xf32>,
    %c1_i32 = arith.constant 1 : i32
    %69 = arith.index_cast %c1_i32 : i32 to index
    %c0_41 = arith.constant 0 : index
    %c0_42 = arith.constant 0 : index
    %70 = vector.load %arg19[%69, %c0_41, %c0_42] : memref<8x16x32xf32, #tpu.memory_space<vmem>>, vector<1x16x32xf32>
    %71 = vector.shape_cast %70 : vector<1x16x32xf32> to vector<16x32xf32>
    %72 = arith.index_cast %c1_i32 : i32 to index
    %c0_43 = arith.constant 0 : index
    %c0_44 = arith.constant 0 : index
    %73 = vector.load %arg20[%72, %c0_43, %c0_44] : memref<8x16x32xf32, #tpu.memory_space<vmem>>, vector<1x16x32xf32>
    %74 = vector.shape_cast %73 : vector<1x16x32xf32> to vector<16x32xf32>
    %75 = arith.mulf %56, %39 : vector<16x32xf32>
    %76 = arith.mulf %60, %42 : vector<16x32xf32>
    %77 = arith.subf %75, %76 : vector<16x32xf32>
    %78 = arith.addf %77, %71 : vector<16x32xf32>
    %79 = arith.mulf %56, %42 : vector<16x32xf32>
    %80 = arith.mulf %60, %39 : vector<16x32xf32>
    %81 = arith.addf %79, %80 : vector<16x32xf32>
    %82 = arith.addf %81, %74 : vector<16x32xf32>
    %83 = arith.index_cast %c1_i32 : i32 to index
    %c0_45 = arith.constant 0 : index
    %c0_46 = arith.constant 0 : index
    %84 = vector.load %arg19[%83, %c0_45, %c0_46] : memref<8x16x32xf32, #tpu.memory_space<vmem>>, vector<1x16x32xf32>
    %85 = vector.shape_cast %84 : vector<1x16x32xf32> to vector<16x32xf32>
    %86 = vector.shape_cast %78 : vector<16x32xf32> to vector<1x16x32xf32>
    tpu.vector_store %arg19[%83, %c0_45, %c0_46], %86 {strides = array<i32>} : memref<8x16x32xf32, #tpu.memory_space<vmem>>, vector<1x16x32xf32>,
    %87 = arith.index_cast %c1_i32 : i32 to index
    %c0_47 = arith.constant 0 : index
    %c0_48 = arith.constant 0 : index
    %88 = vector.load %arg20[%87, %c0_47, %c0_48] : memref<8x16x32xf32, #tpu.memory_space<vmem>>, vector<1x16x32xf32>
    %89 = vector.shape_cast %88 : vector<1x16x32xf32> to vector<16x32xf32>
    %90 = vector.shape_cast %82 : vector<16x32xf32> to vector<1x16x32xf32>
    tpu.vector_store %arg20[%87, %c0_47, %c0_48], %90 {strides = array<i32>} : memref<8x16x32xf32, #tpu.memory_space<vmem>>, vector<1x16x32xf32>,
    %c2_i32 = arith.constant 2 : i32
    %91 = arith.index_cast %c2_i32 : i32 to index
    %c0_49 = arith.constant 0 : index
    %c0_50 = arith.constant 0 : index
    %92 = vector.load %arg19[%91, %c0_49, %c0_50] : memref<8x16x32xf32, #tpu.memory_space<vmem>>, vector<1x16x32xf32>
    %93 = vector.shape_cast %92 : vector<1x16x32xf32> to vector<16x32xf32>
    %94 = arith.index_cast %c2_i32 : i32 to index
    %c0_51 = arith.constant 0 : index
    %c0_52 = arith.constant 0 : index
    %95 = vector.load %arg20[%94, %c0_51, %c0_52] : memref<8x16x32xf32, #tpu.memory_space<vmem>>, vector<1x16x32xf32>
    %96 = vector.shape_cast %95 : vector<1x16x32xf32> to vector<16x32xf32>
    %97 = arith.mulf %78, %39 : vector<16x32xf32>
    %98 = arith.mulf %82, %42 : vector<16x32xf32>
    %99 = arith.subf %97, %98 : vector<16x32xf32>
    %100 = arith.addf %99, %93 : vector<16x32xf32>
    %101 = arith.mulf %78, %42 : vector<16x32xf32>
    %102 = arith.mulf %82, %39 : vector<16x32xf32>
    %103 = arith.addf %101, %102 : vector<16x32xf32>
    %104 = arith.addf %103, %96 : vector<16x32xf32>
    %105 = arith.index_cast %c2_i32 : i32 to index
    %c0_53 = arith.constant 0 : index
    %c0_54 = arith.constant 0 : index
    %106 = vector.load %arg19[%105, %c0_53, %c0_54] : memref<8x16x32xf32, #tpu.memory_space<vmem>>, vector<1x16x32xf32>
    %107 = vector.shape_cast %106 : vector<1x16x32xf32> to vector<16x32xf32>
    %108 = vector.shape_cast %100 : vector<16x32xf32> to vector<1x16x32xf32>
    tpu.vector_store %arg19[%105, %c0_53, %c0_54], %108 {strides = array<i32>} : memref<8x16x32xf32, #tpu.memory_space<vmem>>, vector<1x16x32xf32>,
    %109 = arith.index_cast %c2_i32 : i32 to index
    %c0_55 = arith.constant 0 : index
    %c0_56 = arith.constant 0 : index
    %110 = vector.load %arg20[%109, %c0_55, %c0_56] : memref<8x16x32xf32, #tpu.memory_space<vmem>>, vector<1x16x32xf32>
    %111 = vector.shape_cast %110 : vector<1x16x32xf32> to vector<16x32xf32>
    %112 = vector.shape_cast %104 : vector<16x32xf32> to vector<1x16x32xf32>
    tpu.vector_store %arg20[%109, %c0_55, %c0_56], %112 {strides = array<i32>} : memref<8x16x32xf32, #tpu.memory_space<vmem>>, vector<1x16x32xf32>,
    %c3_i32 = arith.constant 3 : i32
    %113 = arith.index_cast %c3_i32 : i32 to index
    %c0_57 = arith.constant 0 : index
    %c0_58 = arith.constant 0 : index
    %114 = vector.load %arg19[%113, %c0_57, %c0_58] : memref<8x16x32xf32, #tpu.memory_space<vmem>>, vector<1x16x32xf32>
    %115 = vector.shape_cast %114 : vector<1x16x32xf32> to vector<16x32xf32>
    %116 = arith.index_cast %c3_i32 : i32 to index
    %c0_59 = arith.constant 0 : index
    %c0_60 = arith.constant 0 : index
    %117 = vector.load %arg20[%116, %c0_59, %c0_60] : memref<8x16x32xf32, #tpu.memory_space<vmem>>, vector<1x16x32xf32>
    %118 = vector.shape_cast %117 : vector<1x16x32xf32> to vector<16x32xf32>
    %119 = arith.mulf %100, %39 : vector<16x32xf32>
    %120 = arith.mulf %104, %42 : vector<16x32xf32>
    %121 = arith.subf %119, %120 : vector<16x32xf32>
    %122 = arith.addf %121, %115 : vector<16x32xf32>
    %123 = arith.mulf %100, %42 : vector<16x32xf32>
    %124 = arith.mulf %104, %39 : vector<16x32xf32>
    %125 = arith.addf %123, %124 : vector<16x32xf32>
    %126 = arith.addf %125, %118 : vector<16x32xf32>
    %127 = arith.index_cast %c3_i32 : i32 to index
    %c0_61 = arith.constant 0 : index
    %c0_62 = arith.constant 0 : index
    %128 = vector.load %arg19[%127, %c0_61, %c0_62] : memref<8x16x32xf32, #tpu.memory_space<vmem>>, vector<1x16x32xf32>
    %129 = vector.shape_cast %128 : vector<1x16x32xf32> to vector<16x32xf32>
    %130 = vector.shape_cast %122 : vector<16x32xf32> to vector<1x16x32xf32>
    tpu.vector_store %arg19[%127, %c0_61, %c0_62], %130 {strides = array<i32>} : memref<8x16x32xf32, #tpu.memory_space<vmem>>, vector<1x16x32xf32>,
    %131 = arith.index_cast %c3_i32 : i32 to index
    %c0_63 = arith.constant 0 : index
    %c0_64 = arith.constant 0 : index
    %132 = vector.load %arg20[%131, %c0_63, %c0_64] : memref<8x16x32xf32, #tpu.memory_space<vmem>>, vector<1x16x32xf32>
    %133 = vector.shape_cast %132 : vector<1x16x32xf32> to vector<16x32xf32>
    %134 = vector.shape_cast %126 : vector<16x32xf32> to vector<1x16x32xf32>
    tpu.vector_store %arg20[%131, %c0_63, %c0_64], %134 {strides = array<i32>} : memref<8x16x32xf32, #tpu.memory_space<vmem>>, vector<1x16x32xf32>,
    %c4_i32 = arith.constant 4 : i32
    %135 = arith.index_cast %c4_i32 : i32 to index
    %c0_65 = arith.constant 0 : index
    %c0_66 = arith.constant 0 : index
    %136 = vector.load %arg19[%135, %c0_65, %c0_66] : memref<8x16x32xf32, #tpu.memory_space<vmem>>, vector<1x16x32xf32>
    %137 = vector.shape_cast %136 : vector<1x16x32xf32> to vector<16x32xf32>
    %138 = arith.index_cast %c4_i32 : i32 to index
    %c0_67 = arith.constant 0 : index
    %c0_68 = arith.constant 0 : index
    %139 = vector.load %arg20[%138, %c0_67, %c0_68] : memref<8x16x32xf32, #tpu.memory_space<vmem>>, vector<1x16x32xf32>
    %140 = vector.shape_cast %139 : vector<1x16x32xf32> to vector<16x32xf32>
    %141 = arith.mulf %122, %39 : vector<16x32xf32>
    %142 = arith.mulf %126, %42 : vector<16x32xf32>
    %143 = arith.subf %141, %142 : vector<16x32xf32>
    %144 = arith.addf %143, %137 : vector<16x32xf32>
    %145 = arith.mulf %122, %42 : vector<16x32xf32>
    %146 = arith.mulf %126, %39 : vector<16x32xf32>
    %147 = arith.addf %145, %146 : vector<16x32xf32>
    %148 = arith.addf %147, %140 : vector<16x32xf32>
    %149 = arith.index_cast %c4_i32 : i32 to index
    %c0_69 = arith.constant 0 : index
    %c0_70 = arith.constant 0 : index
    %150 = vector.load %arg19[%149, %c0_69, %c0_70] : memref<8x16x32xf32, #tpu.memory_space<vmem>>, vector<1x16x32xf32>
    %151 = vector.shape_cast %150 : vector<1x16x32xf32> to vector<16x32xf32>
    %152 = vector.shape_cast %144 : vector<16x32xf32> to vector<1x16x32xf32>
    tpu.vector_store %arg19[%149, %c0_69, %c0_70], %152 {strides = array<i32>} : memref<8x16x32xf32, #tpu.memory_space<vmem>>, vector<1x16x32xf32>,
    %153 = arith.index_cast %c4_i32 : i32 to index
    %c0_71 = arith.constant 0 : index
    %c0_72 = arith.constant 0 : index
    %154 = vector.load %arg20[%153, %c0_71, %c0_72] : memref<8x16x32xf32, #tpu.memory_space<vmem>>, vector<1x16x32xf32>
    %155 = vector.shape_cast %154 : vector<1x16x32xf32> to vector<16x32xf32>
    %156 = vector.shape_cast %148 : vector<16x32xf32> to vector<1x16x32xf32>
    tpu.vector_store %arg20[%153, %c0_71, %c0_72], %156 {strides = array<i32>} : memref<8x16x32xf32, #tpu.memory_space<vmem>>, vector<1x16x32xf32>,
    %c5_i32 = arith.constant 5 : i32
    %157 = arith.index_cast %c5_i32 : i32 to index
    %c0_73 = arith.constant 0 : index
    %c0_74 = arith.constant 0 : index
    %158 = vector.load %arg19[%157, %c0_73, %c0_74] : memref<8x16x32xf32, #tpu.memory_space<vmem>>, vector<1x16x32xf32>
    %159 = vector.shape_cast %158 : vector<1x16x32xf32> to vector<16x32xf32>
    %160 = arith.index_cast %c5_i32 : i32 to index
    %c0_75 = arith.constant 0 : index
    %c0_76 = arith.constant 0 : index
    %161 = vector.load %arg20[%160, %c0_75, %c0_76] : memref<8x16x32xf32, #tpu.memory_space<vmem>>, vector<1x16x32xf32>
    %162 = vector.shape_cast %161 : vector<1x16x32xf32> to vector<16x32xf32>
    %163 = arith.mulf %144, %39 : vector<16x32xf32>
    %164 = arith.mulf %148, %42 : vector<16x32xf32>
    %165 = arith.subf %163, %164 : vector<16x32xf32>
    %166 = arith.addf %165, %159 : vector<16x32xf32>
    %167 = arith.mulf %144, %42 : vector<16x32xf32>
    %168 = arith.mulf %148, %39 : vector<16x32xf32>
    %169 = arith.addf %167, %168 : vector<16x32xf32>
    %170 = arith.addf %169, %162 : vector<16x32xf32>
    %171 = arith.index_cast %c5_i32 : i32 to index
    %c0_77 = arith.constant 0 : index
    %c0_78 = arith.constant 0 : index
    %172 = vector.load %arg19[%171, %c0_77, %c0_78] : memref<8x16x32xf32, #tpu.memory_space<vmem>>, vector<1x16x32xf32>
    %173 = vector.shape_cast %172 : vector<1x16x32xf32> to vector<16x32xf32>
    %174 = vector.shape_cast %166 : vector<16x32xf32> to vector<1x16x32xf32>
    tpu.vector_store %arg19[%171, %c0_77, %c0_78], %174 {strides = array<i32>} : memref<8x16x32xf32, #tpu.memory_space<vmem>>, vector<1x16x32xf32>,
    %175 = arith.index_cast %c5_i32 : i32 to index
    %c0_79 = arith.constant 0 : index
    %c0_80 = arith.constant 0 : index
    %176 = vector.load %arg20[%175, %c0_79, %c0_80] : memref<8x16x32xf32, #tpu.memory_space<vmem>>, vector<1x16x32xf32>
    %177 = vector.shape_cast %176 : vector<1x16x32xf32> to vector<16x32xf32>
    %178 = vector.shape_cast %170 : vector<16x32xf32> to vector<1x16x32xf32>
    tpu.vector_store %arg20[%175, %c0_79, %c0_80], %178 {strides = array<i32>} : memref<8x16x32xf32, #tpu.memory_space<vmem>>, vector<1x16x32xf32>,
    %c6_i32 = arith.constant 6 : i32
    %179 = arith.index_cast %c6_i32 : i32 to index
    %c0_81 = arith.constant 0 : index
    %c0_82 = arith.constant 0 : index
    %180 = vector.load %arg19[%179, %c0_81, %c0_82] : memref<8x16x32xf32, #tpu.memory_space<vmem>>, vector<1x16x32xf32>
    %181 = vector.shape_cast %180 : vector<1x16x32xf32> to vector<16x32xf32>
    %182 = arith.index_cast %c6_i32 : i32 to index
    %c0_83 = arith.constant 0 : index
    %c0_84 = arith.constant 0 : index
    %183 = vector.load %arg20[%182, %c0_83, %c0_84] : memref<8x16x32xf32, #tpu.memory_space<vmem>>, vector<1x16x32xf32>
    %184 = vector.shape_cast %183 : vector<1x16x32xf32> to vector<16x32xf32>
    %185 = arith.mulf %166, %39 : vector<16x32xf32>
    %186 = arith.mulf %170, %42 : vector<16x32xf32>
    %187 = arith.subf %185, %186 : vector<16x32xf32>
    %188 = arith.addf %187, %181 : vector<16x32xf32>
    %189 = arith.mulf %166, %42 : vector<16x32xf32>
    %190 = arith.mulf %170, %39 : vector<16x32xf32>
    %191 = arith.addf %189, %190 : vector<16x32xf32>
    %192 = arith.addf %191, %184 : vector<16x32xf32>
    %193 = arith.index_cast %c6_i32 : i32 to index
    %c0_85 = arith.constant 0 : index
    %c0_86 = arith.constant 0 : index
    %194 = vector.load %arg19[%193, %c0_85, %c0_86] : memref<8x16x32xf32, #tpu.memory_space<vmem>>, vector<1x16x32xf32>
    %195 = vector.shape_cast %194 : vector<1x16x32xf32> to vector<16x32xf32>
    %196 = vector.shape_cast %188 : vector<16x32xf32> to vector<1x16x32xf32>
    tpu.vector_store %arg19[%193, %c0_85, %c0_86], %196 {strides = array<i32>} : memref<8x16x32xf32, #tpu.memory_space<vmem>>, vector<1x16x32xf32>,
    %197 = arith.index_cast %c6_i32 : i32 to index
    %c0_87 = arith.constant 0 : index
    %c0_88 = arith.constant 0 : index
    %198 = vector.load %arg20[%197, %c0_87, %c0_88] : memref<8x16x32xf32, #tpu.memory_space<vmem>>, vector<1x16x32xf32>
    %199 = vector.shape_cast %198 : vector<1x16x32xf32> to vector<16x32xf32>
    %200 = vector.shape_cast %192 : vector<16x32xf32> to vector<1x16x32xf32>
    tpu.vector_store %arg20[%197, %c0_87, %c0_88], %200 {strides = array<i32>} : memref<8x16x32xf32, #tpu.memory_space<vmem>>, vector<1x16x32xf32>,
    %c7_i32 = arith.constant 7 : i32
    %201 = arith.index_cast %c7_i32 : i32 to index
    %c0_89 = arith.constant 0 : index
    %c0_90 = arith.constant 0 : index
    %202 = vector.load %arg19[%201, %c0_89, %c0_90] : memref<8x16x32xf32, #tpu.memory_space<vmem>>, vector<1x16x32xf32>
    %203 = vector.shape_cast %202 : vector<1x16x32xf32> to vector<16x32xf32>
    %204 = arith.index_cast %c7_i32 : i32 to index
    %c0_91 = arith.constant 0 : index
    %c0_92 = arith.constant 0 : index
    %205 = vector.load %arg20[%204, %c0_91, %c0_92] : memref<8x16x32xf32, #tpu.memory_space<vmem>>, vector<1x16x32xf32>
    %206 = vector.shape_cast %205 : vector<1x16x32xf32> to vector<16x32xf32>
    %207 = arith.mulf %188, %39 : vector<16x32xf32>
    %208 = arith.mulf %192, %42 : vector<16x32xf32>
    %209 = arith.subf %207, %208 : vector<16x32xf32>
    %210 = arith.addf %209, %203 : vector<16x32xf32>
    %211 = arith.mulf %188, %42 : vector<16x32xf32>
    %212 = arith.mulf %192, %39 : vector<16x32xf32>
    %213 = arith.addf %211, %212 : vector<16x32xf32>
    %214 = arith.addf %213, %206 : vector<16x32xf32>
    %215 = arith.index_cast %c7_i32 : i32 to index
    %c0_93 = arith.constant 0 : index
    %c0_94 = arith.constant 0 : index
    %216 = vector.load %arg19[%215, %c0_93, %c0_94] : memref<8x16x32xf32, #tpu.memory_space<vmem>>, vector<1x16x32xf32>
    %217 = vector.shape_cast %216 : vector<1x16x32xf32> to vector<16x32xf32>
    %218 = vector.shape_cast %210 : vector<16x32xf32> to vector<1x16x32xf32>
    tpu.vector_store %arg19[%215, %c0_93, %c0_94], %218 {strides = array<i32>} : memref<8x16x32xf32, #tpu.memory_space<vmem>>, vector<1x16x32xf32>,
    %219 = arith.index_cast %c7_i32 : i32 to index
    %c0_95 = arith.constant 0 : index
    %c0_96 = arith.constant 0 : index
    %220 = vector.load %arg20[%219, %c0_95, %c0_96] : memref<8x16x32xf32, #tpu.memory_space<vmem>>, vector<1x16x32xf32>
    %221 = vector.shape_cast %220 : vector<1x16x32xf32> to vector<16x32xf32>
    %222 = vector.shape_cast %214 : vector<16x32xf32> to vector<1x16x32xf32>
    tpu.vector_store %arg20[%219, %c0_95, %c0_96], %222 {strides = array<i32>} : memref<8x16x32xf32, #tpu.memory_space<vmem>>, vector<1x16x32xf32>,
    %c8_i32 = arith.constant 8 : i32
    %c0_97 = arith.constant 0 : index
    %c0_98 = arith.constant 0 : index
    %c0_99 = arith.constant 0 : index
    %223 = vector.load %arg18[%c0_97, %c0_98, %c0_99] : memref<2x16x32xf32, #tpu.memory_space<vmem>>, vector<1x16x32xf32>
    %224 = vector.shape_cast %223 : vector<1x16x32xf32> to vector<16x32xf32>
    %225 = vector.shape_cast %210 : vector<16x32xf32> to vector<1x16x32xf32>
    tpu.vector_store %arg18[%c0_97, %c0_98, %c0_99], %225 {strides = array<i32>} : memref<2x16x32xf32, #tpu.memory_space<vmem>>, vector<1x16x32xf32>,
    %c1_100 = arith.constant 1 : index
    %c0_101 = arith.constant 0 : index
    %c0_102 = arith.constant 0 : index
    %226 = vector.load %arg18[%c1_100, %c0_101, %c0_102] : memref<2x16x32xf32, #tpu.memory_space<vmem>>, vector<1x16x32xf32>
    %227 = vector.shape_cast %226 : vector<1x16x32xf32> to vector<16x32xf32>
    %228 = vector.shape_cast %214 : vector<16x32xf32> to vector<1x16x32xf32>
    tpu.vector_store %arg18[%c1_100, %c0_101, %c0_102], %228 {strides = array<i32>} : memref<2x16x32xf32, #tpu.memory_space<vmem>>, vector<1x16x32xf32>,
    %c0_103 = arith.constant 0 : index
    %c0_104 = arith.constant 0 : index
    %c0_105 = arith.constant 0 : index
    %229 = vector.load %arg19[%c0_103, %c0_104, %c0_105] : memref<8x16x32xf32, #tpu.memory_space<vmem>>, vector<8x16x32xf32>
    %230 = vector.shape_cast %229 : vector<8x16x32xf32> to vector<128x32xf32>
    %c0_106 = arith.constant 0 : index
    %c0_107 = arith.constant 0 : index
    %231 = vector.load %arg10[%c0_106, %c0_107] : memref<32x16xf32, #tpu.memory_space<vmem>>, vector<32x16xf32>
    %cst_108 = arith.constant dense<0.000000e+00> : vector<128x16xf32>
    %232 = tpu.matmul %230, %231, %cst_108 {dimension_numbers = #tpu.dot_dimension_numbers<[1], [0], [0], [1], [0, 0, 1, 1], [], []>} : vector<128x32xf32>, vector<32x16xf32>, vector<128x16xf32> -> vector<128x16xf32>
    %c0_109 = arith.constant 0 : index
    %c0_110 = arith.constant 0 : index
    %c0_111 = arith.constant 0 : index
    %233 = vector.load %arg20[%c0_109, %c0_110, %c0_111] : memref<8x16x32xf32, #tpu.memory_space<vmem>>, vector<8x16x32xf32>
    %234 = vector.shape_cast %233 : vector<8x16x32xf32> to vector<128x32xf32>
    %c0_112 = arith.constant 0 : index
    %c0_113 = arith.constant 0 : index
    %235 = vector.load %arg11[%c0_112, %c0_113] : memref<32x16xf32, #tpu.memory_space<vmem>>, vector<32x16xf32>
    %cst_114 = arith.constant dense<0.000000e+00> : vector<128x16xf32>
    %236 = tpu.matmul %234, %235, %cst_114 {dimension_numbers = #tpu.dot_dimension_numbers<[1], [0], [0], [1], [0, 0, 1, 1], [], []>} : vector<128x32xf32>, vector<32x16xf32>, vector<128x16xf32> -> vector<128x16xf32>
    %237 = arith.addf %232, %236 : vector<128x16xf32>
    %c0_115 = arith.constant 0 : index
    %c0_116 = arith.constant 0 : index
    %238 = vector.load %arg7[%c0_115, %c0_116] : memref<1x16xf32, #tpu.memory_space<vmem>>, vector<1x16xf32>
    %239 = vector.broadcast %238 : vector<1x16xf32> to vector<128x16xf32>
    %240 = arith.mulf %239, %28 : vector<128x16xf32>
    %241 = arith.addf %237, %240 : vector<128x16xf32>
    %cst_117 = arith.constant 5.000000e-01 : f32
    %242 = vector.broadcast %cst_117 : f32 to vector<128x16xf32>
    %243 = arith.mulf %242, %241 : vector<128x16xf32>
    %cst_118 = arith.constant 0.707106769 : f32
    %244 = vector.broadcast %cst_118 : f32 to vector<128x16xf32>
    %245 = arith.mulf %241, %244 : vector<128x16xf32>
    %246 = math.erf %245 : vector<128x16xf32>
    %cst_119 = arith.constant 1.000000e+00 : f32
    %247 = vector.broadcast %cst_119 : f32 to vector<128x16xf32>
    %248 = arith.addf %247, %246 : vector<128x16xf32>
    %249 = arith.mulf %243, %248 : vector<128x16xf32>
    %c0_120 = arith.constant 0 : index
    %c0_121 = arith.constant 0 : index
    %250 = vector.load %arg12[%c0_120, %c0_121] : memref<16x16xf32, #tpu.memory_space<vmem>>, vector<16x16xf32>
    %cst_122 = arith.constant dense<0.000000e+00> : vector<128x16xf32>
    %251 = tpu.matmul %249, %250, %cst_122 {dimension_numbers = #tpu.dot_dimension_numbers<[1], [0], [0], [1], [0, 0, 1, 1], [], []>} : vector<128x16xf32>, vector<16x16xf32>, vector<128x16xf32> -> vector<128x16xf32>
    %c0_123 = arith.constant 0 : index
    %c0_124 = arith.constant 0 : index
    %252 = vector.load %arg14[%c0_123, %c0_124] : memref<1x16xf32, #tpu.memory_space<vmem>>, vector<1x16xf32>
    %253 = vector.broadcast %252 : vector<1x16xf32> to vector<128x16xf32>
    %254 = arith.addf %251, %253 : vector<128x16xf32>
    %c0_125 = arith.constant 0 : index
    %c0_126 = arith.constant 0 : index
    %255 = vector.load %arg13[%c0_125, %c0_126] : memref<16x16xf32, #tpu.memory_space<vmem>>, vector<16x16xf32>
    %cst_127 = arith.constant dense<0.000000e+00> : vector<128x16xf32>
    %256 = tpu.matmul %249, %255, %cst_127 {dimension_numbers = #tpu.dot_dimension_numbers<[1], [0], [0], [1], [0, 0, 1, 1], [], []>} : vector<128x16xf32>, vector<16x16xf32>, vector<128x16xf32> -> vector<128x16xf32>
    %c0_128 = arith.constant 0 : index
    %c0_129 = arith.constant 0 : index
    %257 = vector.load %arg15[%c0_128, %c0_129] : memref<1x16xf32, #tpu.memory_space<vmem>>, vector<1x16xf32>
    %258 = vector.broadcast %257 : vector<1x16xf32> to vector<128x16xf32>
    %259 = arith.addf %256, %258 : vector<128x16xf32>
    %260 = arith.negf %259 : vector<128x16xf32>
    %261 = math.exp %260 : vector<128x16xf32>
    %cst_130 = arith.constant 1.000000e+00 : f32
    %262 = vector.broadcast %cst_130 : f32 to vector<128x16xf32>
    %263 = arith.addf %262, %261 : vector<128x16xf32>
    %264 = arith.divf %262, %263 : vector<128x16xf32>
    %265 = arith.mulf %254, %264 : vector<128x16xf32>
    %c0_131 = arith.constant 0 : index
    %c0_132 = arith.constant 0 : index
    %c0_133 = arith.constant 0 : index
    %266 = vector.load %arg2[%c0_131, %c0_132, %c0_133] : memref<8x16x16xf32, #tpu.memory_space<vmem>>, vector<8x16x16xf32>
    %267 = vector.shape_cast %265 : vector<128x16xf32> to vector<8x16x16xf32>
    %268 = arith.addf %266, %267 : vector<8x16x16xf32>
    %c0_134 = arith.constant 0 : index
    %c0_135 = arith.constant 0 : index
    %c0_136 = arith.constant 0 : index
    %269 = vector.load %arg16[%c0_134, %c0_135, %c0_136] : memref<8x16x16xf32, #tpu.memory_space<vmem>>, vector<8x16x16xf32>
    tpu.vector_store %arg16[%c0_134, %c0_135, %c0_136], %268 {strides = array<i32>} : memref<8x16x16xf32, #tpu.memory_space<vmem>>, vector<8x16x16xf32>,
    %c0_i32_137 = arith.constant 0 : i32
    %270 = arith.cmpi eq, %arg1, %c0_i32_137 : i32
    %271 = arith.extui %270 : i1 to i32
    %c0_i32_138 = arith.constant 0 : i32
    %272 = arith.cmpi ne, %271, %c0_i32_138 : i32
    scf.if %272 {
      %c0_139 = arith.constant 0 : index
      %c0_140 = arith.constant 0 : index
      %c0_141 = arith.constant 0 : index
      %273 = vector.load %arg18[%c0_139, %c0_140, %c0_141] : memref<2x16x32xf32, #tpu.memory_space<vmem>>, vector<2x16x32xf32>
      %c0_142 = arith.constant 0 : index
      %c0_143 = arith.constant 0 : index
      %c0_144 = arith.constant 0 : index
      %274 = vector.load %arg17[%c0_142, %c0_143, %c0_144] : memref<2x16x32xf32, #tpu.memory_space<vmem>>, vector<2x16x32xf32>
      tpu.vector_store %arg17[%c0_142, %c0_143, %c0_144], %273 {strides = array<i32>} : memref<2x16x32xf32, #tpu.memory_space<vmem>>, vector<2x16x32xf32>,
    } else {
    }
    return
  }
  func.func @transform_0(%arg0: i32, %arg1: i32) -> (i32, i32, i32) {
    %c0_i32 = arith.constant 0 : i32
    %c0_i32_0 = arith.constant 0 : i32
    return %arg1, %arg0, %c0_i32 : i32, i32, i32
  }
  func.func @transform_1(%arg0: i32, %arg1: i32) -> (i32, i32, i32) {
    %c0_i32 = arith.constant 0 : i32
    %c0_i32_0 = arith.constant 0 : i32
    %c0_i32_1 = arith.constant 0 : i32
    return %c0_i32, %arg0, %c0_i32_0 : i32, i32, i32
  }
  func.func @transform_2(%arg0: i32, %arg1: i32) -> (i32, i32) {
    %c0_i32 = arith.constant 0 : i32
    %c0_i32_0 = arith.constant 0 : i32
    %c0_i32_1 = arith.constant 0 : i32
    return %c0_i32, %c0_i32_0 : i32, i32
  }
  func.func @transform_3(%arg0: i32, %arg1: i32) -> (i32, i32) {
    %c0_i32 = arith.constant 0 : i32
    %c0_i32_0 = arith.constant 0 : i32
    %c0_i32_1 = arith.constant 0 : i32
    return %c0_i32, %c0_i32_0 : i32, i32
  }
  func.func @transform_4(%arg0: i32, %arg1: i32) -> (i32, i32) {
    %c0_i32 = arith.constant 0 : i32
    %c0_i32_0 = arith.constant 0 : i32
    %c0_i32_1 = arith.constant 0 : i32
    return %c0_i32, %c0_i32_0 : i32, i32
  }
  func.func @transform_5(%arg0: i32, %arg1: i32) -> (i32, i32) {
    %c0_i32 = arith.constant 0 : i32
    %c0_i32_0 = arith.constant 0 : i32
    %c0_i32_1 = arith.constant 0 : i32
    return %c0_i32, %c0_i32_0 : i32, i32
  }
  func.func @transform_6(%arg0: i32, %arg1: i32) -> (i32, i32) {
    %c0_i32 = arith.constant 0 : i32
    %c0_i32_0 = arith.constant 0 : i32
    %c0_i32_1 = arith.constant 0 : i32
    return %c0_i32, %c0_i32_0 : i32, i32
  }
  func.func @transform_7(%arg0: i32, %arg1: i32) -> (i32, i32) {
    %c0_i32 = arith.constant 0 : i32
    %c0_i32_0 = arith.constant 0 : i32
    %c0_i32_1 = arith.constant 0 : i32
    return %c0_i32, %c0_i32_0 : i32, i32
  }
  func.func @transform_8(%arg0: i32, %arg1: i32) -> (i32, i32) {
    %c0_i32 = arith.constant 0 : i32
    %c0_i32_0 = arith.constant 0 : i32
    %c0_i32_1 = arith.constant 0 : i32
    return %c0_i32, %c0_i32_0 : i32, i32
  }
  func.func @transform_9(%arg0: i32, %arg1: i32) -> (i32, i32) {
    %c0_i32 = arith.constant 0 : i32
    %c0_i32_0 = arith.constant 0 : i32
    %c0_i32_1 = arith.constant 0 : i32
    return %c0_i32, %c0_i32_0 : i32, i32
  }
  func.func @transform_10(%arg0: i32, %arg1: i32) -> (i32, i32) {
    %c0_i32 = arith.constant 0 : i32
    %c0_i32_0 = arith.constant 0 : i32
    %c0_i32_1 = arith.constant 0 : i32
    return %c0_i32, %c0_i32_0 : i32, i32
  }
  func.func @transform_11(%arg0: i32, %arg1: i32) -> (i32, i32) {
    %c0_i32 = arith.constant 0 : i32
    %c0_i32_0 = arith.constant 0 : i32
    %c0_i32_1 = arith.constant 0 : i32
    return %c0_i32, %c0_i32_0 : i32, i32
  }
  func.func @transform_12(%arg0: i32, %arg1: i32) -> (i32, i32) {
    %c0_i32 = arith.constant 0 : i32
    %c0_i32_0 = arith.constant 0 : i32
    %c0_i32_1 = arith.constant 0 : i32
    return %c0_i32, %c0_i32_0 : i32, i32
  }
  func.func @transform_13(%arg0: i32, %arg1: i32) -> (i32, i32) {
    %c0_i32 = arith.constant 0 : i32
    %c0_i32_0 = arith.constant 0 : i32
    %c0_i32_1 = arith.constant 0 : i32
    return %c0_i32, %c0_i32_0 : i32, i32
  }
  func.func @transform_14(%arg0: i32, %arg1: i32) -> (i32, i32, i32) {
    %c0_i32 = arith.constant 0 : i32
    %c0_i32_0 = arith.constant 0 : i32
    return %arg1, %arg0, %c0_i32 : i32, i32, i32
  }
  func.func @transform_15(%arg0: i32, %arg1: i32) -> (i32, i32, i32) {
    %c0_i32 = arith.constant 0 : i32
    %c0_i32_0 = arith.constant 0 : i32
    %c0_i32_1 = arith.constant 0 : i32
    return %c0_i32, %arg0, %c0_i32_0 : i32, i32, i32
  }
}

module attributes {stable_mosaic.version = 11 : i64} {
  func.func @seq_layer_kernel(%arg0: i32, %arg1: i32, %arg2: memref<8x16x16xf32, #tpu.memory_space<vmem>>, %arg3: memref<2x16x32xf32, #tpu.memory_space<vmem>>, %arg4: memref<2x32xf32, #tpu.memory_space<vmem>>, %arg5: memref<1x16xf32, #tpu.memory_space<vmem>>, %arg6: memref<1x16xf32, #tpu.memory_space<vmem>>, %arg7: memref<1x16xf32, #tpu.memory_space<vmem>>, %arg8: memref<16x32xf32, #tpu.memory_space<vmem>>, %arg9: memref<16x32xf32, #tpu.memory_space<vmem>>, %arg10: memref<32x16xf32, #tpu.memory_space<vmem>>, %arg11: memref<32x16xf32, #tpu.memory_space<vmem>>, %arg12: memref<16x16xf32, #tpu.memory_space<vmem>>, %arg13: memref<16x16xf32, #tpu.memory_space<vmem>>, %arg14: memref<1x16xf32, #tpu.memory_space<vmem>>, %arg15: memref<1x16xf32, #tpu.memory_space<vmem>>, %arg16: memref<8x16x16xf32, #tpu.memory_space<vmem>>, %arg17: memref<2x16x32xf32, #tpu.memory_space<vmem>>, %arg18: memref<2x16x32xf32, #tpu.memory_space<vmem>>, %arg19: memref<8x16x32xf32, #tpu.memory_space<vmem>>, %arg20: memref<8x16x32xf32, #tpu.memory_space<vmem>>) attributes {dimension_semantics = [#tpu.dimension_semantics<parallel>, #tpu.dimension_semantics<arbitrary>], iteration_bounds = array<i64: 2, 1>, scalar_prefetch = 0 : i64, scratch_operands = 3 : i64, tpu.core_type = #tpu.core_type<tc>, window_params = [{transform_indices = @transform_0, window_bounds = array<i64: 8, 16, 16>}, {transform_indices = @transform_1, window_bounds = array<i64: 2, 16, 32>}, {pipeline_mode = #tpu.pipeline_mode<synchronous>, transform_indices = @transform_2, window_bounds = array<i64: 2, 32>}, {pipeline_mode = #tpu.pipeline_mode<synchronous>, transform_indices = @transform_3, window_bounds = array<i64: 1, 16>}, {pipeline_mode = #tpu.pipeline_mode<synchronous>, transform_indices = @transform_4, window_bounds = array<i64: 1, 16>}, {pipeline_mode = #tpu.pipeline_mode<synchronous>, transform_indices = @transform_5, window_bounds = array<i64: 1, 16>}, {pipeline_mode = #tpu.pipeline_mode<synchronous>, transform_indices = @transform_6, window_bounds = array<i64: 16, 32>}, {pipeline_mode = #tpu.pipeline_mode<synchronous>, transform_indices = @transform_7, window_bounds = array<i64: 16, 32>}, {pipeline_mode = #tpu.pipeline_mode<synchronous>, transform_indices = @transform_8, window_bounds = array<i64: 32, 16>}, {pipeline_mode = #tpu.pipeline_mode<synchronous>, transform_indices = @transform_9, window_bounds = array<i64: 32, 16>}, {pipeline_mode = #tpu.pipeline_mode<synchronous>, transform_indices = @transform_10, window_bounds = array<i64: 16, 16>}, {pipeline_mode = #tpu.pipeline_mode<synchronous>, transform_indices = @transform_11, window_bounds = array<i64: 16, 16>}, {pipeline_mode = #tpu.pipeline_mode<synchronous>, transform_indices = @transform_12, window_bounds = array<i64: 1, 16>}, {pipeline_mode = #tpu.pipeline_mode<synchronous>, transform_indices = @transform_13, window_bounds = array<i64: 1, 16>}, {transform_indices = @transform_14, window_bounds = array<i64: 8, 16, 16>}, {transform_indices = @transform_15, window_bounds = array<i64: 2, 16, 32>}]} {
    %c0_i32 = arith.constant 0 : i32
    %0 = arith.cmpi eq, %arg1, %c0_i32 : i32
    %1 = arith.extui %0 : i1 to i32
    %c0_i32_0 = arith.constant 0 : i32
    %2 = arith.cmpi ne, %1, %c0_i32_0 : i32
    scf.if %2 {
      %c0_139 = arith.constant 0 : index
      %c0_140 = arith.constant 0 : index
      %c0_141 = arith.constant 0 : index
      %273 = vector.load %arg3[%c0_139, %c0_140, %c0_141] : memref<2x16x32xf32, #tpu.memory_space<vmem>>, vector<2x16x32xf32>
      %c0_142 = arith.constant 0 : index
      %c0_143 = arith.constant 0 : index
      %c0_144 = arith.constant 0 : index
      %274 = vector.load %arg18[%c0_142, %c0_143, %c0_144] : memref<2x16x32xf32, #tpu.memory_space<vmem>>, vector<2x16x32xf32>
      tpu.vector_store %arg18[%c0_142, %c0_143, %c0_144], %273 {strides = array<i32>} : memref<2x16x32xf32, #tpu.memory_space<vmem>>, vector<2x16x32xf32>,
    } else {
    }
    %c0 = arith.constant 0 : index
    %c0_1 = arith.constant 0 : index
    %c0_2 = arith.constant 0 : index
    %3 = vector.load %arg2[%c0, %c0_1, %c0_2] : memref<8x16x16xf32, #tpu.memory_space<vmem>>, vector<8x16x16xf32>
    %4 = vector.shape_cast %3 : vector<8x16x16xf32> to vector<128x16xf32>
    %cst = arith.constant dense<0.000000e+00> : vector<128xf32>
    %5 = vector.multi_reduction <add>, %4, %cst [1] : vector<128x16xf32> to vector<128xf32>
    %6 = vector.shape_cast %5 : vector<128xf32> to vector<128x1xf32>
    %cst_3 = arith.constant 1.600000e+01 : f32
    %7 = vector.broadcast %cst_3 : f32 to vector<128x1xf32>
    %8 = arith.divf %6, %7 : vector<128x1xf32>
    %9 = vector.broadcast %8 : vector<128x1xf32> to vector<128x16xf32>
    %10 = arith.subf %4, %9 : vector<128x16xf32>
    %11 = arith.mulf %10, %10 : vector<128x16xf32>
    %cst_4 = arith.constant dense<0.000000e+00> : vector<128xf32>
    %12 = vector.multi_reduction <add>, %11, %cst_4 [1] : vector<128x16xf32> to vector<128xf32>
    %13 = vector.shape_cast %12 : vector<128xf32> to vector<128x1xf32>
    %cst_5 = arith.constant 1.600000e+01 : f32
    %14 = vector.broadcast %cst_5 : f32 to vector<128x1xf32>
    %15 = arith.divf %13, %14 : vector<128x1xf32>
    %16 = vector.broadcast %8 : vector<128x1xf32> to vector<128x16xf32>
    %17 = arith.subf %4, %16 : vector<128x16xf32>
    %cst_6 = arith.constant 9.99999974E-6 : f32
    %18 = vector.broadcast %cst_6 : f32 to vector<128x1xf32>
    %19 = arith.addf %15, %18 : vector<128x1xf32>
    %20 = math.rsqrt %19 : vector<128x1xf32>
    %21 = vector.broadcast %20 : vector<128x1xf32> to vector<128x16xf32>
    %22 = arith.mulf %17, %21 : vector<128x16xf32>
    %c0_7 = arith.constant 0 : index
    %c0_8 = arith.constant 0 : index
    %23 = vector.load %arg5[%c0_7, %c0_8] : memref<1x16xf32, #tpu.memory_space<vmem>>, vector<1x16xf32>
    %24 = vector.broadcast %23 : vector<1x16xf32> to vector<128x16xf32>
    %25 = arith.mulf %22, %24 : vector<128x16xf32>
    %c0_9 = arith.constant 0 : index
    %c0_10 = arith.constant 0 : index
    %26 = vector.load %arg6[%c0_9, %c0_10] : memref<1x16xf32, #tpu.memory_space<vmem>>, vector<1x16xf32>
    %27 = vector.broadcast %26 : vector<1x16xf32> to vector<128x16xf32>
    %28 = arith.addf %25, %27 : vector<128x16xf32>
    %c0_11 = arith.constant 0 : index
    %c0_12 = arith.constant 0 : index
    %29 = vector.load %arg8[%c0_11, %c0_12] : memref<16x32xf32, #tpu.memory_space<vmem>>, vector<16x32xf32>
    %cst_13 = arith.constant dense<0.000000e+00> : vector<128x32xf32>
    %30 = tpu.matmul %28, %29, %cst_13 {dimension_numbers = #tpu.dot_dimension_numbers<[1], [0], [0], [1], [0, 0, 1, 1], [], []>} : vector<128x16xf32>, vector<16x32xf32>, vector<128x32xf32> -> vector<128x32xf32>
    %c0_14 = arith.constant 0 : index
    %c0_15 = arith.constant 0 : index
    %31 = vector.load %arg9[%c0_14, %c0_15] : memref<16x32xf32, #tpu.memory_space<vmem>>, vector<16x32xf32>
    %cst_16 = arith.constant dense<0.000000e+00> : vector<128x32xf32>
    %32 = tpu.matmul %28, %31, %cst_16 {dimension_numbers = #tpu.dot_dimension_numbers<[1], [0], [0], [1], [0, 0, 1, 1], [], []>} : vector<128x16xf32>, vector<16x32xf32>, vector<128x32xf32> -> vector<128x32xf32>
    %33 = vector.shape_cast %30 : vector<128x32xf32> to vector<8x16x32xf32>
    %c0_17 = arith.constant 0 : index
    %c0_18 = arith.constant 0 : index
    %c0_19 = arith.constant 0 : index
    %34 = vector.load %arg19[%c0_17, %c0_18, %c0_19] : memref<8x16x32xf32, #tpu.memory_space<vmem>>, vector<8x16x32xf32>
    tpu.vector_store %arg19[%c0_17, %c0_18, %c0_19], %33 {strides = array<i32>} : memref<8x16x32xf32, #tpu.memory_space<vmem>>, vector<8x16x32xf32>,
    %35 = vector.shape_cast %32 : vector<128x32xf32> to vector<8x16x32xf32>
    %c0_20 = arith.constant 0 : index
    %c0_21 = arith.constant 0 : index
    %c0_22 = arith.constant 0 : index
    %36 = vector.load %arg20[%c0_20, %c0_21, %c0_22] : memref<8x16x32xf32, #tpu.memory_space<vmem>>, vector<8x16x32xf32>
    tpu.vector_store %arg20[%c0_20, %c0_21, %c0_22], %35 {strides = array<i32>} : memref<8x16x32xf32, #tpu.memory_space<vmem>>, vector<8x16x32xf32>,
    %c0_23 = arith.constant 0 : index
    %c0_24 = arith.constant 0 : index
    %37 = vector.load %arg4[%c0_23, %c0_24] : memref<2x32xf32, #tpu.memory_space<vmem>>, vector<1x32xf32>
    %38 = vector.shape_cast %37 : vector<1x32xf32> to vector<1x32xf32>
    %39 = vector.broadcast %38 : vector<1x32xf32> to vector<16x32xf32>
    %c1 = arith.constant 1 : index
    %c0_25 = arith.constant 0 : index
    %40 = vector.load %arg4[%c1, %c0_25] : memref<2x32xf32, #tpu.memory_space<vmem>>, vector<1x32xf32>
    %41 = vector.shape_cast %40 : vector<1x32xf32> to vector<1x32xf32>
    %42 = vector.broadcast %41 : vector<1x32xf32> to vector<16x32xf32>
    %c0_26 = arith.constant 0 : index
    %c0_27 = arith.constant 0 : index
    %c0_28 = arith.constant 0 : index
    %43 = vector.load %arg18[%c0_26, %c0_27, %c0_28] : memref<2x16x32xf32, #tpu.memory_space<vmem>>, vector<1x16x32xf32>
    %44 = vector.shape_cast %43 : vector<1x16x32xf32> to vector<16x32xf32>
    %c1_29 = arith.constant 1 : index
    %c0_30 = arith.constant 0 : index
    %c0_31 = arith.constant 0 : index
    %45 = vector.load %arg18[%c1_29, %c0_30, %c0_31] : memref<2x16x32xf32, #tpu.memory_space<vmem>>, vector<1x16x32xf32>
    %46 = vector.shape_cast %45 : vector<1x16x32xf32> to vector<16x32xf32>
    %c0_i32_32 = arith.constant 0 : i32
    %47 = arith.index_cast %c0_i32_32 : i32 to index
    %c0_33 = arith.constant 0 : index
    %c0_34 = arith.constant 0 : index
    %48 = vector.load %arg19[%47, %c0_33, %c0_34] : memref<8x16x32xf32, #tpu.memory_space<vmem>>, vector<1x16x32xf32>
    %49 = vector.shape_cast %48 : vector<1x16x32xf32> to vector<16x32xf32>
    %50 = arith.index_cast %c0_i32_32 : i32 to index
    %c0_35 = arith.constant 0 : index
    %c0_36 = arith.constant 0 : index
    %51 = vector.load %arg20[%50, %c0_35, %c0_36] : memref<8x16x32xf32, #tpu.memory_space<vmem>>, vector<1x16x32xf32>
    %52 = vector.shape_cast %51 : vector<1x16x32xf32> to vector<16x32xf32>
    %53 = arith.mulf %44, %39 : vector<16x32xf32>
    %54 = arith.mulf %46, %42 : vector<16x32xf32>
    %55 = arith.subf %53, %54 : vector<16x32xf32>
    %56 = arith.addf %55, %49 : vector<16x32xf32>
    %57 = arith.mulf %44, %42 : vector<16x32xf32>
    %58 = arith.mulf %46, %39 : vector<16x32xf32>
    %59 = arith.addf %57, %58 : vector<16x32xf32>
    %60 = arith.addf %59, %52 : vector<16x32xf32>
    %61 = arith.index_cast %c0_i32_32 : i32 to index
    %c0_37 = arith.constant 0 : index
    %c0_38 = arith.constant 0 : index
    %62 = vector.load %arg19[%61, %c0_37, %c0_38] : memref<8x16x32xf32, #tpu.memory_space<vmem>>, vector<1x16x32xf32>
    %63 = vector.shape_cast %62 : vector<1x16x32xf32> to vector<16x32xf32>
    %64 = vector.shape_cast %56 : vector<16x32xf32> to vector<1x16x32xf32>
    tpu.vector_store %arg19[%61, %c0_37, %c0_38], %64 {strides = array<i32>} : memref<8x16x32xf32, #tpu.memory_space<vmem>>, vector<1x16x32xf32>,
    %65 = arith.index_cast %c0_i32_32 : i32 to index
    %c0_39 = arith.constant 0 : index
    %c0_40 = arith.constant 0 : index
    %66 = vector.load %arg20[%65, %c0_39, %c0_40] : memref<8x16x32xf32, #tpu.memory_space<vmem>>, vector<1x16x32xf32>
    %67 = vector.shape_cast %66 : vector<1x16x32xf32> to vector<16x32xf32>
    %68 = vector.shape_cast %60 : vector<16x32xf32> to vector<1x16x32xf32>
    tpu.vector_store %arg20[%65, %c0_39, %c0_40], %68 {strides = array<i32>} : memref<8x16x32xf32, #tpu.memory_space<vmem>>, vector<1x16x32xf32>,
    %c1_i32 = arith.constant 1 : i32
    %69 = arith.index_cast %c1_i32 : i32 to index
    %c0_41 = arith.constant 0 : index
    %c0_42 = arith.constant 0 : index
    %70 = vector.load %arg19[%69, %c0_41, %c0_42] : memref<8x16x32xf32, #tpu.memory_space<vmem>>, vector<1x16x32xf32>
    %71 = vector.shape_cast %70 : vector<1x16x32xf32> to vector<16x32xf32>
    %72 = arith.index_cast %c1_i32 : i32 to index
    %c0_43 = arith.constant 0 : index
    %c0_44 = arith.constant 0 : index
    %73 = vector.load %arg20[%72, %c0_43, %c0_44] : memref<8x16x32xf32, #tpu.memory_space<vmem>>, vector<1x16x32xf32>
    %74 = vector.shape_cast %73 : vector<1x16x32xf32> to vector<16x32xf32>
    %75 = arith.mulf %56, %39 : vector<16x32xf32>
    %76 = arith.mulf %60, %42 : vector<16x32xf32>
    %77 = arith.subf %75, %76 : vector<16x32xf32>
    %78 = arith.addf %77, %71 : vector<16x32xf32>
    %79 = arith.mulf %56, %42 : vector<16x32xf32>
    %80 = arith.mulf %60, %39 : vector<16x32xf32>
    %81 = arith.addf %79, %80 : vector<16x32xf32>
    %82 = arith.addf %81, %74 : vector<16x32xf32>
    %83 = arith.index_cast %c1_i32 : i32 to index
    %c0_45 = arith.constant 0 : index
    %c0_46 = arith.constant 0 : index
    %84 = vector.load %arg19[%83, %c0_45, %c0_46] : memref<8x16x32xf32, #tpu.memory_space<vmem>>, vector<1x16x32xf32>
    %85 = vector.shape_cast %84 : vector<1x16x32xf32> to vector<16x32xf32>
    %86 = vector.shape_cast %78 : vector<16x32xf32> to vector<1x16x32xf32>
    tpu.vector_store %arg19[%83, %c0_45, %c0_46], %86 {strides = array<i32>} : memref<8x16x32xf32, #tpu.memory_space<vmem>>, vector<1x16x32xf32>,
    %87 = arith.index_cast %c1_i32 : i32 to index
    %c0_47 = arith.constant 0 : index
    %c0_48 = arith.constant 0 : index
    %88 = vector.load %arg20[%87, %c0_47, %c0_48] : memref<8x16x32xf32, #tpu.memory_space<vmem>>, vector<1x16x32xf32>
    %89 = vector.shape_cast %88 : vector<1x16x32xf32> to vector<16x32xf32>
    %90 = vector.shape_cast %82 : vector<16x32xf32> to vector<1x16x32xf32>
    tpu.vector_store %arg20[%87, %c0_47, %c0_48], %90 {strides = array<i32>} : memref<8x16x32xf32, #tpu.memory_space<vmem>>, vector<1x16x32xf32>,
    %c2_i32 = arith.constant 2 : i32
    %91 = arith.index_cast %c2_i32 : i32 to index
    %c0_49 = arith.constant 0 : index
    %c0_50 = arith.constant 0 : index
    %92 = vector.load %arg19[%91, %c0_49, %c0_50] : memref<8x16x32xf32, #tpu.memory_space<vmem>>, vector<1x16x32xf32>
    %93 = vector.shape_cast %92 : vector<1x16x32xf32> to vector<16x32xf32>
    %94 = arith.index_cast %c2_i32 : i32 to index
    %c0_51 = arith.constant 0 : index
    %c0_52 = arith.constant 0 : index
    %95 = vector.load %arg20[%94, %c0_51, %c0_52] : memref<8x16x32xf32, #tpu.memory_space<vmem>>, vector<1x16x32xf32>
    %96 = vector.shape_cast %95 : vector<1x16x32xf32> to vector<16x32xf32>
    %97 = arith.mulf %78, %39 : vector<16x32xf32>
    %98 = arith.mulf %82, %42 : vector<16x32xf32>
    %99 = arith.subf %97, %98 : vector<16x32xf32>
    %100 = arith.addf %99, %93 : vector<16x32xf32>
    %101 = arith.mulf %78, %42 : vector<16x32xf32>
    %102 = arith.mulf %82, %39 : vector<16x32xf32>
    %103 = arith.addf %101, %102 : vector<16x32xf32>
    %104 = arith.addf %103, %96 : vector<16x32xf32>
    %105 = arith.index_cast %c2_i32 : i32 to index
    %c0_53 = arith.constant 0 : index
    %c0_54 = arith.constant 0 : index
    %106 = vector.load %arg19[%105, %c0_53, %c0_54] : memref<8x16x32xf32, #tpu.memory_space<vmem>>, vector<1x16x32xf32>
    %107 = vector.shape_cast %106 : vector<1x16x32xf32> to vector<16x32xf32>
    %108 = vector.shape_cast %100 : vector<16x32xf32> to vector<1x16x32xf32>
    tpu.vector_store %arg19[%105, %c0_53, %c0_54], %108 {strides = array<i32>} : memref<8x16x32xf32, #tpu.memory_space<vmem>>, vector<1x16x32xf32>,
    %109 = arith.index_cast %c2_i32 : i32 to index
    %c0_55 = arith.constant 0 : index
    %c0_56 = arith.constant 0 : index
    %110 = vector.load %arg20[%109, %c0_55, %c0_56] : memref<8x16x32xf32, #tpu.memory_space<vmem>>, vector<1x16x32xf32>
    %111 = vector.shape_cast %110 : vector<1x16x32xf32> to vector<16x32xf32>
    %112 = vector.shape_cast %104 : vector<16x32xf32> to vector<1x16x32xf32>
    tpu.vector_store %arg20[%109, %c0_55, %c0_56], %112 {strides = array<i32>} : memref<8x16x32xf32, #tpu.memory_space<vmem>>, vector<1x16x32xf32>,
    %c3_i32 = arith.constant 3 : i32
    %113 = arith.index_cast %c3_i32 : i32 to index
    %c0_57 = arith.constant 0 : index
    %c0_58 = arith.constant 0 : index
    %114 = vector.load %arg19[%113, %c0_57, %c0_58] : memref<8x16x32xf32, #tpu.memory_space<vmem>>, vector<1x16x32xf32>
    %115 = vector.shape_cast %114 : vector<1x16x32xf32> to vector<16x32xf32>
    %116 = arith.index_cast %c3_i32 : i32 to index
    %c0_59 = arith.constant 0 : index
    %c0_60 = arith.constant 0 : index
    %117 = vector.load %arg20[%116, %c0_59, %c0_60] : memref<8x16x32xf32, #tpu.memory_space<vmem>>, vector<1x16x32xf32>
    %118 = vector.shape_cast %117 : vector<1x16x32xf32> to vector<16x32xf32>
    %119 = arith.mulf %100, %39 : vector<16x32xf32>
    %120 = arith.mulf %104, %42 : vector<16x32xf32>
    %121 = arith.subf %119, %120 : vector<16x32xf32>
    %122 = arith.addf %121, %115 : vector<16x32xf32>
    %123 = arith.mulf %100, %42 : vector<16x32xf32>
    %124 = arith.mulf %104, %39 : vector<16x32xf32>
    %125 = arith.addf %123, %124 : vector<16x32xf32>
    %126 = arith.addf %125, %118 : vector<16x32xf32>
    %127 = arith.index_cast %c3_i32 : i32 to index
    %c0_61 = arith.constant 0 : index
    %c0_62 = arith.constant 0 : index
    %128 = vector.load %arg19[%127, %c0_61, %c0_62] : memref<8x16x32xf32, #tpu.memory_space<vmem>>, vector<1x16x32xf32>
    %129 = vector.shape_cast %128 : vector<1x16x32xf32> to vector<16x32xf32>
    %130 = vector.shape_cast %122 : vector<16x32xf32> to vector<1x16x32xf32>
    tpu.vector_store %arg19[%127, %c0_61, %c0_62], %130 {strides = array<i32>} : memref<8x16x32xf32, #tpu.memory_space<vmem>>, vector<1x16x32xf32>,
    %131 = arith.index_cast %c3_i32 : i32 to index
    %c0_63 = arith.constant 0 : index
    %c0_64 = arith.constant 0 : index
    %132 = vector.load %arg20[%131, %c0_63, %c0_64] : memref<8x16x32xf32, #tpu.memory_space<vmem>>, vector<1x16x32xf32>
    %133 = vector.shape_cast %132 : vector<1x16x32xf32> to vector<16x32xf32>
    %134 = vector.shape_cast %126 : vector<16x32xf32> to vector<1x16x32xf32>
    tpu.vector_store %arg20[%131, %c0_63, %c0_64], %134 {strides = array<i32>} : memref<8x16x32xf32, #tpu.memory_space<vmem>>, vector<1x16x32xf32>,
    %c4_i32 = arith.constant 4 : i32
    %135 = arith.index_cast %c4_i32 : i32 to index
    %c0_65 = arith.constant 0 : index
    %c0_66 = arith.constant 0 : index
    %136 = vector.load %arg19[%135, %c0_65, %c0_66] : memref<8x16x32xf32, #tpu.memory_space<vmem>>, vector<1x16x32xf32>
    %137 = vector.shape_cast %136 : vector<1x16x32xf32> to vector<16x32xf32>
    %138 = arith.index_cast %c4_i32 : i32 to index
    %c0_67 = arith.constant 0 : index
    %c0_68 = arith.constant 0 : index
    %139 = vector.load %arg20[%138, %c0_67, %c0_68] : memref<8x16x32xf32, #tpu.memory_space<vmem>>, vector<1x16x32xf32>
    %140 = vector.shape_cast %139 : vector<1x16x32xf32> to vector<16x32xf32>
    %141 = arith.mulf %122, %39 : vector<16x32xf32>
    %142 = arith.mulf %126, %42 : vector<16x32xf32>
    %143 = arith.subf %141, %142 : vector<16x32xf32>
    %144 = arith.addf %143, %137 : vector<16x32xf32>
    %145 = arith.mulf %122, %42 : vector<16x32xf32>
    %146 = arith.mulf %126, %39 : vector<16x32xf32>
    %147 = arith.addf %145, %146 : vector<16x32xf32>
    %148 = arith.addf %147, %140 : vector<16x32xf32>
    %149 = arith.index_cast %c4_i32 : i32 to index
    %c0_69 = arith.constant 0 : index
    %c0_70 = arith.constant 0 : index
    %150 = vector.load %arg19[%149, %c0_69, %c0_70] : memref<8x16x32xf32, #tpu.memory_space<vmem>>, vector<1x16x32xf32>
    %151 = vector.shape_cast %150 : vector<1x16x32xf32> to vector<16x32xf32>
    %152 = vector.shape_cast %144 : vector<16x32xf32> to vector<1x16x32xf32>
    tpu.vector_store %arg19[%149, %c0_69, %c0_70], %152 {strides = array<i32>} : memref<8x16x32xf32, #tpu.memory_space<vmem>>, vector<1x16x32xf32>,
    %153 = arith.index_cast %c4_i32 : i32 to index
    %c0_71 = arith.constant 0 : index
    %c0_72 = arith.constant 0 : index
    %154 = vector.load %arg20[%153, %c0_71, %c0_72] : memref<8x16x32xf32, #tpu.memory_space<vmem>>, vector<1x16x32xf32>
    %155 = vector.shape_cast %154 : vector<1x16x32xf32> to vector<16x32xf32>
    %156 = vector.shape_cast %148 : vector<16x32xf32> to vector<1x16x32xf32>
    tpu.vector_store %arg20[%153, %c0_71, %c0_72], %156 {strides = array<i32>} : memref<8x16x32xf32, #tpu.memory_space<vmem>>, vector<1x16x32xf32>,
    %c5_i32 = arith.constant 5 : i32
    %157 = arith.index_cast %c5_i32 : i32 to index
    %c0_73 = arith.constant 0 : index
    %c0_74 = arith.constant 0 : index
    %158 = vector.load %arg19[%157, %c0_73, %c0_74] : memref<8x16x32xf32, #tpu.memory_space<vmem>>, vector<1x16x32xf32>
    %159 = vector.shape_cast %158 : vector<1x16x32xf32> to vector<16x32xf32>
    %160 = arith.index_cast %c5_i32 : i32 to index
    %c0_75 = arith.constant 0 : index
    %c0_76 = arith.constant 0 : index
    %161 = vector.load %arg20[%160, %c0_75, %c0_76] : memref<8x16x32xf32, #tpu.memory_space<vmem>>, vector<1x16x32xf32>
    %162 = vector.shape_cast %161 : vector<1x16x32xf32> to vector<16x32xf32>
    %163 = arith.mulf %144, %39 : vector<16x32xf32>
    %164 = arith.mulf %148, %42 : vector<16x32xf32>
    %165 = arith.subf %163, %164 : vector<16x32xf32>
    %166 = arith.addf %165, %159 : vector<16x32xf32>
    %167 = arith.mulf %144, %42 : vector<16x32xf32>
    %168 = arith.mulf %148, %39 : vector<16x32xf32>
    %169 = arith.addf %167, %168 : vector<16x32xf32>
    %170 = arith.addf %169, %162 : vector<16x32xf32>
    %171 = arith.index_cast %c5_i32 : i32 to index
    %c0_77 = arith.constant 0 : index
    %c0_78 = arith.constant 0 : index
    %172 = vector.load %arg19[%171, %c0_77, %c0_78] : memref<8x16x32xf32, #tpu.memory_space<vmem>>, vector<1x16x32xf32>
    %173 = vector.shape_cast %172 : vector<1x16x32xf32> to vector<16x32xf32>
    %174 = vector.shape_cast %166 : vector<16x32xf32> to vector<1x16x32xf32>
    tpu.vector_store %arg19[%171, %c0_77, %c0_78], %174 {strides = array<i32>} : memref<8x16x32xf32, #tpu.memory_space<vmem>>, vector<1x16x32xf32>,
    %175 = arith.index_cast %c5_i32 : i32 to index
    %c0_79 = arith.constant 0 : index
    %c0_80 = arith.constant 0 : index
    %176 = vector.load %arg20[%175, %c0_79, %c0_80] : memref<8x16x32xf32, #tpu.memory_space<vmem>>, vector<1x16x32xf32>
    %177 = vector.shape_cast %176 : vector<1x16x32xf32> to vector<16x32xf32>
    %178 = vector.shape_cast %170 : vector<16x32xf32> to vector<1x16x32xf32>
    tpu.vector_store %arg20[%175, %c0_79, %c0_80], %178 {strides = array<i32>} : memref<8x16x32xf32, #tpu.memory_space<vmem>>, vector<1x16x32xf32>,
    %c6_i32 = arith.constant 6 : i32
    %179 = arith.index_cast %c6_i32 : i32 to index
    %c0_81 = arith.constant 0 : index
    %c0_82 = arith.constant 0 : index
    %180 = vector.load %arg19[%179, %c0_81, %c0_82] : memref<8x16x32xf32, #tpu.memory_space<vmem>>, vector<1x16x32xf32>
    %181 = vector.shape_cast %180 : vector<1x16x32xf32> to vector<16x32xf32>
    %182 = arith.index_cast %c6_i32 : i32 to index
    %c0_83 = arith.constant 0 : index
    %c0_84 = arith.constant 0 : index
    %183 = vector.load %arg20[%182, %c0_83, %c0_84] : memref<8x16x32xf32, #tpu.memory_space<vmem>>, vector<1x16x32xf32>
    %184 = vector.shape_cast %183 : vector<1x16x32xf32> to vector<16x32xf32>
    %185 = arith.mulf %166, %39 : vector<16x32xf32>
    %186 = arith.mulf %170, %42 : vector<16x32xf32>
    %187 = arith.subf %185, %186 : vector<16x32xf32>
    %188 = arith.addf %187, %181 : vector<16x32xf32>
    %189 = arith.mulf %166, %42 : vector<16x32xf32>
    %190 = arith.mulf %170, %39 : vector<16x32xf32>
    %191 = arith.addf %189, %190 : vector<16x32xf32>
    %192 = arith.addf %191, %184 : vector<16x32xf32>
    %193 = arith.index_cast %c6_i32 : i32 to index
    %c0_85 = arith.constant 0 : index
    %c0_86 = arith.constant 0 : index
    %194 = vector.load %arg19[%193, %c0_85, %c0_86] : memref<8x16x32xf32, #tpu.memory_space<vmem>>, vector<1x16x32xf32>
    %195 = vector.shape_cast %194 : vector<1x16x32xf32> to vector<16x32xf32>
    %196 = vector.shape_cast %188 : vector<16x32xf32> to vector<1x16x32xf32>
    tpu.vector_store %arg19[%193, %c0_85, %c0_86], %196 {strides = array<i32>} : memref<8x16x32xf32, #tpu.memory_space<vmem>>, vector<1x16x32xf32>,
    %197 = arith.index_cast %c6_i32 : i32 to index
    %c0_87 = arith.constant 0 : index
    %c0_88 = arith.constant 0 : index
    %198 = vector.load %arg20[%197, %c0_87, %c0_88] : memref<8x16x32xf32, #tpu.memory_space<vmem>>, vector<1x16x32xf32>
    %199 = vector.shape_cast %198 : vector<1x16x32xf32> to vector<16x32xf32>
    %200 = vector.shape_cast %192 : vector<16x32xf32> to vector<1x16x32xf32>
    tpu.vector_store %arg20[%197, %c0_87, %c0_88], %200 {strides = array<i32>} : memref<8x16x32xf32, #tpu.memory_space<vmem>>, vector<1x16x32xf32>,
    %c7_i32 = arith.constant 7 : i32
    %201 = arith.index_cast %c7_i32 : i32 to index
    %c0_89 = arith.constant 0 : index
    %c0_90 = arith.constant 0 : index
    %202 = vector.load %arg19[%201, %c0_89, %c0_90] : memref<8x16x32xf32, #tpu.memory_space<vmem>>, vector<1x16x32xf32>
    %203 = vector.shape_cast %202 : vector<1x16x32xf32> to vector<16x32xf32>
    %204 = arith.index_cast %c7_i32 : i32 to index
    %c0_91 = arith.constant 0 : index
    %c0_92 = arith.constant 0 : index
    %205 = vector.load %arg20[%204, %c0_91, %c0_92] : memref<8x16x32xf32, #tpu.memory_space<vmem>>, vector<1x16x32xf32>
    %206 = vector.shape_cast %205 : vector<1x16x32xf32> to vector<16x32xf32>
    %207 = arith.mulf %188, %39 : vector<16x32xf32>
    %208 = arith.mulf %192, %42 : vector<16x32xf32>
    %209 = arith.subf %207, %208 : vector<16x32xf32>
    %210 = arith.addf %209, %203 : vector<16x32xf32>
    %211 = arith.mulf %188, %42 : vector<16x32xf32>
    %212 = arith.mulf %192, %39 : vector<16x32xf32>
    %213 = arith.addf %211, %212 : vector<16x32xf32>
    %214 = arith.addf %213, %206 : vector<16x32xf32>
    %215 = arith.index_cast %c7_i32 : i32 to index
    %c0_93 = arith.constant 0 : index
    %c0_94 = arith.constant 0 : index
    %216 = vector.load %arg19[%215, %c0_93, %c0_94] : memref<8x16x32xf32, #tpu.memory_space<vmem>>, vector<1x16x32xf32>
    %217 = vector.shape_cast %216 : vector<1x16x32xf32> to vector<16x32xf32>
    %218 = vector.shape_cast %210 : vector<16x32xf32> to vector<1x16x32xf32>
    tpu.vector_store %arg19[%215, %c0_93, %c0_94], %218 {strides = array<i32>} : memref<8x16x32xf32, #tpu.memory_space<vmem>>, vector<1x16x32xf32>,
    %219 = arith.index_cast %c7_i32 : i32 to index
    %c0_95 = arith.constant 0 : index
    %c0_96 = arith.constant 0 : index
    %220 = vector.load %arg20[%219, %c0_95, %c0_96] : memref<8x16x32xf32, #tpu.memory_space<vmem>>, vector<1x16x32xf32>
    %221 = vector.shape_cast %220 : vector<1x16x32xf32> to vector<16x32xf32>
    %222 = vector.shape_cast %214 : vector<16x32xf32> to vector<1x16x32xf32>
    tpu.vector_store %arg20[%219, %c0_95, %c0_96], %222 {strides = array<i32>} : memref<8x16x32xf32, #tpu.memory_space<vmem>>, vector<1x16x32xf32>,
    %c8_i32 = arith.constant 8 : i32
    %c0_97 = arith.constant 0 : index
    %c0_98 = arith.constant 0 : index
    %c0_99 = arith.constant 0 : index
    %223 = vector.load %arg18[%c0_97, %c0_98, %c0_99] : memref<2x16x32xf32, #tpu.memory_space<vmem>>, vector<1x16x32xf32>
    %224 = vector.shape_cast %223 : vector<1x16x32xf32> to vector<16x32xf32>
    %225 = vector.shape_cast %210 : vector<16x32xf32> to vector<1x16x32xf32>
    tpu.vector_store %arg18[%c0_97, %c0_98, %c0_99], %225 {strides = array<i32>} : memref<2x16x32xf32, #tpu.memory_space<vmem>>, vector<1x16x32xf32>,
    %c1_100 = arith.constant 1 : index
    %c0_101 = arith.constant 0 : index
    %c0_102 = arith.constant 0 : index
    %226 = vector.load %arg18[%c1_100, %c0_101, %c0_102] : memref<2x16x32xf32, #tpu.memory_space<vmem>>, vector<1x16x32xf32>
    %227 = vector.shape_cast %226 : vector<1x16x32xf32> to vector<16x32xf32>
    %228 = vector.shape_cast %214 : vector<16x32xf32> to vector<1x16x32xf32>
    tpu.vector_store %arg18[%c1_100, %c0_101, %c0_102], %228 {strides = array<i32>} : memref<2x16x32xf32, #tpu.memory_space<vmem>>, vector<1x16x32xf32>,
    %c0_103 = arith.constant 0 : index
    %c0_104 = arith.constant 0 : index
    %c0_105 = arith.constant 0 : index
    %229 = vector.load %arg19[%c0_103, %c0_104, %c0_105] : memref<8x16x32xf32, #tpu.memory_space<vmem>>, vector<8x16x32xf32>
    %230 = vector.shape_cast %229 : vector<8x16x32xf32> to vector<128x32xf32>
    %c0_106 = arith.constant 0 : index
    %c0_107 = arith.constant 0 : index
    %231 = vector.load %arg10[%c0_106, %c0_107] : memref<32x16xf32, #tpu.memory_space<vmem>>, vector<32x16xf32>
    %cst_108 = arith.constant dense<0.000000e+00> : vector<128x16xf32>
    %232 = tpu.matmul %230, %231, %cst_108 {dimension_numbers = #tpu.dot_dimension_numbers<[1], [0], [0], [1], [0, 0, 1, 1], [], []>} : vector<128x32xf32>, vector<32x16xf32>, vector<128x16xf32> -> vector<128x16xf32>
    %c0_109 = arith.constant 0 : index
    %c0_110 = arith.constant 0 : index
    %c0_111 = arith.constant 0 : index
    %233 = vector.load %arg20[%c0_109, %c0_110, %c0_111] : memref<8x16x32xf32, #tpu.memory_space<vmem>>, vector<8x16x32xf32>
    %234 = vector.shape_cast %233 : vector<8x16x32xf32> to vector<128x32xf32>
    %c0_112 = arith.constant 0 : index
    %c0_113 = arith.constant 0 : index
    %235 = vector.load %arg11[%c0_112, %c0_113] : memref<32x16xf32, #tpu.memory_space<vmem>>, vector<32x16xf32>
    %cst_114 = arith.constant dense<0.000000e+00> : vector<128x16xf32>
    %236 = tpu.matmul %234, %235, %cst_114 {dimension_numbers = #tpu.dot_dimension_numbers<[1], [0], [0], [1], [0, 0, 1, 1], [], []>} : vector<128x32xf32>, vector<32x16xf32>, vector<128x16xf32> -> vector<128x16xf32>
    %237 = arith.addf %232, %236 : vector<128x16xf32>
    %c0_115 = arith.constant 0 : index
    %c0_116 = arith.constant 0 : index
    %238 = vector.load %arg7[%c0_115, %c0_116] : memref<1x16xf32, #tpu.memory_space<vmem>>, vector<1x16xf32>
    %239 = vector.broadcast %238 : vector<1x16xf32> to vector<128x16xf32>
    %240 = arith.mulf %239, %28 : vector<128x16xf32>
    %241 = arith.addf %237, %240 : vector<128x16xf32>
    %cst_117 = arith.constant 5.000000e-01 : f32
    %242 = vector.broadcast %cst_117 : f32 to vector<128x16xf32>
    %243 = arith.mulf %242, %241 : vector<128x16xf32>
    %cst_118 = arith.constant 0.707106769 : f32
    %244 = vector.broadcast %cst_118 : f32 to vector<128x16xf32>
    %245 = arith.mulf %241, %244 : vector<128x16xf32>
    %246 = math.erf %245 : vector<128x16xf32>
    %cst_119 = arith.constant 1.000000e+00 : f32
    %247 = vector.broadcast %cst_119 : f32 to vector<128x16xf32>
    %248 = arith.addf %247, %246 : vector<128x16xf32>
    %249 = arith.mulf %243, %248 : vector<128x16xf32>
    %c0_120 = arith.constant 0 : index
    %c0_121 = arith.constant 0 : index
    %250 = vector.load %arg12[%c0_120, %c0_121] : memref<16x16xf32, #tpu.memory_space<vmem>>, vector<16x16xf32>
    %cst_122 = arith.constant dense<0.000000e+00> : vector<128x16xf32>
    %251 = tpu.matmul %249, %250, %cst_122 {dimension_numbers = #tpu.dot_dimension_numbers<[1], [0], [0], [1], [0, 0, 1, 1], [], []>} : vector<128x16xf32>, vector<16x16xf32>, vector<128x16xf32> -> vector<128x16xf32>
    %c0_123 = arith.constant 0 : index
    %c0_124 = arith.constant 0 : index
    %252 = vector.load %arg14[%c0_123, %c0_124] : memref<1x16xf32, #tpu.memory_space<vmem>>, vector<1x16xf32>
    %253 = vector.broadcast %252 : vector<1x16xf32> to vector<128x16xf32>
    %254 = arith.addf %251, %253 : vector<128x16xf32>
    %c0_125 = arith.constant 0 : index
    %c0_126 = arith.constant 0 : index
    %255 = vector.load %arg13[%c0_125, %c0_126] : memref<16x16xf32, #tpu.memory_space<vmem>>, vector<16x16xf32>
    %cst_127 = arith.constant dense<0.000000e+00> : vector<128x16xf32>
    %256 = tpu.matmul %249, %255, %cst_127 {dimension_numbers = #tpu.dot_dimension_numbers<[1], [0], [0], [1], [0, 0, 1, 1], [], []>} : vector<128x16xf32>, vector<16x16xf32>, vector<128x16xf32> -> vector<128x16xf32>
    %c0_128 = arith.constant 0 : index
    %c0_129 = arith.constant 0 : index
    %257 = vector.load %arg15[%c0_128, %c0_129] : memref<1x16xf32, #tpu.memory_space<vmem>>, vector<1x16xf32>
    %258 = vector.broadcast %257 : vector<1x16xf32> to vector<128x16xf32>
    %259 = arith.addf %256, %258 : vector<128x16xf32>
    %260 = arith.negf %259 : vector<128x16xf32>
    %261 = math.exp %260 : vector<128x16xf32>
    %cst_130 = arith.constant 1.000000e+00 : f32
    %262 = vector.broadcast %cst_130 : f32 to vector<128x16xf32>
    %263 = arith.addf %262, %261 : vector<128x16xf32>
    %264 = arith.divf %262, %263 : vector<128x16xf32>
    %265 = arith.mulf %254, %264 : vector<128x16xf32>
    %c0_131 = arith.constant 0 : index
    %c0_132 = arith.constant 0 : index
    %c0_133 = arith.constant 0 : index
    %266 = vector.load %arg2[%c0_131, %c0_132, %c0_133] : memref<8x16x16xf32, #tpu.memory_space<vmem>>, vector<8x16x16xf32>
    %267 = vector.shape_cast %265 : vector<128x16xf32> to vector<8x16x16xf32>
    %268 = arith.addf %266, %267 : vector<8x16x16xf32>
    %c0_134 = arith.constant 0 : index
    %c0_135 = arith.constant 0 : index
    %c0_136 = arith.constant 0 : index
    %269 = vector.load %arg16[%c0_134, %c0_135, %c0_136] : memref<8x16x16xf32, #tpu.memory_space<vmem>>, vector<8x16x16xf32>
    tpu.vector_store %arg16[%c0_134, %c0_135, %c0_136], %268 {strides = array<i32>} : memref<8x16x16xf32, #tpu.memory_space<vmem>>, vector<8x16x16xf32>,
    %c0_i32_137 = arith.constant 0 : i32
    %270 = arith.cmpi eq, %arg1, %c0_i32_137 : i32
    %271 = arith.extui %270 : i1 to i32
    %c0_i32_138 = arith.constant 0 : i32
    %272 = arith.cmpi ne, %271, %c0_i32_138 : i32
    scf.if %272 {
      %c0_139 = arith.constant 0 : index
      %c0_140 = arith.constant 0 : index
      %c0_141 = arith.constant 0 : index
      %273 = vector.load %arg18[%c0_139, %c0_140, %c0_141] : memref<2x16x32xf32, #tpu.memory_space<vmem>>, vector<2x16x32xf32>
      %c0_142 = arith.constant 0 : index
      %c0_143 = arith.constant 0 : index
      %c0_144 = arith.constant 0 : index
      %274 = vector.load %arg17[%c0_142, %c0_143, %c0_144] : memref<2x16x32xf32, #tpu.memory_space<vmem>>, vector<2x16x32xf32>
      tpu.vector_store %arg17[%c0_142, %c0_143, %c0_144], %273 {strides = array<i32>} : memref<2x16x32xf32, #tpu.memory_space<vmem>>, vector<2x16x32xf32>,
    } else {
    }
    return
  }
  func.func @transform_0(%arg0: i32, %arg1: i32) -> (i32, i32, i32) {
    %c0_i32 = arith.constant 0 : i32
    %c0_i32_0 = arith.constant 0 : i32
    return %arg1, %arg0, %c0_i32 : i32, i32, i32
  }
  func.func @transform_1(%arg0: i32, %arg1: i32) -> (i32, i32, i32) {
    %c0_i32 = arith.constant 0 : i32
    %c0_i32_0 = arith.constant 0 : i32
    %c0_i32_1 = arith.constant 0 : i32
    return %c0_i32, %arg0, %c0_i32_0 : i32, i32, i32
  }
  func.func @transform_2(%arg0: i32, %arg1: i32) -> (i32, i32) {
    %c0_i32 = arith.constant 0 : i32
    %c0_i32_0 = arith.constant 0 : i32
    %c0_i32_1 = arith.constant 0 : i32
    return %c0_i32, %c0_i32_0 : i32, i32
  }
  func.func @transform_3(%arg0: i32, %arg1: i32) -> (i32, i32) {
    %c0_i32 = arith.constant 0 : i32
    %c0_i32_0 = arith.constant 0 : i32
    %c0_i32_1 = arith.constant 0 : i32
    return %c0_i32, %c0_i32_0 : i32, i32
  }
  func.func @transform_4(%arg0: i32, %arg1: i32) -> (i32, i32) {
    %c0_i32 = arith.constant 0 : i32
    %c0_i32_0 = arith.constant 0 : i32
    %c0_i32_1 = arith.constant 0 : i32
    return %c0_i32, %c0_i32_0 : i32, i32
  }
  func.func @transform_5(%arg0: i32, %arg1: i32) -> (i32, i32) {
    %c0_i32 = arith.constant 0 : i32
    %c0_i32_0 = arith.constant 0 : i32
    %c0_i32_1 = arith.constant 0 : i32
    return %c0_i32, %c0_i32_0 : i32, i32
  }
  func.func @transform_6(%arg0: i32, %arg1: i32) -> (i32, i32) {
    %c0_i32 = arith.constant 0 : i32
    %c0_i32_0 = arith.constant 0 : i32
    %c0_i32_1 = arith.constant 0 : i32
    return %c0_i32, %c0_i32_0 : i32, i32
  }
  func.func @transform_7(%arg0: i32, %arg1: i32) -> (i32, i32) {
    %c0_i32 = arith.constant 0 : i32
    %c0_i32_0 = arith.constant 0 : i32
    %c0_i32_1 = arith.constant 0 : i32
    return %c0_i32, %c0_i32_0 : i32, i32
  }
  func.func @transform_8(%arg0: i32, %arg1: i32) -> (i32, i32) {
    %c0_i32 = arith.constant 0 : i32
    %c0_i32_0 = arith.constant 0 : i32
    %c0_i32_1 = arith.constant 0 : i32
    return %c0_i32, %c0_i32_0 : i32, i32
  }
  func.func @transform_9(%arg0: i32, %arg1: i32) -> (i32, i32) {
    %c0_i32 = arith.constant 0 : i32
    %c0_i32_0 = arith.constant 0 : i32
    %c0_i32_1 = arith.constant 0 : i32
    return %c0_i32, %c0_i32_0 : i32, i32
  }
  func.func @transform_10(%arg0: i32, %arg1: i32) -> (i32, i32) {
    %c0_i32 = arith.constant 0 : i32
    %c0_i32_0 = arith.constant 0 : i32
    %c0_i32_1 = arith.constant 0 : i32
    return %c0_i32, %c0_i32_0 : i32, i32
  }
  func.func @transform_11(%arg0: i32, %arg1: i32) -> (i32, i32) {
    %c0_i32 = arith.constant 0 : i32
    %c0_i32_0 = arith.constant 0 : i32
    %c0_i32_1 = arith.constant 0 : i32
    return %c0_i32, %c0_i32_0 : i32, i32
  }
  func.func @transform_12(%arg0: i32, %arg1: i32) -> (i32, i32) {
    %c0_i32 = arith.constant 0 : i32
    %c0_i32_0 = arith.constant 0 : i32
    %c0_i32_1 = arith.constant 0 : i32
    return %c0_i32, %c0_i32_0 : i32, i32
  }
  func.func @transform_13(%arg0: i32, %arg1: i32) -> (i32, i32) {
    %c0_i32 = arith.constant 0 : i32
    %c0_i32_0 = arith.constant 0 : i32
    %c0_i32_1 = arith.constant 0 : i32
    return %c0_i32, %c0_i32_0 : i32, i32
  }
  func.func @transform_14(%arg0: i32, %arg1: i32) -> (i32, i32, i32) {
    %c0_i32 = arith.constant 0 : i32
    %c0_i32_0 = arith.constant 0 : i32
    return %arg1, %arg0, %c0_i32 : i32, i32, i32
  }
  func.func @transform_15(%arg0: i32, %arg1: i32) -> (i32, i32, i32) {
    %c0_i32 = arith.constant 0 : i32
    %c0_i32_0 = arith.constant 0 : i32
    %c0_i32_1 = arith.constant 0 : i32
    return %c0_i32, %arg0, %c0_i32_0 : i32, i32, i32
  }
}

</mosaic_0001>

<llo_original>
// kernel: tpu_custom_call.1
$region0: #{tpu_custom_call.1}
  #allocation0 [shape = 'u32[]', space=smem, size = 0x4, offset = 0x4, fixed_abs, tag = 'smem constant byte address 0x4 - core index']
  #allocation1 [shape = 'u32[144,128]{1,0:T(1,128)}', space=vmem, size = 0x12000, scoped, tag = 'internal scratch']
  #allocation2 [shape = 'f32[2,16,32]{2,1,0:T(8,128)}', space=vmem, size = 0x4000, scoped, tag = 'scratch operand']
  #allocation3 [shape = 'f32[8,16,32]{2,1,0:T(8,128)}', space=vmem, size = 0x10000, scoped, tag = 'scratch operand']
  #allocation4 [shape = 'f32[8,16,32]{2,1,0:T(8,128)}', space=vmem, size = 0x10000, scoped, tag = 'scratch operand']
  #allocation10 [shape = 's32[]', space=sflag, size = 0x4, offset = 0, fixed_abs, tag = 'sflag constant byte address 0x0 - dummy sync flag']
  %s0 = inlined_call_operand.vmem [shape: f32[8,32,16], index: 0, kind: input, shape index: {}]
  %s1 = inlined_call_operand.vmem [shape: f32[2,32,32], index: 1, kind: input, shape index: {}]
  %s2 = inlined_call_operand.vmem [shape: f32[2,32], index: 2, kind: input, shape index: {}]
  %s3 = inlined_call_operand.vmem [shape: f32[1,16], index: 3, kind: input, shape index: {}]
  %s4 = inlined_call_operand.vmem [shape: f32[1,16], index: 4, kind: input, shape index: {}]
  %s5 = inlined_call_operand.vmem [shape: f32[1,16], index: 5, kind: input, shape index: {}]
  %s6 = inlined_call_operand.vmem [shape: f32[16,32], index: 6, kind: input, shape index: {}]
  %s7 = inlined_call_operand.vmem [shape: f32[16,32], index: 7, kind: input, shape index: {}]
  %s8 = inlined_call_operand.vmem [shape: f32[32,16], index: 8, kind: input, shape index: {}]
  %s9 = inlined_call_operand.vmem [shape: f32[32,16], index: 9, kind: input, shape index: {}]
  %s10 = inlined_call_operand.vmem [shape: f32[16,16], index: 10, kind: input, shape index: {}]
  %s11 = inlined_call_operand.vmem [shape: f32[16,16], index: 11, kind: input, shape index: {}]
  %s12 = inlined_call_operand.vmem [shape: f32[1,16], index: 12, kind: input, shape index: {}]
  %s13 = inlined_call_operand.vmem [shape: f32[1,16], index: 13, kind: input, shape index: {}]
  %s14 = inlined_call_operand.vmem [shape: f32[8,32,16], index: 14, kind: output, shape index: {0}]
  %s15 = inlined_call_operand.hbm [shape: f32[2,32,32], index: 15, kind: output, shape index: {1}]
  %16 = xla_tuple %s14, %s15
  %s17 = sld [smem:[#allocation0]]
  $region215: #{tpu_custom_call.1} parent=0
    _
  %s19 = ssub.s32 1, %s17
  %s20 = scalar_select 0, %s19, %s17
  $region1: #{tpu_custom_call.1} parent=0
    #allocation5 [shape = 'u8[131072]{0}', space=vmem, size = 0x20000, scoped, tag = 'input window, operand 0']
    #allocation6 [shape = 'u8[16384]{0}', space=vmem, size = 0x4000, scoped, tag = 'input window, operand 1, single buffered']
    #allocation7 [shape = 'u8[131072]{0}', space=vmem, size = 0x20000, scoped, tag = 'output window, operand 0']
    #allocation8 [shape = 'u8[32768]{0}', space=vmem, size = 0x8000, scoped, tag = 'output window, operand 1']
    #allocation9 [shape = 's32[2]{0}', space=sflag, size = 0x8, scoped, tag = 'scoped memory for tpu_custom_call.1']
    %21 = vsyncpa [#allocation9], 0
    %s22 = scalar_lea.sflag [#allocation9], 1
    %23 = vsyncpa %s22, 0
    loop: start=0, step=1, limit=4
    $region2: #{tpu_custom_call.1} parent=1 // loop_pre_header
      _
    $region3: #{tpu_custom_call.1} parent=1 // loop_header
      %s25 = sphi 0, %s29
      %p26 = scmp.ge.s32.totalorder %s25, 4
      %s32 = sphi 0, %s44
      %s33 = sphi 0, %s40
      %s34 = sphi 0, %s32
      %s35 = sphi 0, %s33
      %s36 = sphi 0, %s34
      %s37 = sphi 0, %s35
      %s49 = sphi 0, %s51
      %s52 = sphi 0, %s49
      %s53 = sphi 0, %s52
      %s69 = sphi 0, %s53
      %s75 = sphi 0, %s77
      %s78 = sphi 0, %s75
      %s79 = sphi 0, %s78
      %s95 = sphi 0, %s79
      %s99 = sphi 0, %s99
      %s101 = sphi 0, %s99
      %s102 = sphi 0, %s101
      %s116 = sphi 0, %s102
      %s120 = sphi 0, %s120
      %s122 = sphi 0, %s120
      %s123 = sphi 0, %s122
      %s137 = sphi 0, %s123
      %s141 = sphi 0, %s141
      %s143 = sphi 0, %s141
      %s144 = sphi 0, %s143
      %s158 = sphi 0, %s144
      %s162 = sphi 0, %s162
      %s164 = sphi 0, %s162
      %s165 = sphi 0, %s164
      %s179 = sphi 0, %s165
      %s183 = sphi 0, %s183
      %s185 = sphi 0, %s183
      %s186 = sphi 0, %s185
      %s200 = sphi 0, %s186
      %s204 = sphi 0, %s204
      %s206 = sphi 0, %s204
      %s207 = sphi 0, %s206
      %s221 = sphi 0, %s207
      %s225 = sphi 0, %s225
      %s227 = sphi 0, %s225
      %s228 = sphi 0, %s227
      %s242 = sphi 0, %s228
      %s246 = sphi 0, %s246
      %s248 = sphi 0, %s246
      %s249 = sphi 0, %s248
      %s263 = sphi 0, %s249
      %s267 = sphi 0, %s267
      %s269 = sphi 0, %s267
      %s270 = sphi 0, %s269
      %s284 = sphi 0, %s270
      %s288 = sphi 0, %s288
      %s290 = sphi 0, %s288
      %s291 = sphi 0, %s290
      %s305 = sphi 0, %s291
      %s309 = sphi 0, %s309
      %s311 = sphi 0, %s309
      %s312 = sphi 0, %s311
      %s326 = sphi 0, %s312
      %s330 = sphi 0, %s330
      %s332 = sphi 0, %s330
      %s333 = sphi 0, %s332
      %s347 = sphi 0, %s333
      %s355 = sphi 0, %s357
      %s358 = sphi 0, %s355
      %s359 = sphi 0, %s358
      %s375 = sphi 0, %s359
      %s381 = sphi 0, %s383
      %s384 = sphi 0, %s381
      %s385 = sphi 0, %s384
      %s401 = sphi 0, %s385
    $region4: #{tpu_custom_call.1} parent=1 // loop_header_branch
      %28 = sbr.rel (%p26) target = $region8
    $region5: #{tpu_custom_call.1} parent=1 // loop_body
      %s30 = ssub.s32 %s25, 1
      %s31 = ssub.s32 %s25, 2
      %s38 = sadd.s32 1, %s33
      %p39 = scmp.ge.s32.totalorder %s38, 1
      %s40 = scalar_select %p39, 0, %s38
      %s41 = sadd.s32 1, %s32
      %s42 = scalar_select %p39, %s41, %s32
      %p43 = scmp.ge.s32.totalorder %s42, 2
      %s44 = scalar_select %p43, 0, %s42
      %s45 = ssub.s32 %s33, %s40
      %s46 = ssub.s32 %s32, %s44
      %s47 = sor.u32 %s45, %s46
      %p48 = scmp.eq.s32.totalorder %s47, 0
      %s50 = sadd.s32 %s49, 1
      %s51 = scalar_select %p48, %s49, %s50
      %p54 = pneg %p48
      %p55 = scmp.eq.s32.totalorder %s25, 1
      %p56 = por %p54, %p55
      %p57 = scmp.ne.s32.totalorder %s49, %s52
      %p58 = scmp.eq.s32.totalorder %s25, 0
      %p59 = por %p57, %p58
      %p60 = scmp.ne.s32.totalorder %s49, %s52
      %p61 = scmp.eq.s32.totalorder %s30, 1
      %p62 = por %p60, %p61
      %p63 = scmp.ne.s32.totalorder %s52, %s53
      %p64 = scmp.eq.s32.totalorder %s30, 0
      %p65 = por %p63, %p64
      %p66 = scmp.ne.s32.totalorder %s52, %s53
      %p67 = scmp.eq.s32.totalorder %s31, 1
      %p68 = por %p66, %p67
      %p70 = scmp.ne.s32.totalorder %s53, %s69
      %p71 = scmp.eq.s32.totalorder %s31, 0
      %p72 = por %p70, %p71
      %s73 = ssub.s32 %s32, %s44
      %p74 = scmp.eq.s32.totalorder %s73, 0
      %s76 = sadd.s32 %s75, 1
      %s77 = scalar_select %p74, %s75, %s76
      %p80 = pneg %p74
      %p81 = scmp.eq.s32.totalorder %s25, 1
      %p82 = por %p80, %p81
      %p83 = scmp.ne.s32.totalorder %s75, %s78
      %p84 = scmp.eq.s32.totalorder %s25, 0
      %p85 = por %p83, %p84
      %p86 = scmp.ne.s32.totalorder %s75, %s78
      %p87 = scmp.eq.s32.totalorder %s30, 1
      %p88 = por %p86, %p87
      %p89 = scmp.ne.s32.totalorder %s78, %s79
      %p90 = scmp.eq.s32.totalorder %s30, 0
      %p91 = por %p89, %p90
      %p92 = scmp.ne.s32.totalorder %s78, %s79
      %p93 = scmp.eq.s32.totalorder %s31, 1
      %p94 = por %p92, %p93
      %p96 = scmp.ne.s32.totalorder %s79, %s95
      %p97 = scmp.eq.s32.totalorder %s31, 0
      %p98 = por %p96, %p97
      %s100 = sadd.s32 %s99, 1
      %p103 = scmp.eq.s32.totalorder %s25, 1
      %p104 = scmp.ne.s32.totalorder %s99, %s101
      %p105 = scmp.eq.s32.totalorder %s25, 0
      %p106 = por %p104, %p105
      %p107 = scmp.ne.s32.totalorder %s99, %s101
      %p108 = scmp.eq.s32.totalorder %s30, 1
      %p109 = por %p107, %p108
      %p110 = scmp.ne.s32.totalorder %s101, %s102
      %p111 = scmp.eq.s32.totalorder %s30, 0
      %p112 = por %p110, %p111
      %p113 = scmp.ne.s32.totalorder %s101, %s102
      %p114 = scmp.eq.s32.totalorder %s31, 1
      %p115 = por %p113, %p114
      %p117 = scmp.ne.s32.totalorder %s102, %s116
      %p118 = scmp.eq.s32.totalorder %s31, 0
      %p119 = por %p117, %p118
      %s121 = sadd.s32 %s120, 1
      %p124 = scmp.eq.s32.totalorder %s25, 1
      %p125 = scmp.ne.s32.totalorder %s120, %s122
      %p126 = scmp.eq.s32.totalorder %s25, 0
      %p127 = por %p125, %p126
      %p128 = scmp.ne.s32.totalorder %s120, %s122
      %p129 = scmp.eq.s32.totalorder %s30, 1
      %p130 = por %p128, %p129
      %p131 = scmp.ne.s32.totalorder %s122, %s123
      %p132 = scmp.eq.s32.totalorder %s30, 0
      %p133 = por %p131, %p132
      %p134 = scmp.ne.s32.totalorder %s122, %s123
      %p135 = scmp.eq.s32.totalorder %s31, 1
      %p136 = por %p134, %p135
      %p138 = scmp.ne.s32.totalorder %s123, %s137
      %p139 = scmp.eq.s32.totalorder %s31, 0
      %p140 = por %p138, %p139
      %s142 = sadd.s32 %s141, 1
      %p145 = scmp.eq.s32.totalorder %s25, 1
      %p146 = scmp.ne.s32.totalorder %s141, %s143
      %p147 = scmp.eq.s32.totalorder %s25, 0
      %p148 = por %p146, %p147
      %p149 = scmp.ne.s32.totalorder %s141, %s143
      %p150 = scmp.eq.s32.totalorder %s30, 1
      %p151 = por %p149, %p150
      %p152 = scmp.ne.s32.totalorder %s143, %s144
      %p153 = scmp.eq.s32.totalorder %s30, 0
      %p154 = por %p152, %p153
      %p155 = scmp.ne.s32.totalorder %s143, %s144
      %p156 = scmp.eq.s32.totalorder %s31, 1
      %p157 = por %p155, %p156
      %p159 = scmp.ne.s32.totalorder %s144, %s158
      %p160 = scmp.eq.s32.totalorder %s31, 0
      %p161 = por %p159, %p160
      %s163 = sadd.s32 %s162, 1
      %p166 = scmp.eq.s32.totalorder %s25, 1
      %p167 = scmp.ne.s32.totalorder %s162, %s164
      %p168 = scmp.eq.s32.totalorder %s25, 0
      %p169 = por %p167, %p168
      %p170 = scmp.ne.s32.totalorder %s162, %s164
      %p171 = scmp.eq.s32.totalorder %s30, 1
      %p172 = por %p170, %p171
      %p173 = scmp.ne.s32.totalorder %s164, %s165
      %p174 = scmp.eq.s32.totalorder %s30, 0
      %p175 = por %p173, %p174
      %p176 = scmp.ne.s32.totalorder %s164, %s165
      %p177 = scmp.eq.s32.totalorder %s31, 1
      %p178 = por %p176, %p177
      %p180 = scmp.ne.s32.totalorder %s165, %s179
      %p181 = scmp.eq.s32.totalorder %s31, 0
      %p182 = por %p180, %p181
      %s184 = sadd.s32 %s183, 1
      %p187 = scmp.eq.s32.totalorder %s25, 1
      %p188 = scmp.ne.s32.totalorder %s183, %s185
      %p189 = scmp.eq.s32.totalorder %s25, 0
      %p190 = por %p188, %p189
      %p191 = scmp.ne.s32.totalorder %s183, %s185
      %p192 = scmp.eq.s32.totalorder %s30, 1
      %p193 = por %p191, %p192
      %p194 = scmp.ne.s32.totalorder %s185, %s186
      %p195 = scmp.eq.s32.totalorder %s30, 0
      %p196 = por %p194, %p195
      %p197 = scmp.ne.s32.totalorder %s185, %s186
      %p198 = scmp.eq.s32.totalorder %s31, 1
      %p199 = por %p197, %p198
      %p201 = scmp.ne.s32.totalorder %s186, %s200
      %p202 = scmp.eq.s32.totalorder %s31, 0
      %p203 = por %p201, %p202
      %s205 = sadd.s32 %s204, 1
      %p208 = scmp.eq.s32.totalorder %s25, 1
      %p209 = scmp.ne.s32.totalorder %s204, %s206
      %p210 = scmp.eq.s32.totalorder %s25, 0
      %p211 = por %p209, %p210
      %p212 = scmp.ne.s32.totalorder %s204, %s206
      %p213 = scmp.eq.s32.totalorder %s30, 1
      %p214 = por %p212, %p213
      %p215 = scmp.ne.s32.totalorder %s206, %s207
      %p216 = scmp.eq.s32.totalorder %s30, 0
      %p217 = por %p215, %p216
      %p218 = scmp.ne.s32.totalorder %s206, %s207
      %p219 = scmp.eq.s32.totalorder %s31, 1
      %p220 = por %p218, %p219
      %p222 = scmp.ne.s32.totalorder %s207, %s221
      %p223 = scmp.eq.s32.totalorder %s31, 0
      %p224 = por %p222, %p223
      %s226 = sadd.s32 %s225, 1
      %p229 = scmp.eq.s32.totalorder %s25, 1
      %p230 = scmp.ne.s32.totalorder %s225, %s227
      %p231 = scmp.eq.s32.totalorder %s25, 0
      %p232 = por %p230, %p231
      %p233 = scmp.ne.s32.totalorder %s225, %s227
      %p234 = scmp.eq.s32.totalorder %s30, 1
      %p235 = por %p233, %p234
      %p236 = scmp.ne.s32.totalorder %s227, %s228
      %p237 = scmp.eq.s32.totalorder %s30, 0
      %p238 = por %p236, %p237
      %p239 = scmp.ne.s32.totalorder %s227, %s228
      %p240 = scmp.eq.s32.totalorder %s31, 1
      %p241 = por %p239, %p240
      %p243 = scmp.ne.s32.totalorder %s228, %s242
      %p244 = scmp.eq.s32.totalorder %s31, 0
      %p245 = por %p243, %p244
      %s247 = sadd.s32 %s246, 1
      %p250 = scmp.eq.s32.totalorder %s25, 1
      %p251 = scmp.ne.s32.totalorder %s246, %s248
      %p252 = scmp.eq.s32.totalorder %s25, 0
      %p253 = por %p251, %p252
      %p254 = scmp.ne.s32.totalorder %s246, %s248
      %p255 = scmp.eq.s32.totalorder %s30, 1
      %p256 = por %p254, %p255
      %p257 = scmp.ne.s32.totalorder %s248, %s249
      %p258 = scmp.eq.s32.totalorder %s30, 0
      %p259 = por %p257, %p258
      %p260 = scmp.ne.s32.totalorder %s248, %s249
      %p261 = scmp.eq.s32.totalorder %s31, 1
      %p262 = por %p260, %p261
      %p264 = scmp.ne.s32.totalorder %s249, %s263
      %p265 = scmp.eq.s32.totalorder %s31, 0
      %p266 = por %p264, %p265
      %s268 = sadd.s32 %s267, 1
      %p271 = scmp.eq.s32.totalorder %s25, 1
      %p272 = scmp.ne.s32.totalorder %s267, %s269
      %p273 = scmp.eq.s32.totalorder %s25, 0
      %p274 = por %p272, %p273
      %p275 = scmp.ne.s32.totalorder %s267, %s269
      %p276 = scmp.eq.s32.totalorder %s30, 1
      %p277 = por %p275, %p276
      %p278 = scmp.ne.s32.totalorder %s269, %s270
      %p279 = scmp.eq.s32.totalorder %s30, 0
      %p280 = por %p278, %p279
      %p281 = scmp.ne.s32.totalorder %s269, %s270
      %p282 = scmp.eq.s32.totalorder %s31, 1
      %p283 = por %p281, %p282
      %p285 = scmp.ne.s32.totalorder %s270, %s284
      %p286 = scmp.eq.s32.totalorder %s31, 0
      %p287 = por %p285, %p286
      %s289 = sadd.s32 %s288, 1
      %p292 = scmp.eq.s32.totalorder %s25, 1
      %p293 = scmp.ne.s32.totalorder %s288, %s290
      %p294 = scmp.eq.s32.totalorder %s25, 0
      %p295 = por %p293, %p294
      %p296 = scmp.ne.s32.totalorder %s288, %s290
      %p297 = scmp.eq.s32.totalorder %s30, 1
      %p298 = por %p296, %p297
      %p299 = scmp.ne.s32.totalorder %s290, %s291
      %p300 = scmp.eq.s32.totalorder %s30, 0
      %p301 = por %p299, %p300
      %p302 = scmp.ne.s32.totalorder %s290, %s291
      %p303 = scmp.eq.s32.totalorder %s31, 1
      %p304 = por %p302, %p303
      %p306 = scmp.ne.s32.totalorder %s291, %s305
      %p307 = scmp.eq.s32.totalorder %s31, 0
      %p308 = por %p306, %p307
      %s310 = sadd.s32 %s309, 1
      %p313 = scmp.eq.s32.totalorder %s25, 1
      %p314 = scmp.ne.s32.totalorder %s309, %s311
      %p315 = scmp.eq.s32.totalorder %s25, 0
      %p316 = por %p314, %p315
      %p317 = scmp.ne.s32.totalorder %s309, %s311
      %p318 = scmp.eq.s32.totalorder %s30, 1
      %p319 = por %p317, %p318
      %p320 = scmp.ne.s32.totalorder %s311, %s312
      %p321 = scmp.eq.s32.totalorder %s30, 0
      %p322 = por %p320, %p321
      %p323 = scmp.ne.s32.totalorder %s311, %s312
      %p324 = scmp.eq.s32.totalorder %s31, 1
      %p325 = por %p323, %p324
      %p327 = scmp.ne.s32.totalorder %s312, %s326
      %p328 = scmp.eq.s32.totalorder %s31, 0
      %p329 = por %p327, %p328
      %s331 = sadd.s32 %s330, 1
      %p334 = scmp.eq.s32.totalorder %s25, 1
      %p335 = scmp.ne.s32.totalorder %s330, %s332
      %p336 = scmp.eq.s32.totalorder %s25, 0
      %p337 = por %p335, %p336
      %p338 = scmp.ne.s32.totalorder %s330, %s332
      %p339 = scmp.eq.s32.totalorder %s30, 1
      %p340 = por %p338, %p339
      %p341 = scmp.ne.s32.totalorder %s332, %s333
      %p342 = scmp.eq.s32.totalorder %s30, 0
      %p343 = por %p341, %p342
      %p344 = scmp.ne.s32.totalorder %s332, %s333
      %p345 = scmp.eq.s32.totalorder %s31, 1
      %p346 = por %p344, %p345
      %p348 = scmp.ne.s32.totalorder %s333, %s347
      %p349 = scmp.eq.s32.totalorder %s31, 0
      %p350 = por %p348, %p349
      %s351 = ssub.s32 %s33, %s40
      %s352 = ssub.s32 %s32, %s44
      %s353 = sor.u32 %s351, %s352
      %p354 = scmp.eq.s32.totalorder %s353, 0
      %s356 = sadd.s32 %s355, 1
      %s357 = scalar_select %p354, %s355, %s356
      %p360 = pneg %p354
      %p361 = scmp.eq.s32.totalorder %s25, 1
      %p362 = por %p360, %p361
      %p363 = scmp.ne.s32.totalorder %s355, %s358
      %p364 = scmp.eq.s32.totalorder %s25, 0
      %p365 = por %p363, %p364
      %p366 = scmp.ne.s32.totalorder %s355, %s358
      %p367 = scmp.eq.s32.totalorder %s30, 1
      %p368 = por %p366, %p367
      %p369 = scmp.ne.s32.totalorder %s358, %s359
      %p370 = scmp.eq.s32.totalorder %s30, 0
      %p371 = por %p369, %p370
      %p372 = scmp.ne.s32.totalorder %s358, %s359
      %p373 = scmp.eq.s32.totalorder %s31, 1
      %p374 = por %p372, %p373
      %p376 = scmp.ne.s32.totalorder %s359, %s375
      %p377 = scmp.eq.s32.totalorder %s31, 0
      %p378 = por %p376, %p377
      %s379 = ssub.s32 %s32, %s44
      %p380 = scmp.eq.s32.totalorder %s379, 0
      %s382 = sadd.s32 %s381, 1
      %s383 = scalar_select %p380, %s381, %s382
      %p386 = pneg %p380
      %p387 = scmp.eq.s32.totalorder %s25, 1
      %p388 = por %p386, %p387
      %p389 = scmp.ne.s32.totalorder %s381, %s384
      %p390 = scmp.eq.s32.totalorder %s25, 0
      %p391 = por %p389, %p390
      %p392 = scmp.ne.s32.totalorder %s381, %s384
      %p393 = scmp.eq.s32.totalorder %s30, 1
      %p394 = por %p392, %p393
      %p395 = scmp.ne.s32.totalorder %s384, %s385
      %p396 = scmp.eq.s32.totalorder %s30, 0
      %p397 = por %p395, %p396
      %p398 = scmp.ne.s32.totalorder %s384, %s385
      %p399 = scmp.eq.s32.totalorder %s31, 1
      %p400 = por %p398, %p399
      %p402 = scmp.ne.s32.totalorder %s385, %s401
      %p403 = scmp.eq.s32.totalorder %s31, 0
      %p404 = por %p402, %p403
      %p405 = scmp.le.s32.totalorder 1, %s25
      %p406 = scmp.lt.s32.totalorder %s25, 3
      %p407 = pnand %p405, %p406
      %p408 = pneg %p407
      // Predicated region
      $region9: #{tpu_custom_call.1} parent=5 // pred_check
        _
      $region10: #{tpu_custom_call.1} parent=5 // pred_check_branch
        %410 = sbr.rel (%p407) target = $region12
      $region11: #{tpu_custom_call.1} parent=5 // pred_region
        %s411 = ssub.s32 %s25, 1
        // Predicated region
        $region13: #{tpu_custom_call.1} parent=11 // pred_check
          %p412 = pneg %p91
        $region14: #{tpu_custom_call.1} parent=11 // pred_check_branch
          %414 = sbr.rel (%p412) target = $region16
        $region15: #{tpu_custom_call.1} parent=11 // pred_region
          %s415 = smul.u32 2, %s34
          %s416 = smul.addr %s415, 8
          %s417 = scalar_lea.vmem %s1, %s416
          // Predicated region
          $region17: #{tpu_custom_call.1} parent=15 // pred_check
            _
          $region18: #{tpu_custom_call.1} parent=15 // pred_check_branch
            %419 = sbr.rel (0) target = $region20
          $region19: #{tpu_custom_call.1} parent=15 // pred_region
            // Predicated region
            $region21: #{tpu_custom_call.1} parent=19 // pred_check
              _
            $region22: #{tpu_custom_call.1} parent=19 // pred_check_branch
              %421 = sbr.rel (0) target = $region24
            $region23: #{tpu_custom_call.1} parent=19 // pred_region
              // Predicated region
              $region36: #{tpu_custom_call.1} parent=23 // pred_check
                _
              $region37: #{tpu_custom_call.1} parent=23 // pred_check_branch
                %442 = sbr.rel (0) target = $region39
              $region38: #{tpu_custom_call.1} parent=23 // pred_region
                loop: start=0, step=1, limit=1
                $region40: #{tpu_custom_call.1} parent=38 // loop_pre_header
                  _
                $region41: #{tpu_custom_call.1} parent=38 // loop_header
                  %s444 = sphi 0, %s448
                  %p445 = scmp.ge.s32.totalorder %s444, 1
                  %s449 = sphi %s417, %s417
                  %s450 = sphi [#allocation6], [#allocation6]
                $region42: #{tpu_custom_call.1} parent=38 // loop_header_branch
                  %447 = sbr.rel (%p445) target = $region46
                $region43: #{tpu_custom_call.1} parent=38 // loop_body
                  %v451 = vld [vmem:[%s449] sm:$0xff]
                  %452 = vst [vmem:[%s450] sm:$0xff] %v451
                  %v453 = vld [vmem:[%s449 + $0x8] sm:$0xff]
                  %454 = vst [vmem:[%s450 + $0x8] sm:$0xff] %v453
                  %v455 = vld [vmem:[%s449 + $0x20] sm:$0xff]
                  %456 = vst [vmem:[%s450 + $0x10] sm:$0xff] %v455
                  %v457 = vld [vmem:[%s449 + $0x28] sm:$0xff]
                  %458 = vst [vmem:[%s450 + $0x18] sm:$0xff] %v457
                $region44: #{tpu_custom_call.1} parent=38 // loop_footer
                  %s448 = sadd.s32 1, %s444
                $region45: #{tpu_custom_call.1} parent=38 // loop_footer_branch
                  %443 = sbr.rel target = $region41
                $region46: #{tpu_custom_call.1} parent=38 // loop_exit
                  _
              $region39: #{tpu_custom_call.1} parent=23 // pred_fallthru
                _
              // Predicated region
              $region47: #{tpu_custom_call.1} parent=23 // pred_check
                _
              $region48: #{tpu_custom_call.1} parent=23 // pred_check_branch
                %460 = sbr.rel target = $region50
              $region49: #{tpu_custom_call.1} parent=23 // pred_region
                _
              $region50: #{tpu_custom_call.1} parent=23 // pred_fallthru
                _
            $region24: #{tpu_custom_call.1} parent=19 // pred_fallthru
              _
            // Predicated region
            $region25: #{tpu_custom_call.1} parent=19 // pred_check
              _
            $region26: #{tpu_custom_call.1} parent=19 // pred_check_branch
              %423 = sbr.rel target = $region28
            $region27: #{tpu_custom_call.1} parent=19 // pred_region
              loop: start=0, step=1, limit=1
              $region29: #{tpu_custom_call.1} parent=27 // loop_pre_header
                _
              $region30: #{tpu_custom_call.1} parent=27 // loop_header
                %s426 = sphi 0, %s430
                %p427 = scmp.ge.s32.totalorder %s426, 1
                %s431 = sphi %s417, %s417
                %s432 = sphi [#allocation6], [#allocation6]
              $region31: #{tpu_custom_call.1} parent=27 // loop_header_branch
                %429 = sbr.rel (%p427) target = $region35
              $region32: #{tpu_custom_call.1} parent=27 // loop_body
                %v433 = vld [vmem:[%s431] sm:$0xff]
                %434 = vst [vmem:[%s432] sm:$0xff] %v433
                %v435 = vld [vmem:[%s431 + $0x8] sm:$0xff]
                %436 = vst [vmem:[%s432 + $0x8] sm:$0xff] %v435
                %v437 = vld [vmem:[%s431 + $0x20] sm:$0xff]
                %438 = vst [vmem:[%s432 + $0x10] sm:$0xff] %v437
                %v439 = vld [vmem:[%s431 + $0x28] sm:$0xff]
                %440 = vst [vmem:[%s432 + $0x18] sm:$0xff] %v439
              $region33: #{tpu_custom_call.1} parent=27 // loop_footer
                %s430 = sadd.s32 1, %s426
              $region34: #{tpu_custom_call.1} parent=27 // loop_footer_branch
                %425 = sbr.rel target = $region30
              $region35: #{tpu_custom_call.1} parent=27 // loop_exit
                _
            $region28: #{tpu_custom_call.1} parent=19 // pred_fallthru
              _
          $region20: #{tpu_custom_call.1} parent=15 // pred_fallthru
            _
          %461 = vnop
        $region16: #{tpu_custom_call.1} parent=11 // pred_fallthru
          _
        // Predicated region
        $region51: #{tpu_custom_call.1} parent=11 // pred_check
          %p462 = pneg %p112
        $region52: #{tpu_custom_call.1} parent=11 // pred_check_branch
          %464 = sbr.rel (%p462) target = $region54
        $region53: #{tpu_custom_call.1} parent=11 // pred_region
          _
        $region54: #{tpu_custom_call.1} parent=11 // pred_fallthru
          _
        // Predicated region
        $region55: #{tpu_custom_call.1} parent=11 // pred_check
          %p465 = pneg %p133
        $region56: #{tpu_custom_call.1} parent=11 // pred_check_branch
          %467 = sbr.rel (%p465) target = $region58
        $region57: #{tpu_custom_call.1} parent=11 // pred_region
          _
        $region58: #{tpu_custom_call.1} parent=11 // pred_fallthru
          _
        // Predicated region
        $region59: #{tpu_custom_call.1} parent=11 // pred_check
          %p468 = pneg %p154
        $region60: #{tpu_custom_call.1} parent=11 // pred_check_branch
          %470 = sbr.rel (%p468) target = $region62
        $region61: #{tpu_custom_call.1} parent=11 // pred_region
          _
        $region62: #{tpu_custom_call.1} parent=11 // pred_fallthru
          _
        // Predicated region
        $region63: #{tpu_custom_call.1} parent=11 // pred_check
          %p471 = pneg %p175
        $region64: #{tpu_custom_call.1} parent=11 // pred_check_branch
          %473 = sbr.rel (%p471) target = $region66
        $region65: #{tpu_custom_call.1} parent=11 // pred_region
          _
        $region66: #{tpu_custom_call.1} parent=11 // pred_fallthru
          _
        // Predicated region
        $region67: #{tpu_custom_call.1} parent=11 // pred_check
          %p474 = pneg %p196
        $region68: #{tpu_custom_call.1} parent=11 // pred_check_branch
          %476 = sbr.rel (%p474) target = $region70
        $region69: #{tpu_custom_call.1} parent=11 // pred_region
          _
        $region70: #{tpu_custom_call.1} parent=11 // pred_fallthru
          _
        // Predicated region
        $region71: #{tpu_custom_call.1} parent=11 // pred_check
          %p477 = pneg %p217
        $region72: #{tpu_custom_call.1} parent=11 // pred_check_branch
          %479 = sbr.rel (%p477) target = $region74
        $region73: #{tpu_custom_call.1} parent=11 // pred_region
          _
        $region74: #{tpu_custom_call.1} parent=11 // pred_fallthru
          _
        // Predicated region
        $region75: #{tpu_custom_call.1} parent=11 // pred_check
          %p480 = pneg %p238
        $region76: #{tpu_custom_call.1} parent=11 // pred_check_branch
          %482 = sbr.rel (%p480) target = $region78
        $region77: #{tpu_custom_call.1} parent=11 // pred_region
          _
        $region78: #{tpu_custom_call.1} parent=11 // pred_fallthru
          _
        // Predicated region
        $region79: #{tpu_custom_call.1} parent=11 // pred_check
          %p483 = pneg %p259
        $region80: #{tpu_custom_call.1} parent=11 // pred_check_branch
          %485 = sbr.rel (%p483) target = $region82
        $region81: #{tpu_custom_call.1} parent=11 // pred_region
          _
        $region82: #{tpu_custom_call.1} parent=11 // pred_fallthru
          _
        // Predicated region
        $region83: #{tpu_custom_call.1} parent=11 // pred_check
          %p486 = pneg %p280
        $region84: #{tpu_custom_call.1} parent=11 // pred_check_branch
          %488 = sbr.rel (%p486) target = $region86
        $region85: #{tpu_custom_call.1} parent=11 // pred_region
          _
        $region86: #{tpu_custom_call.1} parent=11 // pred_fallthru
          _
        // Predicated region
        $region87: #{tpu_custom_call.1} parent=11 // pred_check
          %p489 = pneg %p301
        $region88: #{tpu_custom_call.1} parent=11 // pred_check_branch
          %491 = sbr.rel (%p489) target = $region90
        $region89: #{tpu_custom_call.1} parent=11 // pred_region
          _
        $region90: #{tpu_custom_call.1} parent=11 // pred_fallthru
          _
        // Predicated region
        $region91: #{tpu_custom_call.1} parent=11 // pred_check
          %p492 = pneg %p322
        $region92: #{tpu_custom_call.1} parent=11 // pred_check_branch
          %494 = sbr.rel (%p492) target = $region94
        $region93: #{tpu_custom_call.1} parent=11 // pred_region
          _
        $region94: #{tpu_custom_call.1} parent=11 // pred_fallthru
          _
        // Predicated region
        $region95: #{tpu_custom_call.1} parent=11 // pred_check
          %p495 = pneg %p343
        $region96: #{tpu_custom_call.1} parent=11 // pred_check_branch
          %497 = sbr.rel (%p495) target = $region98
        $region97: #{tpu_custom_call.1} parent=11 // pred_region
          _
        $region98: #{tpu_custom_call.1} parent=11 // pred_fallthru
          _
      $region12: #{tpu_custom_call.1} parent=5 // pred_fallthru
        _
      %p498 = scmp.lt.s32.totalorder %s25, 2
      // Predicated region
      $region99: #{tpu_custom_call.1} parent=5 // pred_check
        %p499 = pneg %p498
      $region100: #{tpu_custom_call.1} parent=5 // pred_check_branch
        %501 = sbr.rel (%p499) target = $region102
      $region101: #{tpu_custom_call.1} parent=5 // pred_region
        // Predicated region
        $region103: #{tpu_custom_call.1} parent=101 // pred_check
          %p502 = pneg %p59
        $region104: #{tpu_custom_call.1} parent=101 // pred_check_branch
          %504 = sbr.rel (%p502) target = $region106
        $region105: #{tpu_custom_call.1} parent=101 // pred_region
          %s505 = sand.u32 %s49, 1
          %s506 = sand.u32 %s49, 1
          %s507 = smul.addr %s506, 128
          %s508 = scalar_lea.vmem [#allocation5], %s507
          %s509 = smul.u32 8, %s33
          %s510 = smul.u32 2, %s32
          %s511 = smul.addr %s509, 4
          %s512 = sadd.s32 %s510, %s511
          %s513 = smul.addr %s512, 8
          %s514 = scalar_lea.vmem %s0, %s513
          // Predicated region
          $region107: #{tpu_custom_call.1} parent=105 // pred_check
            _
          $region108: #{tpu_custom_call.1} parent=105 // pred_check_branch
            %516 = sbr.rel (0) target = $region110
          $region109: #{tpu_custom_call.1} parent=105 // pred_region
            // Predicated region
            $region111: #{tpu_custom_call.1} parent=109 // pred_check
              _
            $region112: #{tpu_custom_call.1} parent=109 // pred_check_branch
              %518 = sbr.rel (0) target = $region114
            $region113: #{tpu_custom_call.1} parent=109 // pred_region
              // Predicated region
              $region126: #{tpu_custom_call.1} parent=113 // pred_check
                _
              $region127: #{tpu_custom_call.1} parent=113 // pred_check_branch
                %563 = sbr.rel (0) target = $region129
              $region128: #{tpu_custom_call.1} parent=113 // pred_region
                loop: start=0, step=1, limit=1
                $region130: #{tpu_custom_call.1} parent=128 // loop_pre_header
                  _
                $region131: #{tpu_custom_call.1} parent=128 // loop_header
                  %s565 = sphi 0, %s569
                  %p566 = scmp.ge.s32.totalorder %s565, 1
                  %s570 = sphi %s514, %s514
                  %s571 = sphi %s508, %s508
                $region132: #{tpu_custom_call.1} parent=128 // loop_header_branch
                  %568 = sbr.rel (%p566) target = $region136
                $region133: #{tpu_custom_call.1} parent=128 // loop_body
                  %v572 = vld [vmem:[%s570] sm:$0xff]
                  %573 = vst [vmem:[%s571] sm:$0xff] %v572
                  %v574 = vld [vmem:[%s570 + $0x8] sm:$0xff]
                  %575 = vst [vmem:[%s571 + $0x8] sm:$0xff] %v574
                  %v576 = vld [vmem:[%s570 + $0x20] sm:$0xff]
                  %577 = vst [vmem:[%s571 + $0x10] sm:$0xff] %v576
                  %v578 = vld [vmem:[%s570 + $0x28] sm:$0xff]
                  %579 = vst [vmem:[%s571 + $0x18] sm:$0xff] %v578
                  %v580 = vld [vmem:[%s570 + $0x40] sm:$0xff]
                  %581 = vst [vmem:[%s571 + $0x20] sm:$0xff] %v580
                  %v582 = vld [vmem:[%s570 + $0x48] sm:$0xff]
                  %583 = vst [vmem:[%s571 + $0x28] sm:$0xff] %v582
                  %v584 = vld [vmem:[%s570 + $0x60] sm:$0xff]
                  %585 = vst [vmem:[%s571 + $0x30] sm:$0xff] %v584
                  %v586 = vld [vmem:[%s570 + $0x68] sm:$0xff]
                  %587 = vst [vmem:[%s571 + $0x38] sm:$0xff] %v586
                  %v588 = vld [vmem:[%s570 + $0x80] sm:$0xff]
                  %589 = vst [vmem:[%s571 + $0x40] sm:$0xff] %v588
                  %v590 = vld [vmem:[%s570 + $0x88] sm:$0xff]
                  %591 = vst [vmem:[%s571 + $0x48] sm:$0xff] %v590
                  %v592 = vld [vmem:[%s570 + $0xa0] sm:$0xff]
                  %593 = vst [vmem:[%s571 + $0x50] sm:$0xff] %v592
                  %v594 = vld [vmem:[%s570 + $0xa8] sm:$0xff]
                  %595 = vst [vmem:[%s571 + $0x58] sm:$0xff] %v594
                  %v596 = vld [vmem:[%s570 + $0xc0] sm:$0xff]
                  %597 = vst [vmem:[%s571 + $0x60] sm:$0xff] %v596
                  %v598 = vld [vmem:[%s570 + $0xc8] sm:$0xff]
                  %599 = vst [vmem:[%s571 + $0x68] sm:$0xff] %v598
                  %v600 = vld [vmem:[%s570 + $0xe0] sm:$0xff]
                  %601 = vst [vmem:[%s571 + $0x70] sm:$0xff] %v600
                  %v602 = vld [vmem:[%s570 + $0xe8] sm:$0xff]
                  %603 = vst [vmem:[%s571 + $0x78] sm:$0xff] %v602
                $region134: #{tpu_custom_call.1} parent=128 // loop_footer
                  %s569 = sadd.s32 1, %s565
                $region135: #{tpu_custom_call.1} parent=128 // loop_footer_branch
                  %564 = sbr.rel target = $region131
                $region136: #{tpu_custom_call.1} parent=128 // loop_exit
                  _
              $region129: #{tpu_custom_call.1} parent=113 // pred_fallthru
                _
              // Predicated region
              $region137: #{tpu_custom_call.1} parent=113 // pred_check
                _
              $region138: #{tpu_custom_call.1} parent=113 // pred_check_branch
                %605 = sbr.rel target = $region140
              $region139: #{tpu_custom_call.1} parent=113 // pred_region
                _
              $region140: #{tpu_custom_call.1} parent=113 // pred_fallthru
                _
            $region114: #{tpu_custom_call.1} parent=109 // pred_fallthru
              _
            // Predicated region
            $region115: #{tpu_custom_call.1} parent=109 // pred_check
              _
            $region116: #{tpu_custom_call.1} parent=109 // pred_check_branch
              %520 = sbr.rel target = $region118
            $region117: #{tpu_custom_call.1} parent=109 // pred_region
              loop: start=0, step=1, limit=1
              $region119: #{tpu_custom_call.1} parent=117 // loop_pre_header
                _
              $region120: #{tpu_custom_call.1} parent=117 // loop_header
                %s523 = sphi 0, %s527
                %p524 = scmp.ge.s32.totalorder %s523, 1
                %s528 = sphi %s514, %s514
                %s529 = sphi %s508, %s508
              $region121: #{tpu_custom_call.1} parent=117 // loop_header_branch
                %526 = sbr.rel (%p524) target = $region125
              $region122: #{tpu_custom_call.1} parent=117 // loop_body
                %v530 = vld [vmem:[%s528] sm:$0xff]
                %531 = vst [vmem:[%s529] sm:$0xff] %v530
                %v532 = vld [vmem:[%s528 + $0x8] sm:$0xff]
                %533 = vst [vmem:[%s529 + $0x8] sm:$0xff] %v532
                %v534 = vld [vmem:[%s528 + $0x20] sm:$0xff]
                %535 = vst [vmem:[%s529 + $0x10] sm:$0xff] %v534
                %v536 = vld [vmem:[%s528 + $0x28] sm:$0xff]
                %537 = vst [vmem:[%s529 + $0x18] sm:$0xff] %v536
                %v538 = vld [vmem:[%s528 + $0x40] sm:$0xff]
                %539 = vst [vmem:[%s529 + $0x20] sm:$0xff] %v538
                %v540 = vld [vmem:[%s528 + $0x48] sm:$0xff]
                %541 = vst [vmem:[%s529 + $0x28] sm:$0xff] %v540
                %v542 = vld [vmem:[%s528 + $0x60] sm:$0xff]
                %543 = vst [vmem:[%s529 + $0x30] sm:$0xff] %v542
                %v544 = vld [vmem:[%s528 + $0x68] sm:$0xff]
                %545 = vst [vmem:[%s529 + $0x38] sm:$0xff] %v544
                %v546 = vld [vmem:[%s528 + $0x80] sm:$0xff]
                %547 = vst [vmem:[%s529 + $0x40] sm:$0xff] %v546
                %v548 = vld [vmem:[%s528 + $0x88] sm:$0xff]
                %549 = vst [vmem:[%s529 + $0x48] sm:$0xff] %v548
                %v550 = vld [vmem:[%s528 + $0xa0] sm:$0xff]
                %551 = vst [vmem:[%s529 + $0x50] sm:$0xff] %v550
                %v552 = vld [vmem:[%s528 + $0xa8] sm:$0xff]
                %553 = vst [vmem:[%s529 + $0x58] sm:$0xff] %v552
                %v554 = vld [vmem:[%s528 + $0xc0] sm:$0xff]
                %555 = vst [vmem:[%s529 + $0x60] sm:$0xff] %v554
                %v556 = vld [vmem:[%s528 + $0xc8] sm:$0xff]
                %557 = vst [vmem:[%s529 + $0x68] sm:$0xff] %v556
                %v558 = vld [vmem:[%s528 + $0xe0] sm:$0xff]
                %559 = vst [vmem:[%s529 + $0x70] sm:$0xff] %v558
                %v560 = vld [vmem:[%s528 + $0xe8] sm:$0xff]
                %561 = vst [vmem:[%s529 + $0x78] sm:$0xff] %v560
              $region123: #{tpu_custom_call.1} parent=117 // loop_footer
                %s527 = sadd.s32 1, %s523
              $region124: #{tpu_custom_call.1} parent=117 // loop_footer_branch
                %522 = sbr.rel target = $region120
              $region125: #{tpu_custom_call.1} parent=117 // loop_exit
                _
            $region118: #{tpu_custom_call.1} parent=109 // pred_fallthru
              _
          $region110: #{tpu_custom_call.1} parent=105 // pred_fallthru
            _
          %606 = vnop
        $region106: #{tpu_custom_call.1} parent=101 // pred_fallthru
          _
      $region102: #{tpu_custom_call.1} parent=5 // pred_fallthru
        _
      %p607 = scmp.le.s32.totalorder 1, %s25
      %p608 = scmp.lt.s32.totalorder %s25, 3
      %p609 = pnand %p607, %p608
      %p610 = pneg %p609
      // Predicated region
      $region141: #{tpu_custom_call.1} parent=5 // pred_check
        _
      $region142: #{tpu_custom_call.1} parent=5 // pred_check_branch
        %612 = sbr.rel (%p609) target = $region144
      $region143: #{tpu_custom_call.1} parent=5 // pred_region
        %s613 = ssub.s32 %s25, 1
        %s614 = sand.u32 %s52, 1
        %s615 = sand.u32 %s52, 1
        %s616 = smul.addr %s615, 128
        %s617 = scalar_lea.vmem [#allocation5], %s616
        // Predicated region
        $region145: #{tpu_custom_call.1} parent=143 // pred_check
          %p618 = pneg %p65
        $region146: #{tpu_custom_call.1} parent=143 // pred_check_branch
          %620 = sbr.rel (%p618) target = $region148
        $region147: #{tpu_custom_call.1} parent=143 // pred_region
          _
        $region148: #{tpu_custom_call.1} parent=143 // pred_fallthru
          _
        // Predicated region
        $region149: #{tpu_custom_call.1} parent=143 // pred_check
          %p621 = pneg %p91
        $region150: #{tpu_custom_call.1} parent=143 // pred_check_branch
          %623 = sbr.rel (%p621) target = $region152
        $region151: #{tpu_custom_call.1} parent=143 // pred_region
          _
        $region152: #{tpu_custom_call.1} parent=143 // pred_fallthru
          _
        %s624 = sand.u32 %s52, 1
        %s625 = sand.u32 %s52, 1
        %s626 = smul.addr %s625, 128
        %s627 = scalar_lea.vmem [#allocation5], %s626
        %p628 = pneg %p65
        %p629 = pneg %p62
        %p630 = pneg %p91
        %p631 = pneg %p88
        %p632 = pneg %p112
        %p633 = pneg %p109
        %p634 = pneg %p133
        %p635 = pneg %p130
        %p636 = pneg %p154
        %p637 = pneg %p151
        %p638 = pneg %p175
        %p639 = pneg %p172
        %p640 = pneg %p196
        %p641 = pneg %p193
        %p642 = pneg %p217
        %p643 = pneg %p214
        %p644 = pneg %p238
        %p645 = pneg %p235
        %p646 = pneg %p259
        %p647 = pneg %p256
        %p648 = pneg %p280
        %p649 = pneg %p277
        %p650 = pneg %p301
        %p651 = pneg %p298
        %p652 = pneg %p322
        %p653 = pneg %p319
        %p654 = pneg %p343
        %p655 = pneg %p340
        %p656 = pneg %p371
        %p657 = pneg %p368
        %s658 = sand.u32 %s358, 1
        %s659 = sand.u32 %s358, 1
        %s660 = smul.addr %s659, 128
        %s661 = scalar_lea.vmem [#allocation7], %s660
        %p662 = pneg %p397
        %p663 = pneg %p394
        %s664 = sand.u32 %s384, 1
        %s665 = scalar_lea.sflag [#allocation9], %s664
        %s666 = sand.u32 %s384, 1
        %s667 = smul.addr %s666, 32
        %s668 = scalar_lea.vmem [#allocation8], %s667
        %s669 = smul.u32 8, %s35
        %s670 = smul.u32 2, %s34
        %s671 = smul.u32 2, %s34
        %s672 = smul.u32 8, %s35
        %s673 = smul.u32 2, %s34
        %s674 = smul.u32 2, %s34
        %p675 = scmp.eq.s32.totalorder %s35, 0
        // Predicated region
        $region153: #{tpu_custom_call.1} parent=143 // pred_check
          %p676 = pneg %p675
        $region154: #{tpu_custom_call.1} parent=143 // pred_check_branch
          %678 = sbr.rel (%p676) target = $region156
        $region155: #{tpu_custom_call.1} parent=143 // pred_region
          %v679 = vld [vmem:[#allocation6] sm:$0xff]
          %v680 = vld [vmem:[#allocation6 + $0x8] sm:$0xff]
          %v681 = vld [vmem:[#allocation6 + $0x10] sm:$0xff]
          %v682 = vld [vmem:[#allocation6 + $0x18] sm:$0xff]
          %vm683 = vcmask 261120
          %684 = vst.msk [vmem:[#allocation2] sm:$0xff] %vm683, %v679
          %685 = vst.msk [vmem:[#allocation2 + $0x8] sm:$0xff] %vm683, %v680
          %686 = vst.msk [vmem:[#allocation2 + $0x10] sm:$0xff] %vm683, %v681
          %687 = vst.msk [vmem:[#allocation2 + $0x18] sm:$0xff] %vm683, %v682
        $region156: #{tpu_custom_call.1} parent=143 // pred_fallthru
          _
        %v688 = vld [vmem:[%s617] sm:$0xff]
        %v689 = vld [vmem:[%s617 + $0x8] sm:$0xff]
        %v690 = vld [vmem:[%s617 + $0x10] sm:$0xff]
        %v691 = vld [vmem:[%s617 + $0x18] sm:$0xff]
        %v692 = vld [vmem:[%s617 + $0x20] sm:$0xff]
        %v693 = vld [vmem:[%s617 + $0x28] sm:$0xff]
        %v694 = vld [vmem:[%s617 + $0x30] sm:$0xff]
        %v695 = vld [vmem:[%s617 + $0x38] sm:$0xff]
        %v696 = vld [vmem:[%s617 + $0x40] sm:$0xff]
        %v697 = vld [vmem:[%s617 + $0x48] sm:$0xff]
        %v698 = vld [vmem:[%s617 + $0x50] sm:$0xff]
        %v699 = vld [vmem:[%s617 + $0x58] sm:$0xff]
        %v700 = vld [vmem:[%s617 + $0x60] sm:$0xff]
        %v701 = vld [vmem:[%s617 + $0x68] sm:$0xff]
        %v702 = vld [vmem:[%s617 + $0x70] sm:$0xff]
        %v703 = vld [vmem:[%s617 + $0x78] sm:$0xff]
        %vm704 = vcmask 130048
        %v705 = vsel %vm704, %v688, 0.0
        %706 = vadd.xlane.f32.xlu0 %v705
        %v707 = vpop.xlane.xlu0 %706
        %v708 = vsel %vm704, %v689, 0.0
        %709 = vadd.xlane.f32.xlu0 %v708
        %v710 = vpop.xlane.xlu0 %709
        %v711 = vsel %vm704, %v690, 0.0
        %712 = vadd.xlane.f32.xlu0 %v711
        %v713 = vpop.xlane.xlu0 %712
        %v714 = vsel %vm704, %v691, 0.0
        %715 = vadd.xlane.f32.xlu0 %v714
        %v716 = vpop.xlane.xlu0 %715
        %v717 = vsel %vm704, %v692, 0.0
        %718 = vadd.xlane.f32.xlu0 %v717
        %v719 = vpop.xlane.xlu0 %718
        %v720 = vsel %vm704, %v693, 0.0
        %721 = vadd.xlane.f32.xlu0 %v720
        %v722 = vpop.xlane.xlu0 %721
        %v723 = vsel %vm704, %v694, 0.0
        %724 = vadd.xlane.f32.xlu0 %v723
        %v725 = vpop.xlane.xlu0 %724
        %v726 = vsel %vm704, %v695, 0.0
        %727 = vadd.xlane.f32.xlu0 %v726
        %v728 = vpop.xlane.xlu0 %727
        %v729 = vsel %vm704, %v696, 0.0
        %730 = vadd.xlane.f32.xlu0 %v729
        %v731 = vpop.xlane.xlu0 %730
        %v732 = vsel %vm704, %v697, 0.0
        %733 = vadd.xlane.f32.xlu0 %v732
        %v734 = vpop.xlane.xlu0 %733
        %v735 = vsel %vm704, %v698, 0.0
        %736 = vadd.xlane.f32.xlu0 %v735
        %v737 = vpop.xlane.xlu0 %736
        %v738 = vsel %vm704, %v699, 0.0
        %739 = vadd.xlane.f32.xlu0 %v738
        %v740 = vpop.xlane.xlu0 %739
        %v741 = vsel %vm704, %v700, 0.0
        %742 = vadd.xlane.f32.xlu0 %v741
        %v743 = vpop.xlane.xlu0 %742
        %v744 = vsel %vm704, %v701, 0.0
        %745 = vadd.xlane.f32.xlu0 %v744
        %v746 = vpop.xlane.xlu0 %745
        %v747 = vsel %vm704, %v702, 0.0
        %748 = vadd.xlane.f32.xlu0 %v747
        %v749 = vpop.xlane.xlu0 %748
        %v750 = vsel %vm704, %v703, 0.0
        %751 = vadd.xlane.f32.xlu0 %v750
        %v752 = vpop.xlane.xlu0 %751
        %v753 = vrcp.pop 16.0
        %v754 = vmul.f32 %v707, %v753
        %v755 = vmul.f32 %v710, %v753
        %v756 = vmul.f32 %v713, %v753
        %v757 = vmul.f32 %v716, %v753
        %v758 = vmul.f32 %v719, %v753
        %v759 = vmul.f32 %v722, %v753
        %v760 = vmul.f32 %v725, %v753
        %v761 = vmul.f32 %v728, %v753
        %v762 = vmul.f32 %v731, %v753
        %v763 = vmul.f32 %v734, %v753
        %v764 = vmul.f32 %v737, %v753
        %v765 = vmul.f32 %v740, %v753
        %v766 = vmul.f32 %v743, %v753
        %v767 = vmul.f32 %v746, %v753
        %v768 = vmul.f32 %v749, %v753
        %v769 = vmul.f32 %v752, %v753
        %v770 = vsub.f32 %v688, %v754
        %v771 = vsub.f32 %v689, %v755
        %v772 = vsub.f32 %v690, %v756
        %v773 = vsub.f32 %v691, %v757
        %v774 = vsub.f32 %v692, %v758
        %v775 = vsub.f32 %v693, %v759
        %v776 = vsub.f32 %v694, %v760
        %v777 = vsub.f32 %v695, %v761
        %v778 = vsub.f32 %v696, %v762
        %v779 = vsub.f32 %v697, %v763
        %v780 = vsub.f32 %v698, %v764
        %v781 = vsub.f32 %v699, %v765
        %v782 = vsub.f32 %v700, %v766
        %v783 = vsub.f32 %v701, %v767
        %v784 = vsub.f32 %v702, %v768
        %v785 = vsub.f32 %v703, %v769
        %v786 = vmul.f32 %v770, %v770
        %v787 = vmul.f32 %v771, %v771
        %v788 = vmul.f32 %v772, %v772
        %v789 = vmul.f32 %v773, %v773
        %v790 = vmul.f32 %v774, %v774
        %v791 = vmul.f32 %v775, %v775
        %v792 = vmul.f32 %v776, %v776
        %v793 = vmul.f32 %v777, %v777
        %v794 = vmul.f32 %v778, %v778
        %v795 = vmul.f32 %v779, %v779
        %v796 = vmul.f32 %v780, %v780
        %v797 = vmul.f32 %v781, %v781
        %v798 = vmul.f32 %v782, %v782
        %v799 = vmul.f32 %v783, %v783
        %v800 = vmul.f32 %v784, %v784
        %v801 = vmul.f32 %v785, %v785
        %v802 = vsel %vm704, %v786, 0.0
        %803 = vadd.xlane.f32.xlu0 %v802
        %v804 = vpop.xlane.xlu0 %803
        %v805 = vsel %vm704, %v787, 0.0
        %806 = vadd.xlane.f32.xlu0 %v805
        %v807 = vpop.xlane.xlu0 %806
        %v808 = vsel %vm704, %v788, 0.0
        %809 = vadd.xlane.f32.xlu0 %v808
        %v810 = vpop.xlane.xlu0 %809
        %v811 = vsel %vm704, %v789, 0.0
        %812 = vadd.xlane.f32.xlu0 %v811
        %v813 = vpop.xlane.xlu0 %812
        %v814 = vsel %vm704, %v790, 0.0
        %815 = vadd.xlane.f32.xlu0 %v814
        %v816 = vpop.xlane.xlu0 %815
        %v817 = vsel %vm704, %v791, 0.0
        %818 = vadd.xlane.f32.xlu0 %v817
        %v819 = vpop.xlane.xlu0 %818
        %v820 = vsel %vm704, %v792, 0.0
        %821 = vadd.xlane.f32.xlu0 %v820
        %v822 = vpop.xlane.xlu0 %821
        %v823 = vsel %vm704, %v793, 0.0
        %824 = vadd.xlane.f32.xlu0 %v823
        %v825 = vpop.xlane.xlu0 %824
        %v826 = vsel %vm704, %v794, 0.0
        %827 = vadd.xlane.f32.xlu0 %v826
        %v828 = vpop.xlane.xlu0 %827
        %v829 = vsel %vm704, %v795, 0.0
        %830 = vadd.xlane.f32.xlu0 %v829
        %v831 = vpop.xlane.xlu0 %830
        %v832 = vsel %vm704, %v796, 0.0
        %833 = vadd.xlane.f32.xlu0 %v832
        %v834 = vpop.xlane.xlu0 %833
        %v835 = vsel %vm704, %v797, 0.0
        %836 = vadd.xlane.f32.xlu0 %v835
        %v837 = vpop.xlane.xlu0 %836
        %v838 = vsel %vm704, %v798, 0.0
        %839 = vadd.xlane.f32.xlu0 %v838
        %v840 = vpop.xlane.xlu0 %839
        %v841 = vsel %vm704, %v799, 0.0
        %842 = vadd.xlane.f32.xlu0 %v841
        %v843 = vpop.xlane.xlu0 %842
        %v844 = vsel %vm704, %v800, 0.0
        %845 = vadd.xlane.f32.xlu0 %v844
        %v846 = vpop.xlane.xlu0 %845
        %v847 = vsel %vm704, %v801, 0.0
        %848 = vadd.xlane.f32.xlu0 %v847
        %v849 = vpop.xlane.xlu0 %848
        %v850 = vmul.f32 %v804, %v753
        %v851 = vmul.f32 %v807, %v753
        %v852 = vmul.f32 %v810, %v753
        %v853 = vmul.f32 %v813, %v753
        %v854 = vmul.f32 %v816, %v753
        %v855 = vmul.f32 %v819, %v753
        %v856 = vmul.f32 %v822, %v753
        %v857 = vmul.f32 %v825, %v753
        %v858 = vmul.f32 %v828, %v753
        %v859 = vmul.f32 %v831, %v753
        %v860 = vmul.f32 %v834, %v753
        %v861 = vmul.f32 %v837, %v753
        %v862 = vmul.f32 %v840, %v753
        %v863 = vmul.f32 %v843, %v753
        %v864 = vmul.f32 %v846, %v753
        %v865 = vmul.f32 %v849, %v753
        %v866 = vadd.f32 %v850, 1e-05
        %v867 = vadd.f32 %v851, 1e-05
        %v868 = vadd.f32 %v852, 1e-05
        %v869 = vadd.f32 %v853, 1e-05
        %v870 = vadd.f32 %v854, 1e-05
        %v871 = vadd.f32 %v855, 1e-05
        %v872 = vadd.f32 %v856, 1e-05
        %v873 = vadd.f32 %v857, 1e-05
        %v874 = vadd.f32 %v858, 1e-05
        %v875 = vadd.f32 %v859, 1e-05
        %v876 = vadd.f32 %v860, 1e-05
        %v877 = vadd.f32 %v861, 1e-05
        %v878 = vadd.f32 %v862, 1e-05
        %v879 = vadd.f32 %v863, 1e-05
        %v880 = vadd.f32 %v864, 1e-05
        %v881 = vadd.f32 %v865, 1e-05
        %v882 = vrsqrt.pop %v866
        %v883 = vrsqrt.pop %v867
        %v884 = vrsqrt.pop %v868
        %v885 = vrsqrt.pop %v869
        %v886 = vrsqrt.pop %v870
        %v887 = vrsqrt.pop %v871
        %v888 = vrsqrt.pop %v872
        %v889 = vrsqrt.pop %v873
        %v890 = vrsqrt.pop %v874
        %v891 = vrsqrt.pop %v875
        %v892 = vrsqrt.pop %v876
        %v893 = vrsqrt.pop %v877
        %v894 = vrsqrt.pop %v878
        %v895 = vrsqrt.pop %v879
        %v896 = vrsqrt.pop %v880
        %v897 = vrsqrt.pop %v881
        %v898 = vmul.f32 %v770, %v882
        %v899 = vmul.f32 %v771, %v883
        %v900 = vmul.f32 %v772, %v884
        %v901 = vmul.f32 %v773, %v885
        %v902 = vmul.f32 %v774, %v886
        %v903 = vmul.f32 %v775, %v887
        %v904 = vmul.f32 %v776, %v888
        %v905 = vmul.f32 %v777, %v889
        %v906 = vmul.f32 %v778, %v890
        %v907 = vmul.f32 %v779, %v891
        %v908 = vmul.f32 %v780, %v892
        %v909 = vmul.f32 %v781, %v893
        %v910 = vmul.f32 %v782, %v894
        %v911 = vmul.f32 %v783, %v895
        %v912 = vmul.f32 %v784, %v896
        %v913 = vmul.f32 %v785, %v897
        %v914 = vld [vmem:[%s3] sm:$0x1]
        %v916 = vlaneseq
        %v917 = vshrl.u32 %v916, 7
        %v918 = vsub.s32 0, %v917
        %v919 = vrot.slane %v914, %v918
        %v921 = vmul.f32 %v898, %v919
        %v922 = vmul.f32 %v899, %v919
        %v923 = vmul.f32 %v900, %v919
        %v924 = vmul.f32 %v901, %v919
        %v925 = vmul.f32 %v902, %v919
        %v926 = vmul.f32 %v903, %v919
        %v927 = vmul.f32 %v904, %v919
        %v928 = vmul.f32 %v905, %v919
        %v929 = vmul.f32 %v906, %v919
        %v930 = vmul.f32 %v907, %v919
        %v931 = vmul.f32 %v908, %v919
        %v932 = vmul.f32 %v909, %v919
        %v933 = vmul.f32 %v910, %v919
        %v934 = vmul.f32 %v911, %v919
        %v935 = vmul.f32 %v912, %v919
        %v936 = vmul.f32 %v913, %v919
        %v937 = vld [vmem:[%s4] sm:$0x1]
        %v939 = vlaneseq
        %v940 = vshrl.u32 %v939, 7
        %v941 = vsub.s32 0, %v940
        %v942 = vrot.slane %v937, %v941
        %v944 = vadd.f32 %v921, %v942
        %v945 = vadd.f32 %v922, %v942
        %v946 = vadd.f32 %v923, %v942
        %v947 = vadd.f32 %v924, %v942
        %v948 = vadd.f32 %v925, %v942
        %v949 = vadd.f32 %v926, %v942
        %v950 = vadd.f32 %v927, %v942
        %v951 = vadd.f32 %v928, %v942
        %v952 = vadd.f32 %v929, %v942
        %v953 = vadd.f32 %v930, %v942
        %v954 = vadd.f32 %v931, %v942
        %v955 = vadd.f32 %v932, %v942
        %v956 = vadd.f32 %v933, %v942
        %v957 = vadd.f32 %v934, %v942
        %v958 = vadd.f32 %v935, %v942
        %v959 = vadd.f32 %v936, %v942
        %v960 = vld [vmem:[%s6] sm:$0xff]
        %v961 = vld [vmem:[%s6 + $0x8] sm:$0xff]
        %v963 = vsel %vm704, %v944, 0
        %v966 = vsel %vm704, %v945, 0
        %v969 = vsel %vm704, %v946, 0
        %v972 = vsel %vm704, %v947, 0
        %v975 = vsel %vm704, %v948, 0
        %v978 = vsel %vm704, %v949, 0
        %v981 = vsel %vm704, %v950, 0
        %v984 = vsel %vm704, %v951, 0
        %v987 = vsel %vm704, %v952, 0
        %v990 = vsel %vm704, %v953, 0
        %v993 = vsel %vm704, %v954, 0
        %v996 = vsel %vm704, %v955, 0
        %v999 = vsel %vm704, %v956, 0
        %v1002 = vsel %vm704, %v957, 0
        %v1005 = vsel %vm704, %v958, 0
        %v1008 = vsel %vm704, %v959, 0
        %1010 = vmatprep.subr.mxu0 0.0
        %1011 = vmatpush1.msra.mxu0 %v960
        %1012 = vmatprep.subr.mxu0 0.0
        %1013 = vmatpush1.msra.mxu0 %v961
        %1014 = vmatprep.subr.mxu0 0.0
        %1015 = vmatpush1.msra.mxu0 0.0
        %1016 = vmatprep.subr.mxu0 0.0
        %1017 = vmatpush1.msra.mxu0 0.0
        %1018 = vmatprep.subr.mxu0 0.0
        %1019 = vmatpush1.msra.mxu0 0.0
        %1020 = vmatprep.subr.mxu0 0.0
        %1021 = vmatpush1.msra.mxu0 0.0
        %1022 = vmatprep.subr.mxu0 0.0
        %1023 = vmatpush1.msra.mxu0 0.0
        %1024 = vmatprep.subr.mxu0 0.0
        %1025 = vmatpush1.msra.mxu0 0.0
        %1026 = vmatprep.subr.mxu0 0.0
        %1027 = vmatpush1.msra.mxu0 0.0
        %1028 = vmatprep.subr.mxu0 0.0
        %1029 = vmatpush1.msra.mxu0 0.0
        %1030 = vmatprep.subr.mxu0 0.0
        %1031 = vmatpush1.msra.mxu0 0.0
        %1032 = vmatprep.subr.mxu0 0.0
        %1033 = vmatpush1.msra.mxu0 0.0
        %1034 = vmatprep.subr.mxu0 0.0
        %1035 = vmatpush1.msra.mxu0 0.0
        %1036 = vmatprep.subr.mxu0 0.0
        %1037 = vmatpush1.msra.mxu0 0.0
        %1038 = vmatprep.subr.mxu0 0.0
        %1039 = vmatpush1.msra.mxu0 0.0
        %1040 = vmatprep.subr.mxu0 0.0
        %1041 = vmatpush1.msra.mxu0 0.0
        %1042 = vmatprep.subr.mxu0 0.0
        %1043 = vmatpush1.msra.mxu0 0.0
        %1044 = vmatprep.subr.mxu0 0.0
        %1045 = vmatpush1.msra.mxu0 0.0
        %1046 = vmatprep.subr.mxu0 0.0
        %1047 = vmatpush1.msra.mxu0 0.0
        %1048 = vmatprep.subr.mxu0 0.0
        %1049 = vmatpush1.msra.mxu0 0.0
        %1050 = vmatprep.subr.mxu0 0.0
        %1051 = vmatpush1.msra.mxu0 0.0
        %1052 = vmatprep.subr.mxu0 0.0
        %1053 = vmatpush1.msra.mxu0 0.0
        %1054 = vmatprep.subr.mxu0 0.0
        %1055 = vmatpush1.msra.mxu0 0.0
        %1056 = vmatprep.subr.mxu0 0.0
        %1057 = vmatpush1.msra.mxu0 0.0
        %1058 = vmatprep.subr.mxu0 0.0
        %1059 = vmatpush1.msra.mxu0 0.0
        %1060 = vmatprep.subr.mxu0 0.0
        %1061 = vmatpush1.msra.mxu0 0.0
        %1062 = vmatprep.subr.mxu0 0.0
        %1063 = vmatpush1.msra.mxu0 0.0
        %1064 = vmatprep.subr.mxu0 0.0
        %1065 = vmatpush1.msra.mxu0 0.0
        %1066 = vmatprep.subr.mxu0 0.0
        %1067 = vmatpush1.msra.mxu0 0.0
        %1068 = vmatprep.subr.mxu0 0.0
        %1069 = vmatpush1.msra.mxu0 0.0
        %1070 = vmatprep.subr.mxu0 0.0
        %1071 = vmatpush1.msra.mxu0 0.0
        %1072 = vmatprep.subr.mxu0 0.0
        %1073 = vmatpush1.msra.mxu0 0.0
        %1074 = vmatprep.mubr.f32.mxu0 0.0
        %1075 = vmatmul.mubr.f32.gmra.mrb[0].mxu0 %v963
        %v1076 = vpop.f32.mrb[0].mxu0
        %v1077 = vadd.f32 0.0, %v1076
        %v1078 = vpop.f32.mrb[0].mxu0
        %1079 = vmatprep.mubr.f32.mxu0 0.0
        %1080 = vmatmul.mubr.f32.gmra.mrb[0].mxu0 %v966
        %v1081 = vpop.f32.mrb[0].mxu0
        %v1082 = vadd.f32 0.0, %v1081
        %v1083 = vpop.f32.mrb[0].mxu0
        %1084 = vmatprep.mubr.f32.mxu0 0.0
        %1085 = vmatmul.mubr.f32.gmra.mrb[0].mxu0 %v969
        %v1086 = vpop.f32.mrb[0].mxu0
        %v1087 = vadd.f32 0.0, %v1086
        %v1088 = vpop.f32.mrb[0].mxu0
        %1089 = vmatprep.mubr.f32.mxu0 0.0
        %1090 = vmatmul.mubr.f32.gmra.mrb[0].mxu0 %v972
        %v1091 = vpop.f32.mrb[0].mxu0
        %v1092 = vadd.f32 0.0, %v1091
        %v1093 = vpop.f32.mrb[0].mxu0
        %1094 = vmatprep.mubr.f32.mxu0 0.0
        %1095 = vmatmul.mubr.f32.gmra.mrb[0].mxu0 %v975
        %v1096 = vpop.f32.mrb[0].mxu0
        %v1097 = vadd.f32 0.0, %v1096
        %v1098 = vpop.f32.mrb[0].mxu0
        %1099 = vmatprep.mubr.f32.mxu0 0.0
        %1100 = vmatmul.mubr.f32.gmra.mrb[0].mxu0 %v978
        %v1101 = vpop.f32.mrb[0].mxu0
        %v1102 = vadd.f32 0.0, %v1101
        %v1103 = vpop.f32.mrb[0].mxu0
        %1104 = vmatprep.mubr.f32.mxu0 0.0
        %1105 = vmatmul.mubr.f32.gmra.mrb[0].mxu0 %v981
        %v1106 = vpop.f32.mrb[0].mxu0
        %v1107 = vadd.f32 0.0, %v1106
        %v1108 = vpop.f32.mrb[0].mxu0
        %1109 = vmatprep.mubr.f32.mxu0 0.0
        %1110 = vmatmul.mubr.f32.gmra.mrb[0].mxu0 %v984
        %v1111 = vpop.f32.mrb[0].mxu0
        %v1112 = vadd.f32 0.0, %v1111
        %v1113 = vpop.f32.mrb[0].mxu0
        %1114 = vmatprep.mubr.f32.mxu0 0.0
        %1115 = vmatmul.mubr.f32.gmra.mrb[0].mxu0 %v987
        %v1116 = vpop.f32.mrb[0].mxu0
        %v1117 = vadd.f32 0.0, %v1116
        %v1118 = vpop.f32.mrb[0].mxu0
        %1119 = vmatprep.mubr.f32.mxu0 0.0
        %1120 = vmatmul.mubr.f32.gmra.mrb[0].mxu0 %v990
        %v1121 = vpop.f32.mrb[0].mxu0
        %v1122 = vadd.f32 0.0, %v1121
        %v1123 = vpop.f32.mrb[0].mxu0
        %1124 = vmatprep.mubr.f32.mxu0 0.0
        %1125 = vmatmul.mubr.f32.gmra.mrb[0].mxu0 %v993
        %v1126 = vpop.f32.mrb[0].mxu0
        %v1127 = vadd.f32 0.0, %v1126
        %v1128 = vpop.f32.mrb[0].mxu0
        %1129 = vmatprep.mubr.f32.mxu0 0.0
        %1130 = vmatmul.mubr.f32.gmra.mrb[0].mxu0 %v996
        %v1131 = vpop.f32.mrb[0].mxu0
        %v1132 = vadd.f32 0.0, %v1131
        %v1133 = vpop.f32.mrb[0].mxu0
        %1134 = vmatprep.mubr.f32.mxu0 0.0
        %1135 = vmatmul.mubr.f32.gmra.mrb[0].mxu0 %v999
        %v1136 = vpop.f32.mrb[0].mxu0
        %v1137 = vadd.f32 0.0, %v1136
        %v1138 = vpop.f32.mrb[0].mxu0
        %1139 = vmatprep.mubr.f32.mxu0 0.0
        %1140 = vmatmul.mubr.f32.gmra.mrb[0].mxu0 %v1002
        %v1141 = vpop.f32.mrb[0].mxu0
        %v1142 = vadd.f32 0.0, %v1141
        %v1143 = vpop.f32.mrb[0].mxu0
        %1144 = vmatprep.mubr.f32.mxu0 0.0
        %1145 = vmatmul.mubr.f32.gmra.mrb[0].mxu0 %v1005
        %v1146 = vpop.f32.mrb[0].mxu0
        %v1147 = vadd.f32 0.0, %v1146
        %v1148 = vpop.f32.mrb[0].mxu0
        %1149 = vmatprep.mubr.f32.mxu0 0.0
        %1150 = vmatmul.mubr.f32.gmra.mrb[0].mxu0 %v1008
        %v1151 = vpop.f32.mrb[0].mxu0
        %v1152 = vadd.f32 0.0, %v1151
        %v1153 = vpop.f32.mrb[0].mxu0
        %1154 = vdwg.mxu0
        %v1155 = vld [vmem:[%s7] sm:$0xff]
        %v1156 = vld [vmem:[%s7 + $0x8] sm:$0xff]
        %1157 = vmatprep.subr.mxu0 0.0
        %1158 = vmatpush1.msra.mxu0 %v1155
        %1159 = vmatprep.subr.mxu0 0.0
        %1160 = vmatpush1.msra.mxu0 %v1156
        %1161 = vmatprep.subr.mxu0 0.0
        %1162 = vmatpush1.msra.mxu0 0.0
        %1163 = vmatprep.subr.mxu0 0.0
        %1164 = vmatpush1.msra.mxu0 0.0
        %1165 = vmatprep.subr.mxu0 0.0
        %1166 = vmatpush1.msra.mxu0 0.0
        %1167 = vmatprep.subr.mxu0 0.0
        %1168 = vmatpush1.msra.mxu0 0.0
        %1169 = vmatprep.subr.mxu0 0.0
        %1170 = vmatpush1.msra.mxu0 0.0
        %1171 = vmatprep.subr.mxu0 0.0
        %1172 = vmatpush1.msra.mxu0 0.0
        %1173 = vmatprep.subr.mxu0 0.0
        %1174 = vmatpush1.msra.mxu0 0.0
        %1175 = vmatprep.subr.mxu0 0.0
        %1176 = vmatpush1.msra.mxu0 0.0
        %1177 = vmatprep.subr.mxu0 0.0
        %1178 = vmatpush1.msra.mxu0 0.0
        %1179 = vmatprep.subr.mxu0 0.0
        %1180 = vmatpush1.msra.mxu0 0.0
        %1181 = vmatprep.subr.mxu0 0.0
        %1182 = vmatpush1.msra.mxu0 0.0
        %1183 = vmatprep.subr.mxu0 0.0
        %1184 = vmatpush1.msra.mxu0 0.0
        %1185 = vmatprep.subr.mxu0 0.0
        %1186 = vmatpush1.msra.mxu0 0.0
        %1187 = vmatprep.subr.mxu0 0.0
        %1188 = vmatpush1.msra.mxu0 0.0
        %1189 = vmatprep.subr.mxu0 0.0
        %1190 = vmatpush1.msra.mxu0 0.0
        %1191 = vmatprep.subr.mxu0 0.0
        %1192 = vmatpush1.msra.mxu0 0.0
        %1193 = vmatprep.subr.mxu0 0.0
        %1194 = vmatpush1.msra.mxu0 0.0
        %1195 = vmatprep.subr.mxu0 0.0
        %1196 = vmatpush1.msra.mxu0 0.0
        %1197 = vmatprep.subr.mxu0 0.0
        %1198 = vmatpush1.msra.mxu0 0.0
        %1199 = vmatprep.subr.mxu0 0.0
        %1200 = vmatpush1.msra.mxu0 0.0
        %1201 = vmatprep.subr.mxu0 0.0
        %1202 = vmatpush1.msra.mxu0 0.0
        %1203 = vmatprep.subr.mxu0 0.0
        %1204 = vmatpush1.msra.mxu0 0.0
        %1205 = vmatprep.subr.mxu0 0.0
        %1206 = vmatpush1.msra.mxu0 0.0
        %1207 = vmatprep.subr.mxu0 0.0
        %1208 = vmatpush1.msra.mxu0 0.0
        %1209 = vmatprep.subr.mxu0 0.0
        %1210 = vmatpush1.msra.mxu0 0.0
        %1211 = vmatprep.subr.mxu0 0.0
        %1212 = vmatpush1.msra.mxu0 0.0
        %1213 = vmatprep.subr.mxu0 0.0
        %1214 = vmatpush1.msra.mxu0 0.0
        %1215 = vmatprep.subr.mxu0 0.0
        %1216 = vmatpush1.msra.mxu0 0.0
        %1217 = vmatprep.subr.mxu0 0.0
        %1218 = vmatpush1.msra.mxu0 0.0
        %1219 = vmatprep.subr.mxu0 0.0
        %1220 = vmatpush1.msra.mxu0 0.0
        %1221 = vmatprep.mubr.f32.mxu0 0.0
        %1222 = vmatmul.mubr.f32.gmra.mrb[0].mxu0 %v963
        %v1223 = vpop.f32.mrb[0].mxu0
        %v1224 = vadd.f32 0.0, %v1223
        %v1225 = vpop.f32.mrb[0].mxu0
        %1226 = vmatprep.mubr.f32.mxu0 0.0
        %1227 = vmatmul.mubr.f32.gmra.mrb[0].mxu0 %v966
        %v1228 = vpop.f32.mrb[0].mxu0
        %v1229 = vadd.f32 0.0, %v1228
        %v1230 = vpop.f32.mrb[0].mxu0
        %1231 = vmatprep.mubr.f32.mxu0 0.0
        %1232 = vmatmul.mubr.f32.gmra.mrb[0].mxu0 %v969
        %v1233 = vpop.f32.mrb[0].mxu0
        %v1234 = vadd.f32 0.0, %v1233
        %v1235 = vpop.f32.mrb[0].mxu0
        %1236 = vmatprep.mubr.f32.mxu0 0.0
        %1237 = vmatmul.mubr.f32.gmra.mrb[0].mxu0 %v972
        %v1238 = vpop.f32.mrb[0].mxu0
        %v1239 = vadd.f32 0.0, %v1238
        %v1240 = vpop.f32.mrb[0].mxu0
        %1241 = vmatprep.mubr.f32.mxu0 0.0
        %1242 = vmatmul.mubr.f32.gmra.mrb[0].mxu0 %v975
        %v1243 = vpop.f32.mrb[0].mxu0
        %v1244 = vadd.f32 0.0, %v1243
        %v1245 = vpop.f32.mrb[0].mxu0
        %1246 = vmatprep.mubr.f32.mxu0 0.0
        %1247 = vmatmul.mubr.f32.gmra.mrb[0].mxu0 %v978
        %v1248 = vpop.f32.mrb[0].mxu0
        %v1249 = vadd.f32 0.0, %v1248
        %v1250 = vpop.f32.mrb[0].mxu0
        %1251 = vmatprep.mubr.f32.mxu0 0.0
        %1252 = vmatmul.mubr.f32.gmra.mrb[0].mxu0 %v981
        %v1253 = vpop.f32.mrb[0].mxu0
        %v1254 = vadd.f32 0.0, %v1253
        %v1255 = vpop.f32.mrb[0].mxu0
        %1256 = vmatprep.mubr.f32.mxu0 0.0
        %1257 = vmatmul.mubr.f32.gmra.mrb[0].mxu0 %v984
        %v1258 = vpop.f32.mrb[0].mxu0
        %v1259 = vadd.f32 0.0, %v1258
        %v1260 = vpop.f32.mrb[0].mxu0
        %1261 = vmatprep.mubr.f32.mxu0 0.0
        %1262 = vmatmul.mubr.f32.gmra.mrb[0].mxu0 %v987
        %v1263 = vpop.f32.mrb[0].mxu0
        %v1264 = vadd.f32 0.0, %v1263
        %v1265 = vpop.f32.mrb[0].mxu0
        %1266 = vmatprep.mubr.f32.mxu0 0.0
        %1267 = vmatmul.mubr.f32.gmra.mrb[0].mxu0 %v990
        %v1268 = vpop.f32.mrb[0].mxu0
        %v1269 = vadd.f32 0.0, %v1268
        %v1270 = vpop.f32.mrb[0].mxu0
        %1271 = vmatprep.mubr.f32.mxu0 0.0
        %1272 = vmatmul.mubr.f32.gmra.mrb[0].mxu0 %v993
        %v1273 = vpop.f32.mrb[0].mxu0
        %v1274 = vadd.f32 0.0, %v1273
        %v1275 = vpop.f32.mrb[0].mxu0
        %1276 = vmatprep.mubr.f32.mxu0 0.0
        %1277 = vmatmul.mubr.f32.gmra.mrb[0].mxu0 %v996
        %v1278 = vpop.f32.mrb[0].mxu0
        %v1279 = vadd.f32 0.0, %v1278
        %v1280 = vpop.f32.mrb[0].mxu0
        %1281 = vmatprep.mubr.f32.mxu0 0.0
        %1282 = vmatmul.mubr.f32.gmra.mrb[0].mxu0 %v999
        %v1283 = vpop.f32.mrb[0].mxu0
        %v1284 = vadd.f32 0.0, %v1283
        %v1285 = vpop.f32.mrb[0].mxu0
        %1286 = vmatprep.mubr.f32.mxu0 0.0
        %1287 = vmatmul.mubr.f32.gmra.mrb[0].mxu0 %v1002
        %v1288 = vpop.f32.mrb[0].mxu0
        %v1289 = vadd.f32 0.0, %v1288
        %v1290 = vpop.f32.mrb[0].mxu0
        %1291 = vmatprep.mubr.f32.mxu0 0.0
        %1292 = vmatmul.mubr.f32.gmra.mrb[0].mxu0 %v1005
        %v1293 = vpop.f32.mrb[0].mxu0
        %v1294 = vadd.f32 0.0, %v1293
        %v1295 = vpop.f32.mrb[0].mxu0
        %1296 = vmatprep.mubr.f32.mxu0 0.0
        %1297 = vmatmul.mubr.f32.gmra.mrb[0].mxu0 %v1008
        %v1298 = vpop.f32.mrb[0].mxu0
        %v1299 = vadd.f32 0.0, %v1298
        %v1300 = vpop.f32.mrb[0].mxu0
        %1301 = vdwg.mxu0
        %vm1302 = vcmask 261120
        %1303 = vst.msk [vmem:[#allocation3] sm:$0xff] %vm1302, %v1077
        %1304 = vst.msk [vmem:[#allocation3 + $0x8] sm:$0xff] %vm1302, %v1082
        %1305 = vst.msk [vmem:[#allocation3 + $0x10] sm:$0xff] %vm1302, %v1087
        %1306 = vst.msk [vmem:[#allocation3 + $0x18] sm:$0xff] %vm1302, %v1092
        %1307 = vst.msk [vmem:[#allocation3 + $0x20] sm:$0xff] %vm1302, %v1097
        %1308 = vst.msk [vmem:[#allocation3 + $0x28] sm:$0xff] %vm1302, %v1102
        %1309 = vst.msk [vmem:[#allocation3 + $0x30] sm:$0xff] %vm1302, %v1107
        %1310 = vst.msk [vmem:[#allocation3 + $0x38] sm:$0xff] %vm1302, %v1112
        %1311 = vst.msk [vmem:[#allocation3 + $0x40] sm:$0xff] %vm1302, %v1117
        %1312 = vst.msk [vmem:[#allocation3 + $0x48] sm:$0xff] %vm1302, %v1122
        %1313 = vst.msk [vmem:[#allocation3 + $0x50] sm:$0xff] %vm1302, %v1127
        %1314 = vst.msk [vmem:[#allocation3 + $0x58] sm:$0xff] %vm1302, %v1132
        %1315 = vst.msk [vmem:[#allocation3 + $0x60] sm:$0xff] %vm1302, %v1137
        %1316 = vst.msk [vmem:[#allocation3 + $0x68] sm:$0xff] %vm1302, %v1142
        %1317 = vst.msk [vmem:[#allocation3 + $0x70] sm:$0xff] %vm1302, %v1147
        %1318 = vst.msk [vmem:[#allocation3 + $0x78] sm:$0xff] %vm1302, %v1152
        %1319 = vst.msk [vmem:[#allocation4] sm:$0xff] %vm1302, %v1224
        %1320 = vst.msk [vmem:[#allocation4 + $0x8] sm:$0xff] %vm1302, %v1229
        %1321 = vst.msk [vmem:[#allocation4 + $0x10] sm:$0xff] %vm1302, %v1234
        %1322 = vst.msk [vmem:[#allocation4 + $0x18] sm:$0xff] %vm1302, %v1239
        %1323 = vst.msk [vmem:[#allocation4 + $0x20] sm:$0xff] %vm1302, %v1244
        %1324 = vst.msk [vmem:[#allocation4 + $0x28] sm:$0xff] %vm1302, %v1249
        %1325 = vst.msk [vmem:[#allocation4 + $0x30] sm:$0xff] %vm1302, %v1254
        %1326 = vst.msk [vmem:[#allocation4 + $0x38] sm:$0xff] %vm1302, %v1259
        %1327 = vst.msk [vmem:[#allocation4 + $0x40] sm:$0xff] %vm1302, %v1264
        %1328 = vst.msk [vmem:[#allocation4 + $0x48] sm:$0xff] %vm1302, %v1269
        %1329 = vst.msk [vmem:[#allocation4 + $0x50] sm:$0xff] %vm1302, %v1274
        %1330 = vst.msk [vmem:[#allocation4 + $0x58] sm:$0xff] %vm1302, %v1279
        %1331 = vst.msk [vmem:[#allocation4 + $0x60] sm:$0xff] %vm1302, %v1284
        %1332 = vst.msk [vmem:[#allocation4 + $0x68] sm:$0xff] %vm1302, %v1289
        %1333 = vst.msk [vmem:[#allocation4 + $0x70] sm:$0xff] %vm1302, %v1294
        %1334 = vst.msk [vmem:[#allocation4 + $0x78] sm:$0xff] %vm1302, %v1299
        %v1335 = vld [vmem:[%s2] sm:$0x1]
        %v1336 = vlaneseq
        %v1337 = vshrl.u32 %v1336, 7
        %v1338 = vsub.s32 0, %v1337
        %v1339 = vrot.slane %v1335, %v1338
        %v1340 = vld [vmem:[%s2 + $0x1] sm:$0x1]
        %v1341 = vlaneseq
        %v1342 = vshrl.u32 %v1341, 7
        %v1343 = vsub.s32 0, %v1342
        %v1344 = vrot.slane %v1340, %v1343
        %v1345 = vld [vmem:[#allocation2] sm:$0xff]
        %v1346 = vld [vmem:[#allocation2 + $0x8] sm:$0xff]
        %s1347 = scalar_lea.vmem [#allocation2], 16
        %v1348 = vld [vmem:[%s1347] sm:$0xff]
        %v1349 = vld [vmem:[%s1347 + $0x8] sm:$0xff]
        %v1350 = vld [vmem:[#allocation3] sm:$0xff]
        %v1351 = vld [vmem:[#allocation3 + $0x8] sm:$0xff]
        %v1352 = vld [vmem:[#allocation4] sm:$0xff]
        %v1353 = vld [vmem:[#allocation4 + $0x8] sm:$0xff]
        %v1354 = vmul.f32 %v1345, %v1339
        %v1355 = vmul.f32 %v1346, %v1339
        %v1356 = vmul.f32 %v1348, %v1344
        %v1357 = vmul.f32 %v1349, %v1344
        %v1358 = vsub.f32 %v1354, %v1356
        %v1359 = vsub.f32 %v1355, %v1357
        %v1360 = vadd.f32 %v1358, %v1350
        %v1361 = vadd.f32 %v1359, %v1351
        %v1362 = vmul.f32 %v1345, %v1344
        %v1363 = vmul.f32 %v1346, %v1344
        %v1364 = vmul.f32 %v1348, %v1339
        %v1365 = vmul.f32 %v1349, %v1339
        %v1366 = vadd.f32 %v1362, %v1364
        %v1367 = vadd.f32 %v1363, %v1365
        %v1368 = vadd.f32 %v1366, %v1352
        %v1369 = vadd.f32 %v1367, %v1353
        %1370 = vst.msk [vmem:[#allocation3] sm:$0xff] %vm1302, %v1360
        %1371 = vst.msk [vmem:[#allocation3 + $0x8] sm:$0xff] %vm1302, %v1361
        %1372 = vst.msk [vmem:[#allocation4] sm:$0xff] %vm1302, %v1368
        %1373 = vst.msk [vmem:[#allocation4 + $0x8] sm:$0xff] %vm1302, %v1369
        %s1374 = scalar_lea.vmem [#allocation3], 16
        %v1375 = vld [vmem:[%s1374] sm:$0xff]
        %v1376 = vld [vmem:[%s1374 + $0x8] sm:$0xff]
        %s1377 = scalar_lea.vmem [#allocation4], 16
        %v1378 = vld [vmem:[%s1377] sm:$0xff]
        %v1379 = vld [vmem:[%s1377 + $0x8] sm:$0xff]
        %v1380 = vmul.f32 %v1360, %v1339
        %v1381 = vmul.f32 %v1361, %v1339
        %v1382 = vmul.f32 %v1368, %v1344
        %v1383 = vmul.f32 %v1369, %v1344
        %v1384 = vsub.f32 %v1380, %v1382
        %v1385 = vsub.f32 %v1381, %v1383
        %v1386 = vadd.f32 %v1384, %v1375
        %v1387 = vadd.f32 %v1385, %v1376
        %v1388 = vmul.f32 %v1360, %v1344
        %v1389 = vmul.f32 %v1361, %v1344
        %v1390 = vmul.f32 %v1368, %v1339
        %v1391 = vmul.f32 %v1369, %v1339
        %v1392 = vadd.f32 %v1388, %v1390
        %v1393 = vadd.f32 %v1389, %v1391
        %v1394 = vadd.f32 %v1392, %v1378
        %v1395 = vadd.f32 %v1393, %v1379
        %1396 = vst.msk [vmem:[%s1374] sm:$0xff] %vm1302, %v1386
        %1397 = vst.msk [vmem:[%s1374 + $0x8] sm:$0xff] %vm1302, %v1387
        %1398 = vst.msk [vmem:[%s1377] sm:$0xff] %vm1302, %v1394
        %1399 = vst.msk [vmem:[%s1377 + $0x8] sm:$0xff] %vm1302, %v1395
        %s1400 = scalar_lea.vmem [#allocation3], 32
        %v1401 = vld [vmem:[%s1400] sm:$0xff]
        %v1402 = vld [vmem:[%s1400 + $0x8] sm:$0xff]
        %s1403 = scalar_lea.vmem [#allocation4], 32
        %v1404 = vld [vmem:[%s1403] sm:$0xff]
        %v1405 = vld [vmem:[%s1403 + $0x8] sm:$0xff]
        %v1406 = vmul.f32 %v1386, %v1339
        %v1407 = vmul.f32 %v1387, %v1339
        %v1408 = vmul.f32 %v1394, %v1344
        %v1409 = vmul.f32 %v1395, %v1344
        %v1410 = vsub.f32 %v1406, %v1408
        %v1411 = vsub.f32 %v1407, %v1409
        %v1412 = vadd.f32 %v1410, %v1401
        %v1413 = vadd.f32 %v1411, %v1402
        %v1414 = vmul.f32 %v1386, %v1344
        %v1415 = vmul.f32 %v1387, %v1344
        %v1416 = vmul.f32 %v1394, %v1339
        %v1417 = vmul.f32 %v1395, %v1339
        %v1418 = vadd.f32 %v1414, %v1416
        %v1419 = vadd.f32 %v1415, %v1417
        %v1420 = vadd.f32 %v1418, %v1404
        %v1421 = vadd.f32 %v1419, %v1405
        %1422 = vst.msk [vmem:[%s1400] sm:$0xff] %vm1302, %v1412
        %1423 = vst.msk [vmem:[%s1400 + $0x8] sm:$0xff] %vm1302, %v1413
        %1424 = vst.msk [vmem:[%s1403] sm:$0xff] %vm1302, %v1420
        %1425 = vst.msk [vmem:[%s1403 + $0x8] sm:$0xff] %vm1302, %v1421
        %s1426 = scalar_lea.vmem [#allocation3], 48
        %v1427 = vld [vmem:[%s1426] sm:$0xff]
        %v1428 = vld [vmem:[%s1426 + $0x8] sm:$0xff]
        %s1429 = scalar_lea.vmem [#allocation4], 48
        %v1430 = vld [vmem:[%s1429] sm:$0xff]
        %v1431 = vld [vmem:[%s1429 + $0x8] sm:$0xff]
        %v1432 = vmul.f32 %v1412, %v1339
        %v1433 = vmul.f32 %v1413, %v1339
        %v1434 = vmul.f32 %v1420, %v1344
        %v1435 = vmul.f32 %v1421, %v1344
        %v1436 = vsub.f32 %v1432, %v1434
        %v1437 = vsub.f32 %v1433, %v1435
        %v1438 = vadd.f32 %v1436, %v1427
        %v1439 = vadd.f32 %v1437, %v1428
        %v1440 = vmul.f32 %v1412, %v1344
        %v1441 = vmul.f32 %v1413, %v1344
        %v1442 = vmul.f32 %v1420, %v1339
        %v1443 = vmul.f32 %v1421, %v1339
        %v1444 = vadd.f32 %v1440, %v1442
        %v1445 = vadd.f32 %v1441, %v1443
        %v1446 = vadd.f32 %v1444, %v1430
        %v1447 = vadd.f32 %v1445, %v1431
        %1448 = vst.msk [vmem:[%s1426] sm:$0xff] %vm1302, %v1438
        %1449 = vst.msk [vmem:[%s1426 + $0x8] sm:$0xff] %vm1302, %v1439
        %1450 = vst.msk [vmem:[%s1429] sm:$0xff] %vm1302, %v1446
        %1451 = vst.msk [vmem:[%s1429 + $0x8] sm:$0xff] %vm1302, %v1447
        %s1452 = scalar_lea.vmem [#allocation3], 64
        %v1453 = vld [vmem:[%s1452] sm:$0xff]
        %v1454 = vld [vmem:[%s1452 + $0x8] sm:$0xff]
        %s1455 = scalar_lea.vmem [#allocation4], 64
        %v1456 = vld [vmem:[%s1455] sm:$0xff]
        %v1457 = vld [vmem:[%s1455 + $0x8] sm:$0xff]
        %v1458 = vmul.f32 %v1438, %v1339
        %v1459 = vmul.f32 %v1439, %v1339
        %v1460 = vmul.f32 %v1446, %v1344
        %v1461 = vmul.f32 %v1447, %v1344
        %v1462 = vsub.f32 %v1458, %v1460
        %v1463 = vsub.f32 %v1459, %v1461
        %v1464 = vadd.f32 %v1462, %v1453
        %v1465 = vadd.f32 %v1463, %v1454
        %v1466 = vmul.f32 %v1438, %v1344
        %v1467 = vmul.f32 %v1439, %v1344
        %v1468 = vmul.f32 %v1446, %v1339
        %v1469 = vmul.f32 %v1447, %v1339
        %v1470 = vadd.f32 %v1466, %v1468
        %v1471 = vadd.f32 %v1467, %v1469
        %v1472 = vadd.f32 %v1470, %v1456
        %v1473 = vadd.f32 %v1471, %v1457
        %1474 = vst.msk [vmem:[%s1452] sm:$0xff] %vm1302, %v1464
        %1475 = vst.msk [vmem:[%s1452 + $0x8] sm:$0xff] %vm1302, %v1465
        %1476 = vst.msk [vmem:[%s1455] sm:$0xff] %vm1302, %v1472
        %1477 = vst.msk [vmem:[%s1455 + $0x8] sm:$0xff] %vm1302, %v1473
        %s1478 = scalar_lea.vmem [#allocation3], 80
        %v1479 = vld [vmem:[%s1478] sm:$0xff]
        %v1480 = vld [vmem:[%s1478 + $0x8] sm:$0xff]
        %s1481 = scalar_lea.vmem [#allocation4], 80
        %v1482 = vld [vmem:[%s1481] sm:$0xff]
        %v1483 = vld [vmem:[%s1481 + $0x8] sm:$0xff]
        %v1484 = vmul.f32 %v1464, %v1339
        %v1485 = vmul.f32 %v1465, %v1339
        %v1486 = vmul.f32 %v1472, %v1344
        %v1487 = vmul.f32 %v1473, %v1344
        %v1488 = vsub.f32 %v1484, %v1486
        %v1489 = vsub.f32 %v1485, %v1487
        %v1490 = vadd.f32 %v1488, %v1479
        %v1491 = vadd.f32 %v1489, %v1480
        %v1492 = vmul.f32 %v1464, %v1344
        %v1493 = vmul.f32 %v1465, %v1344
        %v1494 = vmul.f32 %v1472, %v1339
        %v1495 = vmul.f32 %v1473, %v1339
        %v1496 = vadd.f32 %v1492, %v1494
        %v1497 = vadd.f32 %v1493, %v1495
        %v1498 = vadd.f32 %v1496, %v1482
        %v1499 = vadd.f32 %v1497, %v1483
        %1500 = vst.msk [vmem:[%s1478] sm:$0xff] %vm1302, %v1490
        %1501 = vst.msk [vmem:[%s1478 + $0x8] sm:$0xff] %vm1302, %v1491
        %1502 = vst.msk [vmem:[%s1481] sm:$0xff] %vm1302, %v1498
        %1503 = vst.msk [vmem:[%s1481 + $0x8] sm:$0xff] %vm1302, %v1499
        %s1504 = scalar_lea.vmem [#allocation3], 96
        %v1505 = vld [vmem:[%s1504] sm:$0xff]
        %v1506 = vld [vmem:[%s1504 + $0x8] sm:$0xff]
        %s1507 = scalar_lea.vmem [#allocation4], 96
        %v1508 = vld [vmem:[%s1507] sm:$0xff]
        %v1509 = vld [vmem:[%s1507 + $0x8] sm:$0xff]
        %v1510 = vmul.f32 %v1490, %v1339
        %v1511 = vmul.f32 %v1491, %v1339
        %v1512 = vmul.f32 %v1498, %v1344
        %v1513 = vmul.f32 %v1499, %v1344
        %v1514 = vsub.f32 %v1510, %v1512
        %v1515 = vsub.f32 %v1511, %v1513
        %v1516 = vadd.f32 %v1514, %v1505
        %v1517 = vadd.f32 %v1515, %v1506
        %v1518 = vmul.f32 %v1490, %v1344
        %v1519 = vmul.f32 %v1491, %v1344
        %v1520 = vmul.f32 %v1498, %v1339
        %v1521 = vmul.f32 %v1499, %v1339
        %v1522 = vadd.f32 %v1518, %v1520
        %v1523 = vadd.f32 %v1519, %v1521
        %v1524 = vadd.f32 %v1522, %v1508
        %v1525 = vadd.f32 %v1523, %v1509
        %1526 = vst.msk [vmem:[%s1504] sm:$0xff] %vm1302, %v1516
        %1527 = vst.msk [vmem:[%s1504 + $0x8] sm:$0xff] %vm1302, %v1517
        %1528 = vst.msk [vmem:[%s1507] sm:$0xff] %vm1302, %v1524
        %1529 = vst.msk [vmem:[%s1507 + $0x8] sm:$0xff] %vm1302, %v1525
        %s1530 = scalar_lea.vmem [#allocation3], 112
        %v1531 = vld [vmem:[%s1530] sm:$0xff]
        %v1532 = vld [vmem:[%s1530 + $0x8] sm:$0xff]
        %s1533 = scalar_lea.vmem [#allocation4], 112
        %v1534 = vld [vmem:[%s1533] sm:$0xff]
        %v1535 = vld [vmem:[%s1533 + $0x8] sm:$0xff]
        %v1536 = vmul.f32 %v1516, %v1339
        %v1537 = vmul.f32 %v1517, %v1339
        %v1538 = vmul.f32 %v1524, %v1344
        %v1539 = vmul.f32 %v1525, %v1344
        %v1540 = vsub.f32 %v1536, %v1538
        %v1541 = vsub.f32 %v1537, %v1539
        %v1542 = vadd.f32 %v1540, %v1531
        %v1543 = vadd.f32 %v1541, %v1532
        %v1544 = vmul.f32 %v1516, %v1344
        %v1545 = vmul.f32 %v1517, %v1344
        %v1546 = vmul.f32 %v1524, %v1339
        %v1547 = vmul.f32 %v1525, %v1339
        %v1548 = vadd.f32 %v1544, %v1546
        %v1549 = vadd.f32 %v1545, %v1547
        %v1550 = vadd.f32 %v1548, %v1534
        %v1551 = vadd.f32 %v1549, %v1535
        %1552 = vst.msk [vmem:[%s1530] sm:$0xff] %vm1302, %v1542
        %1553 = vst.msk [vmem:[%s1530 + $0x8] sm:$0xff] %vm1302, %v1543
        %1554 = vst.msk [vmem:[%s1533] sm:$0xff] %vm1302, %v1550
        %1555 = vst.msk [vmem:[%s1533 + $0x8] sm:$0xff] %vm1302, %v1551
        %1556 = vst.msk [vmem:[#allocation2] sm:$0xff] %vm1302, %v1542
        %1557 = vst.msk [vmem:[#allocation2 + $0x8] sm:$0xff] %vm1302, %v1543
        %1558 = vst.msk [vmem:[%s1347] sm:$0xff] %vm1302, %v1550
        %1559 = vst.msk [vmem:[%s1347 + $0x8] sm:$0xff] %vm1302, %v1551
        %v1560 = vld [vmem:[#allocation3] sm:$0xff]
        %v1561 = vld [vmem:[#allocation3 + $0x8] sm:$0xff]
        %v1562 = vld [vmem:[#allocation3 + $0x10] sm:$0xff]
        %v1563 = vld [vmem:[#allocation3 + $0x18] sm:$0xff]
        %v1564 = vld [vmem:[#allocation3 + $0x20] sm:$0xff]
        %v1565 = vld [vmem:[#allocation3 + $0x28] sm:$0xff]
        %v1566 = vld [vmem:[#allocation3 + $0x30] sm:$0xff]
        %v1567 = vld [vmem:[#allocation3 + $0x38] sm:$0xff]
        %v1568 = vld [vmem:[#allocation3 + $0x40] sm:$0xff]
        %v1569 = vld [vmem:[#allocation3 + $0x48] sm:$0xff]
        %v1570 = vld [vmem:[#allocation3 + $0x50] sm:$0xff]
        %v1571 = vld [vmem:[#allocation3 + $0x58] sm:$0xff]
        %v1572 = vld [vmem:[#allocation3 + $0x60] sm:$0xff]
        %v1573 = vld [vmem:[#allocation3 + $0x68] sm:$0xff]
        %v1574 = vld [vmem:[#allocation3 + $0x70] sm:$0xff]
        %v1575 = vld [vmem:[#allocation3 + $0x78] sm:$0xff]
        %v1576 = vld [vmem:[%s8] sm:$0xff]
        %v1577 = vld [vmem:[%s8 + $0x8] sm:$0xff]
        %v1578 = vld [vmem:[%s8 + $0x10] sm:$0xff]
        %v1579 = vld [vmem:[%s8 + $0x18] sm:$0xff]
        %v1580 = vld [vmem:[#allocation4] sm:$0xff]
        %v1581 = vld [vmem:[#allocation4 + $0x8] sm:$0xff]
        %v1582 = vld [vmem:[#allocation4 + $0x10] sm:$0xff]
        %v1583 = vld [vmem:[#allocation4 + $0x18] sm:$0xff]
        %v1584 = vld [vmem:[#allocation4 + $0x20] sm:$0xff]
        %v1585 = vld [vmem:[#allocation4 + $0x28] sm:$0xff]
        %v1586 = vld [vmem:[#allocation4 + $0x30] sm:$0xff]
        %v1587 = vld [vmem:[#allocation4 + $0x38] sm:$0xff]
        %v1588 = vld [vmem:[#allocation4 + $0x40] sm:$0xff]
        %v1589 = vld [vmem:[#allocation4 + $0x48] sm:$0xff]
        %v1590 = vld [vmem:[#allocation4 + $0x50] sm:$0xff]
        %v1591 = vld [vmem:[#allocation4 + $0x58] sm:$0xff]
        %v1592 = vld [vmem:[#allocation4 + $0x60] sm:$0xff]
        %v1593 = vld [vmem:[#allocation4 + $0x68] sm:$0xff]
        %v1594 = vld [vmem:[#allocation4 + $0x70] sm:$0xff]
        %v1595 = vld [vmem:[#allocation4 + $0x78] sm:$0xff]
        %v1596 = vld [vmem:[%s9] sm:$0xff]
        %v1597 = vld [vmem:[%s9 + $0x8] sm:$0xff]
        %v1598 = vld [vmem:[%s9 + $0x10] sm:$0xff]
        %v1599 = vld [vmem:[%s9 + $0x18] sm:$0xff]
        %v1601 = vsel %vm1302, %v1580, 0
        %v1604 = vsel %vm1302, %v1581, 0
        %v1607 = vsel %vm1302, %v1582, 0
        %v1610 = vsel %vm1302, %v1583, 0
        %v1613 = vsel %vm1302, %v1584, 0
        %v1616 = vsel %vm1302, %v1585, 0
        %v1619 = vsel %vm1302, %v1586, 0
        %v1622 = vsel %vm1302, %v1587, 0
        %v1625 = vsel %vm1302, %v1588, 0
        %v1628 = vsel %vm1302, %v1589, 0
        %v1631 = vsel %vm1302, %v1590, 0
        %v1634 = vsel %vm1302, %v1591, 0
        %v1637 = vsel %vm1302, %v1592, 0
        %v1640 = vsel %vm1302, %v1593, 0
        %v1643 = vsel %vm1302, %v1594, 0
        %v1646 = vsel %vm1302, %v1595, 0
        %1648 = vmatprep.subr.mxu0 0.0
        %1649 = vmatpush1.msra.mxu0 %v1596
        %1650 = vmatprep.subr.mxu0 0.0
        %1651 = vmatpush1.msra.mxu0 %v1597
        %1652 = vmatprep.subr.mxu0 0.0
        %1653 = vmatpush1.msra.mxu0 %v1598
        %1654 = vmatprep.subr.mxu0 0.0
        %1655 = vmatpush1.msra.mxu0 %v1599
        %1656 = vmatprep.subr.mxu0 0.0
        %1657 = vmatpush1.msra.mxu0 0.0
        %1658 = vmatprep.subr.mxu0 0.0
        %1659 = vmatpush1.msra.mxu0 0.0
        %1660 = vmatprep.subr.mxu0 0.0
        %1661 = vmatpush1.msra.mxu0 0.0
        %1662 = vmatprep.subr.mxu0 0.0
        %1663 = vmatpush1.msra.mxu0 0.0
        %1664 = vmatprep.subr.mxu0 0.0
        %1665 = vmatpush1.msra.mxu0 0.0
        %1666 = vmatprep.subr.mxu0 0.0
        %1667 = vmatpush1.msra.mxu0 0.0
        %1668 = vmatprep.subr.mxu0 0.0
        %1669 = vmatpush1.msra.mxu0 0.0
        %1670 = vmatprep.subr.mxu0 0.0
        %1671 = vmatpush1.msra.mxu0 0.0
        %1672 = vmatprep.subr.mxu0 0.0
        %1673 = vmatpush1.msra.mxu0 0.0
        %1674 = vmatprep.subr.mxu0 0.0
        %1675 = vmatpush1.msra.mxu0 0.0
        %1676 = vmatprep.subr.mxu0 0.0
        %1677 = vmatpush1.msra.mxu0 0.0
        %1678 = vmatprep.subr.mxu0 0.0
        %1679 = vmatpush1.msra.mxu0 0.0
        %1680 = vmatprep.subr.mxu0 0.0
        %1681 = vmatpush1.msra.mxu0 0.0
        %1682 = vmatprep.subr.mxu0 0.0
        %1683 = vmatpush1.msra.mxu0 0.0
        %1684 = vmatprep.subr.mxu0 0.0
        %1685 = vmatpush1.msra.mxu0 0.0
        %1686 = vmatprep.subr.mxu0 0.0
        %1687 = vmatpush1.msra.mxu0 0.0
        %1688 = vmatprep.subr.mxu0 0.0
        %1689 = vmatpush1.msra.mxu0 0.0
        %1690 = vmatprep.subr.mxu0 0.0
        %1691 = vmatpush1.msra.mxu0 0.0
        %1692 = vmatprep.subr.mxu0 0.0
        %1693 = vmatpush1.msra.mxu0 0.0
        %1694 = vmatprep.subr.mxu0 0.0
        %1695 = vmatpush1.msra.mxu0 0.0
        %1696 = vmatprep.subr.mxu0 0.0
        %1697 = vmatpush1.msra.mxu0 0.0
        %1698 = vmatprep.subr.mxu0 0.0
        %1699 = vmatpush1.msra.mxu0 0.0
        %1700 = vmatprep.subr.mxu0 0.0
        %1701 = vmatpush1.msra.mxu0 0.0
        %1702 = vmatprep.subr.mxu0 0.0
        %1703 = vmatpush1.msra.mxu0 0.0
        %1704 = vmatprep.subr.mxu0 0.0
        %1705 = vmatpush1.msra.mxu0 0.0
        %1706 = vmatprep.subr.mxu0 0.0
        %1707 = vmatpush1.msra.mxu0 0.0
        %1708 = vmatprep.subr.mxu0 0.0
        %1709 = vmatpush1.msra.mxu0 0.0
        %1710 = vmatprep.subr.mxu0 0.0
        %1711 = vmatpush1.msra.mxu0 0.0
        %1712 = vmatprep.mubr.f32.mxu0 0.0
        %1713 = vmatmul.mubr.f32.gmra.mrb[0].mxu0 %v1601
        %v1714 = vpop.f32.mrb[0].mxu0
        %v1715 = vadd.f32 0.0, %v1714
        %v1716 = vpop.f32.mrb[0].mxu0
        %1717 = vmatprep.mubr.f32.mxu0 0.0
        %1718 = vmatmul.mubr.f32.gmra.mrb[0].mxu0 %v1604
        %v1719 = vpop.f32.mrb[0].mxu0
        %v1720 = vadd.f32 0.0, %v1719
        %v1721 = vpop.f32.mrb[0].mxu0
        %1722 = vmatprep.mubr.f32.mxu0 0.0
        %1723 = vmatmul.mubr.f32.gmra.mrb[0].mxu0 %v1607
        %v1724 = vpop.f32.mrb[0].mxu0
        %v1725 = vadd.f32 0.0, %v1724
        %v1726 = vpop.f32.mrb[0].mxu0
        %1727 = vmatprep.mubr.f32.mxu0 0.0
        %1728 = vmatmul.mubr.f32.gmra.mrb[0].mxu0 %v1610
        %v1729 = vpop.f32.mrb[0].mxu0
        %v1730 = vadd.f32 0.0, %v1729
        %v1731 = vpop.f32.mrb[0].mxu0
        %1732 = vmatprep.mubr.f32.mxu0 0.0
        %1733 = vmatmul.mubr.f32.gmra.mrb[0].mxu0 %v1613
        %v1734 = vpop.f32.mrb[0].mxu0
        %v1735 = vadd.f32 0.0, %v1734
        %v1736 = vpop.f32.mrb[0].mxu0
        %1737 = vmatprep.mubr.f32.mxu0 0.0
        %1738 = vmatmul.mubr.f32.gmra.mrb[0].mxu0 %v1616
        %v1739 = vpop.f32.mrb[0].mxu0
        %v1740 = vadd.f32 0.0, %v1739
        %v1741 = vpop.f32.mrb[0].mxu0
        %1742 = vmatprep.mubr.f32.mxu0 0.0
        %1743 = vmatmul.mubr.f32.gmra.mrb[0].mxu0 %v1619
        %v1744 = vpop.f32.mrb[0].mxu0
        %v1745 = vadd.f32 0.0, %v1744
        %v1746 = vpop.f32.mrb[0].mxu0
        %1747 = vmatprep.mubr.f32.mxu0 0.0
        %1748 = vmatmul.mubr.f32.gmra.mrb[0].mxu0 %v1622
        %v1749 = vpop.f32.mrb[0].mxu0
        %v1750 = vadd.f32 0.0, %v1749
        %v1751 = vpop.f32.mrb[0].mxu0
        %1752 = vmatprep.mubr.f32.mxu0 0.0
        %1753 = vmatmul.mubr.f32.gmra.mrb[0].mxu0 %v1625
        %v1754 = vpop.f32.mrb[0].mxu0
        %v1755 = vadd.f32 0.0, %v1754
        %v1756 = vpop.f32.mrb[0].mxu0
        %1757 = vmatprep.mubr.f32.mxu0 0.0
        %1758 = vmatmul.mubr.f32.gmra.mrb[0].mxu0 %v1628
        %v1759 = vpop.f32.mrb[0].mxu0
        %v1760 = vadd.f32 0.0, %v1759
        %v1761 = vpop.f32.mrb[0].mxu0
        %1762 = vmatprep.mubr.f32.mxu0 0.0
        %1763 = vmatmul.mubr.f32.gmra.mrb[0].mxu0 %v1631
        %v1764 = vpop.f32.mrb[0].mxu0
        %v1765 = vadd.f32 0.0, %v1764
        %v1766 = vpop.f32.mrb[0].mxu0
        %1767 = vmatprep.mubr.f32.mxu0 0.0
        %1768 = vmatmul.mubr.f32.gmra.mrb[0].mxu0 %v1634
        %v1769 = vpop.f32.mrb[0].mxu0
        %v1770 = vadd.f32 0.0, %v1769
        %v1771 = vpop.f32.mrb[0].mxu0
        %1772 = vmatprep.mubr.f32.mxu0 0.0
        %1773 = vmatmul.mubr.f32.gmra.mrb[0].mxu0 %v1637
        %v1774 = vpop.f32.mrb[0].mxu0
        %v1775 = vadd.f32 0.0, %v1774
        %v1776 = vpop.f32.mrb[0].mxu0
        %1777 = vmatprep.mubr.f32.mxu0 0.0
        %1778 = vmatmul.mubr.f32.gmra.mrb[0].mxu0 %v1640
        %v1779 = vpop.f32.mrb[0].mxu0
        %v1780 = vadd.f32 0.0, %v1779
        %v1781 = vpop.f32.mrb[0].mxu0
        %1782 = vmatprep.mubr.f32.mxu0 0.0
        %1783 = vmatmul.mubr.f32.gmra.mrb[0].mxu0 %v1643
        %v1784 = vpop.f32.mrb[0].mxu0
        %v1785 = vadd.f32 0.0, %v1784
        %v1786 = vpop.f32.mrb[0].mxu0
        %1787 = vmatprep.mubr.f32.mxu0 0.0
        %1788 = vmatmul.mubr.f32.gmra.mrb[0].mxu0 %v1646
        %v1789 = vpop.f32.mrb[0].mxu0
        %v1790 = vadd.f32 0.0, %v1789
        %v1791 = vpop.f32.mrb[0].mxu0
        %1792 = vdwg.mxu0
        %v1794 = vsel %vm1302, %v1560, 0
        %v1797 = vsel %vm1302, %v1561, 0
        %v1800 = vsel %vm1302, %v1562, 0
        %v1803 = vsel %vm1302, %v1563, 0
        %v1806 = vsel %vm1302, %v1564, 0
        %v1809 = vsel %vm1302, %v1565, 0
        %v1812 = vsel %vm1302, %v1566, 0
        %v1815 = vsel %vm1302, %v1567, 0
        %v1818 = vsel %vm1302, %v1568, 0
        %v1821 = vsel %vm1302, %v1569, 0
        %v1824 = vsel %vm1302, %v1570, 0
        %v1827 = vsel %vm1302, %v1571, 0
        %v1830 = vsel %vm1302, %v1572, 0
        %v1833 = vsel %vm1302, %v1573, 0
        %v1836 = vsel %vm1302, %v1574, 0
        %v1839 = vsel %vm1302, %v1575, 0
        %1841 = vmatprep.subr.mxu0 0.0
        %1842 = vmatpush1.msra.mxu0 %v1576
        %1843 = vmatprep.subr.mxu0 0.0
        %1844 = vmatpush1.msra.mxu0 %v1577
        %1845 = vmatprep.subr.mxu0 0.0
        %1846 = vmatpush1.msra.mxu0 %v1578
        %1847 = vmatprep.subr.mxu0 0.0
        %1848 = vmatpush1.msra.mxu0 %v1579
        %1849 = vmatprep.subr.mxu0 0.0
        %1850 = vmatpush1.msra.mxu0 0.0
        %1851 = vmatprep.subr.mxu0 0.0
        %1852 = vmatpush1.msra.mxu0 0.0
        %1853 = vmatprep.subr.mxu0 0.0
        %1854 = vmatpush1.msra.mxu0 0.0
        %1855 = vmatprep.subr.mxu0 0.0
        %1856 = vmatpush1.msra.mxu0 0.0
        %1857 = vmatprep.subr.mxu0 0.0
        %1858 = vmatpush1.msra.mxu0 0.0
        %1859 = vmatprep.subr.mxu0 0.0
        %1860 = vmatpush1.msra.mxu0 0.0
        %1861 = vmatprep.subr.mxu0 0.0
        %1862 = vmatpush1.msra.mxu0 0.0
        %1863 = vmatprep.subr.mxu0 0.0
        %1864 = vmatpush1.msra.mxu0 0.0
        %1865 = vmatprep.subr.mxu0 0.0
        %1866 = vmatpush1.msra.mxu0 0.0
        %1867 = vmatprep.subr.mxu0 0.0
        %1868 = vmatpush1.msra.mxu0 0.0
        %1869 = vmatprep.subr.mxu0 0.0
        %1870 = vmatpush1.msra.mxu0 0.0
        %1871 = vmatprep.subr.mxu0 0.0
        %1872 = vmatpush1.msra.mxu0 0.0
        %1873 = vmatprep.subr.mxu0 0.0
        %1874 = vmatpush1.msra.mxu0 0.0
        %1875 = vmatprep.subr.mxu0 0.0
        %1876 = vmatpush1.msra.mxu0 0.0
        %1877 = vmatprep.subr.mxu0 0.0
        %1878 = vmatpush1.msra.mxu0 0.0
        %1879 = vmatprep.subr.mxu0 0.0
        %1880 = vmatpush1.msra.mxu0 0.0
        %1881 = vmatprep.subr.mxu0 0.0
        %1882 = vmatpush1.msra.mxu0 0.0
        %1883 = vmatprep.subr.mxu0 0.0
        %1884 = vmatpush1.msra.mxu0 0.0
        %1885 = vmatprep.subr.mxu0 0.0
        %1886 = vmatpush1.msra.mxu0 0.0
        %1887 = vmatprep.subr.mxu0 0.0
        %1888 = vmatpush1.msra.mxu0 0.0
        %1889 = vmatprep.subr.mxu0 0.0
        %1890 = vmatpush1.msra.mxu0 0.0
        %1891 = vmatprep.subr.mxu0 0.0
        %1892 = vmatpush1.msra.mxu0 0.0
        %1893 = vmatprep.subr.mxu0 0.0
        %1894 = vmatpush1.msra.mxu0 0.0
        %1895 = vmatprep.subr.mxu0 0.0
        %1896 = vmatpush1.msra.mxu0 0.0
        %1897 = vmatprep.subr.mxu0 0.0
        %1898 = vmatpush1.msra.mxu0 0.0
        %1899 = vmatprep.subr.mxu0 0.0
        %1900 = vmatpush1.msra.mxu0 0.0
        %1901 = vmatprep.subr.mxu0 0.0
        %1902 = vmatpush1.msra.mxu0 0.0
        %1903 = vmatprep.subr.mxu0 0.0
        %1904 = vmatpush1.msra.mxu0 0.0
        %1905 = vmatprep.mubr.f32.mxu0 0.0
        %1906 = vmatmul.mubr.f32.gmra.mrb[0].mxu0 %v1794
        %v1907 = vpop.f32.mrb[0].mxu0
        %v1908 = vadd.f32 %v1715, %v1907
        %v1909 = vpop.f32.mrb[0].mxu0
        %1910 = vmatprep.mubr.f32.mxu0 0.0
        %1911 = vmatmul.mubr.f32.gmra.mrb[0].mxu0 %v1797
        %v1912 = vpop.f32.mrb[0].mxu0
        %v1913 = vadd.f32 %v1720, %v1912
        %v1914 = vpop.f32.mrb[0].mxu0
        %1915 = vmatprep.mubr.f32.mxu0 0.0
        %1916 = vmatmul.mubr.f32.gmra.mrb[0].mxu0 %v1800
        %v1917 = vpop.f32.mrb[0].mxu0
        %v1918 = vadd.f32 %v1725, %v1917
        %v1919 = vpop.f32.mrb[0].mxu0
        %1920 = vmatprep.mubr.f32.mxu0 0.0
        %1921 = vmatmul.mubr.f32.gmra.mrb[0].mxu0 %v1803
        %v1922 = vpop.f32.mrb[0].mxu0
        %v1923 = vadd.f32 %v1730, %v1922
        %v1924 = vpop.f32.mrb[0].mxu0
        %1925 = vmatprep.mubr.f32.mxu0 0.0
        %1926 = vmatmul.mubr.f32.gmra.mrb[0].mxu0 %v1806
        %v1927 = vpop.f32.mrb[0].mxu0
        %v1928 = vadd.f32 %v1735, %v1927
        %v1929 = vpop.f32.mrb[0].mxu0
        %1930 = vmatprep.mubr.f32.mxu0 0.0
        %1931 = vmatmul.mubr.f32.gmra.mrb[0].mxu0 %v1809
        %v1932 = vpop.f32.mrb[0].mxu0
        %v1933 = vadd.f32 %v1740, %v1932
        %v1934 = vpop.f32.mrb[0].mxu0
        %1935 = vmatprep.mubr.f32.mxu0 0.0
        %1936 = vmatmul.mubr.f32.gmra.mrb[0].mxu0 %v1812
        %v1937 = vpop.f32.mrb[0].mxu0
        %v1938 = vadd.f32 %v1745, %v1937
        %v1939 = vpop.f32.mrb[0].mxu0
        %1940 = vmatprep.mubr.f32.mxu0 0.0
        %1941 = vmatmul.mubr.f32.gmra.mrb[0].mxu0 %v1815
        %v1942 = vpop.f32.mrb[0].mxu0
        %v1943 = vadd.f32 %v1750, %v1942
        %v1944 = vpop.f32.mrb[0].mxu0
        %1945 = vmatprep.mubr.f32.mxu0 0.0
        %1946 = vmatmul.mubr.f32.gmra.mrb[0].mxu0 %v1818
        %v1947 = vpop.f32.mrb[0].mxu0
        %v1948 = vadd.f32 %v1755, %v1947
        %v1949 = vpop.f32.mrb[0].mxu0
        %1950 = vmatprep.mubr.f32.mxu0 0.0
        %1951 = vmatmul.mubr.f32.gmra.mrb[0].mxu0 %v1821
        %v1952 = vpop.f32.mrb[0].mxu0
        %v1953 = vadd.f32 %v1760, %v1952
        %v1954 = vpop.f32.mrb[0].mxu0
        %1955 = vmatprep.mubr.f32.mxu0 0.0
        %1956 = vmatmul.mubr.f32.gmra.mrb[0].mxu0 %v1824
        %v1957 = vpop.f32.mrb[0].mxu0
        %v1958 = vadd.f32 %v1765, %v1957
        %v1959 = vpop.f32.mrb[0].mxu0
        %1960 = vmatprep.mubr.f32.mxu0 0.0
        %1961 = vmatmul.mubr.f32.gmra.mrb[0].mxu0 %v1827
        %v1962 = vpop.f32.mrb[0].mxu0
        %v1963 = vadd.f32 %v1770, %v1962
        %v1964 = vpop.f32.mrb[0].mxu0
        %1965 = vmatprep.mubr.f32.mxu0 0.0
        %1966 = vmatmul.mubr.f32.gmra.mrb[0].mxu0 %v1830
        %v1967 = vpop.f32.mrb[0].mxu0
        %v1968 = vadd.f32 %v1775, %v1967
        %v1969 = vpop.f32.mrb[0].mxu0
        %1970 = vmatprep.mubr.f32.mxu0 0.0
        %1971 = vmatmul.mubr.f32.gmra.mrb[0].mxu0 %v1833
        %v1972 = vpop.f32.mrb[0].mxu0
        %v1973 = vadd.f32 %v1780, %v1972
        %v1974 = vpop.f32.mrb[0].mxu0
        %1975 = vmatprep.mubr.f32.mxu0 0.0
        %1976 = vmatmul.mubr.f32.gmra.mrb[0].mxu0 %v1836
        %v1977 = vpop.f32.mrb[0].mxu0
        %v1978 = vadd.f32 %v1785, %v1977
        %v1979 = vpop.f32.mrb[0].mxu0
        %1980 = vmatprep.mubr.f32.mxu0 0.0
        %1981 = vmatmul.mubr.f32.gmra.mrb[0].mxu0 %v1839
        %v1982 = vpop.f32.mrb[0].mxu0
        %v1983 = vadd.f32 %v1790, %v1982
        %v1984 = vpop.f32.mrb[0].mxu0
        %1985 = vdwg.mxu0
        %v1986 = vld [vmem:[%s5] sm:$0x1]
        %v1988 = vlaneseq
        %v1989 = vshrl.u32 %v1988, 7
        %v1990 = vsub.s32 0, %v1989
        %v1991 = vrot.slane %v1986, %v1990
        %v1993 = vmul.f32 %v1991, %v944
        %v1994 = vmul.f32 %v1991, %v945
        %v1995 = vmul.f32 %v1991, %v946
        %v1996 = vmul.f32 %v1991, %v947
        %v1997 = vmul.f32 %v1991, %v948
        %v1998 = vmul.f32 %v1991, %v949
        %v1999 = vmul.f32 %v1991, %v950
        %v2000 = vmul.f32 %v1991, %v951
        %v2001 = vmul.f32 %v1991, %v952
        %v2002 = vmul.f32 %v1991, %v953
        %v2003 = vmul.f32 %v1991, %v954
        %v2004 = vmul.f32 %v1991, %v955
        %v2005 = vmul.f32 %v1991, %v956
        %v2006 = vmul.f32 %v1991, %v957
        %v2007 = vmul.f32 %v1991, %v958
        %v2008 = vmul.f32 %v1991, %v959
        %v2009 = vadd.f32 %v1908, %v1993
        %v2010 = vadd.f32 %v1913, %v1994
        %v2011 = vadd.f32 %v1918, %v1995
        %v2012 = vadd.f32 %v1923, %v1996
        %v2013 = vadd.f32 %v1928, %v1997
        %v2014 = vadd.f32 %v1933, %v1998
        %v2015 = vadd.f32 %v1938, %v1999
        %v2016 = vadd.f32 %v1943, %v2000
        %v2017 = vadd.f32 %v1948, %v2001
        %v2018 = vadd.f32 %v1953, %v2002
        %v2019 = vadd.f32 %v1958, %v2003
        %v2020 = vadd.f32 %v1963, %v2004
        %v2021 = vadd.f32 %v1968, %v2005
        %v2022 = vadd.f32 %v1973, %v2006
        %v2023 = vadd.f32 %v1978, %v2007
        %v2024 = vadd.f32 %v1983, %v2008
        %v2025 = vmul.f32 %v2009, 0.5
        %v2026 = vmul.f32 %v2010, 0.5
        %v2027 = vmul.f32 %v2011, 0.5
        %v2028 = vmul.f32 %v2012, 0.5
        %v2029 = vmul.f32 %v2013, 0.5
        %v2030 = vmul.f32 %v2014, 0.5
        %v2031 = vmul.f32 %v2015, 0.5
        %v2032 = vmul.f32 %v2016, 0.5
        %v2033 = vmul.f32 %v2017, 0.5
        %v2034 = vmul.f32 %v2018, 0.5
        %v2035 = vmul.f32 %v2019, 0.5
        %v2036 = vmul.f32 %v2020, 0.5
        %v2037 = vmul.f32 %v2021, 0.5
        %v2038 = vmul.f32 %v2022, 0.5
        %v2039 = vmul.f32 %v2023, 0.5
        %v2040 = vmul.f32 %v2024, 0.5
        %v2041 = vmul.f32 %v2009, 0.70710677
        %v2042 = vmul.f32 %v2010, 0.70710677
        %v2043 = vmul.f32 %v2011, 0.70710677
        %v2044 = vmul.f32 %v2012, 0.70710677
        %v2045 = vmul.f32 %v2013, 0.70710677
        %v2046 = vmul.f32 %v2014, 0.70710677
        %v2047 = vmul.f32 %v2015, 0.70710677
        %v2048 = vmul.f32 %v2016, 0.70710677
        %v2049 = vmul.f32 %v2017, 0.70710677
        %v2050 = vmul.f32 %v2018, 0.70710677
        %v2051 = vmul.f32 %v2019, 0.70710677
        %v2052 = vmul.f32 %v2020, 0.70710677
        %v2053 = vmul.f32 %v2021, 0.70710677
        %v2054 = vmul.f32 %v2022, 0.70710677
        %v2055 = vmul.f32 %v2023, 0.70710677
        %v2056 = vmul.f32 %v2024, 0.70710677
        %v2057 = verf.f32.pop %v2041
        %v2058 = verf.f32.pop %v2042
        %v2059 = verf.f32.pop %v2043
        %v2060 = verf.f32.pop %v2044
        %v2061 = verf.f32.pop %v2045
        %v2062 = verf.f32.pop %v2046
        %v2063 = verf.f32.pop %v2047
        %v2064 = verf.f32.pop %v2048
        %v2065 = verf.f32.pop %v2049
        %v2066 = verf.f32.pop %v2050
        %v2067 = verf.f32.pop %v2051
        %v2068 = verf.f32.pop %v2052
        %v2069 = verf.f32.pop %v2053
        %v2070 = verf.f32.pop %v2054
        %v2071 = verf.f32.pop %v2055
        %v2072 = verf.f32.pop %v2056
        %v2073 = vadd.f32 %v2057, 1.0
        %v2074 = vadd.f32 %v2058, 1.0
        %v2075 = vadd.f32 %v2059, 1.0
        %v2076 = vadd.f32 %v2060, 1.0
        %v2077 = vadd.f32 %v2061, 1.0
        %v2078 = vadd.f32 %v2062, 1.0
        %v2079 = vadd.f32 %v2063, 1.0
        %v2080 = vadd.f32 %v2064, 1.0
        %v2081 = vadd.f32 %v2065, 1.0
        %v2082 = vadd.f32 %v2066, 1.0
        %v2083 = vadd.f32 %v2067, 1.0
        %v2084 = vadd.f32 %v2068, 1.0
        %v2085 = vadd.f32 %v2069, 1.0
        %v2086 = vadd.f32 %v2070, 1.0
        %v2087 = vadd.f32 %v2071, 1.0
        %v2088 = vadd.f32 %v2072, 1.0
        %v2089 = vmul.f32 %v2025, %v2073
        %v2090 = vmul.f32 %v2026, %v2074
        %v2091 = vmul.f32 %v2027, %v2075
        %v2092 = vmul.f32 %v2028, %v2076
        %v2093 = vmul.f32 %v2029, %v2077
        %v2094 = vmul.f32 %v2030, %v2078
        %v2095 = vmul.f32 %v2031, %v2079
        %v2096 = vmul.f32 %v2032, %v2080
        %v2097 = vmul.f32 %v2033, %v2081
        %v2098 = vmul.f32 %v2034, %v2082
        %v2099 = vmul.f32 %v2035, %v2083
        %v2100 = vmul.f32 %v2036, %v2084
        %v2101 = vmul.f32 %v2037, %v2085
        %v2102 = vmul.f32 %v2038, %v2086
        %v2103 = vmul.f32 %v2039, %v2087
        %v2104 = vmul.f32 %v2040, %v2088
        %v2105 = vld [vmem:[%s10] sm:$0xff]
        %v2106 = vld [vmem:[%s10 + $0x8] sm:$0xff]
        %v2107 = vld [vmem:[%s12] sm:$0x1]
        %v2109 = vlaneseq
        %v2110 = vshrl.u32 %v2109, 7
        %v2111 = vsub.s32 0, %v2110
        %v2112 = vrot.slane %v2107, %v2111
        %v2115 = vsel %vm704, %v2089, 0
        %v2118 = vsel %vm704, %v2090, 0
        %v2121 = vsel %vm704, %v2091, 0
        %v2124 = vsel %vm704, %v2092, 0
        %v2127 = vsel %vm704, %v2093, 0
        %v2130 = vsel %vm704, %v2094, 0
        %v2133 = vsel %vm704, %v2095, 0
        %v2136 = vsel %vm704, %v2096, 0
        %v2139 = vsel %vm704, %v2097, 0
        %v2142 = vsel %vm704, %v2098, 0
        %v2145 = vsel %vm704, %v2099, 0
        %v2148 = vsel %vm704, %v2100, 0
        %v2151 = vsel %vm704, %v2101, 0
        %v2154 = vsel %vm704, %v2102, 0
        %v2157 = vsel %vm704, %v2103, 0
        %v2160 = vsel %vm704, %v2104, 0
        %2162 = vmatprep.subr.mxu0 0.0
        %2163 = vmatpush1.msra.mxu0 %v2105
        %2164 = vmatprep.subr.mxu0 0.0
        %2165 = vmatpush1.msra.mxu0 %v2106
        %2166 = vmatprep.subr.mxu0 0.0
        %2167 = vmatpush1.msra.mxu0 0.0
        %2168 = vmatprep.subr.mxu0 0.0
        %2169 = vmatpush1.msra.mxu0 0.0
        %2170 = vmatprep.subr.mxu0 0.0
        %2171 = vmatpush1.msra.mxu0 0.0
        %2172 = vmatprep.subr.mxu0 0.0
        %2173 = vmatpush1.msra.mxu0 0.0
        %2174 = vmatprep.subr.mxu0 0.0
        %2175 = vmatpush1.msra.mxu0 0.0
        %2176 = vmatprep.subr.mxu0 0.0
        %2177 = vmatpush1.msra.mxu0 0.0
        %2178 = vmatprep.subr.mxu0 0.0
        %2179 = vmatpush1.msra.mxu0 0.0
        %2180 = vmatprep.subr.mxu0 0.0
        %2181 = vmatpush1.msra.mxu0 0.0
        %2182 = vmatprep.subr.mxu0 0.0
        %2183 = vmatpush1.msra.mxu0 0.0
        %2184 = vmatprep.subr.mxu0 0.0
        %2185 = vmatpush1.msra.mxu0 0.0
        %2186 = vmatprep.subr.mxu0 0.0
        %2187 = vmatpush1.msra.mxu0 0.0
        %2188 = vmatprep.subr.mxu0 0.0
        %2189 = vmatpush1.msra.mxu0 0.0
        %2190 = vmatprep.subr.mxu0 0.0
        %2191 = vmatpush1.msra.mxu0 0.0
        %2192 = vmatprep.subr.mxu0 0.0
        %2193 = vmatpush1.msra.mxu0 0.0
        %2194 = vmatprep.subr.mxu0 0.0
        %2195 = vmatpush1.msra.mxu0 0.0
        %2196 = vmatprep.subr.mxu0 0.0
        %2197 = vmatpush1.msra.mxu0 0.0
        %2198 = vmatprep.subr.mxu0 0.0
        %2199 = vmatpush1.msra.mxu0 0.0
        %2200 = vmatprep.subr.mxu0 0.0
        %2201 = vmatpush1.msra.mxu0 0.0
        %2202 = vmatprep.subr.mxu0 0.0
        %2203 = vmatpush1.msra.mxu0 0.0
        %2204 = vmatprep.subr.mxu0 0.0
        %2205 = vmatpush1.msra.mxu0 0.0
        %2206 = vmatprep.subr.mxu0 0.0
        %2207 = vmatpush1.msra.mxu0 0.0
        %2208 = vmatprep.subr.mxu0 0.0
        %2209 = vmatpush1.msra.mxu0 0.0
        %2210 = vmatprep.subr.mxu0 0.0
        %2211 = vmatpush1.msra.mxu0 0.0
        %2212 = vmatprep.subr.mxu0 0.0
        %2213 = vmatpush1.msra.mxu0 0.0
        %2214 = vmatprep.subr.mxu0 0.0
        %2215 = vmatpush1.msra.mxu0 0.0
        %2216 = vmatprep.subr.mxu0 0.0
        %2217 = vmatpush1.msra.mxu0 0.0
        %2218 = vmatprep.subr.mxu0 0.0
        %2219 = vmatpush1.msra.mxu0 0.0
        %2220 = vmatprep.subr.mxu0 0.0
        %2221 = vmatpush1.msra.mxu0 0.0
        %2222 = vmatprep.subr.mxu0 0.0
        %2223 = vmatpush1.msra.mxu0 0.0
        %2224 = vmatprep.subr.mxu0 0.0
        %2225 = vmatpush1.msra.mxu0 0.0
        %2226 = vmatprep.mubr.f32.mxu0 0.0
        %2227 = vmatmul.mubr.f32.gmra.mrb[0].mxu0 %v2115
        %v2228 = vpop.f32.mrb[0].mxu0
        %v2229 = vadd.f32 %v2112, %v2228
        %v2230 = vpop.f32.mrb[0].mxu0
        %2231 = vmatprep.mubr.f32.mxu0 0.0
        %2232 = vmatmul.mubr.f32.gmra.mrb[0].mxu0 %v2118
        %v2233 = vpop.f32.mrb[0].mxu0
        %v2234 = vadd.f32 %v2112, %v2233
        %v2235 = vpop.f32.mrb[0].mxu0
        %2236 = vmatprep.mubr.f32.mxu0 0.0
        %2237 = vmatmul.mubr.f32.gmra.mrb[0].mxu0 %v2121
        %v2238 = vpop.f32.mrb[0].mxu0
        %v2239 = vadd.f32 %v2112, %v2238
        %v2240 = vpop.f32.mrb[0].mxu0
        %2241 = vmatprep.mubr.f32.mxu0 0.0
        %2242 = vmatmul.mubr.f32.gmra.mrb[0].mxu0 %v2124
        %v2243 = vpop.f32.mrb[0].mxu0
        %v2244 = vadd.f32 %v2112, %v2243
        %v2245 = vpop.f32.mrb[0].mxu0
        %2246 = vmatprep.mubr.f32.mxu0 0.0
        %2247 = vmatmul.mubr.f32.gmra.mrb[0].mxu0 %v2127
        %v2248 = vpop.f32.mrb[0].mxu0
        %v2249 = vadd.f32 %v2112, %v2248
        %v2250 = vpop.f32.mrb[0].mxu0
        %2251 = vmatprep.mubr.f32.mxu0 0.0
        %2252 = vmatmul.mubr.f32.gmra.mrb[0].mxu0 %v2130
        %v2253 = vpop.f32.mrb[0].mxu0
        %v2254 = vadd.f32 %v2112, %v2253
        %v2255 = vpop.f32.mrb[0].mxu0
        %2256 = vmatprep.mubr.f32.mxu0 0.0
        %2257 = vmatmul.mubr.f32.gmra.mrb[0].mxu0 %v2133
        %v2258 = vpop.f32.mrb[0].mxu0
        %v2259 = vadd.f32 %v2112, %v2258
        %v2260 = vpop.f32.mrb[0].mxu0
        %2261 = vmatprep.mubr.f32.mxu0 0.0
        %2262 = vmatmul.mubr.f32.gmra.mrb[0].mxu0 %v2136
        %v2263 = vpop.f32.mrb[0].mxu0
        %v2264 = vadd.f32 %v2112, %v2263
        %v2265 = vpop.f32.mrb[0].mxu0
        %2266 = vmatprep.mubr.f32.mxu0 0.0
        %2267 = vmatmul.mubr.f32.gmra.mrb[0].mxu0 %v2139
        %v2268 = vpop.f32.mrb[0].mxu0
        %v2269 = vadd.f32 %v2112, %v2268
        %v2270 = vpop.f32.mrb[0].mxu0
        %2271 = vmatprep.mubr.f32.mxu0 0.0
        %2272 = vmatmul.mubr.f32.gmra.mrb[0].mxu0 %v2142
        %v2273 = vpop.f32.mrb[0].mxu0
        %v2274 = vadd.f32 %v2112, %v2273
        %v2275 = vpop.f32.mrb[0].mxu0
        %2276 = vmatprep.mubr.f32.mxu0 0.0
        %2277 = vmatmul.mubr.f32.gmra.mrb[0].mxu0 %v2145
        %v2278 = vpop.f32.mrb[0].mxu0
        %v2279 = vadd.f32 %v2112, %v2278
        %v2280 = vpop.f32.mrb[0].mxu0
        %2281 = vmatprep.mubr.f32.mxu0 0.0
        %2282 = vmatmul.mubr.f32.gmra.mrb[0].mxu0 %v2148
        %v2283 = vpop.f32.mrb[0].mxu0
        %v2284 = vadd.f32 %v2112, %v2283
        %v2285 = vpop.f32.mrb[0].mxu0
        %2286 = vmatprep.mubr.f32.mxu0 0.0
        %2287 = vmatmul.mubr.f32.gmra.mrb[0].mxu0 %v2151
        %v2288 = vpop.f32.mrb[0].mxu0
        %v2289 = vadd.f32 %v2112, %v2288
        %v2290 = vpop.f32.mrb[0].mxu0
        %2291 = vmatprep.mubr.f32.mxu0 0.0
        %2292 = vmatmul.mubr.f32.gmra.mrb[0].mxu0 %v2154
        %v2293 = vpop.f32.mrb[0].mxu0
        %v2294 = vadd.f32 %v2112, %v2293
        %v2295 = vpop.f32.mrb[0].mxu0
        %2296 = vmatprep.mubr.f32.mxu0 0.0
        %2297 = vmatmul.mubr.f32.gmra.mrb[0].mxu0 %v2157
        %v2298 = vpop.f32.mrb[0].mxu0
        %v2299 = vadd.f32 %v2112, %v2298
        %v2300 = vpop.f32.mrb[0].mxu0
        %2301 = vmatprep.mubr.f32.mxu0 0.0
        %2302 = vmatmul.mubr.f32.gmra.mrb[0].mxu0 %v2160
        %v2303 = vpop.f32.mrb[0].mxu0
        %v2304 = vadd.f32 %v2112, %v2303
        %v2305 = vpop.f32.mrb[0].mxu0
        %2306 = vdwg.mxu0
        %v2307 = vld [vmem:[%s11] sm:$0xff]
        %v2308 = vld [vmem:[%s11 + $0x8] sm:$0xff]
        %v2309 = vld [vmem:[%s13] sm:$0x1]
        %v2311 = vlaneseq
        %v2312 = vshrl.u32 %v2311, 7
        %v2313 = vsub.s32 0, %v2312
        %v2314 = vrot.slane %v2309, %v2313
        %2316 = vmatprep.subr.mxu0 0.0
        %2317 = vmatpush1.msra.mxu0 %v2307
        %2318 = vmatprep.subr.mxu0 0.0
        %2319 = vmatpush1.msra.mxu0 %v2308
        %2320 = vmatprep.subr.mxu0 0.0
        %2321 = vmatpush1.msra.mxu0 0.0
        %2322 = vmatprep.subr.mxu0 0.0
        %2323 = vmatpush1.msra.mxu0 0.0
        %2324 = vmatprep.subr.mxu0 0.0
        %2325 = vmatpush1.msra.mxu0 0.0
        %2326 = vmatprep.subr.mxu0 0.0
        %2327 = vmatpush1.msra.mxu0 0.0
        %2328 = vmatprep.subr.mxu0 0.0
        %2329 = vmatpush1.msra.mxu0 0.0
        %2330 = vmatprep.subr.mxu0 0.0
        %2331 = vmatpush1.msra.mxu0 0.0
        %2332 = vmatprep.subr.mxu0 0.0
        %2333 = vmatpush1.msra.mxu0 0.0
        %2334 = vmatprep.subr.mxu0 0.0
        %2335 = vmatpush1.msra.mxu0 0.0
        %2336 = vmatprep.subr.mxu0 0.0
        %2337 = vmatpush1.msra.mxu0 0.0
        %2338 = vmatprep.subr.mxu0 0.0
        %2339 = vmatpush1.msra.mxu0 0.0
        %2340 = vmatprep.subr.mxu0 0.0
        %2341 = vmatpush1.msra.mxu0 0.0
        %2342 = vmatprep.subr.mxu0 0.0
        %2343 = vmatpush1.msra.mxu0 0.0
        %2344 = vmatprep.subr.mxu0 0.0
        %2345 = vmatpush1.msra.mxu0 0.0
        %2346 = vmatprep.subr.mxu0 0.0
        %2347 = vmatpush1.msra.mxu0 0.0
        %2348 = vmatprep.subr.mxu0 0.0
        %2349 = vmatpush1.msra.mxu0 0.0
        %2350 = vmatprep.subr.mxu0 0.0
        %2351 = vmatpush1.msra.mxu0 0.0
        %2352 = vmatprep.subr.mxu0 0.0
        %2353 = vmatpush1.msra.mxu0 0.0
        %2354 = vmatprep.subr.mxu0 0.0
        %2355 = vmatpush1.msra.mxu0 0.0
        %2356 = vmatprep.subr.mxu0 0.0
        %2357 = vmatpush1.msra.mxu0 0.0
        %2358 = vmatprep.subr.mxu0 0.0
        %2359 = vmatpush1.msra.mxu0 0.0
        %2360 = vmatprep.subr.mxu0 0.0
        %2361 = vmatpush1.msra.mxu0 0.0
        %2362 = vmatprep.subr.mxu0 0.0
        %2363 = vmatpush1.msra.mxu0 0.0
        %2364 = vmatprep.subr.mxu0 0.0
        %2365 = vmatpush1.msra.mxu0 0.0
        %2366 = vmatprep.subr.mxu0 0.0
        %2367 = vmatpush1.msra.mxu0 0.0
        %2368 = vmatprep.subr.mxu0 0.0
        %2369 = vmatpush1.msra.mxu0 0.0
        %2370 = vmatprep.subr.mxu0 0.0
        %2371 = vmatpush1.msra.mxu0 0.0
        %2372 = vmatprep.subr.mxu0 0.0
        %2373 = vmatpush1.msra.mxu0 0.0
        %2374 = vmatprep.subr.mxu0 0.0
        %2375 = vmatpush1.msra.mxu0 0.0
        %2376 = vmatprep.subr.mxu0 0.0
        %2377 = vmatpush1.msra.mxu0 0.0
        %2378 = vmatprep.subr.mxu0 0.0
        %2379 = vmatpush1.msra.mxu0 0.0
        %2380 = vmatprep.mubr.f32.mxu0 0.0
        %2381 = vmatmul.mubr.f32.gmra.mrb[0].mxu0 %v2115
        %v2382 = vpop.f32.mrb[0].mxu0
        %v2383 = vadd.f32 %v2314, %v2382
        %v2384 = vpop.f32.mrb[0].mxu0
        %2385 = vmatprep.mubr.f32.mxu0 0.0
        %2386 = vmatmul.mubr.f32.gmra.mrb[0].mxu0 %v2118
        %v2387 = vpop.f32.mrb[0].mxu0
        %v2388 = vadd.f32 %v2314, %v2387
        %v2389 = vpop.f32.mrb[0].mxu0
        %2390 = vmatprep.mubr.f32.mxu0 0.0
        %2391 = vmatmul.mubr.f32.gmra.mrb[0].mxu0 %v2121
        %v2392 = vpop.f32.mrb[0].mxu0
        %v2393 = vadd.f32 %v2314, %v2392
        %v2394 = vpop.f32.mrb[0].mxu0
        %2395 = vmatprep.mubr.f32.mxu0 0.0
        %2396 = vmatmul.mubr.f32.gmra.mrb[0].mxu0 %v2124
        %v2397 = vpop.f32.mrb[0].mxu0
        %v2398 = vadd.f32 %v2314, %v2397
        %v2399 = vpop.f32.mrb[0].mxu0
        %2400 = vmatprep.mubr.f32.mxu0 0.0
        %2401 = vmatmul.mubr.f32.gmra.mrb[0].mxu0 %v2127
        %v2402 = vpop.f32.mrb[0].mxu0
        %v2403 = vadd.f32 %v2314, %v2402
        %v2404 = vpop.f32.mrb[0].mxu0
        %2405 = vmatprep.mubr.f32.mxu0 0.0
        %2406 = vmatmul.mubr.f32.gmra.mrb[0].mxu0 %v2130
        %v2407 = vpop.f32.mrb[0].mxu0
        %v2408 = vadd.f32 %v2314, %v2407
        %v2409 = vpop.f32.mrb[0].mxu0
        %2410 = vmatprep.mubr.f32.mxu0 0.0
        %2411 = vmatmul.mubr.f32.gmra.mrb[0].mxu0 %v2133
        %v2412 = vpop.f32.mrb[0].mxu0
        %v2413 = vadd.f32 %v2314, %v2412
        %v2414 = vpop.f32.mrb[0].mxu0
        %2415 = vmatprep.mubr.f32.mxu0 0.0
        %2416 = vmatmul.mubr.f32.gmra.mrb[0].mxu0 %v2136
        %v2417 = vpop.f32.mrb[0].mxu0
        %v2418 = vadd.f32 %v2314, %v2417
        %v2419 = vpop.f32.mrb[0].mxu0
        %2420 = vmatprep.mubr.f32.mxu0 0.0
        %2421 = vmatmul.mubr.f32.gmra.mrb[0].mxu0 %v2139
        %v2422 = vpop.f32.mrb[0].mxu0
        %v2423 = vadd.f32 %v2314, %v2422
        %v2424 = vpop.f32.mrb[0].mxu0
        %2425 = vmatprep.mubr.f32.mxu0 0.0
        %2426 = vmatmul.mubr.f32.gmra.mrb[0].mxu0 %v2142
        %v2427 = vpop.f32.mrb[0].mxu0
        %v2428 = vadd.f32 %v2314, %v2427
        %v2429 = vpop.f32.mrb[0].mxu0
        %2430 = vmatprep.mubr.f32.mxu0 0.0
        %2431 = vmatmul.mubr.f32.gmra.mrb[0].mxu0 %v2145
        %v2432 = vpop.f32.mrb[0].mxu0
        %v2433 = vadd.f32 %v2314, %v2432
        %v2434 = vpop.f32.mrb[0].mxu0
        %2435 = vmatprep.mubr.f32.mxu0 0.0
        %2436 = vmatmul.mubr.f32.gmra.mrb[0].mxu0 %v2148
        %v2437 = vpop.f32.mrb[0].mxu0
        %v2438 = vadd.f32 %v2314, %v2437
        %v2439 = vpop.f32.mrb[0].mxu0
        %2440 = vmatprep.mubr.f32.mxu0 0.0
        %2441 = vmatmul.mubr.f32.gmra.mrb[0].mxu0 %v2151
        %v2442 = vpop.f32.mrb[0].mxu0
        %v2443 = vadd.f32 %v2314, %v2442
        %v2444 = vpop.f32.mrb[0].mxu0
        %2445 = vmatprep.mubr.f32.mxu0 0.0
        %2446 = vmatmul.mubr.f32.gmra.mrb[0].mxu0 %v2154
        %v2447 = vpop.f32.mrb[0].mxu0
        %v2448 = vadd.f32 %v2314, %v2447
        %v2449 = vpop.f32.mrb[0].mxu0
        %2450 = vmatprep.mubr.f32.mxu0 0.0
        %2451 = vmatmul.mubr.f32.gmra.mrb[0].mxu0 %v2157
        %v2452 = vpop.f32.mrb[0].mxu0
        %v2453 = vadd.f32 %v2314, %v2452
        %v2454 = vpop.f32.mrb[0].mxu0
        %2455 = vmatprep.mubr.f32.mxu0 0.0
        %2456 = vmatmul.mubr.f32.gmra.mrb[0].mxu0 %v2160
        %v2457 = vpop.f32.mrb[0].mxu0
        %v2458 = vadd.f32 %v2314, %v2457
        %v2459 = vpop.f32.mrb[0].mxu0
        %2460 = vdwg.mxu0
        %v2461 = vxor.u32 %v2383, 2147483648
        %v2462 = vxor.u32 %v2388, 2147483648
        %v2463 = vxor.u32 %v2393, 2147483648
        %v2464 = vxor.u32 %v2398, 2147483648
        %v2465 = vxor.u32 %v2403, 2147483648
        %v2466 = vxor.u32 %v2408, 2147483648
        %v2467 = vxor.u32 %v2413, 2147483648
        %v2468 = vxor.u32 %v2418, 2147483648
        %v2469 = vxor.u32 %v2423, 2147483648
        %v2470 = vxor.u32 %v2428, 2147483648
        %v2471 = vxor.u32 %v2433, 2147483648
        %v2472 = vxor.u32 %v2438, 2147483648
        %v2473 = vxor.u32 %v2443, 2147483648
        %v2474 = vxor.u32 %v2448, 2147483648
        %v2475 = vxor.u32 %v2453, 2147483648
        %v2476 = vxor.u32 %v2458, 2147483648
        %v2477 = vmul.f32 %v2461, 1.442695
        %v2478 = vpow.pop %v2477
        %v2479 = vmul.f32 %v2462, 1.442695
        %v2480 = vpow.pop %v2479
        %v2481 = vmul.f32 %v2463, 1.442695
        %v2482 = vpow.pop %v2481
        %v2483 = vmul.f32 %v2464, 1.442695
        %v2484 = vpow.pop %v2483
        %v2485 = vmul.f32 %v2465, 1.442695
        %v2486 = vpow.pop %v2485
        %v2487 = vmul.f32 %v2466, 1.442695
        %v2488 = vpow.pop %v2487
        %v2489 = vmul.f32 %v2467, 1.442695
        %v2490 = vpow.pop %v2489
        %v2491 = vmul.f32 %v2468, 1.442695
        %v2492 = vpow.pop %v2491
        %v2493 = vmul.f32 %v2469, 1.442695
        %v2494 = vpow.pop %v2493
        %v2495 = vmul.f32 %v2470, 1.442695
        %v2496 = vpow.pop %v2495
        %v2497 = vmul.f32 %v2471, 1.442695
        %v2498 = vpow.pop %v2497
        %v2499 = vmul.f32 %v2472, 1.442695
        %v2500 = vpow.pop %v2499
        %v2501 = vmul.f32 %v2473, 1.442695
        %v2502 = vpow.pop %v2501
        %v2503 = vmul.f32 %v2474, 1.442695
        %v2504 = vpow.pop %v2503
        %v2505 = vmul.f32 %v2475, 1.442695
        %v2506 = vpow.pop %v2505
        %v2507 = vmul.f32 %v2476, 1.442695
        %v2508 = vpow.pop %v2507
        %v2509 = vadd.f32 %v2478, 1.0
        %v2510 = vadd.f32 %v2480, 1.0
        %v2511 = vadd.f32 %v2482, 1.0
        %v2512 = vadd.f32 %v2484, 1.0
        %v2513 = vadd.f32 %v2486, 1.0
        %v2514 = vadd.f32 %v2488, 1.0
        %v2515 = vadd.f32 %v2490, 1.0
        %v2516 = vadd.f32 %v2492, 1.0
        %v2517 = vadd.f32 %v2494, 1.0
        %v2518 = vadd.f32 %v2496, 1.0
        %v2519 = vadd.f32 %v2498, 1.0
        %v2520 = vadd.f32 %v2500, 1.0
        %v2521 = vadd.f32 %v2502, 1.0
        %v2522 = vadd.f32 %v2504, 1.0
        %v2523 = vadd.f32 %v2506, 1.0
        %v2524 = vadd.f32 %v2508, 1.0
        %v2525 = vrcp.pop %v2509
        %v2526 = vmul.f32 1.0, %v2525
        %v2527 = vrcp.pop %v2510
        %v2528 = vmul.f32 1.0, %v2527
        %v2529 = vrcp.pop %v2511
        %v2530 = vmul.f32 1.0, %v2529
        %v2531 = vrcp.pop %v2512
        %v2532 = vmul.f32 1.0, %v2531
        %v2533 = vrcp.pop %v2513
        %v2534 = vmul.f32 1.0, %v2533
        %v2535 = vrcp.pop %v2514
        %v2536 = vmul.f32 1.0, %v2535
        %v2537 = vrcp.pop %v2515
        %v2538 = vmul.f32 1.0, %v2537
        %v2539 = vrcp.pop %v2516
        %v2540 = vmul.f32 1.0, %v2539
        %v2541 = vrcp.pop %v2517
        %v2542 = vmul.f32 1.0, %v2541
        %v2543 = vrcp.pop %v2518
        %v2544 = vmul.f32 1.0, %v2543
        %v2545 = vrcp.pop %v2519
        %v2546 = vmul.f32 1.0, %v2545
        %v2547 = vrcp.pop %v2520
        %v2548 = vmul.f32 1.0, %v2547
        %v2549 = vrcp.pop %v2521
        %v2550 = vmul.f32 1.0, %v2549
        %v2551 = vrcp.pop %v2522
        %v2552 = vmul.f32 1.0, %v2551
        %v2553 = vrcp.pop %v2523
        %v2554 = vmul.f32 1.0, %v2553
        %v2555 = vrcp.pop %v2524
        %v2556 = vmul.f32 1.0, %v2555
        %v2557 = vmul.f32 %v2229, %v2526
        %v2558 = vmul.f32 %v2234, %v2528
        %v2559 = vmul.f32 %v2239, %v2530
        %v2560 = vmul.f32 %v2244, %v2532
        %v2561 = vmul.f32 %v2249, %v2534
        %v2562 = vmul.f32 %v2254, %v2536
        %v2563 = vmul.f32 %v2259, %v2538
        %v2564 = vmul.f32 %v2264, %v2540
        %v2565 = vmul.f32 %v2269, %v2542
        %v2566 = vmul.f32 %v2274, %v2544
        %v2567 = vmul.f32 %v2279, %v2546
        %v2568 = vmul.f32 %v2284, %v2548
        %v2569 = vmul.f32 %v2289, %v2550
        %v2570 = vmul.f32 %v2294, %v2552
        %v2571 = vmul.f32 %v2299, %v2554
        %v2572 = vmul.f32 %v2304, %v2556
        %v2573 = vld [vmem:[%s617] sm:$0xff]
        %v2574 = vld [vmem:[%s617 + $0x8] sm:$0xff]
        %v2575 = vld [vmem:[%s617 + $0x10] sm:$0xff]
        %v2576 = vld [vmem:[%s617 + $0x18] sm:$0xff]
        %v2577 = vld [vmem:[%s617 + $0x20] sm:$0xff]
        %v2578 = vld [vmem:[%s617 + $0x28] sm:$0xff]
        %v2579 = vld [vmem:[%s617 + $0x30] sm:$0xff]
        %v2580 = vld [vmem:[%s617 + $0x38] sm:$0xff]
        %v2581 = vld [vmem:[%s617 + $0x40] sm:$0xff]
        %v2582 = vld [vmem:[%s617 + $0x48] sm:$0xff]
        %v2583 = vld [vmem:[%s617 + $0x50] sm:$0xff]
        %v2584 = vld [vmem:[%s617 + $0x58] sm:$0xff]
        %v2585 = vld [vmem:[%s617 + $0x60] sm:$0xff]
        %v2586 = vld [vmem:[%s617 + $0x68] sm:$0xff]
        %v2587 = vld [vmem:[%s617 + $0x70] sm:$0xff]
        %v2588 = vld [vmem:[%s617 + $0x78] sm:$0xff]
        %v2589 = vadd.f32 %v2573, %v2557
        %v2590 = vadd.f32 %v2574, %v2558
        %v2591 = vadd.f32 %v2575, %v2559
        %v2592 = vadd.f32 %v2576, %v2560
        %v2593 = vadd.f32 %v2577, %v2561
        %v2594 = vadd.f32 %v2578, %v2562
        %v2595 = vadd.f32 %v2579, %v2563
        %v2596 = vadd.f32 %v2580, %v2564
        %v2597 = vadd.f32 %v2581, %v2565
        %v2598 = vadd.f32 %v2582, %v2566
        %v2599 = vadd.f32 %v2583, %v2567
        %v2600 = vadd.f32 %v2584, %v2568
        %v2601 = vadd.f32 %v2585, %v2569
        %v2602 = vadd.f32 %v2586, %v2570
        %v2603 = vadd.f32 %v2587, %v2571
        %v2604 = vadd.f32 %v2588, %v2572
        %2605 = vst.msk [vmem:[%s661] sm:$0xff] %vm704, %v2589
        %2606 = vst.msk [vmem:[%s661 + $0x8] sm:$0xff] %vm704, %v2590
        %2607 = vst.msk [vmem:[%s661 + $0x10] sm:$0xff] %vm704, %v2591
        %2608 = vst.msk [vmem:[%s661 + $0x18] sm:$0xff] %vm704, %v2592
        %2609 = vst.msk [vmem:[%s661 + $0x20] sm:$0xff] %vm704, %v2593
        %2610 = vst.msk [vmem:[%s661 + $0x28] sm:$0xff] %vm704, %v2594
        %2611 = vst.msk [vmem:[%s661 + $0x30] sm:$0xff] %vm704, %v2595
        %2612 = vst.msk [vmem:[%s661 + $0x38] sm:$0xff] %vm704, %v2596
        %2613 = vst.msk [vmem:[%s661 + $0x40] sm:$0xff] %vm704, %v2597
        %2614 = vst.msk [vmem:[%s661 + $0x48] sm:$0xff] %vm704, %v2598
        %2615 = vst.msk [vmem:[%s661 + $0x50] sm:$0xff] %vm704, %v2599
        %2616 = vst.msk [vmem:[%s661 + $0x58] sm:$0xff] %vm704, %v2600
        %2617 = vst.msk [vmem:[%s661 + $0x60] sm:$0xff] %vm704, %v2601
        %2618 = vst.msk [vmem:[%s661 + $0x68] sm:$0xff] %vm704, %v2602
        %2619 = vst.msk [vmem:[%s661 + $0x70] sm:$0xff] %vm704, %v2603
        %2620 = vst.msk [vmem:[%s661 + $0x78] sm:$0xff] %vm704, %v2604
        // Predicated region
        $region157: #{tpu_custom_call.1} parent=143 // pred_check
          %p2621 = pneg %p675
        $region158: #{tpu_custom_call.1} parent=143 // pred_check_branch
          %2623 = sbr.rel (%p2621) target = $region160
        $region159: #{tpu_custom_call.1} parent=143 // pred_region
          %v2624 = vld [vmem:[#allocation2] sm:$0xff]
          %v2625 = vld [vmem:[#allocation2 + $0x8] sm:$0xff]
          %v2626 = vld [vmem:[#allocation2 + $0x10] sm:$0xff]
          %v2627 = vld [vmem:[#allocation2 + $0x18] sm:$0xff]
          %2628 = vst.msk [vmem:[%s668] sm:$0xff] %vm1302, %v2624
          %2629 = vst.msk [vmem:[%s668 + $0x8] sm:$0xff] %vm1302, %v2625
          %2630 = vst.msk [vmem:[%s668 + $0x10] sm:$0xff] %vm1302, %v2626
          %2631 = vst.msk [vmem:[%s668 + $0x18] sm:$0xff] %vm1302, %v2627
        $region160: #{tpu_custom_call.1} parent=143 // pred_fallthru
          _
        %s2632 = sand.u32 %s358, 1
        %s2633 = sand.u32 %s358, 1
        %s2634 = smul.addr %s2633, 128
        %s2635 = scalar_lea.vmem [#allocation7], %s2634
        %s2636 = sand.u32 %s384, 1
        %s2637 = scalar_lea.sflag [#allocation9], %s2636
        %s2638 = sand.u32 %s384, 1
        %s2639 = smul.addr %s2638, 32
        %s2640 = scalar_lea.vmem [#allocation8], %s2639
        // Predicated region
        $region161: #{tpu_custom_call.1} parent=143 // pred_check
          %p2641 = pneg %p368
        $region162: #{tpu_custom_call.1} parent=143 // pred_check_branch
          %2643 = sbr.rel (%p2641) target = $region164
        $region163: #{tpu_custom_call.1} parent=143 // pred_region
          %s2644 = smul.u32 8, %s35
          %s2645 = smul.u32 2, %s34
          %s2646 = smul.addr %s2644, 4
          %s2647 = sadd.s32 %s2645, %s2646
          %s2648 = smul.addr %s2647, 8
          %s2649 = scalar_lea.vmem %s14, %s2648
          // Predicated region
          $region165: #{tpu_custom_call.1} parent=163 // pred_check
            _
          $region166: #{tpu_custom_call.1} parent=163 // pred_check_branch
            %2651 = sbr.rel (0) target = $region168
          $region167: #{tpu_custom_call.1} parent=163 // pred_region
            // Predicated region
            $region169: #{tpu_custom_call.1} parent=167 // pred_check
              _
            $region170: #{tpu_custom_call.1} parent=167 // pred_check_branch
              %2653 = sbr.rel (0) target = $region172
            $region171: #{tpu_custom_call.1} parent=167 // pred_region
              // Predicated region
              $region184: #{tpu_custom_call.1} parent=171 // pred_check
                _
              $region185: #{tpu_custom_call.1} parent=171 // pred_check_branch
                %2698 = sbr.rel (0) target = $region187
              $region186: #{tpu_custom_call.1} parent=171 // pred_region
                loop: start=0, step=1, limit=1
                $region188: #{tpu_custom_call.1} parent=186 // loop_pre_header
                  _
                $region189: #{tpu_custom_call.1} parent=186 // loop_header
                  %s2700 = sphi 0, %s2704
                  %p2701 = scmp.ge.s32.totalorder %s2700, 1
                  %s2705 = sphi %s2635, %s2635
                  %s2706 = sphi %s2649, %s2649
                $region190: #{tpu_custom_call.1} parent=186 // loop_header_branch
                  %2703 = sbr.rel (%p2701) target = $region194
                $region191: #{tpu_custom_call.1} parent=186 // loop_body
                  %v2707 = vld [vmem:[%s2705] sm:$0xff]
                  %2708 = vst [vmem:[%s2706] sm:$0xff] %v2707
                  %v2709 = vld [vmem:[%s2705 + $0x8] sm:$0xff]
                  %2710 = vst [vmem:[%s2706 + $0x8] sm:$0xff] %v2709
                  %v2711 = vld [vmem:[%s2705 + $0x10] sm:$0xff]
                  %2712 = vst [vmem:[%s2706 + $0x20] sm:$0xff] %v2711
                  %v2713 = vld [vmem:[%s2705 + $0x18] sm:$0xff]
                  %2714 = vst [vmem:[%s2706 + $0x28] sm:$0xff] %v2713
                  %v2715 = vld [vmem:[%s2705 + $0x20] sm:$0xff]
                  %2716 = vst [vmem:[%s2706 + $0x40] sm:$0xff] %v2715
                  %v2717 = vld [vmem:[%s2705 + $0x28] sm:$0xff]
                  %2718 = vst [vmem:[%s2706 + $0x48] sm:$0xff] %v2717
                  %v2719 = vld [vmem:[%s2705 + $0x30] sm:$0xff]
                  %2720 = vst [vmem:[%s2706 + $0x60] sm:$0xff] %v2719
                  %v2721 = vld [vmem:[%s2705 + $0x38] sm:$0xff]
                  %2722 = vst [vmem:[%s2706 + $0x68] sm:$0xff] %v2721
                  %v2723 = vld [vmem:[%s2705 + $0x40] sm:$0xff]
                  %2724 = vst [vmem:[%s2706 + $0x80] sm:$0xff] %v2723
                  %v2725 = vld [vmem:[%s2705 + $0x48] sm:$0xff]
                  %2726 = vst [vmem:[%s2706 + $0x88] sm:$0xff] %v2725
                  %v2727 = vld [vmem:[%s2705 + $0x50] sm:$0xff]
                  %2728 = vst [vmem:[%s2706 + $0xa0] sm:$0xff] %v2727
                  %v2729 = vld [vmem:[%s2705 + $0x58] sm:$0xff]
                  %2730 = vst [vmem:[%s2706 + $0xa8] sm:$0xff] %v2729
                  %v2731 = vld [vmem:[%s2705 + $0x60] sm:$0xff]
                  %2732 = vst [vmem:[%s2706 + $0xc0] sm:$0xff] %v2731
                  %v2733 = vld [vmem:[%s2705 + $0x68] sm:$0xff]
                  %2734 = vst [vmem:[%s2706 + $0xc8] sm:$0xff] %v2733
                  %v2735 = vld [vmem:[%s2705 + $0x70] sm:$0xff]
                  %2736 = vst [vmem:[%s2706 + $0xe0] sm:$0xff] %v2735
                  %v2737 = vld [vmem:[%s2705 + $0x78] sm:$0xff]
                  %2738 = vst [vmem:[%s2706 + $0xe8] sm:$0xff] %v2737
                $region192: #{tpu_custom_call.1} parent=186 // loop_footer
                  %s2704 = sadd.s32 1, %s2700
                $region193: #{tpu_custom_call.1} parent=186 // loop_footer_branch
                  %2699 = sbr.rel target = $region189
                $region194: #{tpu_custom_call.1} parent=186 // loop_exit
                  _
              $region187: #{tpu_custom_call.1} parent=171 // pred_fallthru
                _
              // Predicated region
              $region195: #{tpu_custom_call.1} parent=171 // pred_check
                _
              $region196: #{tpu_custom_call.1} parent=171 // pred_check_branch
                %2740 = sbr.rel target = $region198
              $region197: #{tpu_custom_call.1} parent=171 // pred_region
                _
              $region198: #{tpu_custom_call.1} parent=171 // pred_fallthru
                _
            $region172: #{tpu_custom_call.1} parent=167 // pred_fallthru
              _
            // Predicated region
            $region173: #{tpu_custom_call.1} parent=167 // pred_check
              _
            $region174: #{tpu_custom_call.1} parent=167 // pred_check_branch
              %2655 = sbr.rel target = $region176
            $region175: #{tpu_custom_call.1} parent=167 // pred_region
              loop: start=0, step=1, limit=1
              $region177: #{tpu_custom_call.1} parent=175 // loop_pre_header
                _
              $region178: #{tpu_custom_call.1} parent=175 // loop_header
                %s2658 = sphi 0, %s2662
                %p2659 = scmp.ge.s32.totalorder %s2658, 1
                %s2663 = sphi %s2635, %s2635
                %s2664 = sphi %s2649, %s2649
              $region179: #{tpu_custom_call.1} parent=175 // loop_header_branch
                %2661 = sbr.rel (%p2659) target = $region183
              $region180: #{tpu_custom_call.1} parent=175 // loop_body
                %v2665 = vld [vmem:[%s2663] sm:$0xff]
                %2666 = vst [vmem:[%s2664] sm:$0xff] %v2665
                %v2667 = vld [vmem:[%s2663 + $0x8] sm:$0xff]
                %2668 = vst [vmem:[%s2664 + $0x8] sm:$0xff] %v2667
                %v2669 = vld [vmem:[%s2663 + $0x10] sm:$0xff]
                %2670 = vst [vmem:[%s2664 + $0x20] sm:$0xff] %v2669
                %v2671 = vld [vmem:[%s2663 + $0x18] sm:$0xff]
                %2672 = vst [vmem:[%s2664 + $0x28] sm:$0xff] %v2671
                %v2673 = vld [vmem:[%s2663 + $0x20] sm:$0xff]
                %2674 = vst [vmem:[%s2664 + $0x40] sm:$0xff] %v2673
                %v2675 = vld [vmem:[%s2663 + $0x28] sm:$0xff]
                %2676 = vst [vmem:[%s2664 + $0x48] sm:$0xff] %v2675
                %v2677 = vld [vmem:[%s2663 + $0x30] sm:$0xff]
                %2678 = vst [vmem:[%s2664 + $0x60] sm:$0xff] %v2677
                %v2679 = vld [vmem:[%s2663 + $0x38] sm:$0xff]
                %2680 = vst [vmem:[%s2664 + $0x68] sm:$0xff] %v2679
                %v2681 = vld [vmem:[%s2663 + $0x40] sm:$0xff]
                %2682 = vst [vmem:[%s2664 + $0x80] sm:$0xff] %v2681
                %v2683 = vld [vmem:[%s2663 + $0x48] sm:$0xff]
                %2684 = vst [vmem:[%s2664 + $0x88] sm:$0xff] %v2683
                %v2685 = vld [vmem:[%s2663 + $0x50] sm:$0xff]
                %2686 = vst [vmem:[%s2664 + $0xa0] sm:$0xff] %v2685
                %v2687 = vld [vmem:[%s2663 + $0x58] sm:$0xff]
                %2688 = vst [vmem:[%s2664 + $0xa8] sm:$0xff] %v2687
                %v2689 = vld [vmem:[%s2663 + $0x60] sm:$0xff]
                %2690 = vst [vmem:[%s2664 + $0xc0] sm:$0xff] %v2689
                %v2691 = vld [vmem:[%s2663 + $0x68] sm:$0xff]
                %2692 = vst [vmem:[%s2664 + $0xc8] sm:$0xff] %v2691
                %v2693 = vld [vmem:[%s2663 + $0x70] sm:$0xff]
                %2694 = vst [vmem:[%s2664 + $0xe0] sm:$0xff] %v2693
                %v2695 = vld [vmem:[%s2663 + $0x78] sm:$0xff]
                %2696 = vst [vmem:[%s2664 + $0xe8] sm:$0xff] %v2695
              $region181: #{tpu_custom_call.1} parent=175 // loop_footer
                %s2662 = sadd.s32 1, %s2658
              $region182: #{tpu_custom_call.1} parent=175 // loop_footer_branch
                %2657 = sbr.rel target = $region178
              $region183: #{tpu_custom_call.1} parent=175 // loop_exit
                _
            $region176: #{tpu_custom_call.1} parent=167 // pred_fallthru
              _
          $region168: #{tpu_custom_call.1} parent=163 // pred_fallthru
            _
          %2741 = vnop
        $region164: #{tpu_custom_call.1} parent=143 // pred_fallthru
          _
        // Predicated region
        $region199: #{tpu_custom_call.1} parent=143 // pred_check
          %p2742 = pneg %p394
        $region200: #{tpu_custom_call.1} parent=143 // pred_check_branch
          %2744 = sbr.rel (%p2742) target = $region202
        $region201: #{tpu_custom_call.1} parent=143 // pred_region
          #allocation11 [shape = 'u32[6]{0}', space=smem, size = 0x18, scoped, tag = 'DMA stride descriptor']
          %s2745 = smul.u32 2, %s34
          %s2747 = ssub.s32 512, 512
          %2748 = vsyncadd %s2637, %s2747
          %s2749 = smul.addr %s2745, 128
          %s2750 = scalar_lea.hbm %s15, %s2749
          %s2752 = sshll.u32 1, 14
          %s2753 = sxor.u32 4294967295, %s2752
          %s2756 = sshll.u32 7, 18
          %s2757 = sxor.u32 4294967295, %s2756
          %s2758 = sand.u32 0, %s2757
          %s2760 = sor.u32 %s2758, 0
          %s2762 = sshll.u32 3, 24
          %s2763 = sxor.u32 4294967295, %s2762
          %s2764 = sand.u32 %s2760, %s2763
          %s2766 = sor.u32 %s2764, 0
          %s2767 = sshll.u32 %s2640, 4
          %s2768 = int_to_ptr.vmem [resolvable:$true] %s2767
          %2774 = sst [smem:[#allocation11]] 256
          %s2775 = scalar_lea.smem [#allocation11], 1
          %2776 = sst [smem:[%s2775]] 512
          %s2777 = scalar_lea.smem [#allocation11], 2
          %2778 = sst [smem:[%s2777]] 2
          %s2779 = scalar_lea.smem [#allocation11], 3
          %2780 = sst [smem:[%s2779]] 128
          %s2781 = scalar_lea.smem [#allocation11], 4
          %2782 = sst [smem:[%s2781]] 128
          %s2783 = scalar_lea.smem [#allocation11], 5
          %2784 = sst [smem:[%s2783]] 8
          %2786 = dma.general %s2768, 512, %s2750, %s2637, [#allocation10], [#allocation11], %s2766, 0
        $region202: #{tpu_custom_call.1} parent=143 // pred_fallthru
          _
      $region144: #{tpu_custom_call.1} parent=5 // pred_fallthru
        _
      %p2787 = scmp.le.s32.totalorder 2, %s25
      // Predicated region
      $region203: #{tpu_custom_call.1} parent=5 // pred_check
        %p2788 = pneg %p2787
      $region204: #{tpu_custom_call.1} parent=5 // pred_check_branch
        %2790 = sbr.rel (%p2788) target = $region206
      $region205: #{tpu_custom_call.1} parent=5 // pred_region
        %s2791 = ssub.s32 %s25, 2
        // Predicated region
        $region207: #{tpu_custom_call.1} parent=205 // pred_check
          %p2792 = pneg %p374
        $region208: #{tpu_custom_call.1} parent=205 // pred_check_branch
          %2794 = sbr.rel (%p2792) target = $region210
        $region209: #{tpu_custom_call.1} parent=205 // pred_region
          %s2795 = sand.u32 %s359, 1
          %s2796 = sand.u32 %s359, 1
          %s2797 = smul.addr %s2796, 128
          %s2798 = scalar_lea.vmem [#allocation7], %s2797
        $region210: #{tpu_custom_call.1} parent=205 // pred_fallthru
          _
        // Predicated region
        $region211: #{tpu_custom_call.1} parent=205 // pred_check
          %p2799 = pneg %p400
        $region212: #{tpu_custom_call.1} parent=205 // pred_check_branch
          %2801 = sbr.rel (%p2799) target = $region214
        $region213: #{tpu_custom_call.1} parent=205 // pred_region
          %s2802 = sand.u32 %s385, 1
          %s2803 = scalar_lea.sflag [#allocation9], %s2802
          %s2804 = sand.u32 %s385, 1
          %s2805 = smul.addr %s2804, 32
          %s2806 = scalar_lea.vmem [#allocation8], %s2805
          %2807 = dma.done %s2803, 512
        $region214: #{tpu_custom_call.1} parent=205 // pred_fallthru
          _
      $region206: #{tpu_custom_call.1} parent=5 // pred_fallthru
        _
    $region6: #{tpu_custom_call.1} parent=1 // loop_footer
      %s29 = sadd.s32 1, %s25
    $region7: #{tpu_custom_call.1} parent=1 // loop_footer_branch
      %24 = sbr.rel target = $region3
    $region8: #{tpu_custom_call.1} parent=1 // loop_exit
      _
    %2808 = vsyncpa [#allocation9], 1
    %s2809 = scalar_lea.sflag [#allocation9], 1
    %2810 = vsyncpa %s2809, 1

// kernel: tpu_custom_call.1
$region0: #{tpu_custom_call.1}
  #allocation0 [shape = 'u32[]', space=smem, size = 0x4, offset = 0x4, fixed_abs, tag = 'smem constant byte address 0x4 - core index']
  #allocation1 [shape = 'u32[144,128]{1,0:T(1,128)}', space=vmem, size = 0x12000, scoped, tag = 'internal scratch']
  #allocation2 [shape = 'f32[2,16,32]{2,1,0:T(8,128)}', space=vmem, size = 0x4000, scoped, tag = 'scratch operand']
  #allocation3 [shape = 'f32[8,16,32]{2,1,0:T(8,128)}', space=vmem, size = 0x10000, scoped, tag = 'scratch operand']
  #allocation4 [shape = 'f32[8,16,32]{2,1,0:T(8,128)}', space=vmem, size = 0x10000, scoped, tag = 'scratch operand']
  #allocation10 [shape = 's32[]', space=sflag, size = 0x4, offset = 0, fixed_abs, tag = 'sflag constant byte address 0x0 - dummy sync flag']
  %s0 = inlined_call_operand.vmem [shape: f32[8,32,16], index: 0, kind: input, shape index: {}]
  %s1 = inlined_call_operand.vmem [shape: f32[2,32,32], index: 1, kind: input, shape index: {}]
  %s2 = inlined_call_operand.vmem [shape: f32[2,32], index: 2, kind: input, shape index: {}]
  %s3 = inlined_call_operand.vmem [shape: f32[1,16], index: 3, kind: input, shape index: {}]
  %s4 = inlined_call_operand.vmem [shape: f32[1,16], index: 4, kind: input, shape index: {}]
  %s5 = inlined_call_operand.vmem [shape: f32[1,16], index: 5, kind: input, shape index: {}]
  %s6 = inlined_call_operand.vmem [shape: f32[16,32], index: 6, kind: input, shape index: {}]
  %s7 = inlined_call_operand.vmem [shape: f32[16,32], index: 7, kind: input, shape index: {}]
  %s8 = inlined_call_operand.vmem [shape: f32[32,16], index: 8, kind: input, shape index: {}]
  %s9 = inlined_call_operand.vmem [shape: f32[32,16], index: 9, kind: input, shape index: {}]
  %s10 = inlined_call_operand.vmem [shape: f32[16,16], index: 10, kind: input, shape index: {}]
  %s11 = inlined_call_operand.vmem [shape: f32[16,16], index: 11, kind: input, shape index: {}]
  %s12 = inlined_call_operand.vmem [shape: f32[1,16], index: 12, kind: input, shape index: {}]
  %s13 = inlined_call_operand.vmem [shape: f32[1,16], index: 13, kind: input, shape index: {}]
  %s14 = inlined_call_operand.vmem [shape: f32[8,32,16], index: 14, kind: output, shape index: {0}]
  %s15 = inlined_call_operand.hbm [shape: f32[2,32,32], index: 15, kind: output, shape index: {1}]
  %16 = xla_tuple %s14, %s15
  %s17 = sld [smem:[#allocation0]]
  $region215: #{tpu_custom_call.1} parent=0
    _
  %s19 = ssub.s32 1, %s17
  %s20 = scalar_select 0, %s19, %s17
  $region1: #{tpu_custom_call.1} parent=0
    #allocation5 [shape = 'u8[131072]{0}', space=vmem, size = 0x20000, scoped, tag = 'input window, operand 0']
    #allocation6 [shape = 'u8[32768]{0}', space=vmem, size = 0x8000, scoped, tag = 'input window, operand 1']
    #allocation7 [shape = 'u8[131072]{0}', space=vmem, size = 0x20000, scoped, tag = 'output window, operand 0']
    #allocation8 [shape = 'u8[32768]{0}', space=vmem, size = 0x8000, scoped, tag = 'output window, operand 1']
    #allocation9 [shape = 's32[2]{0}', space=sflag, size = 0x8, scoped, tag = 'scoped memory for tpu_custom_call.1']
    %21 = vsyncpa [#allocation9], 0
    %s22 = scalar_lea.sflag [#allocation9], 1
    %23 = vsyncpa %s22, 0
    loop: start=0, step=1, limit=4
    $region2: #{tpu_custom_call.1} parent=1 // loop_pre_header
      _
    $region3: #{tpu_custom_call.1} parent=1 // loop_header
      %s25 = sphi 0, %s29
      %p26 = scmp.ge.s32.totalorder %s25, 4
      %s32 = sphi 0, %s44
      %s33 = sphi 0, %s40
      %s34 = sphi 0, %s32
      %s35 = sphi 0, %s33
      %s36 = sphi 0, %s34
      %s37 = sphi 0, %s35
      %s49 = sphi 0, %s51
      %s52 = sphi 0, %s49
      %s53 = sphi 0, %s52
      %s69 = sphi 0, %s53
      %s75 = sphi 0, %s77
      %s78 = sphi 0, %s75
      %s79 = sphi 0, %s78
      %s95 = sphi 0, %s79
      %s99 = sphi 0, %s99
      %s101 = sphi 0, %s99
      %s102 = sphi 0, %s101
      %s116 = sphi 0, %s102
      %s120 = sphi 0, %s120
      %s122 = sphi 0, %s120
      %s123 = sphi 0, %s122
      %s137 = sphi 0, %s123
      %s141 = sphi 0, %s141
      %s143 = sphi 0, %s141
      %s144 = sphi 0, %s143
      %s158 = sphi 0, %s144
      %s162 = sphi 0, %s162
      %s164 = sphi 0, %s162
      %s165 = sphi 0, %s164
      %s179 = sphi 0, %s165
      %s183 = sphi 0, %s183
      %s185 = sphi 0, %s183
      %s186 = sphi 0, %s185
      %s200 = sphi 0, %s186
      %s204 = sphi 0, %s204
      %s206 = sphi 0, %s204
      %s207 = sphi 0, %s206
      %s221 = sphi 0, %s207
      %s225 = sphi 0, %s225
      %s227 = sphi 0, %s225
      %s228 = sphi 0, %s227
      %s242 = sphi 0, %s228
      %s246 = sphi 0, %s246
      %s248 = sphi 0, %s246
      %s249 = sphi 0, %s248
      %s263 = sphi 0, %s249
      %s267 = sphi 0, %s267
      %s269 = sphi 0, %s267
      %s270 = sphi 0, %s269
      %s284 = sphi 0, %s270
      %s288 = sphi 0, %s288
      %s290 = sphi 0, %s288
      %s291 = sphi 0, %s290
      %s305 = sphi 0, %s291
      %s309 = sphi 0, %s309
      %s311 = sphi 0, %s309
      %s312 = sphi 0, %s311
      %s326 = sphi 0, %s312
      %s330 = sphi 0, %s330
      %s332 = sphi 0, %s330
      %s333 = sphi 0, %s332
      %s347 = sphi 0, %s333
      %s355 = sphi 0, %s357
      %s358 = sphi 0, %s355
      %s359 = sphi 0, %s358
      %s375 = sphi 0, %s359
      %s381 = sphi 0, %s383
      %s384 = sphi 0, %s381
      %s385 = sphi 0, %s384
      %s401 = sphi 0, %s385
    $region4: #{tpu_custom_call.1} parent=1 // loop_header_branch
      %28 = sbr.rel (%p26) target = $region8
    $region5: #{tpu_custom_call.1} parent=1 // loop_body
      %s30 = ssub.s32 %s25, 1
      %s31 = ssub.s32 %s25, 2
      %s38 = sadd.s32 1, %s33
      %p39 = scmp.ge.s32.totalorder %s38, 1
      %s40 = scalar_select %p39, 0, %s38
      %s41 = sadd.s32 1, %s32
      %s42 = scalar_select %p39, %s41, %s32
      %p43 = scmp.ge.s32.totalorder %s42, 2
      %s44 = scalar_select %p43, 0, %s42
      %s45 = ssub.s32 %s33, %s40
      %s46 = ssub.s32 %s32, %s44
      %s47 = sor.u32 %s45, %s46
      %p48 = scmp.eq.s32.totalorder %s47, 0
      %s50 = sadd.s32 %s49, 1
      %s51 = scalar_select %p48, %s49, %s50
      %p54 = pneg %p48
      %p55 = scmp.eq.s32.totalorder %s25, 1
      %p56 = por %p54, %p55
      %p57 = scmp.ne.s32.totalorder %s49, %s52
      %p58 = scmp.eq.s32.totalorder %s25, 0
      %p59 = por %p57, %p58
      %p60 = scmp.ne.s32.totalorder %s49, %s52
      %p61 = scmp.eq.s32.totalorder %s30, 1
      %p62 = por %p60, %p61
      %p63 = scmp.ne.s32.totalorder %s52, %s53
      %p64 = scmp.eq.s32.totalorder %s30, 0
      %p65 = por %p63, %p64
      %p66 = scmp.ne.s32.totalorder %s52, %s53
      %p67 = scmp.eq.s32.totalorder %s31, 1
      %p68 = por %p66, %p67
      %p70 = scmp.ne.s32.totalorder %s53, %s69
      %p71 = scmp.eq.s32.totalorder %s31, 0
      %p72 = por %p70, %p71
      %s73 = ssub.s32 %s32, %s44
      %p74 = scmp.eq.s32.totalorder %s73, 0
      %s76 = sadd.s32 %s75, 1
      %s77 = scalar_select %p74, %s75, %s76
      %p80 = pneg %p74
      %p81 = scmp.eq.s32.totalorder %s25, 1
      %p82 = por %p80, %p81
      %p83 = scmp.ne.s32.totalorder %s75, %s78
      %p84 = scmp.eq.s32.totalorder %s25, 0
      %p85 = por %p83, %p84
      %p86 = scmp.ne.s32.totalorder %s75, %s78
      %p87 = scmp.eq.s32.totalorder %s30, 1
      %p88 = por %p86, %p87
      %p89 = scmp.ne.s32.totalorder %s78, %s79
      %p90 = scmp.eq.s32.totalorder %s30, 0
      %p91 = por %p89, %p90
      %p92 = scmp.ne.s32.totalorder %s78, %s79
      %p93 = scmp.eq.s32.totalorder %s31, 1
      %p94 = por %p92, %p93
      %p96 = scmp.ne.s32.totalorder %s79, %s95
      %p97 = scmp.eq.s32.totalorder %s31, 0
      %p98 = por %p96, %p97
      %s100 = sadd.s32 %s99, 1
      %p103 = scmp.eq.s32.totalorder %s25, 1
      %p104 = scmp.ne.s32.totalorder %s99, %s101
      %p105 = scmp.eq.s32.totalorder %s25, 0
      %p106 = por %p104, %p105
      %p107 = scmp.ne.s32.totalorder %s99, %s101
      %p108 = scmp.eq.s32.totalorder %s30, 1
      %p109 = por %p107, %p108
      %p110 = scmp.ne.s32.totalorder %s101, %s102
      %p111 = scmp.eq.s32.totalorder %s30, 0
      %p112 = por %p110, %p111
      %p113 = scmp.ne.s32.totalorder %s101, %s102
      %p114 = scmp.eq.s32.totalorder %s31, 1
      %p115 = por %p113, %p114
      %p117 = scmp.ne.s32.totalorder %s102, %s116
      %p118 = scmp.eq.s32.totalorder %s31, 0
      %p119 = por %p117, %p118
      %s121 = sadd.s32 %s120, 1
      %p124 = scmp.eq.s32.totalorder %s25, 1
      %p125 = scmp.ne.s32.totalorder %s120, %s122
      %p126 = scmp.eq.s32.totalorder %s25, 0
      %p127 = por %p125, %p126
      %p128 = scmp.ne.s32.totalorder %s120, %s122
      %p129 = scmp.eq.s32.totalorder %s30, 1
      %p130 = por %p128, %p129
      %p131 = scmp.ne.s32.totalorder %s122, %s123
      %p132 = scmp.eq.s32.totalorder %s30, 0
      %p133 = por %p131, %p132
      %p134 = scmp.ne.s32.totalorder %s122, %s123
      %p135 = scmp.eq.s32.totalorder %s31, 1
      %p136 = por %p134, %p135
      %p138 = scmp.ne.s32.totalorder %s123, %s137
      %p139 = scmp.eq.s32.totalorder %s31, 0
      %p140 = por %p138, %p139
      %s142 = sadd.s32 %s141, 1
      %p145 = scmp.eq.s32.totalorder %s25, 1
      %p146 = scmp.ne.s32.totalorder %s141, %s143
      %p147 = scmp.eq.s32.totalorder %s25, 0
      %p148 = por %p146, %p147
      %p149 = scmp.ne.s32.totalorder %s141, %s143
      %p150 = scmp.eq.s32.totalorder %s30, 1
      %p151 = por %p149, %p150
      %p152 = scmp.ne.s32.totalorder %s143, %s144
      %p153 = scmp.eq.s32.totalorder %s30, 0
      %p154 = por %p152, %p153
      %p155 = scmp.ne.s32.totalorder %s143, %s144
      %p156 = scmp.eq.s32.totalorder %s31, 1
      %p157 = por %p155, %p156
      %p159 = scmp.ne.s32.totalorder %s144, %s158
      %p160 = scmp.eq.s32.totalorder %s31, 0
      %p161 = por %p159, %p160
      %s163 = sadd.s32 %s162, 1
      %p166 = scmp.eq.s32.totalorder %s25, 1
      %p167 = scmp.ne.s32.totalorder %s162, %s164
      %p168 = scmp.eq.s32.totalorder %s25, 0
      %p169 = por %p167, %p168
      %p170 = scmp.ne.s32.totalorder %s162, %s164
      %p171 = scmp.eq.s32.totalorder %s30, 1
      %p172 = por %p170, %p171
      %p173 = scmp.ne.s32.totalorder %s164, %s165
      %p174 = scmp.eq.s32.totalorder %s30, 0
      %p175 = por %p173, %p174
      %p176 = scmp.ne.s32.totalorder %s164, %s165
      %p177 = scmp.eq.s32.totalorder %s31, 1
      %p178 = por %p176, %p177
      %p180 = scmp.ne.s32.totalorder %s165, %s179
      %p181 = scmp.eq.s32.totalorder %s31, 0
      %p182 = por %p180, %p181
      %s184 = sadd.s32 %s183, 1
      %p187 = scmp.eq.s32.totalorder %s25, 1
      %p188 = scmp.ne.s32.totalorder %s183, %s185
      %p189 = scmp.eq.s32.totalorder %s25, 0
      %p190 = por %p188, %p189
      %p191 = scmp.ne.s32.totalorder %s183, %s185
      %p192 = scmp.eq.s32.totalorder %s30, 1
      %p193 = por %p191, %p192
      %p194 = scmp.ne.s32.totalorder %s185, %s186
      %p195 = scmp.eq.s32.totalorder %s30, 0
      %p196 = por %p194, %p195
      %p197 = scmp.ne.s32.totalorder %s185, %s186
      %p198 = scmp.eq.s32.totalorder %s31, 1
      %p199 = por %p197, %p198
      %p201 = scmp.ne.s32.totalorder %s186, %s200
      %p202 = scmp.eq.s32.totalorder %s31, 0
      %p203 = por %p201, %p202
      %s205 = sadd.s32 %s204, 1
      %p208 = scmp.eq.s32.totalorder %s25, 1
      %p209 = scmp.ne.s32.totalorder %s204, %s206
      %p210 = scmp.eq.s32.totalorder %s25, 0
      %p211 = por %p209, %p210
      %p212 = scmp.ne.s32.totalorder %s204, %s206
      %p213 = scmp.eq.s32.totalorder %s30, 1
      %p214 = por %p212, %p213
      %p215 = scmp.ne.s32.totalorder %s206, %s207
      %p216 = scmp.eq.s32.totalorder %s30, 0
      %p217 = por %p215, %p216
      %p218 = scmp.ne.s32.totalorder %s206, %s207
      %p219 = scmp.eq.s32.totalorder %s31, 1
      %p220 = por %p218, %p219
      %p222 = scmp.ne.s32.totalorder %s207, %s221
      %p223 = scmp.eq.s32.totalorder %s31, 0
      %p224 = por %p222, %p223
      %s226 = sadd.s32 %s225, 1
      %p229 = scmp.eq.s32.totalorder %s25, 1
      %p230 = scmp.ne.s32.totalorder %s225, %s227
      %p231 = scmp.eq.s32.totalorder %s25, 0
      %p232 = por %p230, %p231
      %p233 = scmp.ne.s32.totalorder %s225, %s227
      %p234 = scmp.eq.s32.totalorder %s30, 1
      %p235 = por %p233, %p234
      %p236 = scmp.ne.s32.totalorder %s227, %s228
      %p237 = scmp.eq.s32.totalorder %s30, 0
      %p238 = por %p236, %p237
      %p239 = scmp.ne.s32.totalorder %s227, %s228
      %p240 = scmp.eq.s32.totalorder %s31, 1
      %p241 = por %p239, %p240
      %p243 = scmp.ne.s32.totalorder %s228, %s242
      %p244 = scmp.eq.s32.totalorder %s31, 0
      %p245 = por %p243, %p244
      %s247 = sadd.s32 %s246, 1
      %p250 = scmp.eq.s32.totalorder %s25, 1
      %p251 = scmp.ne.s32.totalorder %s246, %s248
      %p252 = scmp.eq.s32.totalorder %s25, 0
      %p253 = por %p251, %p252
      %p254 = scmp.ne.s32.totalorder %s246, %s248
      %p255 = scmp.eq.s32.totalorder %s30, 1
      %p256 = por %p254, %p255
      %p257 = scmp.ne.s32.totalorder %s248, %s249
      %p258 = scmp.eq.s32.totalorder %s30, 0
      %p259 = por %p257, %p258
      %p260 = scmp.ne.s32.totalorder %s248, %s249
      %p261 = scmp.eq.s32.totalorder %s31, 1
      %p262 = por %p260, %p261
      %p264 = scmp.ne.s32.totalorder %s249, %s263
      %p265 = scmp.eq.s32.totalorder %s31, 0
      %p266 = por %p264, %p265
      %s268 = sadd.s32 %s267, 1
      %p271 = scmp.eq.s32.totalorder %s25, 1
      %p272 = scmp.ne.s32.totalorder %s267, %s269
      %p273 = scmp.eq.s32.totalorder %s25, 0
      %p274 = por %p272, %p273
      %p275 = scmp.ne.s32.totalorder %s267, %s269
      %p276 = scmp.eq.s32.totalorder %s30, 1
      %p277 = por %p275, %p276
      %p278 = scmp.ne.s32.totalorder %s269, %s270
      %p279 = scmp.eq.s32.totalorder %s30, 0
      %p280 = por %p278, %p279
      %p281 = scmp.ne.s32.totalorder %s269, %s270
      %p282 = scmp.eq.s32.totalorder %s31, 1
      %p283 = por %p281, %p282
      %p285 = scmp.ne.s32.totalorder %s270, %s284
      %p286 = scmp.eq.s32.totalorder %s31, 0
      %p287 = por %p285, %p286
      %s289 = sadd.s32 %s288, 1
      %p292 = scmp.eq.s32.totalorder %s25, 1
      %p293 = scmp.ne.s32.totalorder %s288, %s290
      %p294 = scmp.eq.s32.totalorder %s25, 0
      %p295 = por %p293, %p294
      %p296 = scmp.ne.s32.totalorder %s288, %s290
      %p297 = scmp.eq.s32.totalorder %s30, 1
      %p298 = por %p296, %p297
      %p299 = scmp.ne.s32.totalorder %s290, %s291
      %p300 = scmp.eq.s32.totalorder %s30, 0
      %p301 = por %p299, %p300
      %p302 = scmp.ne.s32.totalorder %s290, %s291
      %p303 = scmp.eq.s32.totalorder %s31, 1
      %p304 = por %p302, %p303
      %p306 = scmp.ne.s32.totalorder %s291, %s305
      %p307 = scmp.eq.s32.totalorder %s31, 0
      %p308 = por %p306, %p307
      %s310 = sadd.s32 %s309, 1
      %p313 = scmp.eq.s32.totalorder %s25, 1
      %p314 = scmp.ne.s32.totalorder %s309, %s311
      %p315 = scmp.eq.s32.totalorder %s25, 0
      %p316 = por %p314, %p315
      %p317 = scmp.ne.s32.totalorder %s309, %s311
      %p318 = scmp.eq.s32.totalorder %s30, 1
      %p319 = por %p317, %p318
      %p320 = scmp.ne.s32.totalorder %s311, %s312
      %p321 = scmp.eq.s32.totalorder %s30, 0
      %p322 = por %p320, %p321
      %p323 = scmp.ne.s32.totalorder %s311, %s312
      %p324 = scmp.eq.s32.totalorder %s31, 1
      %p325 = por %p323, %p324
      %p327 = scmp.ne.s32.totalorder %s312, %s326
      %p328 = scmp.eq.s32.totalorder %s31, 0
      %p329 = por %p327, %p328
      %s331 = sadd.s32 %s330, 1
      %p334 = scmp.eq.s32.totalorder %s25, 1
      %p335 = scmp.ne.s32.totalorder %s330, %s332
      %p336 = scmp.eq.s32.totalorder %s25, 0
      %p337 = por %p335, %p336
      %p338 = scmp.ne.s32.totalorder %s330, %s332
      %p339 = scmp.eq.s32.totalorder %s30, 1
      %p340 = por %p338, %p339
      %p341 = scmp.ne.s32.totalorder %s332, %s333
      %p342 = scmp.eq.s32.totalorder %s30, 0
      %p343 = por %p341, %p342
      %p344 = scmp.ne.s32.totalorder %s332, %s333
      %p345 = scmp.eq.s32.totalorder %s31, 1
      %p346 = por %p344, %p345
      %p348 = scmp.ne.s32.totalorder %s333, %s347
      %p349 = scmp.eq.s32.totalorder %s31, 0
      %p350 = por %p348, %p349
      %s351 = ssub.s32 %s33, %s40
      %s352 = ssub.s32 %s32, %s44
      %s353 = sor.u32 %s351, %s352
      %p354 = scmp.eq.s32.totalorder %s353, 0
      %s356 = sadd.s32 %s355, 1
      %s357 = scalar_select %p354, %s355, %s356
      %p360 = pneg %p354
      %p361 = scmp.eq.s32.totalorder %s25, 1
      %p362 = por %p360, %p361
      %p363 = scmp.ne.s32.totalorder %s355, %s358
      %p364 = scmp.eq.s32.totalorder %s25, 0
      %p365 = por %p363, %p364
      %p366 = scmp.ne.s32.totalorder %s355, %s358
      %p367 = scmp.eq.s32.totalorder %s30, 1
      %p368 = por %p366, %p367
      %p369 = scmp.ne.s32.totalorder %s358, %s359
      %p370 = scmp.eq.s32.totalorder %s30, 0
      %p371 = por %p369, %p370
      %p372 = scmp.ne.s32.totalorder %s358, %s359
      %p373 = scmp.eq.s32.totalorder %s31, 1
      %p374 = por %p372, %p373
      %p376 = scmp.ne.s32.totalorder %s359, %s375
      %p377 = scmp.eq.s32.totalorder %s31, 0
      %p378 = por %p376, %p377
      %s379 = ssub.s32 %s32, %s44
      %p380 = scmp.eq.s32.totalorder %s379, 0
      %s382 = sadd.s32 %s381, 1
      %s383 = scalar_select %p380, %s381, %s382
      %p386 = pneg %p380
      %p387 = scmp.eq.s32.totalorder %s25, 1
      %p388 = por %p386, %p387
      %p389 = scmp.ne.s32.totalorder %s381, %s384
      %p390 = scmp.eq.s32.totalorder %s25, 0
      %p391 = por %p389, %p390
      %p392 = scmp.ne.s32.totalorder %s381, %s384
      %p393 = scmp.eq.s32.totalorder %s30, 1
      %p394 = por %p392, %p393
      %p395 = scmp.ne.s32.totalorder %s384, %s385
      %p396 = scmp.eq.s32.totalorder %s30, 0
      %p397 = por %p395, %p396
      %p398 = scmp.ne.s32.totalorder %s384, %s385
      %p399 = scmp.eq.s32.totalorder %s31, 1
      %p400 = por %p398, %p399
      %p402 = scmp.ne.s32.totalorder %s385, %s401
      %p403 = scmp.eq.s32.totalorder %s31, 0
      %p404 = por %p402, %p403
      %p405 = scmp.le.s32.totalorder 1, %s25
      %p406 = scmp.lt.s32.totalorder %s25, 3
      %p407 = pnand %p405, %p406
      %p408 = pneg %p407
      // Predicated region
      $region9: #{tpu_custom_call.1} parent=5 // pred_check
        _
      $region10: #{tpu_custom_call.1} parent=5 // pred_check_branch
        %410 = sbr.rel (%p407) target = $region12
      $region11: #{tpu_custom_call.1} parent=5 // pred_region
        %s411 = ssub.s32 %s25, 1
        // Predicated region
        $region13: #{tpu_custom_call.1} parent=11 // pred_check
          %p412 = pneg %p112
        $region14: #{tpu_custom_call.1} parent=11 // pred_check_branch
          %414 = sbr.rel (%p412) target = $region16
        $region15: #{tpu_custom_call.1} parent=11 // pred_region
          _
        $region16: #{tpu_custom_call.1} parent=11 // pred_fallthru
          _
        // Predicated region
        $region17: #{tpu_custom_call.1} parent=11 // pred_check
          %p415 = pneg %p133
        $region18: #{tpu_custom_call.1} parent=11 // pred_check_branch
          %417 = sbr.rel (%p415) target = $region20
        $region19: #{tpu_custom_call.1} parent=11 // pred_region
          _
        $region20: #{tpu_custom_call.1} parent=11 // pred_fallthru
          _
        // Predicated region
        $region21: #{tpu_custom_call.1} parent=11 // pred_check
          %p418 = pneg %p154
        $region22: #{tpu_custom_call.1} parent=11 // pred_check_branch
          %420 = sbr.rel (%p418) target = $region24
        $region23: #{tpu_custom_call.1} parent=11 // pred_region
          _
        $region24: #{tpu_custom_call.1} parent=11 // pred_fallthru
          _
        // Predicated region
        $region25: #{tpu_custom_call.1} parent=11 // pred_check
          %p421 = pneg %p175
        $region26: #{tpu_custom_call.1} parent=11 // pred_check_branch
          %423 = sbr.rel (%p421) target = $region28
        $region27: #{tpu_custom_call.1} parent=11 // pred_region
          _
        $region28: #{tpu_custom_call.1} parent=11 // pred_fallthru
          _
        // Predicated region
        $region29: #{tpu_custom_call.1} parent=11 // pred_check
          %p424 = pneg %p196
        $region30: #{tpu_custom_call.1} parent=11 // pred_check_branch
          %426 = sbr.rel (%p424) target = $region32
        $region31: #{tpu_custom_call.1} parent=11 // pred_region
          _
        $region32: #{tpu_custom_call.1} parent=11 // pred_fallthru
          _
        // Predicated region
        $region33: #{tpu_custom_call.1} parent=11 // pred_check
          %p427 = pneg %p217
        $region34: #{tpu_custom_call.1} parent=11 // pred_check_branch
          %429 = sbr.rel (%p427) target = $region36
        $region35: #{tpu_custom_call.1} parent=11 // pred_region
          _
        $region36: #{tpu_custom_call.1} parent=11 // pred_fallthru
          _
        // Predicated region
        $region37: #{tpu_custom_call.1} parent=11 // pred_check
          %p430 = pneg %p238
        $region38: #{tpu_custom_call.1} parent=11 // pred_check_branch
          %432 = sbr.rel (%p430) target = $region40
        $region39: #{tpu_custom_call.1} parent=11 // pred_region
          _
        $region40: #{tpu_custom_call.1} parent=11 // pred_fallthru
          _
        // Predicated region
        $region41: #{tpu_custom_call.1} parent=11 // pred_check
          %p433 = pneg %p259
        $region42: #{tpu_custom_call.1} parent=11 // pred_check_branch
          %435 = sbr.rel (%p433) target = $region44
        $region43: #{tpu_custom_call.1} parent=11 // pred_region
          _
        $region44: #{tpu_custom_call.1} parent=11 // pred_fallthru
          _
        // Predicated region
        $region45: #{tpu_custom_call.1} parent=11 // pred_check
          %p436 = pneg %p280
        $region46: #{tpu_custom_call.1} parent=11 // pred_check_branch
          %438 = sbr.rel (%p436) target = $region48
        $region47: #{tpu_custom_call.1} parent=11 // pred_region
          _
        $region48: #{tpu_custom_call.1} parent=11 // pred_fallthru
          _
        // Predicated region
        $region49: #{tpu_custom_call.1} parent=11 // pred_check
          %p439 = pneg %p301
        $region50: #{tpu_custom_call.1} parent=11 // pred_check_branch
          %441 = sbr.rel (%p439) target = $region52
        $region51: #{tpu_custom_call.1} parent=11 // pred_region
          _
        $region52: #{tpu_custom_call.1} parent=11 // pred_fallthru
          _
        // Predicated region
        $region53: #{tpu_custom_call.1} parent=11 // pred_check
          %p442 = pneg %p322
        $region54: #{tpu_custom_call.1} parent=11 // pred_check_branch
          %444 = sbr.rel (%p442) target = $region56
        $region55: #{tpu_custom_call.1} parent=11 // pred_region
          _
        $region56: #{tpu_custom_call.1} parent=11 // pred_fallthru
          _
        // Predicated region
        $region57: #{tpu_custom_call.1} parent=11 // pred_check
          %p445 = pneg %p343
        $region58: #{tpu_custom_call.1} parent=11 // pred_check_branch
          %447 = sbr.rel (%p445) target = $region60
        $region59: #{tpu_custom_call.1} parent=11 // pred_region
          _
        $region60: #{tpu_custom_call.1} parent=11 // pred_fallthru
          _
      $region12: #{tpu_custom_call.1} parent=5 // pred_fallthru
        _
      %p448 = scmp.lt.s32.totalorder %s25, 2
      // Predicated region
      $region61: #{tpu_custom_call.1} parent=5 // pred_check
        %p449 = pneg %p448
      $region62: #{tpu_custom_call.1} parent=5 // pred_check_branch
        %451 = sbr.rel (%p449) target = $region64
      $region63: #{tpu_custom_call.1} parent=5 // pred_region
        // Predicated region
        $region65: #{tpu_custom_call.1} parent=63 // pred_check
          %p452 = pneg %p59
        $region66: #{tpu_custom_call.1} parent=63 // pred_check_branch
          %454 = sbr.rel (%p452) target = $region68
        $region67: #{tpu_custom_call.1} parent=63 // pred_region
          %s455 = sand.u32 %s49, 1
          %s456 = sand.u32 %s49, 1
          %s457 = smul.addr %s456, 128
          %s458 = scalar_lea.vmem [#allocation5], %s457
          %s459 = smul.u32 8, %s33
          %s460 = smul.u32 2, %s32
          %s461 = smul.addr %s459, 4
          %s462 = sadd.s32 %s460, %s461
          %s463 = smul.addr %s462, 8
          %s464 = scalar_lea.vmem %s0, %s463
          // Predicated region
          $region69: #{tpu_custom_call.1} parent=67 // pred_check
            _
          $region70: #{tpu_custom_call.1} parent=67 // pred_check_branch
            %466 = sbr.rel (0) target = $region72
          $region71: #{tpu_custom_call.1} parent=67 // pred_region
            // Predicated region
            $region73: #{tpu_custom_call.1} parent=71 // pred_check
              _
            $region74: #{tpu_custom_call.1} parent=71 // pred_check_branch
              %468 = sbr.rel (0) target = $region76
            $region75: #{tpu_custom_call.1} parent=71 // pred_region
              // Predicated region
              $region88: #{tpu_custom_call.1} parent=75 // pred_check
                _
              $region89: #{tpu_custom_call.1} parent=75 // pred_check_branch
                %513 = sbr.rel (0) target = $region91
              $region90: #{tpu_custom_call.1} parent=75 // pred_region
                loop: start=0, step=1, limit=1
                $region92: #{tpu_custom_call.1} parent=90 // loop_pre_header
                  _
                $region93: #{tpu_custom_call.1} parent=90 // loop_header
                  %s515 = sphi 0, %s519
                  %p516 = scmp.ge.s32.totalorder %s515, 1
                  %s520 = sphi %s464, %s464
                  %s521 = sphi %s458, %s458
                $region94: #{tpu_custom_call.1} parent=90 // loop_header_branch
                  %518 = sbr.rel (%p516) target = $region98
                $region95: #{tpu_custom_call.1} parent=90 // loop_body
                  %v522 = vld [vmem:[%s520] sm:$0xff]
                  %523 = vst [vmem:[%s521] sm:$0xff] %v522
                  %v524 = vld [vmem:[%s520 + $0x8] sm:$0xff]
                  %525 = vst [vmem:[%s521 + $0x8] sm:$0xff] %v524
                  %v526 = vld [vmem:[%s520 + $0x20] sm:$0xff]
                  %527 = vst [vmem:[%s521 + $0x10] sm:$0xff] %v526
                  %v528 = vld [vmem:[%s520 + $0x28] sm:$0xff]
                  %529 = vst [vmem:[%s521 + $0x18] sm:$0xff] %v528
                  %v530 = vld [vmem:[%s520 + $0x40] sm:$0xff]
                  %531 = vst [vmem:[%s521 + $0x20] sm:$0xff] %v530
                  %v532 = vld [vmem:[%s520 + $0x48] sm:$0xff]
                  %533 = vst [vmem:[%s521 + $0x28] sm:$0xff] %v532
                  %v534 = vld [vmem:[%s520 + $0x60] sm:$0xff]
                  %535 = vst [vmem:[%s521 + $0x30] sm:$0xff] %v534
                  %v536 = vld [vmem:[%s520 + $0x68] sm:$0xff]
                  %537 = vst [vmem:[%s521 + $0x38] sm:$0xff] %v536
                  %v538 = vld [vmem:[%s520 + $0x80] sm:$0xff]
                  %539 = vst [vmem:[%s521 + $0x40] sm:$0xff] %v538
                  %v540 = vld [vmem:[%s520 + $0x88] sm:$0xff]
                  %541 = vst [vmem:[%s521 + $0x48] sm:$0xff] %v540
                  %v542 = vld [vmem:[%s520 + $0xa0] sm:$0xff]
                  %543 = vst [vmem:[%s521 + $0x50] sm:$0xff] %v542
                  %v544 = vld [vmem:[%s520 + $0xa8] sm:$0xff]
                  %545 = vst [vmem:[%s521 + $0x58] sm:$0xff] %v544
                  %v546 = vld [vmem:[%s520 + $0xc0] sm:$0xff]
                  %547 = vst [vmem:[%s521 + $0x60] sm:$0xff] %v546
                  %v548 = vld [vmem:[%s520 + $0xc8] sm:$0xff]
                  %549 = vst [vmem:[%s521 + $0x68] sm:$0xff] %v548
                  %v550 = vld [vmem:[%s520 + $0xe0] sm:$0xff]
                  %551 = vst [vmem:[%s521 + $0x70] sm:$0xff] %v550
                  %v552 = vld [vmem:[%s520 + $0xe8] sm:$0xff]
                  %553 = vst [vmem:[%s521 + $0x78] sm:$0xff] %v552
                $region96: #{tpu_custom_call.1} parent=90 // loop_footer
                  %s519 = sadd.s32 1, %s515
                $region97: #{tpu_custom_call.1} parent=90 // loop_footer_branch
                  %514 = sbr.rel target = $region93
                $region98: #{tpu_custom_call.1} parent=90 // loop_exit
                  _
              $region91: #{tpu_custom_call.1} parent=75 // pred_fallthru
                _
              // Predicated region
              $region99: #{tpu_custom_call.1} parent=75 // pred_check
                _
              $region100: #{tpu_custom_call.1} parent=75 // pred_check_branch
                %555 = sbr.rel target = $region102
              $region101: #{tpu_custom_call.1} parent=75 // pred_region
                _
              $region102: #{tpu_custom_call.1} parent=75 // pred_fallthru
                _
            $region76: #{tpu_custom_call.1} parent=71 // pred_fallthru
              _
            // Predicated region
            $region77: #{tpu_custom_call.1} parent=71 // pred_check
              _
            $region78: #{tpu_custom_call.1} parent=71 // pred_check_branch
              %470 = sbr.rel target = $region80
            $region79: #{tpu_custom_call.1} parent=71 // pred_region
              loop: start=0, step=1, limit=1
              $region81: #{tpu_custom_call.1} parent=79 // loop_pre_header
                _
              $region82: #{tpu_custom_call.1} parent=79 // loop_header
                %s473 = sphi 0, %s477
                %p474 = scmp.ge.s32.totalorder %s473, 1
                %s478 = sphi %s464, %s464
                %s479 = sphi %s458, %s458
              $region83: #{tpu_custom_call.1} parent=79 // loop_header_branch
                %476 = sbr.rel (%p474) target = $region87
              $region84: #{tpu_custom_call.1} parent=79 // loop_body
                %v480 = vld [vmem:[%s478] sm:$0xff]
                %481 = vst [vmem:[%s479] sm:$0xff] %v480
                %v482 = vld [vmem:[%s478 + $0x8] sm:$0xff]
                %483 = vst [vmem:[%s479 + $0x8] sm:$0xff] %v482
                %v484 = vld [vmem:[%s478 + $0x20] sm:$0xff]
                %485 = vst [vmem:[%s479 + $0x10] sm:$0xff] %v484
                %v486 = vld [vmem:[%s478 + $0x28] sm:$0xff]
                %487 = vst [vmem:[%s479 + $0x18] sm:$0xff] %v486
                %v488 = vld [vmem:[%s478 + $0x40] sm:$0xff]
                %489 = vst [vmem:[%s479 + $0x20] sm:$0xff] %v488
                %v490 = vld [vmem:[%s478 + $0x48] sm:$0xff]
                %491 = vst [vmem:[%s479 + $0x28] sm:$0xff] %v490
                %v492 = vld [vmem:[%s478 + $0x60] sm:$0xff]
                %493 = vst [vmem:[%s479 + $0x30] sm:$0xff] %v492
                %v494 = vld [vmem:[%s478 + $0x68] sm:$0xff]
                %495 = vst [vmem:[%s479 + $0x38] sm:$0xff] %v494
                %v496 = vld [vmem:[%s478 + $0x80] sm:$0xff]
                %497 = vst [vmem:[%s479 + $0x40] sm:$0xff] %v496
                %v498 = vld [vmem:[%s478 + $0x88] sm:$0xff]
                %499 = vst [vmem:[%s479 + $0x48] sm:$0xff] %v498
                %v500 = vld [vmem:[%s478 + $0xa0] sm:$0xff]
                %501 = vst [vmem:[%s479 + $0x50] sm:$0xff] %v500
                %v502 = vld [vmem:[%s478 + $0xa8] sm:$0xff]
                %503 = vst [vmem:[%s479 + $0x58] sm:$0xff] %v502
                %v504 = vld [vmem:[%s478 + $0xc0] sm:$0xff]
                %505 = vst [vmem:[%s479 + $0x60] sm:$0xff] %v504
                %v506 = vld [vmem:[%s478 + $0xc8] sm:$0xff]
                %507 = vst [vmem:[%s479 + $0x68] sm:$0xff] %v506
                %v508 = vld [vmem:[%s478 + $0xe0] sm:$0xff]
                %509 = vst [vmem:[%s479 + $0x70] sm:$0xff] %v508
                %v510 = vld [vmem:[%s478 + $0xe8] sm:$0xff]
                %511 = vst [vmem:[%s479 + $0x78] sm:$0xff] %v510
              $region85: #{tpu_custom_call.1} parent=79 // loop_footer
                %s477 = sadd.s32 1, %s473
              $region86: #{tpu_custom_call.1} parent=79 // loop_footer_branch
                %472 = sbr.rel target = $region82
              $region87: #{tpu_custom_call.1} parent=79 // loop_exit
                _
            $region80: #{tpu_custom_call.1} parent=71 // pred_fallthru
              _
          $region72: #{tpu_custom_call.1} parent=67 // pred_fallthru
            _
          %556 = vnop
        $region68: #{tpu_custom_call.1} parent=63 // pred_fallthru
          _
        // Predicated region
        $region103: #{tpu_custom_call.1} parent=63 // pred_check
          %p557 = pneg %p85
        $region104: #{tpu_custom_call.1} parent=63 // pred_check_branch
          %559 = sbr.rel (%p557) target = $region106
        $region105: #{tpu_custom_call.1} parent=63 // pred_region
          %s560 = sand.u32 %s75, 1
          %s561 = sand.u32 %s75, 1
          %s562 = smul.addr %s561, 32
          %s563 = scalar_lea.vmem [#allocation6], %s562
          %s564 = smul.u32 2, %s32
          %s565 = smul.addr %s564, 8
          %s566 = scalar_lea.vmem %s1, %s565
          // Predicated region
          $region107: #{tpu_custom_call.1} parent=105 // pred_check
            _
          $region108: #{tpu_custom_call.1} parent=105 // pred_check_branch
            %568 = sbr.rel (0) target = $region110
          $region109: #{tpu_custom_call.1} parent=105 // pred_region
            // Predicated region
            $region111: #{tpu_custom_call.1} parent=109 // pred_check
              _
            $region112: #{tpu_custom_call.1} parent=109 // pred_check_branch
              %570 = sbr.rel (0) target = $region114
            $region113: #{tpu_custom_call.1} parent=109 // pred_region
              // Predicated region
              $region126: #{tpu_custom_call.1} parent=113 // pred_check
                _
              $region127: #{tpu_custom_call.1} parent=113 // pred_check_branch
                %591 = sbr.rel (0) target = $region129
              $region128: #{tpu_custom_call.1} parent=113 // pred_region
                loop: start=0, step=1, limit=1
                $region130: #{tpu_custom_call.1} parent=128 // loop_pre_header
                  _
                $region131: #{tpu_custom_call.1} parent=128 // loop_header
                  %s593 = sphi 0, %s597
                  %p594 = scmp.ge.s32.totalorder %s593, 1
                  %s598 = sphi %s566, %s566
                  %s599 = sphi %s563, %s563
                $region132: #{tpu_custom_call.1} parent=128 // loop_header_branch
                  %596 = sbr.rel (%p594) target = $region136
                $region133: #{tpu_custom_call.1} parent=128 // loop_body
                  %v600 = vld [vmem:[%s598] sm:$0xff]
                  %601 = vst [vmem:[%s599] sm:$0xff] %v600
                  %v602 = vld [vmem:[%s598 + $0x8] sm:$0xff]
                  %603 = vst [vmem:[%s599 + $0x8] sm:$0xff] %v602
                  %v604 = vld [vmem:[%s598 + $0x20] sm:$0xff]
                  %605 = vst [vmem:[%s599 + $0x10] sm:$0xff] %v604
                  %v606 = vld [vmem:[%s598 + $0x28] sm:$0xff]
                  %607 = vst [vmem:[%s599 + $0x18] sm:$0xff] %v606
                $region134: #{tpu_custom_call.1} parent=128 // loop_footer
                  %s597 = sadd.s32 1, %s593
                $region135: #{tpu_custom_call.1} parent=128 // loop_footer_branch
                  %592 = sbr.rel target = $region131
                $region136: #{tpu_custom_call.1} parent=128 // loop_exit
                  _
              $region129: #{tpu_custom_call.1} parent=113 // pred_fallthru
                _
              // Predicated region
              $region137: #{tpu_custom_call.1} parent=113 // pred_check
                _
              $region138: #{tpu_custom_call.1} parent=113 // pred_check_branch
                %609 = sbr.rel target = $region140
              $region139: #{tpu_custom_call.1} parent=113 // pred_region
                _
              $region140: #{tpu_custom_call.1} parent=113 // pred_fallthru
                _
            $region114: #{tpu_custom_call.1} parent=109 // pred_fallthru
              _
            // Predicated region
            $region115: #{tpu_custom_call.1} parent=109 // pred_check
              _
            $region116: #{tpu_custom_call.1} parent=109 // pred_check_branch
              %572 = sbr.rel target = $region118
            $region117: #{tpu_custom_call.1} parent=109 // pred_region
              loop: start=0, step=1, limit=1
              $region119: #{tpu_custom_call.1} parent=117 // loop_pre_header
                _
              $region120: #{tpu_custom_call.1} parent=117 // loop_header
                %s575 = sphi 0, %s579
                %p576 = scmp.ge.s32.totalorder %s575, 1
                %s580 = sphi %s566, %s566
                %s581 = sphi %s563, %s563
              $region121: #{tpu_custom_call.1} parent=117 // loop_header_branch
                %578 = sbr.rel (%p576) target = $region125
              $region122: #{tpu_custom_call.1} parent=117 // loop_body
                %v582 = vld [vmem:[%s580] sm:$0xff]
                %583 = vst [vmem:[%s581] sm:$0xff] %v582
                %v584 = vld [vmem:[%s580 + $0x8] sm:$0xff]
                %585 = vst [vmem:[%s581 + $0x8] sm:$0xff] %v584
                %v586 = vld [vmem:[%s580 + $0x20] sm:$0xff]
                %587 = vst [vmem:[%s581 + $0x10] sm:$0xff] %v586
                %v588 = vld [vmem:[%s580 + $0x28] sm:$0xff]
                %589 = vst [vmem:[%s581 + $0x18] sm:$0xff] %v588
              $region123: #{tpu_custom_call.1} parent=117 // loop_footer
                %s579 = sadd.s32 1, %s575
              $region124: #{tpu_custom_call.1} parent=117 // loop_footer_branch
                %574 = sbr.rel target = $region120
              $region125: #{tpu_custom_call.1} parent=117 // loop_exit
                _
            $region118: #{tpu_custom_call.1} parent=109 // pred_fallthru
              _
          $region110: #{tpu_custom_call.1} parent=105 // pred_fallthru
            _
          %610 = vnop
        $region106: #{tpu_custom_call.1} parent=63 // pred_fallthru
          _
      $region64: #{tpu_custom_call.1} parent=5 // pred_fallthru
        _
      %p611 = scmp.le.s32.totalorder 1, %s25
      %p612 = scmp.lt.s32.totalorder %s25, 3
      %p613 = pnand %p611, %p612
      %p614 = pneg %p613
      // Predicated region
      $region141: #{tpu_custom_call.1} parent=5 // pred_check
        _
      $region142: #{tpu_custom_call.1} parent=5 // pred_check_branch
        %616 = sbr.rel (%p613) target = $region144
      $region143: #{tpu_custom_call.1} parent=5 // pred_region
        %s617 = ssub.s32 %s25, 1
        %s618 = sand.u32 %s52, 1
        %s619 = sand.u32 %s52, 1
        %s620 = smul.addr %s619, 128
        %s621 = scalar_lea.vmem [#allocation5], %s620
        // Predicated region
        $region145: #{tpu_custom_call.1} parent=143 // pred_check
          %p622 = pneg %p65
        $region146: #{tpu_custom_call.1} parent=143 // pred_check_branch
          %624 = sbr.rel (%p622) target = $region148
        $region147: #{tpu_custom_call.1} parent=143 // pred_region
          _
        $region148: #{tpu_custom_call.1} parent=143 // pred_fallthru
          _
        %s625 = sand.u32 %s78, 1
        %s626 = sand.u32 %s78, 1
        %s627 = smul.addr %s626, 32
        %s628 = scalar_lea.vmem [#allocation6], %s627
        // Predicated region
        $region149: #{tpu_custom_call.1} parent=143 // pred_check
          %p629 = pneg %p91
        $region150: #{tpu_custom_call.1} parent=143 // pred_check_branch
          %631 = sbr.rel (%p629) target = $region152
        $region151: #{tpu_custom_call.1} parent=143 // pred_region
          _
        $region152: #{tpu_custom_call.1} parent=143 // pred_fallthru
          _
        %s632 = sand.u32 %s52, 1
        %s633 = sand.u32 %s52, 1
        %s634 = smul.addr %s633, 128
        %s635 = scalar_lea.vmem [#allocation5], %s634
        %p636 = pneg %p65
        %p637 = pneg %p62
        %s638 = sand.u32 %s78, 1
        %s639 = sand.u32 %s78, 1
        %s640 = smul.addr %s639, 32
        %s641 = scalar_lea.vmem [#allocation6], %s640
        %p642 = pneg %p91
        %p643 = pneg %p88
        %p644 = pneg %p112
        %p645 = pneg %p109
        %p646 = pneg %p133
        %p647 = pneg %p130
        %p648 = pneg %p154
        %p649 = pneg %p151
        %p650 = pneg %p175
        %p651 = pneg %p172
        %p652 = pneg %p196
        %p653 = pneg %p193
        %p654 = pneg %p217
        %p655 = pneg %p214
        %p656 = pneg %p238
        %p657 = pneg %p235
        %p658 = pneg %p259
        %p659 = pneg %p256
        %p660 = pneg %p280
        %p661 = pneg %p277
        %p662 = pneg %p301
        %p663 = pneg %p298
        %p664 = pneg %p322
        %p665 = pneg %p319
        %p666 = pneg %p343
        %p667 = pneg %p340
        %p668 = pneg %p371
        %p669 = pneg %p368
        %s670 = sand.u32 %s358, 1
        %s671 = sand.u32 %s358, 1
        %s672 = smul.addr %s671, 128
        %s673 = scalar_lea.vmem [#allocation7], %s672
        %p674 = pneg %p397
        %p675 = pneg %p394
        %s676 = sand.u32 %s384, 1
        %s677 = scalar_lea.sflag [#allocation9], %s676
        %s678 = sand.u32 %s384, 1
        %s679 = smul.addr %s678, 32
        %s680 = scalar_lea.vmem [#allocation8], %s679
        %s681 = smul.u32 8, %s35
        %s682 = smul.u32 2, %s34
        %s683 = smul.u32 2, %s34
        %s684 = smul.u32 8, %s35
        %s685 = smul.u32 2, %s34
        %s686 = smul.u32 2, %s34
        %p687 = scmp.eq.s32.totalorder %s35, 0
        // Predicated region
        $region153: #{tpu_custom_call.1} parent=143 // pred_check
          %p688 = pneg %p687
        $region154: #{tpu_custom_call.1} parent=143 // pred_check_branch
          %690 = sbr.rel (%p688) target = $region156
        $region155: #{tpu_custom_call.1} parent=143 // pred_region
          %v691 = vld [vmem:[%s628] sm:$0xff]
          %v692 = vld [vmem:[%s628 + $0x8] sm:$0xff]
          %v693 = vld [vmem:[%s628 + $0x10] sm:$0xff]
          %v694 = vld [vmem:[%s628 + $0x18] sm:$0xff]
          %vm695 = vcmask 261120
          %696 = vst.msk [vmem:[#allocation2] sm:$0xff] %vm695, %v691
          %697 = vst.msk [vmem:[#allocation2 + $0x8] sm:$0xff] %vm695, %v692
          %698 = vst.msk [vmem:[#allocation2 + $0x10] sm:$0xff] %vm695, %v693
          %699 = vst.msk [vmem:[#allocation2 + $0x18] sm:$0xff] %vm695, %v694
        $region156: #{tpu_custom_call.1} parent=143 // pred_fallthru
          _
        %v700 = vld [vmem:[%s621] sm:$0xff]
        %v701 = vld [vmem:[%s621 + $0x8] sm:$0xff]
        %v702 = vld [vmem:[%s621 + $0x10] sm:$0xff]
        %v703 = vld [vmem:[%s621 + $0x18] sm:$0xff]
        %v704 = vld [vmem:[%s621 + $0x20] sm:$0xff]
        %v705 = vld [vmem:[%s621 + $0x28] sm:$0xff]
        %v706 = vld [vmem:[%s621 + $0x30] sm:$0xff]
        %v707 = vld [vmem:[%s621 + $0x38] sm:$0xff]
        %v708 = vld [vmem:[%s621 + $0x40] sm:$0xff]
        %v709 = vld [vmem:[%s621 + $0x48] sm:$0xff]
        %v710 = vld [vmem:[%s621 + $0x50] sm:$0xff]
        %v711 = vld [vmem:[%s621 + $0x58] sm:$0xff]
        %v712 = vld [vmem:[%s621 + $0x60] sm:$0xff]
        %v713 = vld [vmem:[%s621 + $0x68] sm:$0xff]
        %v714 = vld [vmem:[%s621 + $0x70] sm:$0xff]
        %v715 = vld [vmem:[%s621 + $0x78] sm:$0xff]
        %vm716 = vcmask 130048
        %v717 = vsel %vm716, %v700, 0.0
        %718 = vadd.xlane.f32.xlu0 %v717
        %v719 = vpop.xlane.xlu0 %718
        %v720 = vsel %vm716, %v701, 0.0
        %721 = vadd.xlane.f32.xlu0 %v720
        %v722 = vpop.xlane.xlu0 %721
        %v723 = vsel %vm716, %v702, 0.0
        %724 = vadd.xlane.f32.xlu0 %v723
        %v725 = vpop.xlane.xlu0 %724
        %v726 = vsel %vm716, %v703, 0.0
        %727 = vadd.xlane.f32.xlu0 %v726
        %v728 = vpop.xlane.xlu0 %727
        %v729 = vsel %vm716, %v704, 0.0
        %730 = vadd.xlane.f32.xlu0 %v729
        %v731 = vpop.xlane.xlu0 %730
        %v732 = vsel %vm716, %v705, 0.0
        %733 = vadd.xlane.f32.xlu0 %v732
        %v734 = vpop.xlane.xlu0 %733
        %v735 = vsel %vm716, %v706, 0.0
        %736 = vadd.xlane.f32.xlu0 %v735
        %v737 = vpop.xlane.xlu0 %736
        %v738 = vsel %vm716, %v707, 0.0
        %739 = vadd.xlane.f32.xlu0 %v738
        %v740 = vpop.xlane.xlu0 %739
        %v741 = vsel %vm716, %v708, 0.0
        %742 = vadd.xlane.f32.xlu0 %v741
        %v743 = vpop.xlane.xlu0 %742
        %v744 = vsel %vm716, %v709, 0.0
        %745 = vadd.xlane.f32.xlu0 %v744
        %v746 = vpop.xlane.xlu0 %745
        %v747 = vsel %vm716, %v710, 0.0
        %748 = vadd.xlane.f32.xlu0 %v747
        %v749 = vpop.xlane.xlu0 %748
        %v750 = vsel %vm716, %v711, 0.0
        %751 = vadd.xlane.f32.xlu0 %v750
        %v752 = vpop.xlane.xlu0 %751
        %v753 = vsel %vm716, %v712, 0.0
        %754 = vadd.xlane.f32.xlu0 %v753
        %v755 = vpop.xlane.xlu0 %754
        %v756 = vsel %vm716, %v713, 0.0
        %757 = vadd.xlane.f32.xlu0 %v756
        %v758 = vpop.xlane.xlu0 %757
        %v759 = vsel %vm716, %v714, 0.0
        %760 = vadd.xlane.f32.xlu0 %v759
        %v761 = vpop.xlane.xlu0 %760
        %v762 = vsel %vm716, %v715, 0.0
        %763 = vadd.xlane.f32.xlu0 %v762
        %v764 = vpop.xlane.xlu0 %763
        %v765 = vrcp.pop 16.0
        %v766 = vmul.f32 %v719, %v765
        %v767 = vmul.f32 %v722, %v765
        %v768 = vmul.f32 %v725, %v765
        %v769 = vmul.f32 %v728, %v765
        %v770 = vmul.f32 %v731, %v765
        %v771 = vmul.f32 %v734, %v765
        %v772 = vmul.f32 %v737, %v765
        %v773 = vmul.f32 %v740, %v765
        %v774 = vmul.f32 %v743, %v765
        %v775 = vmul.f32 %v746, %v765
        %v776 = vmul.f32 %v749, %v765
        %v777 = vmul.f32 %v752, %v765
        %v778 = vmul.f32 %v755, %v765
        %v779 = vmul.f32 %v758, %v765
        %v780 = vmul.f32 %v761, %v765
        %v781 = vmul.f32 %v764, %v765
        %v782 = vsub.f32 %v700, %v766
        %v783 = vsub.f32 %v701, %v767
        %v784 = vsub.f32 %v702, %v768
        %v785 = vsub.f32 %v703, %v769
        %v786 = vsub.f32 %v704, %v770
        %v787 = vsub.f32 %v705, %v771
        %v788 = vsub.f32 %v706, %v772
        %v789 = vsub.f32 %v707, %v773
        %v790 = vsub.f32 %v708, %v774
        %v791 = vsub.f32 %v709, %v775
        %v792 = vsub.f32 %v710, %v776
        %v793 = vsub.f32 %v711, %v777
        %v794 = vsub.f32 %v712, %v778
        %v795 = vsub.f32 %v713, %v779
        %v796 = vsub.f32 %v714, %v780
        %v797 = vsub.f32 %v715, %v781
        %v798 = vmul.f32 %v782, %v782
        %v799 = vmul.f32 %v783, %v783
        %v800 = vmul.f32 %v784, %v784
        %v801 = vmul.f32 %v785, %v785
        %v802 = vmul.f32 %v786, %v786
        %v803 = vmul.f32 %v787, %v787
        %v804 = vmul.f32 %v788, %v788
        %v805 = vmul.f32 %v789, %v789
        %v806 = vmul.f32 %v790, %v790
        %v807 = vmul.f32 %v791, %v791
        %v808 = vmul.f32 %v792, %v792
        %v809 = vmul.f32 %v793, %v793
        %v810 = vmul.f32 %v794, %v794
        %v811 = vmul.f32 %v795, %v795
        %v812 = vmul.f32 %v796, %v796
        %v813 = vmul.f32 %v797, %v797
        %v814 = vsel %vm716, %v798, 0.0
        %815 = vadd.xlane.f32.xlu0 %v814
        %v816 = vpop.xlane.xlu0 %815
        %v817 = vsel %vm716, %v799, 0.0
        %818 = vadd.xlane.f32.xlu0 %v817
        %v819 = vpop.xlane.xlu0 %818
        %v820 = vsel %vm716, %v800, 0.0
        %821 = vadd.xlane.f32.xlu0 %v820
        %v822 = vpop.xlane.xlu0 %821
        %v823 = vsel %vm716, %v801, 0.0
        %824 = vadd.xlane.f32.xlu0 %v823
        %v825 = vpop.xlane.xlu0 %824
        %v826 = vsel %vm716, %v802, 0.0
        %827 = vadd.xlane.f32.xlu0 %v826
        %v828 = vpop.xlane.xlu0 %827
        %v829 = vsel %vm716, %v803, 0.0
        %830 = vadd.xlane.f32.xlu0 %v829
        %v831 = vpop.xlane.xlu0 %830
        %v832 = vsel %vm716, %v804, 0.0
        %833 = vadd.xlane.f32.xlu0 %v832
        %v834 = vpop.xlane.xlu0 %833
        %v835 = vsel %vm716, %v805, 0.0
        %836 = vadd.xlane.f32.xlu0 %v835
        %v837 = vpop.xlane.xlu0 %836
        %v838 = vsel %vm716, %v806, 0.0
        %839 = vadd.xlane.f32.xlu0 %v838
        %v840 = vpop.xlane.xlu0 %839
        %v841 = vsel %vm716, %v807, 0.0
        %842 = vadd.xlane.f32.xlu0 %v841
        %v843 = vpop.xlane.xlu0 %842
        %v844 = vsel %vm716, %v808, 0.0
        %845 = vadd.xlane.f32.xlu0 %v844
        %v846 = vpop.xlane.xlu0 %845
        %v847 = vsel %vm716, %v809, 0.0
        %848 = vadd.xlane.f32.xlu0 %v847
        %v849 = vpop.xlane.xlu0 %848
        %v850 = vsel %vm716, %v810, 0.0
        %851 = vadd.xlane.f32.xlu0 %v850
        %v852 = vpop.xlane.xlu0 %851
        %v853 = vsel %vm716, %v811, 0.0
        %854 = vadd.xlane.f32.xlu0 %v853
        %v855 = vpop.xlane.xlu0 %854
        %v856 = vsel %vm716, %v812, 0.0
        %857 = vadd.xlane.f32.xlu0 %v856
        %v858 = vpop.xlane.xlu0 %857
        %v859 = vsel %vm716, %v813, 0.0
        %860 = vadd.xlane.f32.xlu0 %v859
        %v861 = vpop.xlane.xlu0 %860
        %v862 = vmul.f32 %v816, %v765
        %v863 = vmul.f32 %v819, %v765
        %v864 = vmul.f32 %v822, %v765
        %v865 = vmul.f32 %v825, %v765
        %v866 = vmul.f32 %v828, %v765
        %v867 = vmul.f32 %v831, %v765
        %v868 = vmul.f32 %v834, %v765
        %v869 = vmul.f32 %v837, %v765
        %v870 = vmul.f32 %v840, %v765
        %v871 = vmul.f32 %v843, %v765
        %v872 = vmul.f32 %v846, %v765
        %v873 = vmul.f32 %v849, %v765
        %v874 = vmul.f32 %v852, %v765
        %v875 = vmul.f32 %v855, %v765
        %v876 = vmul.f32 %v858, %v765
        %v877 = vmul.f32 %v861, %v765
        %v878 = vadd.f32 %v862, 1e-05
        %v879 = vadd.f32 %v863, 1e-05
        %v880 = vadd.f32 %v864, 1e-05
        %v881 = vadd.f32 %v865, 1e-05
        %v882 = vadd.f32 %v866, 1e-05
        %v883 = vadd.f32 %v867, 1e-05
        %v884 = vadd.f32 %v868, 1e-05
        %v885 = vadd.f32 %v869, 1e-05
        %v886 = vadd.f32 %v870, 1e-05
        %v887 = vadd.f32 %v871, 1e-05
        %v888 = vadd.f32 %v872, 1e-05
        %v889 = vadd.f32 %v873, 1e-05
        %v890 = vadd.f32 %v874, 1e-05
        %v891 = vadd.f32 %v875, 1e-05
        %v892 = vadd.f32 %v876, 1e-05
        %v893 = vadd.f32 %v877, 1e-05
        %v894 = vrsqrt.pop %v878
        %v895 = vrsqrt.pop %v879
        %v896 = vrsqrt.pop %v880
        %v897 = vrsqrt.pop %v881
        %v898 = vrsqrt.pop %v882
        %v899 = vrsqrt.pop %v883
        %v900 = vrsqrt.pop %v884
        %v901 = vrsqrt.pop %v885
        %v902 = vrsqrt.pop %v886
        %v903 = vrsqrt.pop %v887
        %v904 = vrsqrt.pop %v888
        %v905 = vrsqrt.pop %v889
        %v906 = vrsqrt.pop %v890
        %v907 = vrsqrt.pop %v891
        %v908 = vrsqrt.pop %v892
        %v909 = vrsqrt.pop %v893
        %v910 = vmul.f32 %v782, %v894
        %v911 = vmul.f32 %v783, %v895
        %v912 = vmul.f32 %v784, %v896
        %v913 = vmul.f32 %v785, %v897
        %v914 = vmul.f32 %v786, %v898
        %v915 = vmul.f32 %v787, %v899
        %v916 = vmul.f32 %v788, %v900
        %v917 = vmul.f32 %v789, %v901
        %v918 = vmul.f32 %v790, %v902
        %v919 = vmul.f32 %v791, %v903
        %v920 = vmul.f32 %v792, %v904
        %v921 = vmul.f32 %v793, %v905
        %v922 = vmul.f32 %v794, %v906
        %v923 = vmul.f32 %v795, %v907
        %v924 = vmul.f32 %v796, %v908
        %v925 = vmul.f32 %v797, %v909
        %v926 = vld [vmem:[%s3] sm:$0x1]
        %v928 = vlaneseq
        %v929 = vshrl.u32 %v928, 7
        %v930 = vsub.s32 0, %v929
        %v931 = vrot.slane %v926, %v930
        %v933 = vmul.f32 %v910, %v931
        %v934 = vmul.f32 %v911, %v931
        %v935 = vmul.f32 %v912, %v931
        %v936 = vmul.f32 %v913, %v931
        %v937 = vmul.f32 %v914, %v931
        %v938 = vmul.f32 %v915, %v931
        %v939 = vmul.f32 %v916, %v931
        %v940 = vmul.f32 %v917, %v931
        %v941 = vmul.f32 %v918, %v931
        %v942 = vmul.f32 %v919, %v931
        %v943 = vmul.f32 %v920, %v931
        %v944 = vmul.f32 %v921, %v931
        %v945 = vmul.f32 %v922, %v931
        %v946 = vmul.f32 %v923, %v931
        %v947 = vmul.f32 %v924, %v931
        %v948 = vmul.f32 %v925, %v931
        %v949 = vld [vmem:[%s4] sm:$0x1]
        %v951 = vlaneseq
        %v952 = vshrl.u32 %v951, 7
        %v953 = vsub.s32 0, %v952
        %v954 = vrot.slane %v949, %v953
        %v956 = vadd.f32 %v933, %v954
        %v957 = vadd.f32 %v934, %v954
        %v958 = vadd.f32 %v935, %v954
        %v959 = vadd.f32 %v936, %v954
        %v960 = vadd.f32 %v937, %v954
        %v961 = vadd.f32 %v938, %v954
        %v962 = vadd.f32 %v939, %v954
        %v963 = vadd.f32 %v940, %v954
        %v964 = vadd.f32 %v941, %v954
        %v965 = vadd.f32 %v942, %v954
        %v966 = vadd.f32 %v943, %v954
        %v967 = vadd.f32 %v944, %v954
        %v968 = vadd.f32 %v945, %v954
        %v969 = vadd.f32 %v946, %v954
        %v970 = vadd.f32 %v947, %v954
        %v971 = vadd.f32 %v948, %v954
        %v972 = vld [vmem:[%s6] sm:$0xff]
        %v973 = vld [vmem:[%s6 + $0x8] sm:$0xff]
        %v975 = vsel %vm716, %v956, 0
        %v978 = vsel %vm716, %v957, 0
        %v981 = vsel %vm716, %v958, 0
        %v984 = vsel %vm716, %v959, 0
        %v987 = vsel %vm716, %v960, 0
        %v990 = vsel %vm716, %v961, 0
        %v993 = vsel %vm716, %v962, 0
        %v996 = vsel %vm716, %v963, 0
        %v999 = vsel %vm716, %v964, 0
        %v1002 = vsel %vm716, %v965, 0
        %v1005 = vsel %vm716, %v966, 0
        %v1008 = vsel %vm716, %v967, 0
        %v1011 = vsel %vm716, %v968, 0
        %v1014 = vsel %vm716, %v969, 0
        %v1017 = vsel %vm716, %v970, 0
        %v1020 = vsel %vm716, %v971, 0
        %1022 = vmatprep.subr.mxu0 0.0
        %1023 = vmatpush1.msra.mxu0 %v972
        %1024 = vmatprep.subr.mxu0 0.0
        %1025 = vmatpush1.msra.mxu0 %v973
        %1026 = vmatprep.subr.mxu0 0.0
        %1027 = vmatpush1.msra.mxu0 0.0
        %1028 = vmatprep.subr.mxu0 0.0
        %1029 = vmatpush1.msra.mxu0 0.0
        %1030 = vmatprep.subr.mxu0 0.0
        %1031 = vmatpush1.msra.mxu0 0.0
        %1032 = vmatprep.subr.mxu0 0.0
        %1033 = vmatpush1.msra.mxu0 0.0
        %1034 = vmatprep.subr.mxu0 0.0
        %1035 = vmatpush1.msra.mxu0 0.0
        %1036 = vmatprep.subr.mxu0 0.0
        %1037 = vmatpush1.msra.mxu0 0.0
        %1038 = vmatprep.subr.mxu0 0.0
        %1039 = vmatpush1.msra.mxu0 0.0
        %1040 = vmatprep.subr.mxu0 0.0
        %1041 = vmatpush1.msra.mxu0 0.0
        %1042 = vmatprep.subr.mxu0 0.0
        %1043 = vmatpush1.msra.mxu0 0.0
        %1044 = vmatprep.subr.mxu0 0.0
        %1045 = vmatpush1.msra.mxu0 0.0
        %1046 = vmatprep.subr.mxu0 0.0
        %1047 = vmatpush1.msra.mxu0 0.0
        %1048 = vmatprep.subr.mxu0 0.0
        %1049 = vmatpush1.msra.mxu0 0.0
        %1050 = vmatprep.subr.mxu0 0.0
        %1051 = vmatpush1.msra.mxu0 0.0
        %1052 = vmatprep.subr.mxu0 0.0
        %1053 = vmatpush1.msra.mxu0 0.0
        %1054 = vmatprep.subr.mxu0 0.0
        %1055 = vmatpush1.msra.mxu0 0.0
        %1056 = vmatprep.subr.mxu0 0.0
        %1057 = vmatpush1.msra.mxu0 0.0
        %1058 = vmatprep.subr.mxu0 0.0
        %1059 = vmatpush1.msra.mxu0 0.0
        %1060 = vmatprep.subr.mxu0 0.0
        %1061 = vmatpush1.msra.mxu0 0.0
        %1062 = vmatprep.subr.mxu0 0.0
        %1063 = vmatpush1.msra.mxu0 0.0
        %1064 = vmatprep.subr.mxu0 0.0
        %1065 = vmatpush1.msra.mxu0 0.0
        %1066 = vmatprep.subr.mxu0 0.0
        %1067 = vmatpush1.msra.mxu0 0.0
        %1068 = vmatprep.subr.mxu0 0.0
        %1069 = vmatpush1.msra.mxu0 0.0
        %1070 = vmatprep.subr.mxu0 0.0
        %1071 = vmatpush1.msra.mxu0 0.0
        %1072 = vmatprep.subr.mxu0 0.0
        %1073 = vmatpush1.msra.mxu0 0.0
        %1074 = vmatprep.subr.mxu0 0.0
        %1075 = vmatpush1.msra.mxu0 0.0
        %1076 = vmatprep.subr.mxu0 0.0
        %1077 = vmatpush1.msra.mxu0 0.0
        %1078 = vmatprep.subr.mxu0 0.0
        %1079 = vmatpush1.msra.mxu0 0.0
        %1080 = vmatprep.subr.mxu0 0.0
        %1081 = vmatpush1.msra.mxu0 0.0
        %1082 = vmatprep.subr.mxu0 0.0
        %1083 = vmatpush1.msra.mxu0 0.0
        %1084 = vmatprep.subr.mxu0 0.0
        %1085 = vmatpush1.msra.mxu0 0.0
        %1086 = vmatprep.mubr.f32.mxu0 0.0
        %1087 = vmatmul.mubr.f32.gmra.mrb[0].mxu0 %v975
        %v1088 = vpop.f32.mrb[0].mxu0
        %v1089 = vadd.f32 0.0, %v1088
        %v1090 = vpop.f32.mrb[0].mxu0
        %1091 = vmatprep.mubr.f32.mxu0 0.0
        %1092 = vmatmul.mubr.f32.gmra.mrb[0].mxu0 %v978
        %v1093 = vpop.f32.mrb[0].mxu0
        %v1094 = vadd.f32 0.0, %v1093
        %v1095 = vpop.f32.mrb[0].mxu0
        %1096 = vmatprep.mubr.f32.mxu0 0.0
        %1097 = vmatmul.mubr.f32.gmra.mrb[0].mxu0 %v981
        %v1098 = vpop.f32.mrb[0].mxu0
        %v1099 = vadd.f32 0.0, %v1098
        %v1100 = vpop.f32.mrb[0].mxu0
        %1101 = vmatprep.mubr.f32.mxu0 0.0
        %1102 = vmatmul.mubr.f32.gmra.mrb[0].mxu0 %v984
        %v1103 = vpop.f32.mrb[0].mxu0
        %v1104 = vadd.f32 0.0, %v1103
        %v1105 = vpop.f32.mrb[0].mxu0
        %1106 = vmatprep.mubr.f32.mxu0 0.0
        %1107 = vmatmul.mubr.f32.gmra.mrb[0].mxu0 %v987
        %v1108 = vpop.f32.mrb[0].mxu0
        %v1109 = vadd.f32 0.0, %v1108
        %v1110 = vpop.f32.mrb[0].mxu0
        %1111 = vmatprep.mubr.f32.mxu0 0.0
        %1112 = vmatmul.mubr.f32.gmra.mrb[0].mxu0 %v990
        %v1113 = vpop.f32.mrb[0].mxu0
        %v1114 = vadd.f32 0.0, %v1113
        %v1115 = vpop.f32.mrb[0].mxu0
        %1116 = vmatprep.mubr.f32.mxu0 0.0
        %1117 = vmatmul.mubr.f32.gmra.mrb[0].mxu0 %v993
        %v1118 = vpop.f32.mrb[0].mxu0
        %v1119 = vadd.f32 0.0, %v1118
        %v1120 = vpop.f32.mrb[0].mxu0
        %1121 = vmatprep.mubr.f32.mxu0 0.0
        %1122 = vmatmul.mubr.f32.gmra.mrb[0].mxu0 %v996
        %v1123 = vpop.f32.mrb[0].mxu0
        %v1124 = vadd.f32 0.0, %v1123
        %v1125 = vpop.f32.mrb[0].mxu0
        %1126 = vmatprep.mubr.f32.mxu0 0.0
        %1127 = vmatmul.mubr.f32.gmra.mrb[0].mxu0 %v999
        %v1128 = vpop.f32.mrb[0].mxu0
        %v1129 = vadd.f32 0.0, %v1128
        %v1130 = vpop.f32.mrb[0].mxu0
        %1131 = vmatprep.mubr.f32.mxu0 0.0
        %1132 = vmatmul.mubr.f32.gmra.mrb[0].mxu0 %v1002
        %v1133 = vpop.f32.mrb[0].mxu0
        %v1134 = vadd.f32 0.0, %v1133
        %v1135 = vpop.f32.mrb[0].mxu0
        %1136 = vmatprep.mubr.f32.mxu0 0.0
        %1137 = vmatmul.mubr.f32.gmra.mrb[0].mxu0 %v1005
        %v1138 = vpop.f32.mrb[0].mxu0
        %v1139 = vadd.f32 0.0, %v1138
        %v1140 = vpop.f32.mrb[0].mxu0
        %1141 = vmatprep.mubr.f32.mxu0 0.0
        %1142 = vmatmul.mubr.f32.gmra.mrb[0].mxu0 %v1008
        %v1143 = vpop.f32.mrb[0].mxu0
        %v1144 = vadd.f32 0.0, %v1143
        %v1145 = vpop.f32.mrb[0].mxu0
        %1146 = vmatprep.mubr.f32.mxu0 0.0
        %1147 = vmatmul.mubr.f32.gmra.mrb[0].mxu0 %v1011
        %v1148 = vpop.f32.mrb[0].mxu0
        %v1149 = vadd.f32 0.0, %v1148
        %v1150 = vpop.f32.mrb[0].mxu0
        %1151 = vmatprep.mubr.f32.mxu0 0.0
        %1152 = vmatmul.mubr.f32.gmra.mrb[0].mxu0 %v1014
        %v1153 = vpop.f32.mrb[0].mxu0
        %v1154 = vadd.f32 0.0, %v1153
        %v1155 = vpop.f32.mrb[0].mxu0
        %1156 = vmatprep.mubr.f32.mxu0 0.0
        %1157 = vmatmul.mubr.f32.gmra.mrb[0].mxu0 %v1017
        %v1158 = vpop.f32.mrb[0].mxu0
        %v1159 = vadd.f32 0.0, %v1158
        %v1160 = vpop.f32.mrb[0].mxu0
        %1161 = vmatprep.mubr.f32.mxu0 0.0
        %1162 = vmatmul.mubr.f32.gmra.mrb[0].mxu0 %v1020
        %v1163 = vpop.f32.mrb[0].mxu0
        %v1164 = vadd.f32 0.0, %v1163
        %v1165 = vpop.f32.mrb[0].mxu0
        %1166 = vdwg.mxu0
        %v1167 = vld [vmem:[%s7] sm:$0xff]
        %v1168 = vld [vmem:[%s7 + $0x8] sm:$0xff]
        %1169 = vmatprep.subr.mxu0 0.0
        %1170 = vmatpush1.msra.mxu0 %v1167
        %1171 = vmatprep.subr.mxu0 0.0
        %1172 = vmatpush1.msra.mxu0 %v1168
        %1173 = vmatprep.subr.mxu0 0.0
        %1174 = vmatpush1.msra.mxu0 0.0
        %1175 = vmatprep.subr.mxu0 0.0
        %1176 = vmatpush1.msra.mxu0 0.0
        %1177 = vmatprep.subr.mxu0 0.0
        %1178 = vmatpush1.msra.mxu0 0.0
        %1179 = vmatprep.subr.mxu0 0.0
        %1180 = vmatpush1.msra.mxu0 0.0
        %1181 = vmatprep.subr.mxu0 0.0
        %1182 = vmatpush1.msra.mxu0 0.0
        %1183 = vmatprep.subr.mxu0 0.0
        %1184 = vmatpush1.msra.mxu0 0.0
        %1185 = vmatprep.subr.mxu0 0.0
        %1186 = vmatpush1.msra.mxu0 0.0
        %1187 = vmatprep.subr.mxu0 0.0
        %1188 = vmatpush1.msra.mxu0 0.0
        %1189 = vmatprep.subr.mxu0 0.0
        %1190 = vmatpush1.msra.mxu0 0.0
        %1191 = vmatprep.subr.mxu0 0.0
        %1192 = vmatpush1.msra.mxu0 0.0
        %1193 = vmatprep.subr.mxu0 0.0
        %1194 = vmatpush1.msra.mxu0 0.0
        %1195 = vmatprep.subr.mxu0 0.0
        %1196 = vmatpush1.msra.mxu0 0.0
        %1197 = vmatprep.subr.mxu0 0.0
        %1198 = vmatpush1.msra.mxu0 0.0
        %1199 = vmatprep.subr.mxu0 0.0
        %1200 = vmatpush1.msra.mxu0 0.0
        %1201 = vmatprep.subr.mxu0 0.0
        %1202 = vmatpush1.msra.mxu0 0.0
        %1203 = vmatprep.subr.mxu0 0.0
        %1204 = vmatpush1.msra.mxu0 0.0
        %1205 = vmatprep.subr.mxu0 0.0
        %1206 = vmatpush1.msra.mxu0 0.0
        %1207 = vmatprep.subr.mxu0 0.0
        %1208 = vmatpush1.msra.mxu0 0.0
        %1209 = vmatprep.subr.mxu0 0.0
        %1210 = vmatpush1.msra.mxu0 0.0
        %1211 = vmatprep.subr.mxu0 0.0
        %1212 = vmatpush1.msra.mxu0 0.0
        %1213 = vmatprep.subr.mxu0 0.0
        %1214 = vmatpush1.msra.mxu0 0.0
        %1215 = vmatprep.subr.mxu0 0.0
        %1216 = vmatpush1.msra.mxu0 0.0
        %1217 = vmatprep.subr.mxu0 0.0
        %1218 = vmatpush1.msra.mxu0 0.0
        %1219 = vmatprep.subr.mxu0 0.0
        %1220 = vmatpush1.msra.mxu0 0.0
        %1221 = vmatprep.subr.mxu0 0.0
        %1222 = vmatpush1.msra.mxu0 0.0
        %1223 = vmatprep.subr.mxu0 0.0
        %1224 = vmatpush1.msra.mxu0 0.0
        %1225 = vmatprep.subr.mxu0 0.0
        %1226 = vmatpush1.msra.mxu0 0.0
        %1227 = vmatprep.subr.mxu0 0.0
        %1228 = vmatpush1.msra.mxu0 0.0
        %1229 = vmatprep.subr.mxu0 0.0
        %1230 = vmatpush1.msra.mxu0 0.0
        %1231 = vmatprep.subr.mxu0 0.0
        %1232 = vmatpush1.msra.mxu0 0.0
        %1233 = vmatprep.mubr.f32.mxu0 0.0
        %1234 = vmatmul.mubr.f32.gmra.mrb[0].mxu0 %v975
        %v1235 = vpop.f32.mrb[0].mxu0
        %v1236 = vadd.f32 0.0, %v1235
        %v1237 = vpop.f32.mrb[0].mxu0
        %1238 = vmatprep.mubr.f32.mxu0 0.0
        %1239 = vmatmul.mubr.f32.gmra.mrb[0].mxu0 %v978
        %v1240 = vpop.f32.mrb[0].mxu0
        %v1241 = vadd.f32 0.0, %v1240
        %v1242 = vpop.f32.mrb[0].mxu0
        %1243 = vmatprep.mubr.f32.mxu0 0.0
        %1244 = vmatmul.mubr.f32.gmra.mrb[0].mxu0 %v981
        %v1245 = vpop.f32.mrb[0].mxu0
        %v1246 = vadd.f32 0.0, %v1245
        %v1247 = vpop.f32.mrb[0].mxu0
        %1248 = vmatprep.mubr.f32.mxu0 0.0
        %1249 = vmatmul.mubr.f32.gmra.mrb[0].mxu0 %v984
        %v1250 = vpop.f32.mrb[0].mxu0
        %v1251 = vadd.f32 0.0, %v1250
        %v1252 = vpop.f32.mrb[0].mxu0
        %1253 = vmatprep.mubr.f32.mxu0 0.0
        %1254 = vmatmul.mubr.f32.gmra.mrb[0].mxu0 %v987
        %v1255 = vpop.f32.mrb[0].mxu0
        %v1256 = vadd.f32 0.0, %v1255
        %v1257 = vpop.f32.mrb[0].mxu0
        %1258 = vmatprep.mubr.f32.mxu0 0.0
        %1259 = vmatmul.mubr.f32.gmra.mrb[0].mxu0 %v990
        %v1260 = vpop.f32.mrb[0].mxu0
        %v1261 = vadd.f32 0.0, %v1260
        %v1262 = vpop.f32.mrb[0].mxu0
        %1263 = vmatprep.mubr.f32.mxu0 0.0
        %1264 = vmatmul.mubr.f32.gmra.mrb[0].mxu0 %v993
        %v1265 = vpop.f32.mrb[0].mxu0
        %v1266 = vadd.f32 0.0, %v1265
        %v1267 = vpop.f32.mrb[0].mxu0
        %1268 = vmatprep.mubr.f32.mxu0 0.0
        %1269 = vmatmul.mubr.f32.gmra.mrb[0].mxu0 %v996
        %v1270 = vpop.f32.mrb[0].mxu0
        %v1271 = vadd.f32 0.0, %v1270
        %v1272 = vpop.f32.mrb[0].mxu0
        %1273 = vmatprep.mubr.f32.mxu0 0.0
        %1274 = vmatmul.mubr.f32.gmra.mrb[0].mxu0 %v999
        %v1275 = vpop.f32.mrb[0].mxu0
        %v1276 = vadd.f32 0.0, %v1275
        %v1277 = vpop.f32.mrb[0].mxu0
        %1278 = vmatprep.mubr.f32.mxu0 0.0
        %1279 = vmatmul.mubr.f32.gmra.mrb[0].mxu0 %v1002
        %v1280 = vpop.f32.mrb[0].mxu0
        %v1281 = vadd.f32 0.0, %v1280
        %v1282 = vpop.f32.mrb[0].mxu0
        %1283 = vmatprep.mubr.f32.mxu0 0.0
        %1284 = vmatmul.mubr.f32.gmra.mrb[0].mxu0 %v1005
        %v1285 = vpop.f32.mrb[0].mxu0
        %v1286 = vadd.f32 0.0, %v1285
        %v1287 = vpop.f32.mrb[0].mxu0
        %1288 = vmatprep.mubr.f32.mxu0 0.0
        %1289 = vmatmul.mubr.f32.gmra.mrb[0].mxu0 %v1008
        %v1290 = vpop.f32.mrb[0].mxu0
        %v1291 = vadd.f32 0.0, %v1290
        %v1292 = vpop.f32.mrb[0].mxu0
        %1293 = vmatprep.mubr.f32.mxu0 0.0
        %1294 = vmatmul.mubr.f32.gmra.mrb[0].mxu0 %v1011
        %v1295 = vpop.f32.mrb[0].mxu0
        %v1296 = vadd.f32 0.0, %v1295
        %v1297 = vpop.f32.mrb[0].mxu0
        %1298 = vmatprep.mubr.f32.mxu0 0.0
        %1299 = vmatmul.mubr.f32.gmra.mrb[0].mxu0 %v1014
        %v1300 = vpop.f32.mrb[0].mxu0
        %v1301 = vadd.f32 0.0, %v1300
        %v1302 = vpop.f32.mrb[0].mxu0
        %1303 = vmatprep.mubr.f32.mxu0 0.0
        %1304 = vmatmul.mubr.f32.gmra.mrb[0].mxu0 %v1017
        %v1305 = vpop.f32.mrb[0].mxu0
        %v1306 = vadd.f32 0.0, %v1305
        %v1307 = vpop.f32.mrb[0].mxu0
        %1308 = vmatprep.mubr.f32.mxu0 0.0
        %1309 = vmatmul.mubr.f32.gmra.mrb[0].mxu0 %v1020
        %v1310 = vpop.f32.mrb[0].mxu0
        %v1311 = vadd.f32 0.0, %v1310
        %v1312 = vpop.f32.mrb[0].mxu0
        %1313 = vdwg.mxu0
        %vm1314 = vcmask 261120
        %1315 = vst.msk [vmem:[#allocation3] sm:$0xff] %vm1314, %v1089
        %1316 = vst.msk [vmem:[#allocation3 + $0x8] sm:$0xff] %vm1314, %v1094
        %1317 = vst.msk [vmem:[#allocation3 + $0x10] sm:$0xff] %vm1314, %v1099
        %1318 = vst.msk [vmem:[#allocation3 + $0x18] sm:$0xff] %vm1314, %v1104
        %1319 = vst.msk [vmem:[#allocation3 + $0x20] sm:$0xff] %vm1314, %v1109
        %1320 = vst.msk [vmem:[#allocation3 + $0x28] sm:$0xff] %vm1314, %v1114
        %1321 = vst.msk [vmem:[#allocation3 + $0x30] sm:$0xff] %vm1314, %v1119
        %1322 = vst.msk [vmem:[#allocation3 + $0x38] sm:$0xff] %vm1314, %v1124
        %1323 = vst.msk [vmem:[#allocation3 + $0x40] sm:$0xff] %vm1314, %v1129
        %1324 = vst.msk [vmem:[#allocation3 + $0x48] sm:$0xff] %vm1314, %v1134
        %1325 = vst.msk [vmem:[#allocation3 + $0x50] sm:$0xff] %vm1314, %v1139
        %1326 = vst.msk [vmem:[#allocation3 + $0x58] sm:$0xff] %vm1314, %v1144
        %1327 = vst.msk [vmem:[#allocation3 + $0x60] sm:$0xff] %vm1314, %v1149
        %1328 = vst.msk [vmem:[#allocation3 + $0x68] sm:$0xff] %vm1314, %v1154
        %1329 = vst.msk [vmem:[#allocation3 + $0x70] sm:$0xff] %vm1314, %v1159
        %1330 = vst.msk [vmem:[#allocation3 + $0x78] sm:$0xff] %vm1314, %v1164
        %1331 = vst.msk [vmem:[#allocation4] sm:$0xff] %vm1314, %v1236
        %1332 = vst.msk [vmem:[#allocation4 + $0x8] sm:$0xff] %vm1314, %v1241
        %1333 = vst.msk [vmem:[#allocation4 + $0x10] sm:$0xff] %vm1314, %v1246
        %1334 = vst.msk [vmem:[#allocation4 + $0x18] sm:$0xff] %vm1314, %v1251
        %1335 = vst.msk [vmem:[#allocation4 + $0x20] sm:$0xff] %vm1314, %v1256
        %1336 = vst.msk [vmem:[#allocation4 + $0x28] sm:$0xff] %vm1314, %v1261
        %1337 = vst.msk [vmem:[#allocation4 + $0x30] sm:$0xff] %vm1314, %v1266
        %1338 = vst.msk [vmem:[#allocation4 + $0x38] sm:$0xff] %vm1314, %v1271
        %1339 = vst.msk [vmem:[#allocation4 + $0x40] sm:$0xff] %vm1314, %v1276
        %1340 = vst.msk [vmem:[#allocation4 + $0x48] sm:$0xff] %vm1314, %v1281
        %1341 = vst.msk [vmem:[#allocation4 + $0x50] sm:$0xff] %vm1314, %v1286
        %1342 = vst.msk [vmem:[#allocation4 + $0x58] sm:$0xff] %vm1314, %v1291
        %1343 = vst.msk [vmem:[#allocation4 + $0x60] sm:$0xff] %vm1314, %v1296
        %1344 = vst.msk [vmem:[#allocation4 + $0x68] sm:$0xff] %vm1314, %v1301
        %1345 = vst.msk [vmem:[#allocation4 + $0x70] sm:$0xff] %vm1314, %v1306
        %1346 = vst.msk [vmem:[#allocation4 + $0x78] sm:$0xff] %vm1314, %v1311
        %v1347 = vld [vmem:[%s2] sm:$0x1]
        %v1348 = vlaneseq
        %v1349 = vshrl.u32 %v1348, 7
        %v1350 = vsub.s32 0, %v1349
        %v1351 = vrot.slane %v1347, %v1350
        %v1352 = vld [vmem:[%s2 + $0x1] sm:$0x1]
        %v1353 = vlaneseq
        %v1354 = vshrl.u32 %v1353, 7
        %v1355 = vsub.s32 0, %v1354
        %v1356 = vrot.slane %v1352, %v1355
        %v1357 = vld [vmem:[#allocation2] sm:$0xff]
        %v1358 = vld [vmem:[#allocation2 + $0x8] sm:$0xff]
        %s1359 = scalar_lea.vmem [#allocation2], 16
        %v1360 = vld [vmem:[%s1359] sm:$0xff]
        %v1361 = vld [vmem:[%s1359 + $0x8] sm:$0xff]
        %v1362 = vld [vmem:[#allocation3] sm:$0xff]
        %v1363 = vld [vmem:[#allocation3 + $0x8] sm:$0xff]
        %v1364 = vld [vmem:[#allocation4] sm:$0xff]
        %v1365 = vld [vmem:[#allocation4 + $0x8] sm:$0xff]
        %v1366 = vmul.f32 %v1357, %v1351
        %v1367 = vmul.f32 %v1358, %v1351
        %v1368 = vmul.f32 %v1360, %v1356
        %v1369 = vmul.f32 %v1361, %v1356
        %v1370 = vsub.f32 %v1366, %v1368
        %v1371 = vsub.f32 %v1367, %v1369
        %v1372 = vadd.f32 %v1370, %v1362
        %v1373 = vadd.f32 %v1371, %v1363
        %v1374 = vmul.f32 %v1357, %v1356
        %v1375 = vmul.f32 %v1358, %v1356
        %v1376 = vmul.f32 %v1360, %v1351
        %v1377 = vmul.f32 %v1361, %v1351
        %v1378 = vadd.f32 %v1374, %v1376
        %v1379 = vadd.f32 %v1375, %v1377
        %v1380 = vadd.f32 %v1378, %v1364
        %v1381 = vadd.f32 %v1379, %v1365
        %1382 = vst.msk [vmem:[#allocation3] sm:$0xff] %vm1314, %v1372
        %1383 = vst.msk [vmem:[#allocation3 + $0x8] sm:$0xff] %vm1314, %v1373
        %1384 = vst.msk [vmem:[#allocation4] sm:$0xff] %vm1314, %v1380
        %1385 = vst.msk [vmem:[#allocation4 + $0x8] sm:$0xff] %vm1314, %v1381
        %s1386 = scalar_lea.vmem [#allocation3], 16
        %v1387 = vld [vmem:[%s1386] sm:$0xff]
        %v1388 = vld [vmem:[%s1386 + $0x8] sm:$0xff]
        %s1389 = scalar_lea.vmem [#allocation4], 16
        %v1390 = vld [vmem:[%s1389] sm:$0xff]
        %v1391 = vld [vmem:[%s1389 + $0x8] sm:$0xff]
        %v1392 = vmul.f32 %v1372, %v1351
        %v1393 = vmul.f32 %v1373, %v1351
        %v1394 = vmul.f32 %v1380, %v1356
        %v1395 = vmul.f32 %v1381, %v1356
        %v1396 = vsub.f32 %v1392, %v1394
        %v1397 = vsub.f32 %v1393, %v1395
        %v1398 = vadd.f32 %v1396, %v1387
        %v1399 = vadd.f32 %v1397, %v1388
        %v1400 = vmul.f32 %v1372, %v1356
        %v1401 = vmul.f32 %v1373, %v1356
        %v1402 = vmul.f32 %v1380, %v1351
        %v1403 = vmul.f32 %v1381, %v1351
        %v1404 = vadd.f32 %v1400, %v1402
        %v1405 = vadd.f32 %v1401, %v1403
        %v1406 = vadd.f32 %v1404, %v1390
        %v1407 = vadd.f32 %v1405, %v1391
        %1408 = vst.msk [vmem:[%s1386] sm:$0xff] %vm1314, %v1398
        %1409 = vst.msk [vmem:[%s1386 + $0x8] sm:$0xff] %vm1314, %v1399
        %1410 = vst.msk [vmem:[%s1389] sm:$0xff] %vm1314, %v1406
        %1411 = vst.msk [vmem:[%s1389 + $0x8] sm:$0xff] %vm1314, %v1407
        %s1412 = scalar_lea.vmem [#allocation3], 32
        %v1413 = vld [vmem:[%s1412] sm:$0xff]
        %v1414 = vld [vmem:[%s1412 + $0x8] sm:$0xff]
        %s1415 = scalar_lea.vmem [#allocation4], 32
        %v1416 = vld [vmem:[%s1415] sm:$0xff]
        %v1417 = vld [vmem:[%s1415 + $0x8] sm:$0xff]
        %v1418 = vmul.f32 %v1398, %v1351
        %v1419 = vmul.f32 %v1399, %v1351
        %v1420 = vmul.f32 %v1406, %v1356
        %v1421 = vmul.f32 %v1407, %v1356
        %v1422 = vsub.f32 %v1418, %v1420
        %v1423 = vsub.f32 %v1419, %v1421
        %v1424 = vadd.f32 %v1422, %v1413
        %v1425 = vadd.f32 %v1423, %v1414
        %v1426 = vmul.f32 %v1398, %v1356
        %v1427 = vmul.f32 %v1399, %v1356
        %v1428 = vmul.f32 %v1406, %v1351
        %v1429 = vmul.f32 %v1407, %v1351
        %v1430 = vadd.f32 %v1426, %v1428
        %v1431 = vadd.f32 %v1427, %v1429
        %v1432 = vadd.f32 %v1430, %v1416
        %v1433 = vadd.f32 %v1431, %v1417
        %1434 = vst.msk [vmem:[%s1412] sm:$0xff] %vm1314, %v1424
        %1435 = vst.msk [vmem:[%s1412 + $0x8] sm:$0xff] %vm1314, %v1425
        %1436 = vst.msk [vmem:[%s1415] sm:$0xff] %vm1314, %v1432
        %1437 = vst.msk [vmem:[%s1415 + $0x8] sm:$0xff] %vm1314, %v1433
        %s1438 = scalar_lea.vmem [#allocation3], 48
        %v1439 = vld [vmem:[%s1438] sm:$0xff]
        %v1440 = vld [vmem:[%s1438 + $0x8] sm:$0xff]
        %s1441 = scalar_lea.vmem [#allocation4], 48
        %v1442 = vld [vmem:[%s1441] sm:$0xff]
        %v1443 = vld [vmem:[%s1441 + $0x8] sm:$0xff]
        %v1444 = vmul.f32 %v1424, %v1351
        %v1445 = vmul.f32 %v1425, %v1351
        %v1446 = vmul.f32 %v1432, %v1356
        %v1447 = vmul.f32 %v1433, %v1356
        %v1448 = vsub.f32 %v1444, %v1446
        %v1449 = vsub.f32 %v1445, %v1447
        %v1450 = vadd.f32 %v1448, %v1439
        %v1451 = vadd.f32 %v1449, %v1440
        %v1452 = vmul.f32 %v1424, %v1356
        %v1453 = vmul.f32 %v1425, %v1356
        %v1454 = vmul.f32 %v1432, %v1351
        %v1455 = vmul.f32 %v1433, %v1351
        %v1456 = vadd.f32 %v1452, %v1454
        %v1457 = vadd.f32 %v1453, %v1455
        %v1458 = vadd.f32 %v1456, %v1442
        %v1459 = vadd.f32 %v1457, %v1443
        %1460 = vst.msk [vmem:[%s1438] sm:$0xff] %vm1314, %v1450
        %1461 = vst.msk [vmem:[%s1438 + $0x8] sm:$0xff] %vm1314, %v1451
        %1462 = vst.msk [vmem:[%s1441] sm:$0xff] %vm1314, %v1458
        %1463 = vst.msk [vmem:[%s1441 + $0x8] sm:$0xff] %vm1314, %v1459
        %s1464 = scalar_lea.vmem [#allocation3], 64
        %v1465 = vld [vmem:[%s1464] sm:$0xff]
        %v1466 = vld [vmem:[%s1464 + $0x8] sm:$0xff]
        %s1467 = scalar_lea.vmem [#allocation4], 64
        %v1468 = vld [vmem:[%s1467] sm:$0xff]
        %v1469 = vld [vmem:[%s1467 + $0x8] sm:$0xff]
        %v1470 = vmul.f32 %v1450, %v1351
        %v1471 = vmul.f32 %v1451, %v1351
        %v1472 = vmul.f32 %v1458, %v1356
        %v1473 = vmul.f32 %v1459, %v1356
        %v1474 = vsub.f32 %v1470, %v1472
        %v1475 = vsub.f32 %v1471, %v1473
        %v1476 = vadd.f32 %v1474, %v1465
        %v1477 = vadd.f32 %v1475, %v1466
        %v1478 = vmul.f32 %v1450, %v1356
        %v1479 = vmul.f32 %v1451, %v1356
        %v1480 = vmul.f32 %v1458, %v1351
        %v1481 = vmul.f32 %v1459, %v1351
        %v1482 = vadd.f32 %v1478, %v1480
        %v1483 = vadd.f32 %v1479, %v1481
        %v1484 = vadd.f32 %v1482, %v1468
        %v1485 = vadd.f32 %v1483, %v1469
        %1486 = vst.msk [vmem:[%s1464] sm:$0xff] %vm1314, %v1476
        %1487 = vst.msk [vmem:[%s1464 + $0x8] sm:$0xff] %vm1314, %v1477
        %1488 = vst.msk [vmem:[%s1467] sm:$0xff] %vm1314, %v1484
        %1489 = vst.msk [vmem:[%s1467 + $0x8] sm:$0xff] %vm1314, %v1485
        %s1490 = scalar_lea.vmem [#allocation3], 80
        %v1491 = vld [vmem:[%s1490] sm:$0xff]
        %v1492 = vld [vmem:[%s1490 + $0x8] sm:$0xff]
        %s1493 = scalar_lea.vmem [#allocation4], 80
        %v1494 = vld [vmem:[%s1493] sm:$0xff]
        %v1495 = vld [vmem:[%s1493 + $0x8] sm:$0xff]
        %v1496 = vmul.f32 %v1476, %v1351
        %v1497 = vmul.f32 %v1477, %v1351
        %v1498 = vmul.f32 %v1484, %v1356
        %v1499 = vmul.f32 %v1485, %v1356
        %v1500 = vsub.f32 %v1496, %v1498
        %v1501 = vsub.f32 %v1497, %v1499
        %v1502 = vadd.f32 %v1500, %v1491
        %v1503 = vadd.f32 %v1501, %v1492
        %v1504 = vmul.f32 %v1476, %v1356
        %v1505 = vmul.f32 %v1477, %v1356
        %v1506 = vmul.f32 %v1484, %v1351
        %v1507 = vmul.f32 %v1485, %v1351
        %v1508 = vadd.f32 %v1504, %v1506
        %v1509 = vadd.f32 %v1505, %v1507
        %v1510 = vadd.f32 %v1508, %v1494
        %v1511 = vadd.f32 %v1509, %v1495
        %1512 = vst.msk [vmem:[%s1490] sm:$0xff] %vm1314, %v1502
        %1513 = vst.msk [vmem:[%s1490 + $0x8] sm:$0xff] %vm1314, %v1503
        %1514 = vst.msk [vmem:[%s1493] sm:$0xff] %vm1314, %v1510
        %1515 = vst.msk [vmem:[%s1493 + $0x8] sm:$0xff] %vm1314, %v1511
        %s1516 = scalar_lea.vmem [#allocation3], 96
        %v1517 = vld [vmem:[%s1516] sm:$0xff]
        %v1518 = vld [vmem:[%s1516 + $0x8] sm:$0xff]
        %s1519 = scalar_lea.vmem [#allocation4], 96
        %v1520 = vld [vmem:[%s1519] sm:$0xff]
        %v1521 = vld [vmem:[%s1519 + $0x8] sm:$0xff]
        %v1522 = vmul.f32 %v1502, %v1351
        %v1523 = vmul.f32 %v1503, %v1351
        %v1524 = vmul.f32 %v1510, %v1356
        %v1525 = vmul.f32 %v1511, %v1356
        %v1526 = vsub.f32 %v1522, %v1524
        %v1527 = vsub.f32 %v1523, %v1525
        %v1528 = vadd.f32 %v1526, %v1517
        %v1529 = vadd.f32 %v1527, %v1518
        %v1530 = vmul.f32 %v1502, %v1356
        %v1531 = vmul.f32 %v1503, %v1356
        %v1532 = vmul.f32 %v1510, %v1351
        %v1533 = vmul.f32 %v1511, %v1351
        %v1534 = vadd.f32 %v1530, %v1532
        %v1535 = vadd.f32 %v1531, %v1533
        %v1536 = vadd.f32 %v1534, %v1520
        %v1537 = vadd.f32 %v1535, %v1521
        %1538 = vst.msk [vmem:[%s1516] sm:$0xff] %vm1314, %v1528
        %1539 = vst.msk [vmem:[%s1516 + $0x8] sm:$0xff] %vm1314, %v1529
        %1540 = vst.msk [vmem:[%s1519] sm:$0xff] %vm1314, %v1536
        %1541 = vst.msk [vmem:[%s1519 + $0x8] sm:$0xff] %vm1314, %v1537
        %s1542 = scalar_lea.vmem [#allocation3], 112
        %v1543 = vld [vmem:[%s1542] sm:$0xff]
        %v1544 = vld [vmem:[%s1542 + $0x8] sm:$0xff]
        %s1545 = scalar_lea.vmem [#allocation4], 112
        %v1546 = vld [vmem:[%s1545] sm:$0xff]
        %v1547 = vld [vmem:[%s1545 + $0x8] sm:$0xff]
        %v1548 = vmul.f32 %v1528, %v1351
        %v1549 = vmul.f32 %v1529, %v1351
        %v1550 = vmul.f32 %v1536, %v1356
        %v1551 = vmul.f32 %v1537, %v1356
        %v1552 = vsub.f32 %v1548, %v1550
        %v1553 = vsub.f32 %v1549, %v1551
        %v1554 = vadd.f32 %v1552, %v1543
        %v1555 = vadd.f32 %v1553, %v1544
        %v1556 = vmul.f32 %v1528, %v1356
        %v1557 = vmul.f32 %v1529, %v1356
        %v1558 = vmul.f32 %v1536, %v1351
        %v1559 = vmul.f32 %v1537, %v1351
        %v1560 = vadd.f32 %v1556, %v1558
        %v1561 = vadd.f32 %v1557, %v1559
        %v1562 = vadd.f32 %v1560, %v1546
        %v1563 = vadd.f32 %v1561, %v1547
        %1564 = vst.msk [vmem:[%s1542] sm:$0xff] %vm1314, %v1554
        %1565 = vst.msk [vmem:[%s1542 + $0x8] sm:$0xff] %vm1314, %v1555
        %1566 = vst.msk [vmem:[%s1545] sm:$0xff] %vm1314, %v1562
        %1567 = vst.msk [vmem:[%s1545 + $0x8] sm:$0xff] %vm1314, %v1563
        %1568 = vst.msk [vmem:[#allocation2] sm:$0xff] %vm1314, %v1554
        %1569 = vst.msk [vmem:[#allocation2 + $0x8] sm:$0xff] %vm1314, %v1555
        %1570 = vst.msk [vmem:[%s1359] sm:$0xff] %vm1314, %v1562
        %1571 = vst.msk [vmem:[%s1359 + $0x8] sm:$0xff] %vm1314, %v1563
        %v1572 = vld [vmem:[#allocation3] sm:$0xff]
        %v1573 = vld [vmem:[#allocation3 + $0x8] sm:$0xff]
        %v1574 = vld [vmem:[#allocation3 + $0x10] sm:$0xff]
        %v1575 = vld [vmem:[#allocation3 + $0x18] sm:$0xff]
        %v1576 = vld [vmem:[#allocation3 + $0x20] sm:$0xff]
        %v1577 = vld [vmem:[#allocation3 + $0x28] sm:$0xff]
        %v1578 = vld [vmem:[#allocation3 + $0x30] sm:$0xff]
        %v1579 = vld [vmem:[#allocation3 + $0x38] sm:$0xff]
        %v1580 = vld [vmem:[#allocation3 + $0x40] sm:$0xff]
        %v1581 = vld [vmem:[#allocation3 + $0x48] sm:$0xff]
        %v1582 = vld [vmem:[#allocation3 + $0x50] sm:$0xff]
        %v1583 = vld [vmem:[#allocation3 + $0x58] sm:$0xff]
        %v1584 = vld [vmem:[#allocation3 + $0x60] sm:$0xff]
        %v1585 = vld [vmem:[#allocation3 + $0x68] sm:$0xff]
        %v1586 = vld [vmem:[#allocation3 + $0x70] sm:$0xff]
        %v1587 = vld [vmem:[#allocation3 + $0x78] sm:$0xff]
        %v1588 = vld [vmem:[%s8] sm:$0xff]
        %v1589 = vld [vmem:[%s8 + $0x8] sm:$0xff]
        %v1590 = vld [vmem:[%s8 + $0x10] sm:$0xff]
        %v1591 = vld [vmem:[%s8 + $0x18] sm:$0xff]
        %v1592 = vld [vmem:[#allocation4] sm:$0xff]
        %v1593 = vld [vmem:[#allocation4 + $0x8] sm:$0xff]
        %v1594 = vld [vmem:[#allocation4 + $0x10] sm:$0xff]
        %v1595 = vld [vmem:[#allocation4 + $0x18] sm:$0xff]
        %v1596 = vld [vmem:[#allocation4 + $0x20] sm:$0xff]
        %v1597 = vld [vmem:[#allocation4 + $0x28] sm:$0xff]
        %v1598 = vld [vmem:[#allocation4 + $0x30] sm:$0xff]
        %v1599 = vld [vmem:[#allocation4 + $0x38] sm:$0xff]
        %v1600 = vld [vmem:[#allocation4 + $0x40] sm:$0xff]
        %v1601 = vld [vmem:[#allocation4 + $0x48] sm:$0xff]
        %v1602 = vld [vmem:[#allocation4 + $0x50] sm:$0xff]
        %v1603 = vld [vmem:[#allocation4 + $0x58] sm:$0xff]
        %v1604 = vld [vmem:[#allocation4 + $0x60] sm:$0xff]
        %v1605 = vld [vmem:[#allocation4 + $0x68] sm:$0xff]
        %v1606 = vld [vmem:[#allocation4 + $0x70] sm:$0xff]
        %v1607 = vld [vmem:[#allocation4 + $0x78] sm:$0xff]
        %v1608 = vld [vmem:[%s9] sm:$0xff]
        %v1609 = vld [vmem:[%s9 + $0x8] sm:$0xff]
        %v1610 = vld [vmem:[%s9 + $0x10] sm:$0xff]
        %v1611 = vld [vmem:[%s9 + $0x18] sm:$0xff]
        %v1613 = vsel %vm1314, %v1592, 0
        %v1616 = vsel %vm1314, %v1593, 0
        %v1619 = vsel %vm1314, %v1594, 0
        %v1622 = vsel %vm1314, %v1595, 0
        %v1625 = vsel %vm1314, %v1596, 0
        %v1628 = vsel %vm1314, %v1597, 0
        %v1631 = vsel %vm1314, %v1598, 0
        %v1634 = vsel %vm1314, %v1599, 0
        %v1637 = vsel %vm1314, %v1600, 0
        %v1640 = vsel %vm1314, %v1601, 0
        %v1643 = vsel %vm1314, %v1602, 0
        %v1646 = vsel %vm1314, %v1603, 0
        %v1649 = vsel %vm1314, %v1604, 0
        %v1652 = vsel %vm1314, %v1605, 0
        %v1655 = vsel %vm1314, %v1606, 0
        %v1658 = vsel %vm1314, %v1607, 0
        %1660 = vmatprep.subr.mxu0 0.0
        %1661 = vmatpush1.msra.mxu0 %v1608
        %1662 = vmatprep.subr.mxu0 0.0
        %1663 = vmatpush1.msra.mxu0 %v1609
        %1664 = vmatprep.subr.mxu0 0.0
        %1665 = vmatpush1.msra.mxu0 %v1610
        %1666 = vmatprep.subr.mxu0 0.0
        %1667 = vmatpush1.msra.mxu0 %v1611
        %1668 = vmatprep.subr.mxu0 0.0
        %1669 = vmatpush1.msra.mxu0 0.0
        %1670 = vmatprep.subr.mxu0 0.0
        %1671 = vmatpush1.msra.mxu0 0.0
        %1672 = vmatprep.subr.mxu0 0.0
        %1673 = vmatpush1.msra.mxu0 0.0
        %1674 = vmatprep.subr.mxu0 0.0
        %1675 = vmatpush1.msra.mxu0 0.0
        %1676 = vmatprep.subr.mxu0 0.0
        %1677 = vmatpush1.msra.mxu0 0.0
        %1678 = vmatprep.subr.mxu0 0.0
        %1679 = vmatpush1.msra.mxu0 0.0
        %1680 = vmatprep.subr.mxu0 0.0
        %1681 = vmatpush1.msra.mxu0 0.0
        %1682 = vmatprep.subr.mxu0 0.0
        %1683 = vmatpush1.msra.mxu0 0.0
        %1684 = vmatprep.subr.mxu0 0.0
        %1685 = vmatpush1.msra.mxu0 0.0
        %1686 = vmatprep.subr.mxu0 0.0
        %1687 = vmatpush1.msra.mxu0 0.0
        %1688 = vmatprep.subr.mxu0 0.0
        %1689 = vmatpush1.msra.mxu0 0.0
        %1690 = vmatprep.subr.mxu0 0.0
        %1691 = vmatpush1.msra.mxu0 0.0
        %1692 = vmatprep.subr.mxu0 0.0
        %1693 = vmatpush1.msra.mxu0 0.0
        %1694 = vmatprep.subr.mxu0 0.0
        %1695 = vmatpush1.msra.mxu0 0.0
        %1696 = vmatprep.subr.mxu0 0.0
        %1697 = vmatpush1.msra.mxu0 0.0
        %1698 = vmatprep.subr.mxu0 0.0
        %1699 = vmatpush1.msra.mxu0 0.0
        %1700 = vmatprep.subr.mxu0 0.0
        %1701 = vmatpush1.msra.mxu0 0.0
        %1702 = vmatprep.subr.mxu0 0.0
        %1703 = vmatpush1.msra.mxu0 0.0
        %1704 = vmatprep.subr.mxu0 0.0
        %1705 = vmatpush1.msra.mxu0 0.0
        %1706 = vmatprep.subr.mxu0 0.0
        %1707 = vmatpush1.msra.mxu0 0.0
        %1708 = vmatprep.subr.mxu0 0.0
        %1709 = vmatpush1.msra.mxu0 0.0
        %1710 = vmatprep.subr.mxu0 0.0
        %1711 = vmatpush1.msra.mxu0 0.0
        %1712 = vmatprep.subr.mxu0 0.0
        %1713 = vmatpush1.msra.mxu0 0.0
        %1714 = vmatprep.subr.mxu0 0.0
        %1715 = vmatpush1.msra.mxu0 0.0
        %1716 = vmatprep.subr.mxu0 0.0
        %1717 = vmatpush1.msra.mxu0 0.0
        %1718 = vmatprep.subr.mxu0 0.0
        %1719 = vmatpush1.msra.mxu0 0.0
        %1720 = vmatprep.subr.mxu0 0.0
        %1721 = vmatpush1.msra.mxu0 0.0
        %1722 = vmatprep.subr.mxu0 0.0
        %1723 = vmatpush1.msra.mxu0 0.0
        %1724 = vmatprep.mubr.f32.mxu0 0.0
        %1725 = vmatmul.mubr.f32.gmra.mrb[0].mxu0 %v1613
        %v1726 = vpop.f32.mrb[0].mxu0
        %v1727 = vadd.f32 0.0, %v1726
        %v1728 = vpop.f32.mrb[0].mxu0
        %1729 = vmatprep.mubr.f32.mxu0 0.0
        %1730 = vmatmul.mubr.f32.gmra.mrb[0].mxu0 %v1616
        %v1731 = vpop.f32.mrb[0].mxu0
        %v1732 = vadd.f32 0.0, %v1731
        %v1733 = vpop.f32.mrb[0].mxu0
        %1734 = vmatprep.mubr.f32.mxu0 0.0
        %1735 = vmatmul.mubr.f32.gmra.mrb[0].mxu0 %v1619
        %v1736 = vpop.f32.mrb[0].mxu0
        %v1737 = vadd.f32 0.0, %v1736
        %v1738 = vpop.f32.mrb[0].mxu0
        %1739 = vmatprep.mubr.f32.mxu0 0.0
        %1740 = vmatmul.mubr.f32.gmra.mrb[0].mxu0 %v1622
        %v1741 = vpop.f32.mrb[0].mxu0
        %v1742 = vadd.f32 0.0, %v1741
        %v1743 = vpop.f32.mrb[0].mxu0
        %1744 = vmatprep.mubr.f32.mxu0 0.0
        %1745 = vmatmul.mubr.f32.gmra.mrb[0].mxu0 %v1625
        %v1746 = vpop.f32.mrb[0].mxu0
        %v1747 = vadd.f32 0.0, %v1746
        %v1748 = vpop.f32.mrb[0].mxu0
        %1749 = vmatprep.mubr.f32.mxu0 0.0
        %1750 = vmatmul.mubr.f32.gmra.mrb[0].mxu0 %v1628
        %v1751 = vpop.f32.mrb[0].mxu0
        %v1752 = vadd.f32 0.0, %v1751
        %v1753 = vpop.f32.mrb[0].mxu0
        %1754 = vmatprep.mubr.f32.mxu0 0.0
        %1755 = vmatmul.mubr.f32.gmra.mrb[0].mxu0 %v1631
        %v1756 = vpop.f32.mrb[0].mxu0
        %v1757 = vadd.f32 0.0, %v1756
        %v1758 = vpop.f32.mrb[0].mxu0
        %1759 = vmatprep.mubr.f32.mxu0 0.0
        %1760 = vmatmul.mubr.f32.gmra.mrb[0].mxu0 %v1634
        %v1761 = vpop.f32.mrb[0].mxu0
        %v1762 = vadd.f32 0.0, %v1761
        %v1763 = vpop.f32.mrb[0].mxu0
        %1764 = vmatprep.mubr.f32.mxu0 0.0
        %1765 = vmatmul.mubr.f32.gmra.mrb[0].mxu0 %v1637
        %v1766 = vpop.f32.mrb[0].mxu0
        %v1767 = vadd.f32 0.0, %v1766
        %v1768 = vpop.f32.mrb[0].mxu0
        %1769 = vmatprep.mubr.f32.mxu0 0.0
        %1770 = vmatmul.mubr.f32.gmra.mrb[0].mxu0 %v1640
        %v1771 = vpop.f32.mrb[0].mxu0
        %v1772 = vadd.f32 0.0, %v1771
        %v1773 = vpop.f32.mrb[0].mxu0
        %1774 = vmatprep.mubr.f32.mxu0 0.0
        %1775 = vmatmul.mubr.f32.gmra.mrb[0].mxu0 %v1643
        %v1776 = vpop.f32.mrb[0].mxu0
        %v1777 = vadd.f32 0.0, %v1776
        %v1778 = vpop.f32.mrb[0].mxu0
        %1779 = vmatprep.mubr.f32.mxu0 0.0
        %1780 = vmatmul.mubr.f32.gmra.mrb[0].mxu0 %v1646
        %v1781 = vpop.f32.mrb[0].mxu0
        %v1782 = vadd.f32 0.0, %v1781
        %v1783 = vpop.f32.mrb[0].mxu0
        %1784 = vmatprep.mubr.f32.mxu0 0.0
        %1785 = vmatmul.mubr.f32.gmra.mrb[0].mxu0 %v1649
        %v1786 = vpop.f32.mrb[0].mxu0
        %v1787 = vadd.f32 0.0, %v1786
        %v1788 = vpop.f32.mrb[0].mxu0
        %1789 = vmatprep.mubr.f32.mxu0 0.0
        %1790 = vmatmul.mubr.f32.gmra.mrb[0].mxu0 %v1652
        %v1791 = vpop.f32.mrb[0].mxu0
        %v1792 = vadd.f32 0.0, %v1791
        %v1793 = vpop.f32.mrb[0].mxu0
        %1794 = vmatprep.mubr.f32.mxu0 0.0
        %1795 = vmatmul.mubr.f32.gmra.mrb[0].mxu0 %v1655
        %v1796 = vpop.f32.mrb[0].mxu0
        %v1797 = vadd.f32 0.0, %v1796
        %v1798 = vpop.f32.mrb[0].mxu0
        %1799 = vmatprep.mubr.f32.mxu0 0.0
        %1800 = vmatmul.mubr.f32.gmra.mrb[0].mxu0 %v1658
        %v1801 = vpop.f32.mrb[0].mxu0
        %v1802 = vadd.f32 0.0, %v1801
        %v1803 = vpop.f32.mrb[0].mxu0
        %1804 = vdwg.mxu0
        %v1806 = vsel %vm1314, %v1572, 0
        %v1809 = vsel %vm1314, %v1573, 0
        %v1812 = vsel %vm1314, %v1574, 0
        %v1815 = vsel %vm1314, %v1575, 0
        %v1818 = vsel %vm1314, %v1576, 0
        %v1821 = vsel %vm1314, %v1577, 0
        %v1824 = vsel %vm1314, %v1578, 0
        %v1827 = vsel %vm1314, %v1579, 0
        %v1830 = vsel %vm1314, %v1580, 0
        %v1833 = vsel %vm1314, %v1581, 0
        %v1836 = vsel %vm1314, %v1582, 0
        %v1839 = vsel %vm1314, %v1583, 0
        %v1842 = vsel %vm1314, %v1584, 0
        %v1845 = vsel %vm1314, %v1585, 0
        %v1848 = vsel %vm1314, %v1586, 0
        %v1851 = vsel %vm1314, %v1587, 0
        %1853 = vmatprep.subr.mxu0 0.0
        %1854 = vmatpush1.msra.mxu0 %v1588
        %1855 = vmatprep.subr.mxu0 0.0
        %1856 = vmatpush1.msra.mxu0 %v1589
        %1857 = vmatprep.subr.mxu0 0.0
        %1858 = vmatpush1.msra.mxu0 %v1590
        %1859 = vmatprep.subr.mxu0 0.0
        %1860 = vmatpush1.msra.mxu0 %v1591
        %1861 = vmatprep.subr.mxu0 0.0
        %1862 = vmatpush1.msra.mxu0 0.0
        %1863 = vmatprep.subr.mxu0 0.0
        %1864 = vmatpush1.msra.mxu0 0.0
        %1865 = vmatprep.subr.mxu0 0.0
        %1866 = vmatpush1.msra.mxu0 0.0
        %1867 = vmatprep.subr.mxu0 0.0
        %1868 = vmatpush1.msra.mxu0 0.0
        %1869 = vmatprep.subr.mxu0 0.0
        %1870 = vmatpush1.msra.mxu0 0.0
        %1871 = vmatprep.subr.mxu0 0.0
        %1872 = vmatpush1.msra.mxu0 0.0
        %1873 = vmatprep.subr.mxu0 0.0
        %1874 = vmatpush1.msra.mxu0 0.0
        %1875 = vmatprep.subr.mxu0 0.0
        %1876 = vmatpush1.msra.mxu0 0.0
        %1877 = vmatprep.subr.mxu0 0.0
        %1878 = vmatpush1.msra.mxu0 0.0
        %1879 = vmatprep.subr.mxu0 0.0
        %1880 = vmatpush1.msra.mxu0 0.0
        %1881 = vmatprep.subr.mxu0 0.0
        %1882 = vmatpush1.msra.mxu0 0.0
        %1883 = vmatprep.subr.mxu0 0.0
        %1884 = vmatpush1.msra.mxu0 0.0
        %1885 = vmatprep.subr.mxu0 0.0
        %1886 = vmatpush1.msra.mxu0 0.0
        %1887 = vmatprep.subr.mxu0 0.0
        %1888 = vmatpush1.msra.mxu0 0.0
        %1889 = vmatprep.subr.mxu0 0.0
        %1890 = vmatpush1.msra.mxu0 0.0
        %1891 = vmatprep.subr.mxu0 0.0
        %1892 = vmatpush1.msra.mxu0 0.0
        %1893 = vmatprep.subr.mxu0 0.0
        %1894 = vmatpush1.msra.mxu0 0.0
        %1895 = vmatprep.subr.mxu0 0.0
        %1896 = vmatpush1.msra.mxu0 0.0
        %1897 = vmatprep.subr.mxu0 0.0
        %1898 = vmatpush1.msra.mxu0 0.0
        %1899 = vmatprep.subr.mxu0 0.0
        %1900 = vmatpush1.msra.mxu0 0.0
        %1901 = vmatprep.subr.mxu0 0.0
        %1902 = vmatpush1.msra.mxu0 0.0
        %1903 = vmatprep.subr.mxu0 0.0
        %1904 = vmatpush1.msra.mxu0 0.0
        %1905 = vmatprep.subr.mxu0 0.0
        %1906 = vmatpush1.msra.mxu0 0.0
        %1907 = vmatprep.subr.mxu0 0.0
        %1908 = vmatpush1.msra.mxu0 0.0
        %1909 = vmatprep.subr.mxu0 0.0
        %1910 = vmatpush1.msra.mxu0 0.0
        %1911 = vmatprep.subr.mxu0 0.0
        %1912 = vmatpush1.msra.mxu0 0.0
        %1913 = vmatprep.subr.mxu0 0.0
        %1914 = vmatpush1.msra.mxu0 0.0
        %1915 = vmatprep.subr.mxu0 0.0
        %1916 = vmatpush1.msra.mxu0 0.0
        %1917 = vmatprep.mubr.f32.mxu0 0.0
        %1918 = vmatmul.mubr.f32.gmra.mrb[0].mxu0 %v1806
        %v1919 = vpop.f32.mrb[0].mxu0
        %v1920 = vadd.f32 %v1727, %v1919
        %v1921 = vpop.f32.mrb[0].mxu0
        %1922 = vmatprep.mubr.f32.mxu0 0.0
        %1923 = vmatmul.mubr.f32.gmra.mrb[0].mxu0 %v1809
        %v1924 = vpop.f32.mrb[0].mxu0
        %v1925 = vadd.f32 %v1732, %v1924
        %v1926 = vpop.f32.mrb[0].mxu0
        %1927 = vmatprep.mubr.f32.mxu0 0.0
        %1928 = vmatmul.mubr.f32.gmra.mrb[0].mxu0 %v1812
        %v1929 = vpop.f32.mrb[0].mxu0
        %v1930 = vadd.f32 %v1737, %v1929
        %v1931 = vpop.f32.mrb[0].mxu0
        %1932 = vmatprep.mubr.f32.mxu0 0.0
        %1933 = vmatmul.mubr.f32.gmra.mrb[0].mxu0 %v1815
        %v1934 = vpop.f32.mrb[0].mxu0
        %v1935 = vadd.f32 %v1742, %v1934
        %v1936 = vpop.f32.mrb[0].mxu0
        %1937 = vmatprep.mubr.f32.mxu0 0.0
        %1938 = vmatmul.mubr.f32.gmra.mrb[0].mxu0 %v1818
        %v1939 = vpop.f32.mrb[0].mxu0
        %v1940 = vadd.f32 %v1747, %v1939
        %v1941 = vpop.f32.mrb[0].mxu0
        %1942 = vmatprep.mubr.f32.mxu0 0.0
        %1943 = vmatmul.mubr.f32.gmra.mrb[0].mxu0 %v1821
        %v1944 = vpop.f32.mrb[0].mxu0
        %v1945 = vadd.f32 %v1752, %v1944
        %v1946 = vpop.f32.mrb[0].mxu0
        %1947 = vmatprep.mubr.f32.mxu0 0.0
        %1948 = vmatmul.mubr.f32.gmra.mrb[0].mxu0 %v1824
        %v1949 = vpop.f32.mrb[0].mxu0
        %v1950 = vadd.f32 %v1757, %v1949
        %v1951 = vpop.f32.mrb[0].mxu0
        %1952 = vmatprep.mubr.f32.mxu0 0.0
        %1953 = vmatmul.mubr.f32.gmra.mrb[0].mxu0 %v1827
        %v1954 = vpop.f32.mrb[0].mxu0
        %v1955 = vadd.f32 %v1762, %v1954
        %v1956 = vpop.f32.mrb[0].mxu0
        %1957 = vmatprep.mubr.f32.mxu0 0.0
        %1958 = vmatmul.mubr.f32.gmra.mrb[0].mxu0 %v1830
        %v1959 = vpop.f32.mrb[0].mxu0
        %v1960 = vadd.f32 %v1767, %v1959
        %v1961 = vpop.f32.mrb[0].mxu0
        %1962 = vmatprep.mubr.f32.mxu0 0.0
        %1963 = vmatmul.mubr.f32.gmra.mrb[0].mxu0 %v1833
        %v1964 = vpop.f32.mrb[0].mxu0
        %v1965 = vadd.f32 %v1772, %v1964
        %v1966 = vpop.f32.mrb[0].mxu0
        %1967 = vmatprep.mubr.f32.mxu0 0.0
        %1968 = vmatmul.mubr.f32.gmra.mrb[0].mxu0 %v1836
        %v1969 = vpop.f32.mrb[0].mxu0
        %v1970 = vadd.f32 %v1777, %v1969
        %v1971 = vpop.f32.mrb[0].mxu0
        %1972 = vmatprep.mubr.f32.mxu0 0.0
        %1973 = vmatmul.mubr.f32.gmra.mrb[0].mxu0 %v1839
        %v1974 = vpop.f32.mrb[0].mxu0
        %v1975 = vadd.f32 %v1782, %v1974
        %v1976 = vpop.f32.mrb[0].mxu0
        %1977 = vmatprep.mubr.f32.mxu0 0.0
        %1978 = vmatmul.mubr.f32.gmra.mrb[0].mxu0 %v1842
        %v1979 = vpop.f32.mrb[0].mxu0
        %v1980 = vadd.f32 %v1787, %v1979
        %v1981 = vpop.f32.mrb[0].mxu0
        %1982 = vmatprep.mubr.f32.mxu0 0.0
        %1983 = vmatmul.mubr.f32.gmra.mrb[0].mxu0 %v1845
        %v1984 = vpop.f32.mrb[0].mxu0
        %v1985 = vadd.f32 %v1792, %v1984
        %v1986 = vpop.f32.mrb[0].mxu0
        %1987 = vmatprep.mubr.f32.mxu0 0.0
        %1988 = vmatmul.mubr.f32.gmra.mrb[0].mxu0 %v1848
        %v1989 = vpop.f32.mrb[0].mxu0
        %v1990 = vadd.f32 %v1797, %v1989
        %v1991 = vpop.f32.mrb[0].mxu0
        %1992 = vmatprep.mubr.f32.mxu0 0.0
        %1993 = vmatmul.mubr.f32.gmra.mrb[0].mxu0 %v1851
        %v1994 = vpop.f32.mrb[0].mxu0
        %v1995 = vadd.f32 %v1802, %v1994
        %v1996 = vpop.f32.mrb[0].mxu0
        %1997 = vdwg.mxu0
        %v1998 = vld [vmem:[%s5] sm:$0x1]
        %v2000 = vlaneseq
        %v2001 = vshrl.u32 %v2000, 7
        %v2002 = vsub.s32 0, %v2001
        %v2003 = vrot.slane %v1998, %v2002
        %v2005 = vmul.f32 %v2003, %v956
        %v2006 = vmul.f32 %v2003, %v957
        %v2007 = vmul.f32 %v2003, %v958
        %v2008 = vmul.f32 %v2003, %v959
        %v2009 = vmul.f32 %v2003, %v960
        %v2010 = vmul.f32 %v2003, %v961
        %v2011 = vmul.f32 %v2003, %v962
        %v2012 = vmul.f32 %v2003, %v963
        %v2013 = vmul.f32 %v2003, %v964
        %v2014 = vmul.f32 %v2003, %v965
        %v2015 = vmul.f32 %v2003, %v966
        %v2016 = vmul.f32 %v2003, %v967
        %v2017 = vmul.f32 %v2003, %v968
        %v2018 = vmul.f32 %v2003, %v969
        %v2019 = vmul.f32 %v2003, %v970
        %v2020 = vmul.f32 %v2003, %v971
        %v2021 = vadd.f32 %v1920, %v2005
        %v2022 = vadd.f32 %v1925, %v2006
        %v2023 = vadd.f32 %v1930, %v2007
        %v2024 = vadd.f32 %v1935, %v2008
        %v2025 = vadd.f32 %v1940, %v2009
        %v2026 = vadd.f32 %v1945, %v2010
        %v2027 = vadd.f32 %v1950, %v2011
        %v2028 = vadd.f32 %v1955, %v2012
        %v2029 = vadd.f32 %v1960, %v2013
        %v2030 = vadd.f32 %v1965, %v2014
        %v2031 = vadd.f32 %v1970, %v2015
        %v2032 = vadd.f32 %v1975, %v2016
        %v2033 = vadd.f32 %v1980, %v2017
        %v2034 = vadd.f32 %v1985, %v2018
        %v2035 = vadd.f32 %v1990, %v2019
        %v2036 = vadd.f32 %v1995, %v2020
        %v2037 = vmul.f32 %v2021, 0.5
        %v2038 = vmul.f32 %v2022, 0.5
        %v2039 = vmul.f32 %v2023, 0.5
        %v2040 = vmul.f32 %v2024, 0.5
        %v2041 = vmul.f32 %v2025, 0.5
        %v2042 = vmul.f32 %v2026, 0.5
        %v2043 = vmul.f32 %v2027, 0.5
        %v2044 = vmul.f32 %v2028, 0.5
        %v2045 = vmul.f32 %v2029, 0.5
        %v2046 = vmul.f32 %v2030, 0.5
        %v2047 = vmul.f32 %v2031, 0.5
        %v2048 = vmul.f32 %v2032, 0.5
        %v2049 = vmul.f32 %v2033, 0.5
        %v2050 = vmul.f32 %v2034, 0.5
        %v2051 = vmul.f32 %v2035, 0.5
        %v2052 = vmul.f32 %v2036, 0.5
        %v2053 = vmul.f32 %v2021, 0.70710677
        %v2054 = vmul.f32 %v2022, 0.70710677
        %v2055 = vmul.f32 %v2023, 0.70710677
        %v2056 = vmul.f32 %v2024, 0.70710677
        %v2057 = vmul.f32 %v2025, 0.70710677
        %v2058 = vmul.f32 %v2026, 0.70710677
        %v2059 = vmul.f32 %v2027, 0.70710677
        %v2060 = vmul.f32 %v2028, 0.70710677
        %v2061 = vmul.f32 %v2029, 0.70710677
        %v2062 = vmul.f32 %v2030, 0.70710677
        %v2063 = vmul.f32 %v2031, 0.70710677
        %v2064 = vmul.f32 %v2032, 0.70710677
        %v2065 = vmul.f32 %v2033, 0.70710677
        %v2066 = vmul.f32 %v2034, 0.70710677
        %v2067 = vmul.f32 %v2035, 0.70710677
        %v2068 = vmul.f32 %v2036, 0.70710677
        %v2069 = verf.f32.pop %v2053
        %v2070 = verf.f32.pop %v2054
        %v2071 = verf.f32.pop %v2055
        %v2072 = verf.f32.pop %v2056
        %v2073 = verf.f32.pop %v2057
        %v2074 = verf.f32.pop %v2058
        %v2075 = verf.f32.pop %v2059
        %v2076 = verf.f32.pop %v2060
        %v2077 = verf.f32.pop %v2061
        %v2078 = verf.f32.pop %v2062
        %v2079 = verf.f32.pop %v2063
        %v2080 = verf.f32.pop %v2064
        %v2081 = verf.f32.pop %v2065
        %v2082 = verf.f32.pop %v2066
        %v2083 = verf.f32.pop %v2067
        %v2084 = verf.f32.pop %v2068
        %v2085 = vadd.f32 %v2069, 1.0
        %v2086 = vadd.f32 %v2070, 1.0
        %v2087 = vadd.f32 %v2071, 1.0
        %v2088 = vadd.f32 %v2072, 1.0
        %v2089 = vadd.f32 %v2073, 1.0
        %v2090 = vadd.f32 %v2074, 1.0
        %v2091 = vadd.f32 %v2075, 1.0
        %v2092 = vadd.f32 %v2076, 1.0
        %v2093 = vadd.f32 %v2077, 1.0
        %v2094 = vadd.f32 %v2078, 1.0
        %v2095 = vadd.f32 %v2079, 1.0
        %v2096 = vadd.f32 %v2080, 1.0
        %v2097 = vadd.f32 %v2081, 1.0
        %v2098 = vadd.f32 %v2082, 1.0
        %v2099 = vadd.f32 %v2083, 1.0
        %v2100 = vadd.f32 %v2084, 1.0
        %v2101 = vmul.f32 %v2037, %v2085
        %v2102 = vmul.f32 %v2038, %v2086
        %v2103 = vmul.f32 %v2039, %v2087
        %v2104 = vmul.f32 %v2040, %v2088
        %v2105 = vmul.f32 %v2041, %v2089
        %v2106 = vmul.f32 %v2042, %v2090
        %v2107 = vmul.f32 %v2043, %v2091
        %v2108 = vmul.f32 %v2044, %v2092
        %v2109 = vmul.f32 %v2045, %v2093
        %v2110 = vmul.f32 %v2046, %v2094
        %v2111 = vmul.f32 %v2047, %v2095
        %v2112 = vmul.f32 %v2048, %v2096
        %v2113 = vmul.f32 %v2049, %v2097
        %v2114 = vmul.f32 %v2050, %v2098
        %v2115 = vmul.f32 %v2051, %v2099
        %v2116 = vmul.f32 %v2052, %v2100
        %v2117 = vld [vmem:[%s10] sm:$0xff]
        %v2118 = vld [vmem:[%s10 + $0x8] sm:$0xff]
        %v2119 = vld [vmem:[%s12] sm:$0x1]
        %v2121 = vlaneseq
        %v2122 = vshrl.u32 %v2121, 7
        %v2123 = vsub.s32 0, %v2122
        %v2124 = vrot.slane %v2119, %v2123
        %v2127 = vsel %vm716, %v2101, 0
        %v2130 = vsel %vm716, %v2102, 0
        %v2133 = vsel %vm716, %v2103, 0
        %v2136 = vsel %vm716, %v2104, 0
        %v2139 = vsel %vm716, %v2105, 0
        %v2142 = vsel %vm716, %v2106, 0
        %v2145 = vsel %vm716, %v2107, 0
        %v2148 = vsel %vm716, %v2108, 0
        %v2151 = vsel %vm716, %v2109, 0
        %v2154 = vsel %vm716, %v2110, 0
        %v2157 = vsel %vm716, %v2111, 0
        %v2160 = vsel %vm716, %v2112, 0
        %v2163 = vsel %vm716, %v2113, 0
        %v2166 = vsel %vm716, %v2114, 0
        %v2169 = vsel %vm716, %v2115, 0
        %v2172 = vsel %vm716, %v2116, 0
        %2174 = vmatprep.subr.mxu0 0.0
        %2175 = vmatpush1.msra.mxu0 %v2117
        %2176 = vmatprep.subr.mxu0 0.0
        %2177 = vmatpush1.msra.mxu0 %v2118
        %2178 = vmatprep.subr.mxu0 0.0
        %2179 = vmatpush1.msra.mxu0 0.0
        %2180 = vmatprep.subr.mxu0 0.0
        %2181 = vmatpush1.msra.mxu0 0.0
        %2182 = vmatprep.subr.mxu0 0.0
        %2183 = vmatpush1.msra.mxu0 0.0
        %2184 = vmatprep.subr.mxu0 0.0
        %2185 = vmatpush1.msra.mxu0 0.0
        %2186 = vmatprep.subr.mxu0 0.0
        %2187 = vmatpush1.msra.mxu0 0.0
        %2188 = vmatprep.subr.mxu0 0.0
        %2189 = vmatpush1.msra.mxu0 0.0
        %2190 = vmatprep.subr.mxu0 0.0
        %2191 = vmatpush1.msra.mxu0 0.0
        %2192 = vmatprep.subr.mxu0 0.0
        %2193 = vmatpush1.msra.mxu0 0.0
        %2194 = vmatprep.subr.mxu0 0.0
        %2195 = vmatpush1.msra.mxu0 0.0
        %2196 = vmatprep.subr.mxu0 0.0
        %2197 = vmatpush1.msra.mxu0 0.0
        %2198 = vmatprep.subr.mxu0 0.0
        %2199 = vmatpush1.msra.mxu0 0.0
        %2200 = vmatprep.subr.mxu0 0.0
        %2201 = vmatpush1.msra.mxu0 0.0
        %2202 = vmatprep.subr.mxu0 0.0
        %2203 = vmatpush1.msra.mxu0 0.0
        %2204 = vmatprep.subr.mxu0 0.0
        %2205 = vmatpush1.msra.mxu0 0.0
        %2206 = vmatprep.subr.mxu0 0.0
        %2207 = vmatpush1.msra.mxu0 0.0
        %2208 = vmatprep.subr.mxu0 0.0
        %2209 = vmatpush1.msra.mxu0 0.0
        %2210 = vmatprep.subr.mxu0 0.0
        %2211 = vmatpush1.msra.mxu0 0.0
        %2212 = vmatprep.subr.mxu0 0.0
        %2213 = vmatpush1.msra.mxu0 0.0
        %2214 = vmatprep.subr.mxu0 0.0
        %2215 = vmatpush1.msra.mxu0 0.0
        %2216 = vmatprep.subr.mxu0 0.0
        %2217 = vmatpush1.msra.mxu0 0.0
        %2218 = vmatprep.subr.mxu0 0.0
        %2219 = vmatpush1.msra.mxu0 0.0
        %2220 = vmatprep.subr.mxu0 0.0
        %2221 = vmatpush1.msra.mxu0 0.0
        %2222 = vmatprep.subr.mxu0 0.0
        %2223 = vmatpush1.msra.mxu0 0.0
        %2224 = vmatprep.subr.mxu0 0.0
        %2225 = vmatpush1.msra.mxu0 0.0
        %2226 = vmatprep.subr.mxu0 0.0
        %2227 = vmatpush1.msra.mxu0 0.0
        %2228 = vmatprep.subr.mxu0 0.0
        %2229 = vmatpush1.msra.mxu0 0.0
        %2230 = vmatprep.subr.mxu0 0.0
        %2231 = vmatpush1.msra.mxu0 0.0
        %2232 = vmatprep.subr.mxu0 0.0
        %2233 = vmatpush1.msra.mxu0 0.0
        %2234 = vmatprep.subr.mxu0 0.0
        %2235 = vmatpush1.msra.mxu0 0.0
        %2236 = vmatprep.subr.mxu0 0.0
        %2237 = vmatpush1.msra.mxu0 0.0
        %2238 = vmatprep.mubr.f32.mxu0 0.0
        %2239 = vmatmul.mubr.f32.gmra.mrb[0].mxu0 %v2127
        %v2240 = vpop.f32.mrb[0].mxu0
        %v2241 = vadd.f32 %v2124, %v2240
        %v2242 = vpop.f32.mrb[0].mxu0
        %2243 = vmatprep.mubr.f32.mxu0 0.0
        %2244 = vmatmul.mubr.f32.gmra.mrb[0].mxu0 %v2130
        %v2245 = vpop.f32.mrb[0].mxu0
        %v2246 = vadd.f32 %v2124, %v2245
        %v2247 = vpop.f32.mrb[0].mxu0
        %2248 = vmatprep.mubr.f32.mxu0 0.0
        %2249 = vmatmul.mubr.f32.gmra.mrb[0].mxu0 %v2133
        %v2250 = vpop.f32.mrb[0].mxu0
        %v2251 = vadd.f32 %v2124, %v2250
        %v2252 = vpop.f32.mrb[0].mxu0
        %2253 = vmatprep.mubr.f32.mxu0 0.0
        %2254 = vmatmul.mubr.f32.gmra.mrb[0].mxu0 %v2136
        %v2255 = vpop.f32.mrb[0].mxu0
        %v2256 = vadd.f32 %v2124, %v2255
        %v2257 = vpop.f32.mrb[0].mxu0
        %2258 = vmatprep.mubr.f32.mxu0 0.0
        %2259 = vmatmul.mubr.f32.gmra.mrb[0].mxu0 %v2139
        %v2260 = vpop.f32.mrb[0].mxu0
        %v2261 = vadd.f32 %v2124, %v2260
        %v2262 = vpop.f32.mrb[0].mxu0
        %2263 = vmatprep.mubr.f32.mxu0 0.0
        %2264 = vmatmul.mubr.f32.gmra.mrb[0].mxu0 %v2142
        %v2265 = vpop.f32.mrb[0].mxu0
        %v2266 = vadd.f32 %v2124, %v2265
        %v2267 = vpop.f32.mrb[0].mxu0
        %2268 = vmatprep.mubr.f32.mxu0 0.0
        %2269 = vmatmul.mubr.f32.gmra.mrb[0].mxu0 %v2145
        %v2270 = vpop.f32.mrb[0].mxu0
        %v2271 = vadd.f32 %v2124, %v2270
        %v2272 = vpop.f32.mrb[0].mxu0
        %2273 = vmatprep.mubr.f32.mxu0 0.0
        %2274 = vmatmul.mubr.f32.gmra.mrb[0].mxu0 %v2148
        %v2275 = vpop.f32.mrb[0].mxu0
        %v2276 = vadd.f32 %v2124, %v2275
        %v2277 = vpop.f32.mrb[0].mxu0
        %2278 = vmatprep.mubr.f32.mxu0 0.0
        %2279 = vmatmul.mubr.f32.gmra.mrb[0].mxu0 %v2151
        %v2280 = vpop.f32.mrb[0].mxu0
        %v2281 = vadd.f32 %v2124, %v2280
        %v2282 = vpop.f32.mrb[0].mxu0
        %2283 = vmatprep.mubr.f32.mxu0 0.0
        %2284 = vmatmul.mubr.f32.gmra.mrb[0].mxu0 %v2154
        %v2285 = vpop.f32.mrb[0].mxu0
        %v2286 = vadd.f32 %v2124, %v2285
        %v2287 = vpop.f32.mrb[0].mxu0
        %2288 = vmatprep.mubr.f32.mxu0 0.0
        %2289 = vmatmul.mubr.f32.gmra.mrb[0].mxu0 %v2157
        %v2290 = vpop.f32.mrb[0].mxu0
        %v2291 = vadd.f32 %v2124, %v2290
        %v2292 = vpop.f32.mrb[0].mxu0
        %2293 = vmatprep.mubr.f32.mxu0 0.0
        %2294 = vmatmul.mubr.f32.gmra.mrb[0].mxu0 %v2160
        %v2295 = vpop.f32.mrb[0].mxu0
        %v2296 = vadd.f32 %v2124, %v2295
        %v2297 = vpop.f32.mrb[0].mxu0
        %2298 = vmatprep.mubr.f32.mxu0 0.0
        %2299 = vmatmul.mubr.f32.gmra.mrb[0].mxu0 %v2163
        %v2300 = vpop.f32.mrb[0].mxu0
        %v2301 = vadd.f32 %v2124, %v2300
        %v2302 = vpop.f32.mrb[0].mxu0
        %2303 = vmatprep.mubr.f32.mxu0 0.0
        %2304 = vmatmul.mubr.f32.gmra.mrb[0].mxu0 %v2166
        %v2305 = vpop.f32.mrb[0].mxu0
        %v2306 = vadd.f32 %v2124, %v2305
        %v2307 = vpop.f32.mrb[0].mxu0
        %2308 = vmatprep.mubr.f32.mxu0 0.0
        %2309 = vmatmul.mubr.f32.gmra.mrb[0].mxu0 %v2169
        %v2310 = vpop.f32.mrb[0].mxu0
        %v2311 = vadd.f32 %v2124, %v2310
        %v2312 = vpop.f32.mrb[0].mxu0
        %2313 = vmatprep.mubr.f32.mxu0 0.0
        %2314 = vmatmul.mubr.f32.gmra.mrb[0].mxu0 %v2172
        %v2315 = vpop.f32.mrb[0].mxu0
        %v2316 = vadd.f32 %v2124, %v2315
        %v2317 = vpop.f32.mrb[0].mxu0
        %2318 = vdwg.mxu0
        %v2319 = vld [vmem:[%s11] sm:$0xff]
        %v2320 = vld [vmem:[%s11 + $0x8] sm:$0xff]
        %v2321 = vld [vmem:[%s13] sm:$0x1]
        %v2323 = vlaneseq
        %v2324 = vshrl.u32 %v2323, 7
        %v2325 = vsub.s32 0, %v2324
        %v2326 = vrot.slane %v2321, %v2325
        %2328 = vmatprep.subr.mxu0 0.0
        %2329 = vmatpush1.msra.mxu0 %v2319
        %2330 = vmatprep.subr.mxu0 0.0
        %2331 = vmatpush1.msra.mxu0 %v2320
        %2332 = vmatprep.subr.mxu0 0.0
        %2333 = vmatpush1.msra.mxu0 0.0
        %2334 = vmatprep.subr.mxu0 0.0
        %2335 = vmatpush1.msra.mxu0 0.0
        %2336 = vmatprep.subr.mxu0 0.0
        %2337 = vmatpush1.msra.mxu0 0.0
        %2338 = vmatprep.subr.mxu0 0.0
        %2339 = vmatpush1.msra.mxu0 0.0
        %2340 = vmatprep.subr.mxu0 0.0
        %2341 = vmatpush1.msra.mxu0 0.0
        %2342 = vmatprep.subr.mxu0 0.0
        %2343 = vmatpush1.msra.mxu0 0.0
        %2344 = vmatprep.subr.mxu0 0.0
        %2345 = vmatpush1.msra.mxu0 0.0
        %2346 = vmatprep.subr.mxu0 0.0
        %2347 = vmatpush1.msra.mxu0 0.0
        %2348 = vmatprep.subr.mxu0 0.0
        %2349 = vmatpush1.msra.mxu0 0.0
        %2350 = vmatprep.subr.mxu0 0.0
        %2351 = vmatpush1.msra.mxu0 0.0
        %2352 = vmatprep.subr.mxu0 0.0
        %2353 = vmatpush1.msra.mxu0 0.0
        %2354 = vmatprep.subr.mxu0 0.0
        %2355 = vmatpush1.msra.mxu0 0.0
        %2356 = vmatprep.subr.mxu0 0.0
        %2357 = vmatpush1.msra.mxu0 0.0
        %2358 = vmatprep.subr.mxu0 0.0
        %2359 = vmatpush1.msra.mxu0 0.0
        %2360 = vmatprep.subr.mxu0 0.0
        %2361 = vmatpush1.msra.mxu0 0.0
        %2362 = vmatprep.subr.mxu0 0.0
        %2363 = vmatpush1.msra.mxu0 0.0
        %2364 = vmatprep.subr.mxu0 0.0
        %2365 = vmatpush1.msra.mxu0 0.0
        %2366 = vmatprep.subr.mxu0 0.0
        %2367 = vmatpush1.msra.mxu0 0.0
        %2368 = vmatprep.subr.mxu0 0.0
        %2369 = vmatpush1.msra.mxu0 0.0
        %2370 = vmatprep.subr.mxu0 0.0
        %2371 = vmatpush1.msra.mxu0 0.0
        %2372 = vmatprep.subr.mxu0 0.0
        %2373 = vmatpush1.msra.mxu0 0.0
        %2374 = vmatprep.subr.mxu0 0.0
        %2375 = vmatpush1.msra.mxu0 0.0
        %2376 = vmatprep.subr.mxu0 0.0
        %2377 = vmatpush1.msra.mxu0 0.0
        %2378 = vmatprep.subr.mxu0 0.0
        %2379 = vmatpush1.msra.mxu0 0.0
        %2380 = vmatprep.subr.mxu0 0.0
        %2381 = vmatpush1.msra.mxu0 0.0
        %2382 = vmatprep.subr.mxu0 0.0
        %2383 = vmatpush1.msra.mxu0 0.0
        %2384 = vmatprep.subr.mxu0 0.0
        %2385 = vmatpush1.msra.mxu0 0.0
        %2386 = vmatprep.subr.mxu0 0.0
        %2387 = vmatpush1.msra.mxu0 0.0
        %2388 = vmatprep.subr.mxu0 0.0
        %2389 = vmatpush1.msra.mxu0 0.0
        %2390 = vmatprep.subr.mxu0 0.0
        %2391 = vmatpush1.msra.mxu0 0.0
        %2392 = vmatprep.mubr.f32.mxu0 0.0
        %2393 = vmatmul.mubr.f32.gmra.mrb[0].mxu0 %v2127
        %v2394 = vpop.f32.mrb[0].mxu0
        %v2395 = vadd.f32 %v2326, %v2394
        %v2396 = vpop.f32.mrb[0].mxu0
        %2397 = vmatprep.mubr.f32.mxu0 0.0
        %2398 = vmatmul.mubr.f32.gmra.mrb[0].mxu0 %v2130
        %v2399 = vpop.f32.mrb[0].mxu0
        %v2400 = vadd.f32 %v2326, %v2399
        %v2401 = vpop.f32.mrb[0].mxu0
        %2402 = vmatprep.mubr.f32.mxu0 0.0
        %2403 = vmatmul.mubr.f32.gmra.mrb[0].mxu0 %v2133
        %v2404 = vpop.f32.mrb[0].mxu0
        %v2405 = vadd.f32 %v2326, %v2404
        %v2406 = vpop.f32.mrb[0].mxu0
        %2407 = vmatprep.mubr.f32.mxu0 0.0
        %2408 = vmatmul.mubr.f32.gmra.mrb[0].mxu0 %v2136
        %v2409 = vpop.f32.mrb[0].mxu0
        %v2410 = vadd.f32 %v2326, %v2409
        %v2411 = vpop.f32.mrb[0].mxu0
        %2412 = vmatprep.mubr.f32.mxu0 0.0
        %2413 = vmatmul.mubr.f32.gmra.mrb[0].mxu0 %v2139
        %v2414 = vpop.f32.mrb[0].mxu0
        %v2415 = vadd.f32 %v2326, %v2414
        %v2416 = vpop.f32.mrb[0].mxu0
        %2417 = vmatprep.mubr.f32.mxu0 0.0
        %2418 = vmatmul.mubr.f32.gmra.mrb[0].mxu0 %v2142
        %v2419 = vpop.f32.mrb[0].mxu0
        %v2420 = vadd.f32 %v2326, %v2419
        %v2421 = vpop.f32.mrb[0].mxu0
        %2422 = vmatprep.mubr.f32.mxu0 0.0
        %2423 = vmatmul.mubr.f32.gmra.mrb[0].mxu0 %v2145
        %v2424 = vpop.f32.mrb[0].mxu0
        %v2425 = vadd.f32 %v2326, %v2424
        %v2426 = vpop.f32.mrb[0].mxu0
        %2427 = vmatprep.mubr.f32.mxu0 0.0
        %2428 = vmatmul.mubr.f32.gmra.mrb[0].mxu0 %v2148
        %v2429 = vpop.f32.mrb[0].mxu0
        %v2430 = vadd.f32 %v2326, %v2429
        %v2431 = vpop.f32.mrb[0].mxu0
        %2432 = vmatprep.mubr.f32.mxu0 0.0
        %2433 = vmatmul.mubr.f32.gmra.mrb[0].mxu0 %v2151
        %v2434 = vpop.f32.mrb[0].mxu0
        %v2435 = vadd.f32 %v2326, %v2434
        %v2436 = vpop.f32.mrb[0].mxu0
        %2437 = vmatprep.mubr.f32.mxu0 0.0
        %2438 = vmatmul.mubr.f32.gmra.mrb[0].mxu0 %v2154
        %v2439 = vpop.f32.mrb[0].mxu0
        %v2440 = vadd.f32 %v2326, %v2439
        %v2441 = vpop.f32.mrb[0].mxu0
        %2442 = vmatprep.mubr.f32.mxu0 0.0
        %2443 = vmatmul.mubr.f32.gmra.mrb[0].mxu0 %v2157
        %v2444 = vpop.f32.mrb[0].mxu0
        %v2445 = vadd.f32 %v2326, %v2444
        %v2446 = vpop.f32.mrb[0].mxu0
        %2447 = vmatprep.mubr.f32.mxu0 0.0
        %2448 = vmatmul.mubr.f32.gmra.mrb[0].mxu0 %v2160
        %v2449 = vpop.f32.mrb[0].mxu0
        %v2450 = vadd.f32 %v2326, %v2449
        %v2451 = vpop.f32.mrb[0].mxu0
        %2452 = vmatprep.mubr.f32.mxu0 0.0
        %2453 = vmatmul.mubr.f32.gmra.mrb[0].mxu0 %v2163
        %v2454 = vpop.f32.mrb[0].mxu0
        %v2455 = vadd.f32 %v2326, %v2454
        %v2456 = vpop.f32.mrb[0].mxu0
        %2457 = vmatprep.mubr.f32.mxu0 0.0
        %2458 = vmatmul.mubr.f32.gmra.mrb[0].mxu0 %v2166
        %v2459 = vpop.f32.mrb[0].mxu0
        %v2460 = vadd.f32 %v2326, %v2459
        %v2461 = vpop.f32.mrb[0].mxu0
        %2462 = vmatprep.mubr.f32.mxu0 0.0
        %2463 = vmatmul.mubr.f32.gmra.mrb[0].mxu0 %v2169
        %v2464 = vpop.f32.mrb[0].mxu0
        %v2465 = vadd.f32 %v2326, %v2464
        %v2466 = vpop.f32.mrb[0].mxu0
        %2467 = vmatprep.mubr.f32.mxu0 0.0
        %2468 = vmatmul.mubr.f32.gmra.mrb[0].mxu0 %v2172
        %v2469 = vpop.f32.mrb[0].mxu0
        %v2470 = vadd.f32 %v2326, %v2469
        %v2471 = vpop.f32.mrb[0].mxu0
        %2472 = vdwg.mxu0
        %v2473 = vxor.u32 %v2395, 2147483648
        %v2474 = vxor.u32 %v2400, 2147483648
        %v2475 = vxor.u32 %v2405, 2147483648
        %v2476 = vxor.u32 %v2410, 2147483648
        %v2477 = vxor.u32 %v2415, 2147483648
        %v2478 = vxor.u32 %v2420, 2147483648
        %v2479 = vxor.u32 %v2425, 2147483648
        %v2480 = vxor.u32 %v2430, 2147483648
        %v2481 = vxor.u32 %v2435, 2147483648
        %v2482 = vxor.u32 %v2440, 2147483648
        %v2483 = vxor.u32 %v2445, 2147483648
        %v2484 = vxor.u32 %v2450, 2147483648
        %v2485 = vxor.u32 %v2455, 2147483648
        %v2486 = vxor.u32 %v2460, 2147483648
        %v2487 = vxor.u32 %v2465, 2147483648
        %v2488 = vxor.u32 %v2470, 2147483648
        %v2489 = vmul.f32 %v2473, 1.442695
        %v2490 = vpow.pop %v2489
        %v2491 = vmul.f32 %v2474, 1.442695
        %v2492 = vpow.pop %v2491
        %v2493 = vmul.f32 %v2475, 1.442695
        %v2494 = vpow.pop %v2493
        %v2495 = vmul.f32 %v2476, 1.442695
        %v2496 = vpow.pop %v2495
        %v2497 = vmul.f32 %v2477, 1.442695
        %v2498 = vpow.pop %v2497
        %v2499 = vmul.f32 %v2478, 1.442695
        %v2500 = vpow.pop %v2499
        %v2501 = vmul.f32 %v2479, 1.442695
        %v2502 = vpow.pop %v2501
        %v2503 = vmul.f32 %v2480, 1.442695
        %v2504 = vpow.pop %v2503
        %v2505 = vmul.f32 %v2481, 1.442695
        %v2506 = vpow.pop %v2505
        %v2507 = vmul.f32 %v2482, 1.442695
        %v2508 = vpow.pop %v2507
        %v2509 = vmul.f32 %v2483, 1.442695
        %v2510 = vpow.pop %v2509
        %v2511 = vmul.f32 %v2484, 1.442695
        %v2512 = vpow.pop %v2511
        %v2513 = vmul.f32 %v2485, 1.442695
        %v2514 = vpow.pop %v2513
        %v2515 = vmul.f32 %v2486, 1.442695
        %v2516 = vpow.pop %v2515
        %v2517 = vmul.f32 %v2487, 1.442695
        %v2518 = vpow.pop %v2517
        %v2519 = vmul.f32 %v2488, 1.442695
        %v2520 = vpow.pop %v2519
        %v2521 = vadd.f32 %v2490, 1.0
        %v2522 = vadd.f32 %v2492, 1.0
        %v2523 = vadd.f32 %v2494, 1.0
        %v2524 = vadd.f32 %v2496, 1.0
        %v2525 = vadd.f32 %v2498, 1.0
        %v2526 = vadd.f32 %v2500, 1.0
        %v2527 = vadd.f32 %v2502, 1.0
        %v2528 = vadd.f32 %v2504, 1.0
        %v2529 = vadd.f32 %v2506, 1.0
        %v2530 = vadd.f32 %v2508, 1.0
        %v2531 = vadd.f32 %v2510, 1.0
        %v2532 = vadd.f32 %v2512, 1.0
        %v2533 = vadd.f32 %v2514, 1.0
        %v2534 = vadd.f32 %v2516, 1.0
        %v2535 = vadd.f32 %v2518, 1.0
        %v2536 = vadd.f32 %v2520, 1.0
        %v2537 = vrcp.pop %v2521
        %v2538 = vmul.f32 1.0, %v2537
        %v2539 = vrcp.pop %v2522
        %v2540 = vmul.f32 1.0, %v2539
        %v2541 = vrcp.pop %v2523
        %v2542 = vmul.f32 1.0, %v2541
        %v2543 = vrcp.pop %v2524
        %v2544 = vmul.f32 1.0, %v2543
        %v2545 = vrcp.pop %v2525
        %v2546 = vmul.f32 1.0, %v2545
        %v2547 = vrcp.pop %v2526
        %v2548 = vmul.f32 1.0, %v2547
        %v2549 = vrcp.pop %v2527
        %v2550 = vmul.f32 1.0, %v2549
        %v2551 = vrcp.pop %v2528
        %v2552 = vmul.f32 1.0, %v2551
        %v2553 = vrcp.pop %v2529
        %v2554 = vmul.f32 1.0, %v2553
        %v2555 = vrcp.pop %v2530
        %v2556 = vmul.f32 1.0, %v2555
        %v2557 = vrcp.pop %v2531
        %v2558 = vmul.f32 1.0, %v2557
        %v2559 = vrcp.pop %v2532
        %v2560 = vmul.f32 1.0, %v2559
        %v2561 = vrcp.pop %v2533
        %v2562 = vmul.f32 1.0, %v2561
        %v2563 = vrcp.pop %v2534
        %v2564 = vmul.f32 1.0, %v2563
        %v2565 = vrcp.pop %v2535
        %v2566 = vmul.f32 1.0, %v2565
        %v2567 = vrcp.pop %v2536
        %v2568 = vmul.f32 1.0, %v2567
        %v2569 = vmul.f32 %v2241, %v2538
        %v2570 = vmul.f32 %v2246, %v2540
        %v2571 = vmul.f32 %v2251, %v2542
        %v2572 = vmul.f32 %v2256, %v2544
        %v2573 = vmul.f32 %v2261, %v2546
        %v2574 = vmul.f32 %v2266, %v2548
        %v2575 = vmul.f32 %v2271, %v2550
        %v2576 = vmul.f32 %v2276, %v2552
        %v2577 = vmul.f32 %v2281, %v2554
        %v2578 = vmul.f32 %v2286, %v2556
        %v2579 = vmul.f32 %v2291, %v2558
        %v2580 = vmul.f32 %v2296, %v2560
        %v2581 = vmul.f32 %v2301, %v2562
        %v2582 = vmul.f32 %v2306, %v2564
        %v2583 = vmul.f32 %v2311, %v2566
        %v2584 = vmul.f32 %v2316, %v2568
        %v2585 = vld [vmem:[%s621] sm:$0xff]
        %v2586 = vld [vmem:[%s621 + $0x8] sm:$0xff]
        %v2587 = vld [vmem:[%s621 + $0x10] sm:$0xff]
        %v2588 = vld [vmem:[%s621 + $0x18] sm:$0xff]
        %v2589 = vld [vmem:[%s621 + $0x20] sm:$0xff]
        %v2590 = vld [vmem:[%s621 + $0x28] sm:$0xff]
        %v2591 = vld [vmem:[%s621 + $0x30] sm:$0xff]
        %v2592 = vld [vmem:[%s621 + $0x38] sm:$0xff]
        %v2593 = vld [vmem:[%s621 + $0x40] sm:$0xff]
        %v2594 = vld [vmem:[%s621 + $0x48] sm:$0xff]
        %v2595 = vld [vmem:[%s621 + $0x50] sm:$0xff]
        %v2596 = vld [vmem:[%s621 + $0x58] sm:$0xff]
        %v2597 = vld [vmem:[%s621 + $0x60] sm:$0xff]
        %v2598 = vld [vmem:[%s621 + $0x68] sm:$0xff]
        %v2599 = vld [vmem:[%s621 + $0x70] sm:$0xff]
        %v2600 = vld [vmem:[%s621 + $0x78] sm:$0xff]
        %v2601 = vadd.f32 %v2585, %v2569
        %v2602 = vadd.f32 %v2586, %v2570
        %v2603 = vadd.f32 %v2587, %v2571
        %v2604 = vadd.f32 %v2588, %v2572
        %v2605 = vadd.f32 %v2589, %v2573
        %v2606 = vadd.f32 %v2590, %v2574
        %v2607 = vadd.f32 %v2591, %v2575
        %v2608 = vadd.f32 %v2592, %v2576
        %v2609 = vadd.f32 %v2593, %v2577
        %v2610 = vadd.f32 %v2594, %v2578
        %v2611 = vadd.f32 %v2595, %v2579
        %v2612 = vadd.f32 %v2596, %v2580
        %v2613 = vadd.f32 %v2597, %v2581
        %v2614 = vadd.f32 %v2598, %v2582
        %v2615 = vadd.f32 %v2599, %v2583
        %v2616 = vadd.f32 %v2600, %v2584
        %2617 = vst.msk [vmem:[%s673] sm:$0xff] %vm716, %v2601
        %2618 = vst.msk [vmem:[%s673 + $0x8] sm:$0xff] %vm716, %v2602
        %2619 = vst.msk [vmem:[%s673 + $0x10] sm:$0xff] %vm716, %v2603
        %2620 = vst.msk [vmem:[%s673 + $0x18] sm:$0xff] %vm716, %v2604
        %2621 = vst.msk [vmem:[%s673 + $0x20] sm:$0xff] %vm716, %v2605
        %2622 = vst.msk [vmem:[%s673 + $0x28] sm:$0xff] %vm716, %v2606
        %2623 = vst.msk [vmem:[%s673 + $0x30] sm:$0xff] %vm716, %v2607
        %2624 = vst.msk [vmem:[%s673 + $0x38] sm:$0xff] %vm716, %v2608
        %2625 = vst.msk [vmem:[%s673 + $0x40] sm:$0xff] %vm716, %v2609
        %2626 = vst.msk [vmem:[%s673 + $0x48] sm:$0xff] %vm716, %v2610
        %2627 = vst.msk [vmem:[%s673 + $0x50] sm:$0xff] %vm716, %v2611
        %2628 = vst.msk [vmem:[%s673 + $0x58] sm:$0xff] %vm716, %v2612
        %2629 = vst.msk [vmem:[%s673 + $0x60] sm:$0xff] %vm716, %v2613
        %2630 = vst.msk [vmem:[%s673 + $0x68] sm:$0xff] %vm716, %v2614
        %2631 = vst.msk [vmem:[%s673 + $0x70] sm:$0xff] %vm716, %v2615
        %2632 = vst.msk [vmem:[%s673 + $0x78] sm:$0xff] %vm716, %v2616
        // Predicated region
        $region157: #{tpu_custom_call.1} parent=143 // pred_check
          %p2633 = pneg %p687
        $region158: #{tpu_custom_call.1} parent=143 // pred_check_branch
          %2635 = sbr.rel (%p2633) target = $region160
        $region159: #{tpu_custom_call.1} parent=143 // pred_region
          %v2636 = vld [vmem:[#allocation2] sm:$0xff]
          %v2637 = vld [vmem:[#allocation2 + $0x8] sm:$0xff]
          %v2638 = vld [vmem:[#allocation2 + $0x10] sm:$0xff]
          %v2639 = vld [vmem:[#allocation2 + $0x18] sm:$0xff]
          %2640 = vst.msk [vmem:[%s680] sm:$0xff] %vm1314, %v2636
          %2641 = vst.msk [vmem:[%s680 + $0x8] sm:$0xff] %vm1314, %v2637
          %2642 = vst.msk [vmem:[%s680 + $0x10] sm:$0xff] %vm1314, %v2638
          %2643 = vst.msk [vmem:[%s680 + $0x18] sm:$0xff] %vm1314, %v2639
        $region160: #{tpu_custom_call.1} parent=143 // pred_fallthru
          _
        %s2644 = sand.u32 %s358, 1
        %s2645 = sand.u32 %s358, 1
        %s2646 = smul.addr %s2645, 128
        %s2647 = scalar_lea.vmem [#allocation7], %s2646
        %s2648 = sand.u32 %s384, 1
        %s2649 = scalar_lea.sflag [#allocation9], %s2648
        %s2650 = sand.u32 %s384, 1
        %s2651 = smul.addr %s2650, 32
        %s2652 = scalar_lea.vmem [#allocation8], %s2651
        // Predicated region
        $region161: #{tpu_custom_call.1} parent=143 // pred_check
          %p2653 = pneg %p368
        $region162: #{tpu_custom_call.1} parent=143 // pred_check_branch
          %2655 = sbr.rel (%p2653) target = $region164
        $region163: #{tpu_custom_call.1} parent=143 // pred_region
          %s2656 = smul.u32 8, %s35
          %s2657 = smul.u32 2, %s34
          %s2658 = smul.addr %s2656, 4
          %s2659 = sadd.s32 %s2657, %s2658
          %s2660 = smul.addr %s2659, 8
          %s2661 = scalar_lea.vmem %s14, %s2660
          // Predicated region
          $region165: #{tpu_custom_call.1} parent=163 // pred_check
            _
          $region166: #{tpu_custom_call.1} parent=163 // pred_check_branch
            %2663 = sbr.rel (0) target = $region168
          $region167: #{tpu_custom_call.1} parent=163 // pred_region
            // Predicated region
            $region169: #{tpu_custom_call.1} parent=167 // pred_check
              _
            $region170: #{tpu_custom_call.1} parent=167 // pred_check_branch
              %2665 = sbr.rel (0) target = $region172
            $region171: #{tpu_custom_call.1} parent=167 // pred_region
              // Predicated region
              $region184: #{tpu_custom_call.1} parent=171 // pred_check
                _
              $region185: #{tpu_custom_call.1} parent=171 // pred_check_branch
                %2710 = sbr.rel (0) target = $region187
              $region186: #{tpu_custom_call.1} parent=171 // pred_region
                loop: start=0, step=1, limit=1
                $region188: #{tpu_custom_call.1} parent=186 // loop_pre_header
                  _
                $region189: #{tpu_custom_call.1} parent=186 // loop_header
                  %s2712 = sphi 0, %s2716
                  %p2713 = scmp.ge.s32.totalorder %s2712, 1
                  %s2717 = sphi %s2647, %s2647
                  %s2718 = sphi %s2661, %s2661
                $region190: #{tpu_custom_call.1} parent=186 // loop_header_branch
                  %2715 = sbr.rel (%p2713) target = $region194
                $region191: #{tpu_custom_call.1} parent=186 // loop_body
                  %v2719 = vld [vmem:[%s2717] sm:$0xff]
                  %2720 = vst [vmem:[%s2718] sm:$0xff] %v2719
                  %v2721 = vld [vmem:[%s2717 + $0x8] sm:$0xff]
                  %2722 = vst [vmem:[%s2718 + $0x8] sm:$0xff] %v2721
                  %v2723 = vld [vmem:[%s2717 + $0x10] sm:$0xff]
                  %2724 = vst [vmem:[%s2718 + $0x20] sm:$0xff] %v2723
                  %v2725 = vld [vmem:[%s2717 + $0x18] sm:$0xff]
                  %2726 = vst [vmem:[%s2718 + $0x28] sm:$0xff] %v2725
                  %v2727 = vld [vmem:[%s2717 + $0x20] sm:$0xff]
                  %2728 = vst [vmem:[%s2718 + $0x40] sm:$0xff] %v2727
                  %v2729 = vld [vmem:[%s2717 + $0x28] sm:$0xff]
                  %2730 = vst [vmem:[%s2718 + $0x48] sm:$0xff] %v2729
                  %v2731 = vld [vmem:[%s2717 + $0x30] sm:$0xff]
                  %2732 = vst [vmem:[%s2718 + $0x60] sm:$0xff] %v2731
                  %v2733 = vld [vmem:[%s2717 + $0x38] sm:$0xff]
                  %2734 = vst [vmem:[%s2718 + $0x68] sm:$0xff] %v2733
                  %v2735 = vld [vmem:[%s2717 + $0x40] sm:$0xff]
                  %2736 = vst [vmem:[%s2718 + $0x80] sm:$0xff] %v2735
                  %v2737 = vld [vmem:[%s2717 + $0x48] sm:$0xff]
                  %2738 = vst [vmem:[%s2718 + $0x88] sm:$0xff] %v2737
                  %v2739 = vld [vmem:[%s2717 + $0x50] sm:$0xff]
                  %2740 = vst [vmem:[%s2718 + $0xa0] sm:$0xff] %v2739
                  %v2741 = vld [vmem:[%s2717 + $0x58] sm:$0xff]
                  %2742 = vst [vmem:[%s2718 + $0xa8] sm:$0xff] %v2741
                  %v2743 = vld [vmem:[%s2717 + $0x60] sm:$0xff]
                  %2744 = vst [vmem:[%s2718 + $0xc0] sm:$0xff] %v2743
                  %v2745 = vld [vmem:[%s2717 + $0x68] sm:$0xff]
                  %2746 = vst [vmem:[%s2718 + $0xc8] sm:$0xff] %v2745
                  %v2747 = vld [vmem:[%s2717 + $0x70] sm:$0xff]
                  %2748 = vst [vmem:[%s2718 + $0xe0] sm:$0xff] %v2747
                  %v2749 = vld [vmem:[%s2717 + $0x78] sm:$0xff]
                  %2750 = vst [vmem:[%s2718 + $0xe8] sm:$0xff] %v2749
                $region192: #{tpu_custom_call.1} parent=186 // loop_footer
                  %s2716 = sadd.s32 1, %s2712
                $region193: #{tpu_custom_call.1} parent=186 // loop_footer_branch
                  %2711 = sbr.rel target = $region189
                $region194: #{tpu_custom_call.1} parent=186 // loop_exit
                  _
              $region187: #{tpu_custom_call.1} parent=171 // pred_fallthru
                _
              // Predicated region
              $region195: #{tpu_custom_call.1} parent=171 // pred_check
                _
              $region196: #{tpu_custom_call.1} parent=171 // pred_check_branch
                %2752 = sbr.rel target = $region198
              $region197: #{tpu_custom_call.1} parent=171 // pred_region
                _
              $region198: #{tpu_custom_call.1} parent=171 // pred_fallthru
                _
            $region172: #{tpu_custom_call.1} parent=167 // pred_fallthru
              _
            // Predicated region
            $region173: #{tpu_custom_call.1} parent=167 // pred_check
              _
            $region174: #{tpu_custom_call.1} parent=167 // pred_check_branch
              %2667 = sbr.rel target = $region176
            $region175: #{tpu_custom_call.1} parent=167 // pred_region
              loop: start=0, step=1, limit=1
              $region177: #{tpu_custom_call.1} parent=175 // loop_pre_header
                _
              $region178: #{tpu_custom_call.1} parent=175 // loop_header
                %s2670 = sphi 0, %s2674
                %p2671 = scmp.ge.s32.totalorder %s2670, 1
                %s2675 = sphi %s2647, %s2647
                %s2676 = sphi %s2661, %s2661
              $region179: #{tpu_custom_call.1} parent=175 // loop_header_branch
                %2673 = sbr.rel (%p2671) target = $region183
              $region180: #{tpu_custom_call.1} parent=175 // loop_body
                %v2677 = vld [vmem:[%s2675] sm:$0xff]
                %2678 = vst [vmem:[%s2676] sm:$0xff] %v2677
                %v2679 = vld [vmem:[%s2675 + $0x8] sm:$0xff]
                %2680 = vst [vmem:[%s2676 + $0x8] sm:$0xff] %v2679
                %v2681 = vld [vmem:[%s2675 + $0x10] sm:$0xff]
                %2682 = vst [vmem:[%s2676 + $0x20] sm:$0xff] %v2681
                %v2683 = vld [vmem:[%s2675 + $0x18] sm:$0xff]
                %2684 = vst [vmem:[%s2676 + $0x28] sm:$0xff] %v2683
                %v2685 = vld [vmem:[%s2675 + $0x20] sm:$0xff]
                %2686 = vst [vmem:[%s2676 + $0x40] sm:$0xff] %v2685
                %v2687 = vld [vmem:[%s2675 + $0x28] sm:$0xff]
                %2688 = vst [vmem:[%s2676 + $0x48] sm:$0xff] %v2687
                %v2689 = vld [vmem:[%s2675 + $0x30] sm:$0xff]
                %2690 = vst [vmem:[%s2676 + $0x60] sm:$0xff] %v2689
                %v2691 = vld [vmem:[%s2675 + $0x38] sm:$0xff]
                %2692 = vst [vmem:[%s2676 + $0x68] sm:$0xff] %v2691
                %v2693 = vld [vmem:[%s2675 + $0x40] sm:$0xff]
                %2694 = vst [vmem:[%s2676 + $0x80] sm:$0xff] %v2693
                %v2695 = vld [vmem:[%s2675 + $0x48] sm:$0xff]
                %2696 = vst [vmem:[%s2676 + $0x88] sm:$0xff] %v2695
                %v2697 = vld [vmem:[%s2675 + $0x50] sm:$0xff]
                %2698 = vst [vmem:[%s2676 + $0xa0] sm:$0xff] %v2697
                %v2699 = vld [vmem:[%s2675 + $0x58] sm:$0xff]
                %2700 = vst [vmem:[%s2676 + $0xa8] sm:$0xff] %v2699
                %v2701 = vld [vmem:[%s2675 + $0x60] sm:$0xff]
                %2702 = vst [vmem:[%s2676 + $0xc0] sm:$0xff] %v2701
                %v2703 = vld [vmem:[%s2675 + $0x68] sm:$0xff]
                %2704 = vst [vmem:[%s2676 + $0xc8] sm:$0xff] %v2703
                %v2705 = vld [vmem:[%s2675 + $0x70] sm:$0xff]
                %2706 = vst [vmem:[%s2676 + $0xe0] sm:$0xff] %v2705
                %v2707 = vld [vmem:[%s2675 + $0x78] sm:$0xff]
                %2708 = vst [vmem:[%s2676 + $0xe8] sm:$0xff] %v2707
              $region181: #{tpu_custom_call.1} parent=175 // loop_footer
                %s2674 = sadd.s32 1, %s2670
              $region182: #{tpu_custom_call.1} parent=175 // loop_footer_branch
                %2669 = sbr.rel target = $region178
              $region183: #{tpu_custom_call.1} parent=175 // loop_exit
                _
            $region176: #{tpu_custom_call.1} parent=167 // pred_fallthru
              _
          $region168: #{tpu_custom_call.1} parent=163 // pred_fallthru
            _
          %2753 = vnop
        $region164: #{tpu_custom_call.1} parent=143 // pred_fallthru
          _
        // Predicated region
        $region199: #{tpu_custom_call.1} parent=143 // pred_check
          %p2754 = pneg %p394
        $region200: #{tpu_custom_call.1} parent=143 // pred_check_branch
          %2756 = sbr.rel (%p2754) target = $region202
        $region201: #{tpu_custom_call.1} parent=143 // pred_region
          #allocation11 [shape = 'u32[6]{0}', space=smem, size = 0x18, scoped, tag = 'DMA stride descriptor']
          %s2757 = smul.u32 2, %s34
          %s2759 = ssub.s32 512, 512
          %2760 = vsyncadd %s2649, %s2759
          %s2761 = smul.addr %s2757, 128
          %s2762 = scalar_lea.hbm %s15, %s2761
          %s2764 = sshll.u32 1, 14
          %s2765 = sxor.u32 4294967295, %s2764
          %s2768 = sshll.u32 7, 18
          %s2769 = sxor.u32 4294967295, %s2768
          %s2770 = sand.u32 0, %s2769
          %s2772 = sor.u32 %s2770, 0
          %s2774 = sshll.u32 3, 24
          %s2775 = sxor.u32 4294967295, %s2774
          %s2776 = sand.u32 %s2772, %s2775
          %s2778 = sor.u32 %s2776, 0
          %s2779 = sshll.u32 %s2652, 4
          %s2780 = int_to_ptr.vmem [resolvable:$true] %s2779
          %2786 = sst [smem:[#allocation11]] 256
          %s2787 = scalar_lea.smem [#allocation11], 1
          %2788 = sst [smem:[%s2787]] 512
          %s2789 = scalar_lea.smem [#allocation11], 2
          %2790 = sst [smem:[%s2789]] 2
          %s2791 = scalar_lea.smem [#allocation11], 3
          %2792 = sst [smem:[%s2791]] 128
          %s2793 = scalar_lea.smem [#allocation11], 4
          %2794 = sst [smem:[%s2793]] 128
          %s2795 = scalar_lea.smem [#allocation11], 5
          %2796 = sst [smem:[%s2795]] 8
          %2798 = dma.general %s2780, 512, %s2762, %s2649, [#allocation10], [#allocation11], %s2778, 0
        $region202: #{tpu_custom_call.1} parent=143 // pred_fallthru
          _
      $region144: #{tpu_custom_call.1} parent=5 // pred_fallthru
        _
      %p2799 = scmp.le.s32.totalorder 2, %s25
      // Predicated region
      $region203: #{tpu_custom_call.1} parent=5 // pred_check
        %p2800 = pneg %p2799
      $region204: #{tpu_custom_call.1} parent=5 // pred_check_branch
        %2802 = sbr.rel (%p2800) target = $region206
      $region205: #{tpu_custom_call.1} parent=5 // pred_region
        %s2803 = ssub.s32 %s25, 2
        // Predicated region
        $region207: #{tpu_custom_call.1} parent=205 // pred_check
          %p2804 = pneg %p374
        $region208: #{tpu_custom_call.1} parent=205 // pred_check_branch
          %2806 = sbr.rel (%p2804) target = $region210
        $region209: #{tpu_custom_call.1} parent=205 // pred_region
          %s2807 = sand.u32 %s359, 1
          %s2808 = sand.u32 %s359, 1
          %s2809 = smul.addr %s2808, 128
          %s2810 = scalar_lea.vmem [#allocation7], %s2809
        $region210: #{tpu_custom_call.1} parent=205 // pred_fallthru
          _
        // Predicated region
        $region211: #{tpu_custom_call.1} parent=205 // pred_check
          %p2811 = pneg %p400
        $region212: #{tpu_custom_call.1} parent=205 // pred_check_branch
          %2813 = sbr.rel (%p2811) target = $region214
        $region213: #{tpu_custom_call.1} parent=205 // pred_region
          %s2814 = sand.u32 %s385, 1
          %s2815 = scalar_lea.sflag [#allocation9], %s2814
          %s2816 = sand.u32 %s385, 1
          %s2817 = smul.addr %s2816, 32
          %s2818 = scalar_lea.vmem [#allocation8], %s2817
          %2819 = dma.done %s2815, 512
        $region214: #{tpu_custom_call.1} parent=205 // pred_fallthru
          _
      $region206: #{tpu_custom_call.1} parent=5 // pred_fallthru
        _
    $region6: #{tpu_custom_call.1} parent=1 // loop_footer
      %s29 = sadd.s32 1, %s25
    $region7: #{tpu_custom_call.1} parent=1 // loop_footer_branch
      %24 = sbr.rel target = $region3
    $region8: #{tpu_custom_call.1} parent=1 // loop_exit
      _
    %2820 = vsyncpa [#allocation9], 1
    %s2821 = scalar_lea.sflag [#allocation9], 1
    %2822 = vsyncpa %s2821, 1

</llo_original>
